<compile_context>
chip_gen: v7x
topology: tpu7x:2x2x1
jax: 0.10.0
libtpu: 0.0.40
codegen_flags: <defaults>
</compile_context>

<pallas_src>
import jax
import jax.numpy as jnp
from jax import lax
from jax.experimental import pallas as pl
from jax.experimental.pallas import tpu as pltpu

# --- small, module-consistent sizes -----------------------------------------
N = 128          # nodes (single graph)
IN_FEATS = 64    # input node features
HIDDEN = 32      # hidden feats per head
HEADS = 4        # attention heads for gat1..gat3
OUT_FEATS = 16   # output classes (gat4, heads=1)
NUM_EDGES = 1024
_ATT_COLS = 128  # lane-dense padded width of the attention-coefficient matrix


# --- in-kernel building blocks (pure functions on values) --------------------
def _gat_layer(x, w, att, bias, adj_bias, *, heads, out_ch):
    """One GATConv layer (concat over heads), dense-adjacency formulation.

    x:        [N, Fin]
    w:        [Fin, heads*C]
    att:      [heads*C, 128]  col h = att_dst[h], col heads+h = att_src[h],
              remaining columns zero (lane-dense padding); block structure:
              rows h*C..(h+1)*C only.
    bias:     [1, heads*C]
    adj_bias: [N_dst, N_src] additive mask (0 on edges/self-loops, -1e30 else)
    """
    xp = jnp.dot(x, w, preferred_element_type=jnp.float32)          # [N, H*C]
    # All per-head (alpha_dst, alpha_src) logits in one lane-dense MXU matmul.
    alphas = jnp.dot(xp, att, preferred_element_type=jnp.float32)   # [N, 128]
    alphas_t = alphas.T                                             # [128, N], one XLU transpose

    outs = []
    for h in range(heads):                                          # static unroll
        lo = h * out_ch
        xp_h = xp[:, lo:lo + out_ch]                                # [N, C]
        a_dst = alphas[:, h:h + 1]                                  # [N, 1] (lane bcast)
        a_src = alphas_t[heads + h:heads + h + 1, :]                # [1, N] (sublane bcast)
        e = a_dst + a_src                                           # e[i,j] = dst[i]+src[j]
        e = jnp.maximum(e, 0.2 * e)                                 # LeakyReLU(0.2)
        e = e + adj_bias                                            # mask non-edges (add)
        e = e - jnp.max(e, axis=-1, keepdims=True)
        p = jnp.exp(e)                                              # unnormalized softmax
        row_sum = jnp.sum(p, axis=-1, keepdims=True)                # [N, 1]
        agg = jnp.dot(p, xp_h, preferred_element_type=jnp.float32)  # [N, C]
        # Fold normalization after the matmul: [N,1] reciprocal on the EUP.
        outs.append(agg * pl.reciprocal(row_sum, approx=True))
    out = outs[0] if heads == 1 else jnp.concatenate(outs, axis=-1)  # lane-dense
    return out + bias


def _graphnorm_elu(x, w, b, ms):
    """GraphNorm (single graph, eps=1e-5) fused with ELU(alpha=1)."""
    n = x.shape[0]
    mean = jnp.sum(x, axis=0, keepdims=True) * (1.0 / n)            # [1, F]
    shifted = x - ms * mean
    var = jnp.sum(shifted * shifted, axis=0, keepdims=True) * (1.0 / n)
    y = w * shifted * lax.rsqrt(var + 1e-5) + b
    neg = jnp.exp(jnp.minimum(y, 0.0)) - 1.0                        # ELU, no overflow
    return jnp.where(y > 0, y, neg)


# --- fused forward kernel -----------------------------------------------------
def _gat_fused_kernel(x_ref, adjb_ref, *refs):
    o_ref = refs[-1]
    p = refs[:-1]
    adj_bias = adjb_ref[...]                                        # loaded once
    h = x_ref[...]
    idx = 0
    for _ in range(3):                                              # gat1..3 + norm1..3
        w, att, b, nw, nb, nms = p[idx:idx + 6]
        idx += 6
        h = _gat_layer(h, w[...], att[...], b[...], adj_bias,
                       heads=HEADS, out_ch=HIDDEN)
        h = _graphnorm_elu(h, nw[...], nb[...], nms[...])
        # Dropout(0.2) is identity in eval mode.
    w, att, b = p[idx:idx + 3]                                      # gat4 (heads=1)
    h = _gat_layer(h, w[...], att[...], b[...], adj_bias,
                   heads=1, out_ch=OUT_FEATS)
    o_ref[...] = h                                                  # single store


# --- parameters (deterministic, in-script) ------------------------------------
def _build_att_matrix(att_src, att_dst):
    """[heads, C] x2 -> block-structured lane-dense [heads*C, 128]."""
    heads, c = att_src.shape
    m = jnp.zeros((heads * c, _ATT_COLS), jnp.float32)
    for h in range(heads):
        m = m.at[h * c:(h + 1) * c, h].set(att_dst[h])
        m = m.at[h * c:(h + 1) * c, heads + h].set(att_src[h])
    return m


def init_params(key):
    def glorot(k, shape):
        fan_in, fan_out = shape[-2], shape[-1]
        s = jnp.sqrt(6.0 / (fan_in + fan_out))
        return jax.random.uniform(k, shape, jnp.float32, -s, s)

    keys = iter(jax.random.split(key, 12))
    hh = HIDDEN * HEADS
    params = {}
    dims = [(IN_FEATS, HIDDEN, HEADS), (hh, HIDDEN, HEADS),
            (hh, HIDDEN, HEADS), (hh, OUT_FEATS, 1)]
    for i, (fin, c, h) in enumerate(dims, start=1):
        att_src = glorot(next(keys), (h, c))
        att_dst = glorot(next(keys), (h, c))
        params[f"gat{i}"] = dict(
            w=glorot(next(keys), (fin, h * c)),
            att=_build_att_matrix(att_src, att_dst),
            bias=jnp.zeros((1, h * c), jnp.float32),
        )
    for i in (1, 2, 3):
        params[f"norm{i}"] = dict(
            weight=jnp.ones((1, hh), jnp.float32),
            bias=jnp.zeros((1, hh), jnp.float32),
            mean_scale=jnp.ones((1, hh), jnp.float32),
        )
    return params


def _flatten_params(params):
    args = []
    for i in (1, 2, 3):
        g, nrm = params[f"gat{i}"], params[f"norm{i}"]
        args += [g["w"], g["att"], g["bias"],
                 nrm["weight"], nrm["bias"], nrm["mean_scale"]]
    g = params["gat4"]
    args += [g["w"], g["att"], g["bias"]]
    return args


# --- forward ------------------------------------------------------------------
def gat_forward(params, x, edge_index, batch):
    # Dropout(0.2) is identity in eval mode (forward-pass inference semantics).
    # GraphNorm assumes a single graph (batch == all zeros).
    # TODO(synk): multi-graph `batch` segment-wise GraphNorm not implemented.
    # TODO(synk): duplicate edges in edge_index collapse to one in the dense
    #             adjacency (PyG would count each duplicate in the softmax).
    del batch
    n = x.shape[0]
    adj = jnp.zeros((n, n), jnp.float32)
    adj = adj.at[edge_index[1], edge_index[0]].set(1.0)             # adj[dst, src]=1
    adj = adj.at[jnp.arange(n), jnp.arange(n)].set(1.0)             # add self loops
    # Additive attention mask: 0 on edges, -1e30 elsewhere (computed once).
    adj_bias = jnp.where(adj == 0.0, jnp.float32(-1e30), jnp.float32(0.0))

    args = [x, adj_bias] + _flatten_params(params)
    return pl.pallas_call(
        _gat_fused_kernel,
        out_shape=jax.ShapeDtypeStruct((n, OUT_FEATS), jnp.float32),
        in_specs=[pl.BlockSpec(memory_space=pltpu.MemorySpace.VMEM)] * len(args),
        out_specs=pl.BlockSpec(memory_space=pltpu.MemorySpace.VMEM),
    )(*args)


if __name__ == "__main__":
    key = jax.random.PRNGKey(0)
    k_param, k_x, k_e = jax.random.split(key, 3)

    params = init_params(k_param)
    x = jax.random.normal(k_x, (N, IN_FEATS), jnp.float32)
    edge_index = jax.random.randint(k_e, (2, NUM_EDGES), 0, N, jnp.int32)
    batch = jnp.zeros((N,), jnp.int32)  # single graph

    out = jax.jit(gat_forward)(params, x, edge_index, batch)
    out = jax.block_until_ready(out)
    assert out.shape == (N, OUT_FEATS)
    assert bool(jnp.all(jnp.isfinite(out)))
    print("KERNEL_OK")
</pallas_src>

<mosaic_0001>
module attributes {stable_mosaic.version = 11 : i64} {
  func.func @_gat_fused_kernel(%arg0: memref<128x64xf32, #tpu.memory_space<vmem>>, %arg1: memref<128x128xf32, #tpu.memory_space<vmem>>, %arg2: memref<64x128xf32, #tpu.memory_space<vmem>>, %arg3: memref<128x128xf32, #tpu.memory_space<vmem>>, %arg4: memref<1x128xf32, #tpu.memory_space<vmem>>, %arg5: memref<1x128xf32, #tpu.memory_space<vmem>>, %arg6: memref<1x128xf32, #tpu.memory_space<vmem>>, %arg7: memref<1x128xf32, #tpu.memory_space<vmem>>, %arg8: memref<128x128xf32, #tpu.memory_space<vmem>>, %arg9: memref<128x128xf32, #tpu.memory_space<vmem>>, %arg10: memref<1x128xf32, #tpu.memory_space<vmem>>, %arg11: memref<1x128xf32, #tpu.memory_space<vmem>>, %arg12: memref<1x128xf32, #tpu.memory_space<vmem>>, %arg13: memref<1x128xf32, #tpu.memory_space<vmem>>, %arg14: memref<128x128xf32, #tpu.memory_space<vmem>>, %arg15: memref<128x128xf32, #tpu.memory_space<vmem>>, %arg16: memref<1x128xf32, #tpu.memory_space<vmem>>, %arg17: memref<1x128xf32, #tpu.memory_space<vmem>>, %arg18: memref<1x128xf32, #tpu.memory_space<vmem>>, %arg19: memref<1x128xf32, #tpu.memory_space<vmem>>, %arg20: memref<128x16xf32, #tpu.memory_space<vmem>>, %arg21: memref<16x128xf32, #tpu.memory_space<vmem>>, %arg22: memref<1x16xf32, #tpu.memory_space<vmem>>, %arg23: memref<128x16xf32, #tpu.memory_space<vmem>>) attributes {dimension_semantics = [], scalar_prefetch = 0 : i64, scratch_operands = 0 : i64, tpu.core_type = #tpu.core_type<tc>} {
    %c0 = arith.constant 0 : index
    %c0_0 = arith.constant 0 : index
    %0 = vector.load %arg1[%c0, %c0_0] : memref<128x128xf32, #tpu.memory_space<vmem>>, vector<128x128xf32>
    %c0_1 = arith.constant 0 : index
    %c0_2 = arith.constant 0 : index
    %1 = vector.load %arg0[%c0_1, %c0_2] : memref<128x64xf32, #tpu.memory_space<vmem>>, vector<128x64xf32>
    %c0_3 = arith.constant 0 : index
    %c0_4 = arith.constant 0 : index
    %2 = vector.load %arg2[%c0_3, %c0_4] : memref<64x128xf32, #tpu.memory_space<vmem>>, vector<64x128xf32>
    %c0_5 = arith.constant 0 : index
    %c0_6 = arith.constant 0 : index
    %3 = vector.load %arg3[%c0_5, %c0_6] : memref<128x128xf32, #tpu.memory_space<vmem>>, vector<128x128xf32>
    %c0_7 = arith.constant 0 : index
    %c0_8 = arith.constant 0 : index
    %4 = vector.load %arg4[%c0_7, %c0_8] : memref<1x128xf32, #tpu.memory_space<vmem>>, vector<1x128xf32>
    %cst = arith.constant dense<0.000000e+00> : vector<128x128xf32>
    %5 = tpu.matmul %1, %2, %cst {dimension_numbers = #tpu.dot_dimension_numbers<[1], [0], [0], [1], [0, 0, 1, 1], [], []>} : vector<128x64xf32>, vector<64x128xf32>, vector<128x128xf32> -> vector<128x128xf32>
    %cst_9 = arith.constant dense<0.000000e+00> : vector<128x128xf32>
    %6 = tpu.matmul %5, %3, %cst_9 {dimension_numbers = #tpu.dot_dimension_numbers<[1], [0], [0], [1], [0, 0, 1, 1], [], []>} : vector<128x128xf32>, vector<128x128xf32>, vector<128x128xf32> -> vector<128x128xf32>
    %7 = tpu.transpose %6, [1, 0] : vector<128x128xf32> -> vector<128x128xf32>
    %8 = vector.extract_strided_slice %5 {offsets = [0, 0], sizes = [128, 32], strides = [1, 1]} : vector<128x128xf32> to vector<128x32xf32>
    %9 = vector.extract_strided_slice %6 {offsets = [0, 0], sizes = [128, 1], strides = [1, 1]} : vector<128x128xf32> to vector<128x1xf32>
    %10 = vector.extract_strided_slice %7 {offsets = [4, 0], sizes = [1, 128], strides = [1, 1]} : vector<128x128xf32> to vector<1x128xf32>
    %11 = vector.broadcast %9 : vector<128x1xf32> to vector<128x128xf32>
    %12 = vector.broadcast %10 : vector<1x128xf32> to vector<128x128xf32>
    %13 = arith.addf %11, %12 : vector<128x128xf32>
    %cst_10 = arith.constant 2.000000e-01 : f32
    %14 = vector.broadcast %cst_10 : f32 to vector<128x128xf32>
    %15 = arith.mulf %14, %13 : vector<128x128xf32>
    %16 = arith.maximumf %13, %15 : vector<128x128xf32>
    %17 = arith.addf %16, %0 : vector<128x128xf32>
    %cst_11 = arith.constant dense<0xFF800000> : vector<128xf32>
    %18 = vector.multi_reduction <maximumf>, %17, %cst_11 [1] : vector<128x128xf32> to vector<128xf32>
    %19 = vector.shape_cast %18 : vector<128xf32> to vector<128x1xf32>
    %20 = vector.broadcast %19 : vector<128x1xf32> to vector<128x128xf32>
    %21 = arith.subf %17, %20 : vector<128x128xf32>
    %22 = math.exp %21 : vector<128x128xf32>
    %cst_12 = arith.constant dense<0.000000e+00> : vector<128xf32>
    %23 = vector.multi_reduction <add>, %22, %cst_12 [1] : vector<128x128xf32> to vector<128xf32>
    %24 = vector.shape_cast %23 : vector<128xf32> to vector<128x1xf32>
    %cst_13 = arith.constant dense<0.000000e+00> : vector<128x32xf32>
    %25 = tpu.matmul %22, %8, %cst_13 {dimension_numbers = #tpu.dot_dimension_numbers<[1], [0], [0], [1], [0, 0, 1, 1], [], []>} : vector<128x128xf32>, vector<128x32xf32>, vector<128x32xf32> -> vector<128x32xf32>
    %26 = tpu.reciprocal %24 {approx = true} : vector<128x1xf32> -> vector<128x1xf32>
    %27 = vector.broadcast %26 : vector<128x1xf32> to vector<128x32xf32>
    %28 = arith.mulf %25, %27 : vector<128x32xf32>
    %29 = vector.extract_strided_slice %5 {offsets = [0, 32], sizes = [128, 32], strides = [1, 1]} : vector<128x128xf32> to vector<128x32xf32>
    %30 = vector.extract_strided_slice %6 {offsets = [0, 1], sizes = [128, 1], strides = [1, 1]} : vector<128x128xf32> to vector<128x1xf32>
    %31 = vector.extract_strided_slice %7 {offsets = [5, 0], sizes = [1, 128], strides = [1, 1]} : vector<128x128xf32> to vector<1x128xf32>
    %32 = vector.broadcast %30 : vector<128x1xf32> to vector<128x128xf32>
    %33 = vector.broadcast %31 : vector<1x128xf32> to vector<128x128xf32>
    %34 = arith.addf %32, %33 : vector<128x128xf32>
    %cst_14 = arith.constant 2.000000e-01 : f32
    %35 = vector.broadcast %cst_14 : f32 to vector<128x128xf32>
    %36 = arith.mulf %35, %34 : vector<128x128xf32>
    %37 = arith.maximumf %34, %36 : vector<128x128xf32>
    %38 = arith.addf %37, %0 : vector<128x128xf32>
    %cst_15 = arith.constant dense<0xFF800000> : vector<128xf32>
    %39 = vector.multi_reduction <maximumf>, %38, %cst_15 [1] : vector<128x128xf32> to vector<128xf32>
    %40 = vector.shape_cast %39 : vector<128xf32> to vector<128x1xf32>
    %41 = vector.broadcast %40 : vector<128x1xf32> to vector<128x128xf32>
    %42 = arith.subf %38, %41 : vector<128x128xf32>
    %43 = math.exp %42 : vector<128x128xf32>
    %cst_16 = arith.constant dense<0.000000e+00> : vector<128xf32>
    %44 = vector.multi_reduction <add>, %43, %cst_16 [1] : vector<128x128xf32> to vector<128xf32>
    %45 = vector.shape_cast %44 : vector<128xf32> to vector<128x1xf32>
    %cst_17 = arith.constant dense<0.000000e+00> : vector<128x32xf32>
    %46 = tpu.matmul %43, %29, %cst_17 {dimension_numbers = #tpu.dot_dimension_numbers<[1], [0], [0], [1], [0, 0, 1, 1], [], []>} : vector<128x128xf32>, vector<128x32xf32>, vector<128x32xf32> -> vector<128x32xf32>
    %47 = tpu.reciprocal %45 {approx = true} : vector<128x1xf32> -> vector<128x1xf32>
    %48 = vector.broadcast %47 : vector<128x1xf32> to vector<128x32xf32>
    %49 = arith.mulf %46, %48 : vector<128x32xf32>
    %50 = vector.extract_strided_slice %5 {offsets = [0, 64], sizes = [128, 32], strides = [1, 1]} : vector<128x128xf32> to vector<128x32xf32>
    %51 = vector.extract_strided_slice %6 {offsets = [0, 2], sizes = [128, 1], strides = [1, 1]} : vector<128x128xf32> to vector<128x1xf32>
    %52 = vector.extract_strided_slice %7 {offsets = [6, 0], sizes = [1, 128], strides = [1, 1]} : vector<128x128xf32> to vector<1x128xf32>
    %53 = vector.broadcast %51 : vector<128x1xf32> to vector<128x128xf32>
    %54 = vector.broadcast %52 : vector<1x128xf32> to vector<128x128xf32>
    %55 = arith.addf %53, %54 : vector<128x128xf32>
    %cst_18 = arith.constant 2.000000e-01 : f32
    %56 = vector.broadcast %cst_18 : f32 to vector<128x128xf32>
    %57 = arith.mulf %56, %55 : vector<128x128xf32>
    %58 = arith.maximumf %55, %57 : vector<128x128xf32>
    %59 = arith.addf %58, %0 : vector<128x128xf32>
    %cst_19 = arith.constant dense<0xFF800000> : vector<128xf32>
    %60 = vector.multi_reduction <maximumf>, %59, %cst_19 [1] : vector<128x128xf32> to vector<128xf32>
    %61 = vector.shape_cast %60 : vector<128xf32> to vector<128x1xf32>
    %62 = vector.broadcast %61 : vector<128x1xf32> to vector<128x128xf32>
    %63 = arith.subf %59, %62 : vector<128x128xf32>
    %64 = math.exp %63 : vector<128x128xf32>
    %cst_20 = arith.constant dense<0.000000e+00> : vector<128xf32>
    %65 = vector.multi_reduction <add>, %64, %cst_20 [1] : vector<128x128xf32> to vector<128xf32>
    %66 = vector.shape_cast %65 : vector<128xf32> to vector<128x1xf32>
    %cst_21 = arith.constant dense<0.000000e+00> : vector<128x32xf32>
    %67 = tpu.matmul %64, %50, %cst_21 {dimension_numbers = #tpu.dot_dimension_numbers<[1], [0], [0], [1], [0, 0, 1, 1], [], []>} : vector<128x128xf32>, vector<128x32xf32>, vector<128x32xf32> -> vector<128x32xf32>
    %68 = tpu.reciprocal %66 {approx = true} : vector<128x1xf32> -> vector<128x1xf32>
    %69 = vector.broadcast %68 : vector<128x1xf32> to vector<128x32xf32>
    %70 = arith.mulf %67, %69 : vector<128x32xf32>
    %71 = vector.extract_strided_slice %5 {offsets = [0, 96], sizes = [128, 32], strides = [1, 1]} : vector<128x128xf32> to vector<128x32xf32>
    %72 = vector.extract_strided_slice %6 {offsets = [0, 3], sizes = [128, 1], strides = [1, 1]} : vector<128x128xf32> to vector<128x1xf32>
    %73 = vector.extract_strided_slice %7 {offsets = [7, 0], sizes = [1, 128], strides = [1, 1]} : vector<128x128xf32> to vector<1x128xf32>
    %74 = vector.broadcast %72 : vector<128x1xf32> to vector<128x128xf32>
    %75 = vector.broadcast %73 : vector<1x128xf32> to vector<128x128xf32>
    %76 = arith.addf %74, %75 : vector<128x128xf32>
    %cst_22 = arith.constant 2.000000e-01 : f32
    %77 = vector.broadcast %cst_22 : f32 to vector<128x128xf32>
    %78 = arith.mulf %77, %76 : vector<128x128xf32>
    %79 = arith.maximumf %76, %78 : vector<128x128xf32>
    %80 = arith.addf %79, %0 : vector<128x128xf32>
    %cst_23 = arith.constant dense<0xFF800000> : vector<128xf32>
    %81 = vector.multi_reduction <maximumf>, %80, %cst_23 [1] : vector<128x128xf32> to vector<128xf32>
    %82 = vector.shape_cast %81 : vector<128xf32> to vector<128x1xf32>
    %83 = vector.broadcast %82 : vector<128x1xf32> to vector<128x128xf32>
    %84 = arith.subf %80, %83 : vector<128x128xf32>
    %85 = math.exp %84 : vector<128x128xf32>
    %cst_24 = arith.constant dense<0.000000e+00> : vector<128xf32>
    %86 = vector.multi_reduction <add>, %85, %cst_24 [1] : vector<128x128xf32> to vector<128xf32>
    %87 = vector.shape_cast %86 : vector<128xf32> to vector<128x1xf32>
    %cst_25 = arith.constant dense<0.000000e+00> : vector<128x32xf32>
    %88 = tpu.matmul %85, %71, %cst_25 {dimension_numbers = #tpu.dot_dimension_numbers<[1], [0], [0], [1], [0, 0, 1, 1], [], []>} : vector<128x128xf32>, vector<128x32xf32>, vector<128x32xf32> -> vector<128x32xf32>
    %89 = tpu.reciprocal %87 {approx = true} : vector<128x1xf32> -> vector<128x1xf32>
    %90 = vector.broadcast %89 : vector<128x1xf32> to vector<128x32xf32>
    %91 = arith.mulf %88, %90 : vector<128x32xf32>
    %92 = tpu.concatenate %28, %49, %70, %91 in 1 : vector<128x32xf32>, vector<128x32xf32>, vector<128x32xf32>, vector<128x32xf32> -> vector<128x128xf32>
    %93 = vector.broadcast %4 : vector<1x128xf32> to vector<128x128xf32>
    %94 = arith.addf %92, %93 : vector<128x128xf32>
    %c0_26 = arith.constant 0 : index
    %c0_27 = arith.constant 0 : index
    %95 = vector.load %arg5[%c0_26, %c0_27] : memref<1x128xf32, #tpu.memory_space<vmem>>, vector<1x128xf32>
    %c0_28 = arith.constant 0 : index
    %c0_29 = arith.constant 0 : index
    %96 = vector.load %arg6[%c0_28, %c0_29] : memref<1x128xf32, #tpu.memory_space<vmem>>, vector<1x128xf32>
    %c0_30 = arith.constant 0 : index
    %c0_31 = arith.constant 0 : index
    %97 = vector.load %arg7[%c0_30, %c0_31] : memref<1x128xf32, #tpu.memory_space<vmem>>, vector<1x128xf32>
    %cst_32 = arith.constant dense<0.000000e+00> : vector<128xf32>
    %98 = vector.multi_reduction <add>, %94, %cst_32 [0] : vector<128x128xf32> to vector<128xf32>
    %99 = vector.shape_cast %98 : vector<128xf32> to vector<1x128xf32>
    %cst_33 = arith.constant 7.812500e-03 : f32
    %100 = vector.broadcast %cst_33 : f32 to vector<1x128xf32>
    %101 = arith.mulf %99, %100 : vector<1x128xf32>
    %102 = arith.mulf %97, %101 : vector<1x128xf32>
    %103 = vector.broadcast %102 : vector<1x128xf32> to vector<128x128xf32>
    %104 = arith.subf %94, %103 : vector<128x128xf32>
    %105 = arith.mulf %104, %104 : vector<128x128xf32>
    %cst_34 = arith.constant dense<0.000000e+00> : vector<128xf32>
    %106 = vector.multi_reduction <add>, %105, %cst_34 [0] : vector<128x128xf32> to vector<128xf32>
    %107 = vector.shape_cast %106 : vector<128xf32> to vector<1x128xf32>
    %cst_35 = arith.constant 7.812500e-03 : f32
    %108 = vector.broadcast %cst_35 : f32 to vector<1x128xf32>
    %109 = arith.mulf %107, %108 : vector<1x128xf32>
    %110 = vector.broadcast %95 : vector<1x128xf32> to vector<128x128xf32>
    %111 = arith.mulf %110, %104 : vector<128x128xf32>
    %cst_36 = arith.constant 9.99999974E-6 : f32
    %112 = vector.broadcast %cst_36 : f32 to vector<1x128xf32>
    %113 = arith.addf %109, %112 : vector<1x128xf32>
    %114 = math.rsqrt %113 : vector<1x128xf32>
    %115 = vector.broadcast %114 : vector<1x128xf32> to vector<128x128xf32>
    %116 = arith.mulf %111, %115 : vector<128x128xf32>
    %117 = vector.broadcast %96 : vector<1x128xf32> to vector<128x128xf32>
    %118 = arith.addf %116, %117 : vector<128x128xf32>
    %cst_37 = arith.constant 0.000000e+00 : f32
    %119 = vector.broadcast %cst_37 : f32 to vector<128x128xf32>
    %120 = arith.minimumf %118, %119 : vector<128x128xf32>
    %121 = math.exp %120 : vector<128x128xf32>
    %cst_38 = arith.constant 1.000000e+00 : f32
    %122 = vector.broadcast %cst_38 : f32 to vector<128x128xf32>
    %123 = arith.subf %121, %122 : vector<128x128xf32>
    %cst_39 = arith.constant 0.000000e+00 : f32
    %124 = vector.broadcast %cst_39 : f32 to vector<128x128xf32>
    %125 = arith.cmpf ogt, %118, %124 : vector<128x128xf32>
    %126 = arith.select %125, %118, %123 : vector<128x128xi1>, vector<128x128xf32>
    %c0_40 = arith.constant 0 : index
    %c0_41 = arith.constant 0 : index
    %127 = vector.load %arg8[%c0_40, %c0_41] : memref<128x128xf32, #tpu.memory_space<vmem>>, vector<128x128xf32>
    %c0_42 = arith.constant 0 : index
    %c0_43 = arith.constant 0 : index
    %128 = vector.load %arg9[%c0_42, %c0_43] : memref<128x128xf32, #tpu.memory_space<vmem>>, vector<128x128xf32>
    %c0_44 = arith.constant 0 : index
    %c0_45 = arith.constant 0 : index
    %129 = vector.load %arg10[%c0_44, %c0_45] : memref<1x128xf32, #tpu.memory_space<vmem>>, vector<1x128xf32>
    %cst_46 = arith.constant dense<0.000000e+00> : vector<128x128xf32>
    %130 = tpu.matmul %126, %127, %cst_46 {dimension_numbers = #tpu.dot_dimension_numbers<[1], [0], [0], [1], [0, 0, 1, 1], [], []>} : vector<128x128xf32>, vector<128x128xf32>, vector<128x128xf32> -> vector<128x128xf32>
    %cst_47 = arith.constant dense<0.000000e+00> : vector<128x128xf32>
    %131 = tpu.matmul %130, %128, %cst_47 {dimension_numbers = #tpu.dot_dimension_numbers<[1], [0], [0], [1], [0, 0, 1, 1], [], []>} : vector<128x128xf32>, vector<128x128xf32>, vector<128x128xf32> -> vector<128x128xf32>
    %132 = tpu.transpose %131, [1, 0] : vector<128x128xf32> -> vector<128x128xf32>
    %133 = vector.extract_strided_slice %130 {offsets = [0, 0], sizes = [128, 32], strides = [1, 1]} : vector<128x128xf32> to vector<128x32xf32>
    %134 = vector.extract_strided_slice %131 {offsets = [0, 0], sizes = [128, 1], strides = [1, 1]} : vector<128x128xf32> to vector<128x1xf32>
    %135 = vector.extract_strided_slice %132 {offsets = [4, 0], sizes = [1, 128], strides = [1, 1]} : vector<128x128xf32> to vector<1x128xf32>
    %136 = vector.broadcast %134 : vector<128x1xf32> to vector<128x128xf32>
    %137 = vector.broadcast %135 : vector<1x128xf32> to vector<128x128xf32>
    %138 = arith.addf %136, %137 : vector<128x128xf32>
    %cst_48 = arith.constant 2.000000e-01 : f32
    %139 = vector.broadcast %cst_48 : f32 to vector<128x128xf32>
    %140 = arith.mulf %139, %138 : vector<128x128xf32>
    %141 = arith.maximumf %138, %140 : vector<128x128xf32>
    %142 = arith.addf %141, %0 : vector<128x128xf32>
    %cst_49 = arith.constant dense<0xFF800000> : vector<128xf32>
    %143 = vector.multi_reduction <maximumf>, %142, %cst_49 [1] : vector<128x128xf32> to vector<128xf32>
    %144 = vector.shape_cast %143 : vector<128xf32> to vector<128x1xf32>
    %145 = vector.broadcast %144 : vector<128x1xf32> to vector<128x128xf32>
    %146 = arith.subf %142, %145 : vector<128x128xf32>
    %147 = math.exp %146 : vector<128x128xf32>
    %cst_50 = arith.constant dense<0.000000e+00> : vector<128xf32>
    %148 = vector.multi_reduction <add>, %147, %cst_50 [1] : vector<128x128xf32> to vector<128xf32>
    %149 = vector.shape_cast %148 : vector<128xf32> to vector<128x1xf32>
    %cst_51 = arith.constant dense<0.000000e+00> : vector<128x32xf32>
    %150 = tpu.matmul %147, %133, %cst_51 {dimension_numbers = #tpu.dot_dimension_numbers<[1], [0], [0], [1], [0, 0, 1, 1], [], []>} : vector<128x128xf32>, vector<128x32xf32>, vector<128x32xf32> -> vector<128x32xf32>
    %151 = tpu.reciprocal %149 {approx = true} : vector<128x1xf32> -> vector<128x1xf32>
    %152 = vector.broadcast %151 : vector<128x1xf32> to vector<128x32xf32>
    %153 = arith.mulf %150, %152 : vector<128x32xf32>
    %154 = vector.extract_strided_slice %130 {offsets = [0, 32], sizes = [128, 32], strides = [1, 1]} : vector<128x128xf32> to vector<128x32xf32>
    %155 = vector.extract_strided_slice %131 {offsets = [0, 1], sizes = [128, 1], strides = [1, 1]} : vector<128x128xf32> to vector<128x1xf32>
    %156 = vector.extract_strided_slice %132 {offsets = [5, 0], sizes = [1, 128], strides = [1, 1]} : vector<128x128xf32> to vector<1x128xf32>
    %157 = vector.broadcast %155 : vector<128x1xf32> to vector<128x128xf32>
    %158 = vector.broadcast %156 : vector<1x128xf32> to vector<128x128xf32>
    %159 = arith.addf %157, %158 : vector<128x128xf32>
    %cst_52 = arith.constant 2.000000e-01 : f32
    %160 = vector.broadcast %cst_52 : f32 to vector<128x128xf32>
    %161 = arith.mulf %160, %159 : vector<128x128xf32>
    %162 = arith.maximumf %159, %161 : vector<128x128xf32>
    %163 = arith.addf %162, %0 : vector<128x128xf32>
    %cst_53 = arith.constant dense<0xFF800000> : vector<128xf32>
    %164 = vector.multi_reduction <maximumf>, %163, %cst_53 [1] : vector<128x128xf32> to vector<128xf32>
    %165 = vector.shape_cast %164 : vector<128xf32> to vector<128x1xf32>
    %166 = vector.broadcast %165 : vector<128x1xf32> to vector<128x128xf32>
    %167 = arith.subf %163, %166 : vector<128x128xf32>
    %168 = math.exp %167 : vector<128x128xf32>
    %cst_54 = arith.constant dense<0.000000e+00> : vector<128xf32>
    %169 = vector.multi_reduction <add>, %168, %cst_54 [1] : vector<128x128xf32> to vector<128xf32>
    %170 = vector.shape_cast %169 : vector<128xf32> to vector<128x1xf32>
    %cst_55 = arith.constant dense<0.000000e+00> : vector<128x32xf32>
    %171 = tpu.matmul %168, %154, %cst_55 {dimension_numbers = #tpu.dot_dimension_numbers<[1], [0], [0], [1], [0, 0, 1, 1], [], []>} : vector<128x128xf32>, vector<128x32xf32>, vector<128x32xf32> -> vector<128x32xf32>
    %172 = tpu.reciprocal %170 {approx = true} : vector<128x1xf32> -> vector<128x1xf32>
    %173 = vector.broadcast %172 : vector<128x1xf32> to vector<128x32xf32>
    %174 = arith.mulf %171, %173 : vector<128x32xf32>
    %175 = vector.extract_strided_slice %130 {offsets = [0, 64], sizes = [128, 32], strides = [1, 1]} : vector<128x128xf32> to vector<128x32xf32>
    %176 = vector.extract_strided_slice %131 {offsets = [0, 2], sizes = [128, 1], strides = [1, 1]} : vector<128x128xf32> to vector<128x1xf32>
    %177 = vector.extract_strided_slice %132 {offsets = [6, 0], sizes = [1, 128], strides = [1, 1]} : vector<128x128xf32> to vector<1x128xf32>
    %178 = vector.broadcast %176 : vector<128x1xf32> to vector<128x128xf32>
    %179 = vector.broadcast %177 : vector<1x128xf32> to vector<128x128xf32>
    %180 = arith.addf %178, %179 : vector<128x128xf32>
    %cst_56 = arith.constant 2.000000e-01 : f32
    %181 = vector.broadcast %cst_56 : f32 to vector<128x128xf32>
    %182 = arith.mulf %181, %180 : vector<128x128xf32>
    %183 = arith.maximumf %180, %182 : vector<128x128xf32>
    %184 = arith.addf %183, %0 : vector<128x128xf32>
    %cst_57 = arith.constant dense<0xFF800000> : vector<128xf32>
    %185 = vector.multi_reduction <maximumf>, %184, %cst_57 [1] : vector<128x128xf32> to vector<128xf32>
    %186 = vector.shape_cast %185 : vector<128xf32> to vector<128x1xf32>
    %187 = vector.broadcast %186 : vector<128x1xf32> to vector<128x128xf32>
    %188 = arith.subf %184, %187 : vector<128x128xf32>
    %189 = math.exp %188 : vector<128x128xf32>
    %cst_58 = arith.constant dense<0.000000e+00> : vector<128xf32>
    %190 = vector.multi_reduction <add>, %189, %cst_58 [1] : vector<128x128xf32> to vector<128xf32>
    %191 = vector.shape_cast %190 : vector<128xf32> to vector<128x1xf32>
    %cst_59 = arith.constant dense<0.000000e+00> : vector<128x32xf32>
    %192 = tpu.matmul %189, %175, %cst_59 {dimension_numbers = #tpu.dot_dimension_numbers<[1], [0], [0], [1], [0, 0, 1, 1], [], []>} : vector<128x128xf32>, vector<128x32xf32>, vector<128x32xf32> -> vector<128x32xf32>
    %193 = tpu.reciprocal %191 {approx = true} : vector<128x1xf32> -> vector<128x1xf32>
    %194 = vector.broadcast %193 : vector<128x1xf32> to vector<128x32xf32>
    %195 = arith.mulf %192, %194 : vector<128x32xf32>
    %196 = vector.extract_strided_slice %130 {offsets = [0, 96], sizes = [128, 32], strides = [1, 1]} : vector<128x128xf32> to vector<128x32xf32>
    %197 = vector.extract_strided_slice %131 {offsets = [0, 3], sizes = [128, 1], strides = [1, 1]} : vector<128x128xf32> to vector<128x1xf32>
    %198 = vector.extract_strided_slice %132 {offsets = [7, 0], sizes = [1, 128], strides = [1, 1]} : vector<128x128xf32> to vector<1x128xf32>
    %199 = vector.broadcast %197 : vector<128x1xf32> to vector<128x128xf32>
    %200 = vector.broadcast %198 : vector<1x128xf32> to vector<128x128xf32>
    %201 = arith.addf %199, %200 : vector<128x128xf32>
    %cst_60 = arith.constant 2.000000e-01 : f32
    %202 = vector.broadcast %cst_60 : f32 to vector<128x128xf32>
    %203 = arith.mulf %202, %201 : vector<128x128xf32>
    %204 = arith.maximumf %201, %203 : vector<128x128xf32>
    %205 = arith.addf %204, %0 : vector<128x128xf32>
    %cst_61 = arith.constant dense<0xFF800000> : vector<128xf32>
    %206 = vector.multi_reduction <maximumf>, %205, %cst_61 [1] : vector<128x128xf32> to vector<128xf32>
    %207 = vector.shape_cast %206 : vector<128xf32> to vector<128x1xf32>
    %208 = vector.broadcast %207 : vector<128x1xf32> to vector<128x128xf32>
    %209 = arith.subf %205, %208 : vector<128x128xf32>
    %210 = math.exp %209 : vector<128x128xf32>
    %cst_62 = arith.constant dense<0.000000e+00> : vector<128xf32>
    %211 = vector.multi_reduction <add>, %210, %cst_62 [1] : vector<128x128xf32> to vector<128xf32>
    %212 = vector.shape_cast %211 : vector<128xf32> to vector<128x1xf32>
    %cst_63 = arith.constant dense<0.000000e+00> : vector<128x32xf32>
    %213 = tpu.matmul %210, %196, %cst_63 {dimension_numbers = #tpu.dot_dimension_numbers<[1], [0], [0], [1], [0, 0, 1, 1], [], []>} : vector<128x128xf32>, vector<128x32xf32>, vector<128x32xf32> -> vector<128x32xf32>
    %214 = tpu.reciprocal %212 {approx = true} : vector<128x1xf32> -> vector<128x1xf32>
    %215 = vector.broadcast %214 : vector<128x1xf32> to vector<128x32xf32>
    %216 = arith.mulf %213, %215 : vector<128x32xf32>
    %217 = tpu.concatenate %153, %174, %195, %216 in 1 : vector<128x32xf32>, vector<128x32xf32>, vector<128x32xf32>, vector<128x32xf32> -> vector<128x128xf32>
    %218 = vector.broadcast %129 : vector<1x128xf32> to vector<128x128xf32>
    %219 = arith.addf %217, %218 : vector<128x128xf32>
    %c0_64 = arith.constant 0 : index
    %c0_65 = arith.constant 0 : index
    %220 = vector.load %arg11[%c0_64, %c0_65] : memref<1x128xf32, #tpu.memory_space<vmem>>, vector<1x128xf32>
    %c0_66 = arith.constant 0 : index
    %c0_67 = arith.constant 0 : index
    %221 = vector.load %arg12[%c0_66, %c0_67] : memref<1x128xf32, #tpu.memory_space<vmem>>, vector<1x128xf32>
    %c0_68 = arith.constant 0 : index
    %c0_69 = arith.constant 0 : index
    %222 = vector.load %arg13[%c0_68, %c0_69] : memref<1x128xf32, #tpu.memory_space<vmem>>, vector<1x128xf32>
    %cst_70 = arith.constant dense<0.000000e+00> : vector<128xf32>
    %223 = vector.multi_reduction <add>, %219, %cst_70 [0] : vector<128x128xf32> to vector<128xf32>
    %224 = vector.shape_cast %223 : vector<128xf32> to vector<1x128xf32>
    %cst_71 = arith.constant 7.812500e-03 : f32
    %225 = vector.broadcast %cst_71 : f32 to vector<1x128xf32>
    %226 = arith.mulf %224, %225 : vector<1x128xf32>
    %227 = arith.mulf %222, %226 : vector<1x128xf32>
    %228 = vector.broadcast %227 : vector<1x128xf32> to vector<128x128xf32>
    %229 = arith.subf %219, %228 : vector<128x128xf32>
    %230 = arith.mulf %229, %229 : vector<128x128xf32>
    %cst_72 = arith.constant dense<0.000000e+00> : vector<128xf32>
    %231 = vector.multi_reduction <add>, %230, %cst_72 [0] : vector<128x128xf32> to vector<128xf32>
    %232 = vector.shape_cast %231 : vector<128xf32> to vector<1x128xf32>
    %cst_73 = arith.constant 7.812500e-03 : f32
    %233 = vector.broadcast %cst_73 : f32 to vector<1x128xf32>
    %234 = arith.mulf %232, %233 : vector<1x128xf32>
    %235 = vector.broadcast %220 : vector<1x128xf32> to vector<128x128xf32>
    %236 = arith.mulf %235, %229 : vector<128x128xf32>
    %cst_74 = arith.constant 9.99999974E-6 : f32
    %237 = vector.broadcast %cst_74 : f32 to vector<1x128xf32>
    %238 = arith.addf %234, %237 : vector<1x128xf32>
    %239 = math.rsqrt %238 : vector<1x128xf32>
    %240 = vector.broadcast %239 : vector<1x128xf32> to vector<128x128xf32>
    %241 = arith.mulf %236, %240 : vector<128x128xf32>
    %242 = vector.broadcast %221 : vector<1x128xf32> to vector<128x128xf32>
    %243 = arith.addf %241, %242 : vector<128x128xf32>
    %cst_75 = arith.constant 0.000000e+00 : f32
    %244 = vector.broadcast %cst_75 : f32 to vector<128x128xf32>
    %245 = arith.minimumf %243, %244 : vector<128x128xf32>
    %246 = math.exp %245 : vector<128x128xf32>
    %cst_76 = arith.constant 1.000000e+00 : f32
    %247 = vector.broadcast %cst_76 : f32 to vector<128x128xf32>
    %248 = arith.subf %246, %247 : vector<128x128xf32>
    %cst_77 = arith.constant 0.000000e+00 : f32
    %249 = vector.broadcast %cst_77 : f32 to vector<128x128xf32>
    %250 = arith.cmpf ogt, %243, %249 : vector<128x128xf32>
    %251 = arith.select %250, %243, %248 : vector<128x128xi1>, vector<128x128xf32>
    %c0_78 = arith.constant 0 : index
    %c0_79 = arith.constant 0 : index
    %252 = vector.load %arg14[%c0_78, %c0_79] : memref<128x128xf32, #tpu.memory_space<vmem>>, vector<128x128xf32>
    %c0_80 = arith.constant 0 : index
    %c0_81 = arith.constant 0 : index
    %253 = vector.load %arg15[%c0_80, %c0_81] : memref<128x128xf32, #tpu.memory_space<vmem>>, vector<128x128xf32>
    %c0_82 = arith.constant 0 : index
    %c0_83 = arith.constant 0 : index
    %254 = vector.load %arg16[%c0_82, %c0_83] : memref<1x128xf32, #tpu.memory_space<vmem>>, vector<1x128xf32>
    %cst_84 = arith.constant dense<0.000000e+00> : vector<128x128xf32>
    %255 = tpu.matmul %251, %252, %cst_84 {dimension_numbers = #tpu.dot_dimension_numbers<[1], [0], [0], [1], [0, 0, 1, 1], [], []>} : vector<128x128xf32>, vector<128x128xf32>, vector<128x128xf32> -> vector<128x128xf32>
    %cst_85 = arith.constant dense<0.000000e+00> : vector<128x128xf32>
    %256 = tpu.matmul %255, %253, %cst_85 {dimension_numbers = #tpu.dot_dimension_numbers<[1], [0], [0], [1], [0, 0, 1, 1], [], []>} : vector<128x128xf32>, vector<128x128xf32>, vector<128x128xf32> -> vector<128x128xf32>
    %257 = tpu.transpose %256, [1, 0] : vector<128x128xf32> -> vector<128x128xf32>
    %258 = vector.extract_strided_slice %255 {offsets = [0, 0], sizes = [128, 32], strides = [1, 1]} : vector<128x128xf32> to vector<128x32xf32>
    %259 = vector.extract_strided_slice %256 {offsets = [0, 0], sizes = [128, 1], strides = [1, 1]} : vector<128x128xf32> to vector<128x1xf32>
    %260 = vector.extract_strided_slice %257 {offsets = [4, 0], sizes = [1, 128], strides = [1, 1]} : vector<128x128xf32> to vector<1x128xf32>
    %261 = vector.broadcast %259 : vector<128x1xf32> to vector<128x128xf32>
    %262 = vector.broadcast %260 : vector<1x128xf32> to vector<128x128xf32>
    %263 = arith.addf %261, %262 : vector<128x128xf32>
    %cst_86 = arith.constant 2.000000e-01 : f32
    %264 = vector.broadcast %cst_86 : f32 to vector<128x128xf32>
    %265 = arith.mulf %264, %263 : vector<128x128xf32>
    %266 = arith.maximumf %263, %265 : vector<128x128xf32>
    %267 = arith.addf %266, %0 : vector<128x128xf32>
    %cst_87 = arith.constant dense<0xFF800000> : vector<128xf32>
    %268 = vector.multi_reduction <maximumf>, %267, %cst_87 [1] : vector<128x128xf32> to vector<128xf32>
    %269 = vector.shape_cast %268 : vector<128xf32> to vector<128x1xf32>
    %270 = vector.broadcast %269 : vector<128x1xf32> to vector<128x128xf32>
    %271 = arith.subf %267, %270 : vector<128x128xf32>
    %272 = math.exp %271 : vector<128x128xf32>
    %cst_88 = arith.constant dense<0.000000e+00> : vector<128xf32>
    %273 = vector.multi_reduction <add>, %272, %cst_88 [1] : vector<128x128xf32> to vector<128xf32>
    %274 = vector.shape_cast %273 : vector<128xf32> to vector<128x1xf32>
    %cst_89 = arith.constant dense<0.000000e+00> : vector<128x32xf32>
    %275 = tpu.matmul %272, %258, %cst_89 {dimension_numbers = #tpu.dot_dimension_numbers<[1], [0], [0], [1], [0, 0, 1, 1], [], []>} : vector<128x128xf32>, vector<128x32xf32>, vector<128x32xf32> -> vector<128x32xf32>
    %276 = tpu.reciprocal %274 {approx = true} : vector<128x1xf32> -> vector<128x1xf32>
    %277 = vector.broadcast %276 : vector<128x1xf32> to vector<128x32xf32>
    %278 = arith.mulf %275, %277 : vector<128x32xf32>
    %279 = vector.extract_strided_slice %255 {offsets = [0, 32], sizes = [128, 32], strides = [1, 1]} : vector<128x128xf32> to vector<128x32xf32>
    %280 = vector.extract_strided_slice %256 {offsets = [0, 1], sizes = [128, 1], strides = [1, 1]} : vector<128x128xf32> to vector<128x1xf32>
    %281 = vector.extract_strided_slice %257 {offsets = [5, 0], sizes = [1, 128], strides = [1, 1]} : vector<128x128xf32> to vector<1x128xf32>
    %282 = vector.broadcast %280 : vector<128x1xf32> to vector<128x128xf32>
    %283 = vector.broadcast %281 : vector<1x128xf32> to vector<128x128xf32>
    %284 = arith.addf %282, %283 : vector<128x128xf32>
    %cst_90 = arith.constant 2.000000e-01 : f32
    %285 = vector.broadcast %cst_90 : f32 to vector<128x128xf32>
    %286 = arith.mulf %285, %284 : vector<128x128xf32>
    %287 = arith.maximumf %284, %286 : vector<128x128xf32>
    %288 = arith.addf %287, %0 : vector<128x128xf32>
    %cst_91 = arith.constant dense<0xFF800000> : vector<128xf32>
    %289 = vector.multi_reduction <maximumf>, %288, %cst_91 [1] : vector<128x128xf32> to vector<128xf32>
    %290 = vector.shape_cast %289 : vector<128xf32> to vector<128x1xf32>
    %291 = vector.broadcast %290 : vector<128x1xf32> to vector<128x128xf32>
    %292 = arith.subf %288, %291 : vector<128x128xf32>
    %293 = math.exp %292 : vector<128x128xf32>
    %cst_92 = arith.constant dense<0.000000e+00> : vector<128xf32>
    %294 = vector.multi_reduction <add>, %293, %cst_92 [1] : vector<128x128xf32> to vector<128xf32>
    %295 = vector.shape_cast %294 : vector<128xf32> to vector<128x1xf32>
    %cst_93 = arith.constant dense<0.000000e+00> : vector<128x32xf32>
    %296 = tpu.matmul %293, %279, %cst_93 {dimension_numbers = #tpu.dot_dimension_numbers<[1], [0], [0], [1], [0, 0, 1, 1], [], []>} : vector<128x128xf32>, vector<128x32xf32>, vector<128x32xf32> -> vector<128x32xf32>
    %297 = tpu.reciprocal %295 {approx = true} : vector<128x1xf32> -> vector<128x1xf32>
    %298 = vector.broadcast %297 : vector<128x1xf32> to vector<128x32xf32>
    %299 = arith.mulf %296, %298 : vector<128x32xf32>
    %300 = vector.extract_strided_slice %255 {offsets = [0, 64], sizes = [128, 32], strides = [1, 1]} : vector<128x128xf32> to vector<128x32xf32>
    %301 = vector.extract_strided_slice %256 {offsets = [0, 2], sizes = [128, 1], strides = [1, 1]} : vector<128x128xf32> to vector<128x1xf32>
    %302 = vector.extract_strided_slice %257 {offsets = [6, 0], sizes = [1, 128], strides = [1, 1]} : vector<128x128xf32> to vector<1x128xf32>
    %303 = vector.broadcast %301 : vector<128x1xf32> to vector<128x128xf32>
    %304 = vector.broadcast %302 : vector<1x128xf32> to vector<128x128xf32>
    %305 = arith.addf %303, %304 : vector<128x128xf32>
    %cst_94 = arith.constant 2.000000e-01 : f32
    %306 = vector.broadcast %cst_94 : f32 to vector<128x128xf32>
    %307 = arith.mulf %306, %305 : vector<128x128xf32>
    %308 = arith.maximumf %305, %307 : vector<128x128xf32>
    %309 = arith.addf %308, %0 : vector<128x128xf32>
    %cst_95 = arith.constant dense<0xFF800000> : vector<128xf32>
    %310 = vector.multi_reduction <maximumf>, %309, %cst_95 [1] : vector<128x128xf32> to vector<128xf32>
    %311 = vector.shape_cast %310 : vector<128xf32> to vector<128x1xf32>
    %312 = vector.broadcast %311 : vector<128x1xf32> to vector<128x128xf32>
    %313 = arith.subf %309, %312 : vector<128x128xf32>
    %314 = math.exp %313 : vector<128x128xf32>
    %cst_96 = arith.constant dense<0.000000e+00> : vector<128xf32>
    %315 = vector.multi_reduction <add>, %314, %cst_96 [1] : vector<128x128xf32> to vector<128xf32>
    %316 = vector.shape_cast %315 : vector<128xf32> to vector<128x1xf32>
    %cst_97 = arith.constant dense<0.000000e+00> : vector<128x32xf32>
    %317 = tpu.matmul %314, %300, %cst_97 {dimension_numbers = #tpu.dot_dimension_numbers<[1], [0], [0], [1], [0, 0, 1, 1], [], []>} : vector<128x128xf32>, vector<128x32xf32>, vector<128x32xf32> -> vector<128x32xf32>
    %318 = tpu.reciprocal %316 {approx = true} : vector<128x1xf32> -> vector<128x1xf32>
    %319 = vector.broadcast %318 : vector<128x1xf32> to vector<128x32xf32>
    %320 = arith.mulf %317, %319 : vector<128x32xf32>
    %321 = vector.extract_strided_slice %255 {offsets = [0, 96], sizes = [128, 32], strides = [1, 1]} : vector<128x128xf32> to vector<128x32xf32>
    %322 = vector.extract_strided_slice %256 {offsets = [0, 3], sizes = [128, 1], strides = [1, 1]} : vector<128x128xf32> to vector<128x1xf32>
    %323 = vector.extract_strided_slice %257 {offsets = [7, 0], sizes = [1, 128], strides = [1, 1]} : vector<128x128xf32> to vector<1x128xf32>
    %324 = vector.broadcast %322 : vector<128x1xf32> to vector<128x128xf32>
    %325 = vector.broadcast %323 : vector<1x128xf32> to vector<128x128xf32>
    %326 = arith.addf %324, %325 : vector<128x128xf32>
    %cst_98 = arith.constant 2.000000e-01 : f32
    %327 = vector.broadcast %cst_98 : f32 to vector<128x128xf32>
    %328 = arith.mulf %327, %326 : vector<128x128xf32>
    %329 = arith.maximumf %326, %328 : vector<128x128xf32>
    %330 = arith.addf %329, %0 : vector<128x128xf32>
    %cst_99 = arith.constant dense<0xFF800000> : vector<128xf32>
    %331 = vector.multi_reduction <maximumf>, %330, %cst_99 [1] : vector<128x128xf32> to vector<128xf32>
    %332 = vector.shape_cast %331 : vector<128xf32> to vector<128x1xf32>
    %333 = vector.broadcast %332 : vector<128x1xf32> to vector<128x128xf32>
    %334 = arith.subf %330, %333 : vector<128x128xf32>
    %335 = math.exp %334 : vector<128x128xf32>
    %cst_100 = arith.constant dense<0.000000e+00> : vector<128xf32>
    %336 = vector.multi_reduction <add>, %335, %cst_100 [1] : vector<128x128xf32> to vector<128xf32>
    %337 = vector.shape_cast %336 : vector<128xf32> to vector<128x1xf32>
    %cst_101 = arith.constant dense<0.000000e+00> : vector<128x32xf32>
    %338 = tpu.matmul %335, %321, %cst_101 {dimension_numbers = #tpu.dot_dimension_numbers<[1], [0], [0], [1], [0, 0, 1, 1], [], []>} : vector<128x128xf32>, vector<128x32xf32>, vector<128x32xf32> -> vector<128x32xf32>
    %339 = tpu.reciprocal %337 {approx = true} : vector<128x1xf32> -> vector<128x1xf32>
    %340 = vector.broadcast %339 : vector<128x1xf32> to vector<128x32xf32>
    %341 = arith.mulf %338, %340 : vector<128x32xf32>
    %342 = tpu.concatenate %278, %299, %320, %341 in 1 : vector<128x32xf32>, vector<128x32xf32>, vector<128x32xf32>, vector<128x32xf32> -> vector<128x128xf32>
    %343 = vector.broadcast %254 : vector<1x128xf32> to vector<128x128xf32>
    %344 = arith.addf %342, %343 : vector<128x128xf32>
    %c0_102 = arith.constant 0 : index
    %c0_103 = arith.constant 0 : index
    %345 = vector.load %arg17[%c0_102, %c0_103] : memref<1x128xf32, #tpu.memory_space<vmem>>, vector<1x128xf32>
    %c0_104 = arith.constant 0 : index
    %c0_105 = arith.constant 0 : index
    %346 = vector.load %arg18[%c0_104, %c0_105] : memref<1x128xf32, #tpu.memory_space<vmem>>, vector<1x128xf32>
    %c0_106 = arith.constant 0 : index
    %c0_107 = arith.constant 0 : index
    %347 = vector.load %arg19[%c0_106, %c0_107] : memref<1x128xf32, #tpu.memory_space<vmem>>, vector<1x128xf32>
    %cst_108 = arith.constant dense<0.000000e+00> : vector<128xf32>
    %348 = vector.multi_reduction <add>, %344, %cst_108 [0] : vector<128x128xf32> to vector<128xf32>
    %349 = vector.shape_cast %348 : vector<128xf32> to vector<1x128xf32>
    %cst_109 = arith.constant 7.812500e-03 : f32
    %350 = vector.broadcast %cst_109 : f32 to vector<1x128xf32>
    %351 = arith.mulf %349, %350 : vector<1x128xf32>
    %352 = arith.mulf %347, %351 : vector<1x128xf32>
    %353 = vector.broadcast %352 : vector<1x128xf32> to vector<128x128xf32>
    %354 = arith.subf %344, %353 : vector<128x128xf32>
    %355 = arith.mulf %354, %354 : vector<128x128xf32>
    %cst_110 = arith.constant dense<0.000000e+00> : vector<128xf32>
    %356 = vector.multi_reduction <add>, %355, %cst_110 [0] : vector<128x128xf32> to vector<128xf32>
    %357 = vector.shape_cast %356 : vector<128xf32> to vector<1x128xf32>
    %cst_111 = arith.constant 7.812500e-03 : f32
    %358 = vector.broadcast %cst_111 : f32 to vector<1x128xf32>
    %359 = arith.mulf %357, %358 : vector<1x128xf32>
    %360 = vector.broadcast %345 : vector<1x128xf32> to vector<128x128xf32>
    %361 = arith.mulf %360, %354 : vector<128x128xf32>
    %cst_112 = arith.constant 9.99999974E-6 : f32
    %362 = vector.broadcast %cst_112 : f32 to vector<1x128xf32>
    %363 = arith.addf %359, %362 : vector<1x128xf32>
    %364 = math.rsqrt %363 : vector<1x128xf32>
    %365 = vector.broadcast %364 : vector<1x128xf32> to vector<128x128xf32>
    %366 = arith.mulf %361, %365 : vector<128x128xf32>
    %367 = vector.broadcast %346 : vector<1x128xf32> to vector<128x128xf32>
    %368 = arith.addf %366, %367 : vector<128x128xf32>
    %cst_113 = arith.constant 0.000000e+00 : f32
    %369 = vector.broadcast %cst_113 : f32 to vector<128x128xf32>
    %370 = arith.minimumf %368, %369 : vector<128x128xf32>
    %371 = math.exp %370 : vector<128x128xf32>
    %cst_114 = arith.constant 1.000000e+00 : f32
    %372 = vector.broadcast %cst_114 : f32 to vector<128x128xf32>
    %373 = arith.subf %371, %372 : vector<128x128xf32>
    %cst_115 = arith.constant 0.000000e+00 : f32
    %374 = vector.broadcast %cst_115 : f32 to vector<128x128xf32>
    %375 = arith.cmpf ogt, %368, %374 : vector<128x128xf32>
    %376 = arith.select %375, %368, %373 : vector<128x128xi1>, vector<128x128xf32>
    %c0_116 = arith.constant 0 : index
    %c0_117 = arith.constant 0 : index
    %377 = vector.load %arg20[%c0_116, %c0_117] : memref<128x16xf32, #tpu.memory_space<vmem>>, vector<128x16xf32>
    %c0_118 = arith.constant 0 : index
    %c0_119 = arith.constant 0 : index
    %378 = vector.load %arg21[%c0_118, %c0_119] : memref<16x128xf32, #tpu.memory_space<vmem>>, vector<16x128xf32>
    %c0_120 = arith.constant 0 : index
    %c0_121 = arith.constant 0 : index
    %379 = vector.load %arg22[%c0_120, %c0_121] : memref<1x16xf32, #tpu.memory_space<vmem>>, vector<1x16xf32>
    %cst_122 = arith.constant dense<0.000000e+00> : vector<128x16xf32>
    %380 = tpu.matmul %376, %377, %cst_122 {dimension_numbers = #tpu.dot_dimension_numbers<[1], [0], [0], [1], [0, 0, 1, 1], [], []>} : vector<128x128xf32>, vector<128x16xf32>, vector<128x16xf32> -> vector<128x16xf32>
    %cst_123 = arith.constant dense<0.000000e+00> : vector<128x128xf32>
    %381 = tpu.matmul %380, %378, %cst_123 {dimension_numbers = #tpu.dot_dimension_numbers<[1], [0], [0], [1], [0, 0, 1, 1], [], []>} : vector<128x16xf32>, vector<16x128xf32>, vector<128x128xf32> -> vector<128x128xf32>
    %382 = tpu.transpose %381, [1, 0] : vector<128x128xf32> -> vector<128x128xf32>
    %383 = vector.extract_strided_slice %381 {offsets = [0, 0], sizes = [128, 1], strides = [1, 1]} : vector<128x128xf32> to vector<128x1xf32>
    %384 = vector.extract_strided_slice %382 {offsets = [1, 0], sizes = [1, 128], strides = [1, 1]} : vector<128x128xf32> to vector<1x128xf32>
    %385 = vector.broadcast %383 : vector<128x1xf32> to vector<128x128xf32>
    %386 = vector.broadcast %384 : vector<1x128xf32> to vector<128x128xf32>
    %387 = arith.addf %385, %386 : vector<128x128xf32>
    %cst_124 = arith.constant 2.000000e-01 : f32
    %388 = vector.broadcast %cst_124 : f32 to vector<128x128xf32>
    %389 = arith.mulf %388, %387 : vector<128x128xf32>
    %390 = arith.maximumf %387, %389 : vector<128x128xf32>
    %391 = arith.addf %390, %0 : vector<128x128xf32>
    %cst_125 = arith.constant dense<0xFF800000> : vector<128xf32>
    %392 = vector.multi_reduction <maximumf>, %391, %cst_125 [1] : vector<128x128xf32> to vector<128xf32>
    %393 = vector.shape_cast %392 : vector<128xf32> to vector<128x1xf32>
    %394 = vector.broadcast %393 : vector<128x1xf32> to vector<128x128xf32>
    %395 = arith.subf %391, %394 : vector<128x128xf32>
    %396 = math.exp %395 : vector<128x128xf32>
    %cst_126 = arith.constant dense<0.000000e+00> : vector<128xf32>
    %397 = vector.multi_reduction <add>, %396, %cst_126 [1] : vector<128x128xf32> to vector<128xf32>
    %398 = vector.shape_cast %397 : vector<128xf32> to vector<128x1xf32>
    %cst_127 = arith.constant dense<0.000000e+00> : vector<128x16xf32>
    %399 = tpu.matmul %396, %380, %cst_127 {dimension_numbers = #tpu.dot_dimension_numbers<[1], [0], [0], [1], [0, 0, 1, 1], [], []>} : vector<128x128xf32>, vector<128x16xf32>, vector<128x16xf32> -> vector<128x16xf32>
    %400 = tpu.reciprocal %398 {approx = true} : vector<128x1xf32> -> vector<128x1xf32>
    %401 = vector.broadcast %400 : vector<128x1xf32> to vector<128x16xf32>
    %402 = arith.mulf %399, %401 : vector<128x16xf32>
    %403 = vector.broadcast %379 : vector<1x16xf32> to vector<128x16xf32>
    %404 = arith.addf %402, %403 : vector<128x16xf32>
    %c0_128 = arith.constant 0 : index
    %c0_129 = arith.constant 0 : index
    %405 = vector.load %arg23[%c0_128, %c0_129] : memref<128x16xf32, #tpu.memory_space<vmem>>, vector<128x16xf32>
    tpu.vector_store %arg23[%c0_128, %c0_129], %404 {strides = array<i32>} : memref<128x16xf32, #tpu.memory_space<vmem>>, vector<128x16xf32>,
    return
  }
}

</mosaic_0001>

<llo_original>
// kernel: gat_forward.1
$region0: #{gat_forward.1}
  #allocation0 [shape = 'u32[]', space=smem, size = 0x4, offset = 0x4, fixed_abs, tag = 'smem constant byte address 0x4 - core index']
  #allocation1 [shape = 'u32[144,128]{1,0:T(1,128)}', space=vmem, size = 0x12000, scoped, tag = 'internal scratch']
  %s0 = inlined_call_operand.vmem [shape: f32[128,64], index: 0, kind: input, shape index: {}]
  %s1 = inlined_call_operand.vmem [shape: f32[128,128], index: 1, kind: input, shape index: {}]
  %s2 = inlined_call_operand.vmem [shape: f32[64,128], index: 2, kind: input, shape index: {}]
  %s3 = inlined_call_operand.vmem [shape: f32[128,128], index: 3, kind: input, shape index: {}]
  %s4 = inlined_call_operand.vmem [shape: f32[1,128], index: 4, kind: input, shape index: {}]
  %s5 = inlined_call_operand.vmem [shape: f32[1,128], index: 5, kind: input, shape index: {}]
  %s6 = inlined_call_operand.vmem [shape: f32[1,128], index: 6, kind: input, shape index: {}]
  %s7 = inlined_call_operand.vmem [shape: f32[1,128], index: 7, kind: input, shape index: {}]
  %s8 = inlined_call_operand.vmem [shape: f32[128,128], index: 8, kind: input, shape index: {}]
  %s9 = inlined_call_operand.vmem [shape: f32[128,128], index: 9, kind: input, shape index: {}]
  %s10 = inlined_call_operand.vmem [shape: f32[1,128], index: 10, kind: input, shape index: {}]
  %s11 = inlined_call_operand.vmem [shape: f32[1,128], index: 11, kind: input, shape index: {}]
  %s12 = inlined_call_operand.vmem [shape: f32[1,128], index: 12, kind: input, shape index: {}]
  %s13 = inlined_call_operand.vmem [shape: f32[1,128], index: 13, kind: input, shape index: {}]
  %s14 = inlined_call_operand.vmem [shape: f32[128,128], index: 14, kind: input, shape index: {}]
  %s15 = inlined_call_operand.vmem [shape: f32[128,128], index: 15, kind: input, shape index: {}]
  %s16 = inlined_call_operand.vmem [shape: f32[1,128], index: 16, kind: input, shape index: {}]
  %s17 = inlined_call_operand.vmem [shape: f32[1,128], index: 17, kind: input, shape index: {}]
  %s18 = inlined_call_operand.vmem [shape: f32[1,128], index: 18, kind: input, shape index: {}]
  %s19 = inlined_call_operand.vmem [shape: f32[1,128], index: 19, kind: input, shape index: {}]
  %s20 = inlined_call_operand.vmem [shape: f32[128,16], index: 20, kind: input, shape index: {}]
  %s21 = inlined_call_operand.vmem [shape: f32[16,128], index: 21, kind: input, shape index: {}]
  %s22 = inlined_call_operand.vmem [shape: f32[1,16], index: 22, kind: input, shape index: {}]
  %s23 = inlined_call_operand.vmem [shape: f32[128,16], index: 23, kind: output, shape index: {}]
  %s24 = sld [smem:[#allocation0]]
  $region102: #{gat_forward.1} parent=0
    _
  %s26 = ssub.s32 1, %s24
  %s27 = scalar_select 0, %s26, %s24
  // Predicated region
  $region2: #{gat_forward.1} parent=0 // pred_check
    _
  $region3: #{gat_forward.1} parent=0 // pred_check_branch
    %29 = sbr.rel (0) target = $region5
  $region4: #{gat_forward.1} parent=0 // pred_region
    _
  $region5: #{gat_forward.1} parent=0 // pred_fallthru
    _
  // Predicated region
  $region6: #{gat_forward.1} parent=0 // pred_check
    _
  $region7: #{gat_forward.1} parent=0 // pred_check_branch
    %31 = sbr.rel (0) target = $region9
  $region8: #{gat_forward.1} parent=0 // pred_region
    _
  $region9: #{gat_forward.1} parent=0 // pred_fallthru
    _
  // Predicated region
  $region10: #{gat_forward.1} parent=0 // pred_check
    _
  $region11: #{gat_forward.1} parent=0 // pred_check_branch
    %33 = sbr.rel (0) target = $region13
  $region12: #{gat_forward.1} parent=0 // pred_region
    _
  $region13: #{gat_forward.1} parent=0 // pred_fallthru
    _
  // Predicated region
  $region14: #{gat_forward.1} parent=0 // pred_check
    _
  $region15: #{gat_forward.1} parent=0 // pred_check_branch
    %35 = sbr.rel (0) target = $region17
  $region16: #{gat_forward.1} parent=0 // pred_region
    _
  $region17: #{gat_forward.1} parent=0 // pred_fallthru
    _
  // Predicated region
  $region18: #{gat_forward.1} parent=0 // pred_check
    _
  $region19: #{gat_forward.1} parent=0 // pred_check_branch
    %37 = sbr.rel (0) target = $region21
  $region20: #{gat_forward.1} parent=0 // pred_region
    _
  $region21: #{gat_forward.1} parent=0 // pred_fallthru
    _
  // Predicated region
  $region22: #{gat_forward.1} parent=0 // pred_check
    _
  $region23: #{gat_forward.1} parent=0 // pred_check_branch
    %39 = sbr.rel (0) target = $region25
  $region24: #{gat_forward.1} parent=0 // pred_region
    _
  $region25: #{gat_forward.1} parent=0 // pred_fallthru
    _
  // Predicated region
  $region26: #{gat_forward.1} parent=0 // pred_check
    _
  $region27: #{gat_forward.1} parent=0 // pred_check_branch
    %41 = sbr.rel (0) target = $region29
  $region28: #{gat_forward.1} parent=0 // pred_region
    _
  $region29: #{gat_forward.1} parent=0 // pred_fallthru
    _
  // Predicated region
  $region30: #{gat_forward.1} parent=0 // pred_check
    _
  $region31: #{gat_forward.1} parent=0 // pred_check_branch
    %43 = sbr.rel (0) target = $region33
  $region32: #{gat_forward.1} parent=0 // pred_region
    _
  $region33: #{gat_forward.1} parent=0 // pred_fallthru
    _
  // Predicated region
  $region34: #{gat_forward.1} parent=0 // pred_check
    _
  $region35: #{gat_forward.1} parent=0 // pred_check_branch
    %45 = sbr.rel (0) target = $region37
  $region36: #{gat_forward.1} parent=0 // pred_region
    _
  $region37: #{gat_forward.1} parent=0 // pred_fallthru
    _
  // Predicated region
  $region38: #{gat_forward.1} parent=0 // pred_check
    _
  $region39: #{gat_forward.1} parent=0 // pred_check_branch
    %47 = sbr.rel (0) target = $region41
  $region40: #{gat_forward.1} parent=0 // pred_region
    _
  $region41: #{gat_forward.1} parent=0 // pred_fallthru
    _
  // Predicated region
  $region42: #{gat_forward.1} parent=0 // pred_check
    _
  $region43: #{gat_forward.1} parent=0 // pred_check_branch
    %49 = sbr.rel (0) target = $region45
  $region44: #{gat_forward.1} parent=0 // pred_region
    _
  $region45: #{gat_forward.1} parent=0 // pred_fallthru
    _
  // Predicated region
  $region46: #{gat_forward.1} parent=0 // pred_check
    _
  $region47: #{gat_forward.1} parent=0 // pred_check_branch
    %51 = sbr.rel (0) target = $region49
  $region48: #{gat_forward.1} parent=0 // pred_region
    _
  $region49: #{gat_forward.1} parent=0 // pred_fallthru
    _
  // Predicated region
  $region50: #{gat_forward.1} parent=0 // pred_check
    _
  $region51: #{gat_forward.1} parent=0 // pred_check_branch
    %53 = sbr.rel (0) target = $region53
  $region52: #{gat_forward.1} parent=0 // pred_region
    _
  $region53: #{gat_forward.1} parent=0 // pred_fallthru
    _
  // Predicated region
  $region54: #{gat_forward.1} parent=0 // pred_check
    _
  $region55: #{gat_forward.1} parent=0 // pred_check_branch
    %55 = sbr.rel (0) target = $region57
  $region56: #{gat_forward.1} parent=0 // pred_region
    _
  $region57: #{gat_forward.1} parent=0 // pred_fallthru
    _
  // Predicated region
  $region58: #{gat_forward.1} parent=0 // pred_check
    _
  $region59: #{gat_forward.1} parent=0 // pred_check_branch
    %57 = sbr.rel (0) target = $region61
  $region60: #{gat_forward.1} parent=0 // pred_region
    _
  $region61: #{gat_forward.1} parent=0 // pred_fallthru
    _
  // Predicated region
  $region62: #{gat_forward.1} parent=0 // pred_check
    _
  $region63: #{gat_forward.1} parent=0 // pred_check_branch
    %59 = sbr.rel (0) target = $region65
  $region64: #{gat_forward.1} parent=0 // pred_region
    _
  $region65: #{gat_forward.1} parent=0 // pred_fallthru
    _
  // Predicated region
  $region66: #{gat_forward.1} parent=0 // pred_check
    _
  $region67: #{gat_forward.1} parent=0 // pred_check_branch
    %61 = sbr.rel (0) target = $region69
  $region68: #{gat_forward.1} parent=0 // pred_region
    _
  $region69: #{gat_forward.1} parent=0 // pred_fallthru
    _
  // Predicated region
  $region70: #{gat_forward.1} parent=0 // pred_check
    _
  $region71: #{gat_forward.1} parent=0 // pred_check_branch
    %63 = sbr.rel (0) target = $region73
  $region72: #{gat_forward.1} parent=0 // pred_region
    _
  $region73: #{gat_forward.1} parent=0 // pred_fallthru
    _
  // Predicated region
  $region74: #{gat_forward.1} parent=0 // pred_check
    _
  $region75: #{gat_forward.1} parent=0 // pred_check_branch
    %65 = sbr.rel (0) target = $region77
  $region76: #{gat_forward.1} parent=0 // pred_region
    _
  $region77: #{gat_forward.1} parent=0 // pred_fallthru
    _
  // Predicated region
  $region78: #{gat_forward.1} parent=0 // pred_check
    _
  $region79: #{gat_forward.1} parent=0 // pred_check_branch
    %67 = sbr.rel (0) target = $region81
  $region80: #{gat_forward.1} parent=0 // pred_region
    _
  $region81: #{gat_forward.1} parent=0 // pred_fallthru
    _
  // Predicated region
  $region82: #{gat_forward.1} parent=0 // pred_check
    _
  $region83: #{gat_forward.1} parent=0 // pred_check_branch
    %69 = sbr.rel (0) target = $region85
  $region84: #{gat_forward.1} parent=0 // pred_region
    _
  $region85: #{gat_forward.1} parent=0 // pred_fallthru
    _
  // Predicated region
  $region86: #{gat_forward.1} parent=0 // pred_check
    _
  $region87: #{gat_forward.1} parent=0 // pred_check_branch
    %71 = sbr.rel (0) target = $region89
  $region88: #{gat_forward.1} parent=0 // pred_region
    _
  $region89: #{gat_forward.1} parent=0 // pred_fallthru
    _
  // Predicated region
  $region90: #{gat_forward.1} parent=0 // pred_check
    _
  $region91: #{gat_forward.1} parent=0 // pred_check_branch
    %73 = sbr.rel (0) target = $region93
  $region92: #{gat_forward.1} parent=0 // pred_region
    _
  $region93: #{gat_forward.1} parent=0 // pred_fallthru
    _
  %v74 = vld [vmem:[%s1] sm:$0xff]
  %v75 = vld [vmem:[%s1 + $0x8] sm:$0xff]
  %v76 = vld [vmem:[%s1 + $0x10] sm:$0xff]
  %v77 = vld [vmem:[%s1 + $0x18] sm:$0xff]
  %v78 = vld [vmem:[%s1 + $0x20] sm:$0xff]
  %v79 = vld [vmem:[%s1 + $0x28] sm:$0xff]
  %v80 = vld [vmem:[%s1 + $0x30] sm:$0xff]
  %v81 = vld [vmem:[%s1 + $0x38] sm:$0xff]
  %v82 = vld [vmem:[%s1 + $0x40] sm:$0xff]
  %v83 = vld [vmem:[%s1 + $0x48] sm:$0xff]
  %v84 = vld [vmem:[%s1 + $0x50] sm:$0xff]
  %v85 = vld [vmem:[%s1 + $0x58] sm:$0xff]
  %v86 = vld [vmem:[%s1 + $0x60] sm:$0xff]
  %v87 = vld [vmem:[%s1 + $0x68] sm:$0xff]
  %v88 = vld [vmem:[%s1 + $0x70] sm:$0xff]
  %v89 = vld [vmem:[%s1 + $0x78] sm:$0xff]
  %v90 = vld [vmem:[%s0] sm:$0xff]
  %v91 = vld [vmem:[%s0 + $0x8] sm:$0xff]
  %v92 = vld [vmem:[%s0 + $0x10] sm:$0xff]
  %v93 = vld [vmem:[%s0 + $0x18] sm:$0xff]
  %v94 = vld [vmem:[%s0 + $0x20] sm:$0xff]
  %v95 = vld [vmem:[%s0 + $0x28] sm:$0xff]
  %v96 = vld [vmem:[%s0 + $0x30] sm:$0xff]
  %v97 = vld [vmem:[%s0 + $0x38] sm:$0xff]
  %v98 = vld [vmem:[%s0 + $0x40] sm:$0xff]
  %v99 = vld [vmem:[%s0 + $0x48] sm:$0xff]
  %v100 = vld [vmem:[%s0 + $0x50] sm:$0xff]
  %v101 = vld [vmem:[%s0 + $0x58] sm:$0xff]
  %v102 = vld [vmem:[%s0 + $0x60] sm:$0xff]
  %v103 = vld [vmem:[%s0 + $0x68] sm:$0xff]
  %v104 = vld [vmem:[%s0 + $0x70] sm:$0xff]
  %v105 = vld [vmem:[%s0 + $0x78] sm:$0xff]
  %v106 = vld [vmem:[%s2] sm:$0xff]
  %v107 = vld [vmem:[%s2 + $0x8] sm:$0xff]
  %v108 = vld [vmem:[%s2 + $0x10] sm:$0xff]
  %v109 = vld [vmem:[%s2 + $0x18] sm:$0xff]
  %v110 = vld [vmem:[%s2 + $0x20] sm:$0xff]
  %v111 = vld [vmem:[%s2 + $0x28] sm:$0xff]
  %v112 = vld [vmem:[%s2 + $0x30] sm:$0xff]
  %v113 = vld [vmem:[%s2 + $0x38] sm:$0xff]
  %v114 = vld [vmem:[%s3] sm:$0xff]
  %v115 = vld [vmem:[%s3 + $0x8] sm:$0xff]
  %v116 = vld [vmem:[%s3 + $0x10] sm:$0xff]
  %v117 = vld [vmem:[%s3 + $0x18] sm:$0xff]
  %v118 = vld [vmem:[%s3 + $0x20] sm:$0xff]
  %v119 = vld [vmem:[%s3 + $0x28] sm:$0xff]
  %v120 = vld [vmem:[%s3 + $0x30] sm:$0xff]
  %v121 = vld [vmem:[%s3 + $0x38] sm:$0xff]
  %v122 = vld [vmem:[%s3 + $0x40] sm:$0xff]
  %v123 = vld [vmem:[%s3 + $0x48] sm:$0xff]
  %v124 = vld [vmem:[%s3 + $0x50] sm:$0xff]
  %v125 = vld [vmem:[%s3 + $0x58] sm:$0xff]
  %v126 = vld [vmem:[%s3 + $0x60] sm:$0xff]
  %v127 = vld [vmem:[%s3 + $0x68] sm:$0xff]
  %v128 = vld [vmem:[%s3 + $0x70] sm:$0xff]
  %v129 = vld [vmem:[%s3 + $0x78] sm:$0xff]
  %v130 = vld [vmem:[%s4] sm:$0x1]
  %vm131 = vcmask 523264
  %v133 = vsel %vm131, %v90, 0
  %v136 = vsel %vm131, %v91, 0
  %v139 = vsel %vm131, %v92, 0
  %v142 = vsel %vm131, %v93, 0
  %v145 = vsel %vm131, %v94, 0
  %v148 = vsel %vm131, %v95, 0
  %v151 = vsel %vm131, %v96, 0
  %v154 = vsel %vm131, %v97, 0
  %v157 = vsel %vm131, %v98, 0
  %v160 = vsel %vm131, %v99, 0
  %v163 = vsel %vm131, %v100, 0
  %v166 = vsel %vm131, %v101, 0
  %v169 = vsel %vm131, %v102, 0
  %v172 = vsel %vm131, %v103, 0
  %v175 = vsel %vm131, %v104, 0
  %v178 = vsel %vm131, %v105, 0
  %180 = vmatprep.subr.mxu0 0.0
  %181 = vmatpush1.msra.mxu0 %v106
  %182 = vmatprep.subr.mxu0 0.0
  %183 = vmatpush1.msra.mxu0 %v107
  %184 = vmatprep.subr.mxu0 0.0
  %185 = vmatpush1.msra.mxu0 %v108
  %186 = vmatprep.subr.mxu0 0.0
  %187 = vmatpush1.msra.mxu0 %v109
  %188 = vmatprep.subr.mxu0 0.0
  %189 = vmatpush1.msra.mxu0 %v110
  %190 = vmatprep.subr.mxu0 0.0
  %191 = vmatpush1.msra.mxu0 %v111
  %192 = vmatprep.subr.mxu0 0.0
  %193 = vmatpush1.msra.mxu0 %v112
  %194 = vmatprep.subr.mxu0 0.0
  %195 = vmatpush1.msra.mxu0 %v113
  %196 = vmatprep.subr.mxu0 0.0
  %197 = vmatpush1.msra.mxu0 0.0
  %198 = vmatprep.subr.mxu0 0.0
  %199 = vmatpush1.msra.mxu0 0.0
  %200 = vmatprep.subr.mxu0 0.0
  %201 = vmatpush1.msra.mxu0 0.0
  %202 = vmatprep.subr.mxu0 0.0
  %203 = vmatpush1.msra.mxu0 0.0
  %204 = vmatprep.subr.mxu0 0.0
  %205 = vmatpush1.msra.mxu0 0.0
  %206 = vmatprep.subr.mxu0 0.0
  %207 = vmatpush1.msra.mxu0 0.0
  %208 = vmatprep.subr.mxu0 0.0
  %209 = vmatpush1.msra.mxu0 0.0
  %210 = vmatprep.subr.mxu0 0.0
  %211 = vmatpush1.msra.mxu0 0.0
  %212 = vmatprep.subr.mxu0 0.0
  %213 = vmatpush1.msra.mxu0 0.0
  %214 = vmatprep.subr.mxu0 0.0
  %215 = vmatpush1.msra.mxu0 0.0
  %216 = vmatprep.subr.mxu0 0.0
  %217 = vmatpush1.msra.mxu0 0.0
  %218 = vmatprep.subr.mxu0 0.0
  %219 = vmatpush1.msra.mxu0 0.0
  %220 = vmatprep.subr.mxu0 0.0
  %221 = vmatpush1.msra.mxu0 0.0
  %222 = vmatprep.subr.mxu0 0.0
  %223 = vmatpush1.msra.mxu0 0.0
  %224 = vmatprep.subr.mxu0 0.0
  %225 = vmatpush1.msra.mxu0 0.0
  %226 = vmatprep.subr.mxu0 0.0
  %227 = vmatpush1.msra.mxu0 0.0
  %228 = vmatprep.subr.mxu0 0.0
  %229 = vmatpush1.msra.mxu0 0.0
  %230 = vmatprep.subr.mxu0 0.0
  %231 = vmatpush1.msra.mxu0 0.0
  %232 = vmatprep.subr.mxu0 0.0
  %233 = vmatpush1.msra.mxu0 0.0
  %234 = vmatprep.subr.mxu0 0.0
  %235 = vmatpush1.msra.mxu0 0.0
  %236 = vmatprep.subr.mxu0 0.0
  %237 = vmatpush1.msra.mxu0 0.0
  %238 = vmatprep.subr.mxu0 0.0
  %239 = vmatpush1.msra.mxu0 0.0
  %240 = vmatprep.subr.mxu0 0.0
  %241 = vmatpush1.msra.mxu0 0.0
  %242 = vmatprep.subr.mxu0 0.0
  %243 = vmatpush1.msra.mxu0 0.0
  %244 = vmatprep.mubr.f32.mxu0 0.0
  %245 = vmatmul.mubr.f32.gmra.mrb[0].mxu0 %v133
  %v246 = vpop.f32.mrb[0].mxu0
  %v247 = vadd.f32 0.0, %v246
  %v248 = vpop.f32.mrb[0].mxu0
  %249 = vmatprep.mubr.f32.mxu0 0.0
  %250 = vmatmul.mubr.f32.gmra.mrb[0].mxu0 %v136
  %v251 = vpop.f32.mrb[0].mxu0
  %v252 = vadd.f32 0.0, %v251
  %v253 = vpop.f32.mrb[0].mxu0
  %254 = vmatprep.mubr.f32.mxu0 0.0
  %255 = vmatmul.mubr.f32.gmra.mrb[0].mxu0 %v139
  %v256 = vpop.f32.mrb[0].mxu0
  %v257 = vadd.f32 0.0, %v256
  %v258 = vpop.f32.mrb[0].mxu0
  %259 = vmatprep.mubr.f32.mxu0 0.0
  %260 = vmatmul.mubr.f32.gmra.mrb[0].mxu0 %v142
  %v261 = vpop.f32.mrb[0].mxu0
  %v262 = vadd.f32 0.0, %v261
  %v263 = vpop.f32.mrb[0].mxu0
  %264 = vmatprep.mubr.f32.mxu0 0.0
  %265 = vmatmul.mubr.f32.gmra.mrb[0].mxu0 %v145
  %v266 = vpop.f32.mrb[0].mxu0
  %v267 = vadd.f32 0.0, %v266
  %v268 = vpop.f32.mrb[0].mxu0
  %269 = vmatprep.mubr.f32.mxu0 0.0
  %270 = vmatmul.mubr.f32.gmra.mrb[0].mxu0 %v148
  %v271 = vpop.f32.mrb[0].mxu0
  %v272 = vadd.f32 0.0, %v271
  %v273 = vpop.f32.mrb[0].mxu0
  %274 = vmatprep.mubr.f32.mxu0 0.0
  %275 = vmatmul.mubr.f32.gmra.mrb[0].mxu0 %v151
  %v276 = vpop.f32.mrb[0].mxu0
  %v277 = vadd.f32 0.0, %v276
  %v278 = vpop.f32.mrb[0].mxu0
  %279 = vmatprep.mubr.f32.mxu0 0.0
  %280 = vmatmul.mubr.f32.gmra.mrb[0].mxu0 %v154
  %v281 = vpop.f32.mrb[0].mxu0
  %v282 = vadd.f32 0.0, %v281
  %v283 = vpop.f32.mrb[0].mxu0
  %284 = vmatprep.mubr.f32.mxu0 0.0
  %285 = vmatmul.mubr.f32.gmra.mrb[0].mxu0 %v157
  %v286 = vpop.f32.mrb[0].mxu0
  %v287 = vadd.f32 0.0, %v286
  %v288 = vpop.f32.mrb[0].mxu0
  %289 = vmatprep.mubr.f32.mxu0 0.0
  %290 = vmatmul.mubr.f32.gmra.mrb[0].mxu0 %v160
  %v291 = vpop.f32.mrb[0].mxu0
  %v292 = vadd.f32 0.0, %v291
  %v293 = vpop.f32.mrb[0].mxu0
  %294 = vmatprep.mubr.f32.mxu0 0.0
  %295 = vmatmul.mubr.f32.gmra.mrb[0].mxu0 %v163
  %v296 = vpop.f32.mrb[0].mxu0
  %v297 = vadd.f32 0.0, %v296
  %v298 = vpop.f32.mrb[0].mxu0
  %299 = vmatprep.mubr.f32.mxu0 0.0
  %300 = vmatmul.mubr.f32.gmra.mrb[0].mxu0 %v166
  %v301 = vpop.f32.mrb[0].mxu0
  %v302 = vadd.f32 0.0, %v301
  %v303 = vpop.f32.mrb[0].mxu0
  %304 = vmatprep.mubr.f32.mxu0 0.0
  %305 = vmatmul.mubr.f32.gmra.mrb[0].mxu0 %v169
  %v306 = vpop.f32.mrb[0].mxu0
  %v307 = vadd.f32 0.0, %v306
  %v308 = vpop.f32.mrb[0].mxu0
  %309 = vmatprep.mubr.f32.mxu0 0.0
  %310 = vmatmul.mubr.f32.gmra.mrb[0].mxu0 %v172
  %v311 = vpop.f32.mrb[0].mxu0
  %v312 = vadd.f32 0.0, %v311
  %v313 = vpop.f32.mrb[0].mxu0
  %314 = vmatprep.mubr.f32.mxu0 0.0
  %315 = vmatmul.mubr.f32.gmra.mrb[0].mxu0 %v175
  %v316 = vpop.f32.mrb[0].mxu0
  %v317 = vadd.f32 0.0, %v316
  %v318 = vpop.f32.mrb[0].mxu0
  %319 = vmatprep.mubr.f32.mxu0 0.0
  %320 = vmatmul.mubr.f32.gmra.mrb[0].mxu0 %v178
  %v321 = vpop.f32.mrb[0].mxu0
  %v322 = vadd.f32 0.0, %v321
  %v323 = vpop.f32.mrb[0].mxu0
  %324 = vdwg.mxu0
  %325 = vmatprep.subr.mxu0 0.0
  %326 = vmatpush1.msra.mxu0 %v114
  %327 = vmatprep.subr.mxu0 0.0
  %328 = vmatpush1.msra.mxu0 %v115
  %329 = vmatprep.subr.mxu0 0.0
  %330 = vmatpush1.msra.mxu0 %v116
  %331 = vmatprep.subr.mxu0 0.0
  %332 = vmatpush1.msra.mxu0 %v117
  %333 = vmatprep.subr.mxu0 0.0
  %334 = vmatpush1.msra.mxu0 %v118
  %335 = vmatprep.subr.mxu0 0.0
  %336 = vmatpush1.msra.mxu0 %v119
  %337 = vmatprep.subr.mxu0 0.0
  %338 = vmatpush1.msra.mxu0 %v120
  %339 = vmatprep.subr.mxu0 0.0
  %340 = vmatpush1.msra.mxu0 %v121
  %341 = vmatprep.subr.mxu0 0.0
  %342 = vmatpush1.msra.mxu0 %v122
  %343 = vmatprep.subr.mxu0 0.0
  %344 = vmatpush1.msra.mxu0 %v123
  %345 = vmatprep.subr.mxu0 0.0
  %346 = vmatpush1.msra.mxu0 %v124
  %347 = vmatprep.subr.mxu0 0.0
  %348 = vmatpush1.msra.mxu0 %v125
  %349 = vmatprep.subr.mxu0 0.0
  %350 = vmatpush1.msra.mxu0 %v126
  %351 = vmatprep.subr.mxu0 0.0
  %352 = vmatpush1.msra.mxu0 %v127
  %353 = vmatprep.subr.mxu0 0.0
  %354 = vmatpush1.msra.mxu0 %v128
  %355 = vmatprep.subr.mxu0 0.0
  %356 = vmatpush1.msra.mxu0 %v129
  %357 = vmatprep.subr.mxu0 0.0
  %358 = vmatpush1.msra.mxu0 0.0
  %359 = vmatprep.subr.mxu0 0.0
  %360 = vmatpush1.msra.mxu0 0.0
  %361 = vmatprep.subr.mxu0 0.0
  %362 = vmatpush1.msra.mxu0 0.0
  %363 = vmatprep.subr.mxu0 0.0
  %364 = vmatpush1.msra.mxu0 0.0
  %365 = vmatprep.subr.mxu0 0.0
  %366 = vmatpush1.msra.mxu0 0.0
  %367 = vmatprep.subr.mxu0 0.0
  %368 = vmatpush1.msra.mxu0 0.0
  %369 = vmatprep.subr.mxu0 0.0
  %370 = vmatpush1.msra.mxu0 0.0
  %371 = vmatprep.subr.mxu0 0.0
  %372 = vmatpush1.msra.mxu0 0.0
  %373 = vmatprep.subr.mxu0 0.0
  %374 = vmatpush1.msra.mxu0 0.0
  %375 = vmatprep.subr.mxu0 0.0
  %376 = vmatpush1.msra.mxu0 0.0
  %377 = vmatprep.subr.mxu0 0.0
  %378 = vmatpush1.msra.mxu0 0.0
  %379 = vmatprep.subr.mxu0 0.0
  %380 = vmatpush1.msra.mxu0 0.0
  %381 = vmatprep.subr.mxu0 0.0
  %382 = vmatpush1.msra.mxu0 0.0
  %383 = vmatprep.subr.mxu0 0.0
  %384 = vmatpush1.msra.mxu0 0.0
  %385 = vmatprep.subr.mxu0 0.0
  %386 = vmatpush1.msra.mxu0 0.0
  %387 = vmatprep.subr.mxu0 0.0
  %388 = vmatpush1.msra.mxu0 0.0
  %389 = vmatprep.mubr.f32.mxu0 0.0
  %390 = vmatmul.mubr.f32.gmra.mrb[0].mxu0 %v247
  %v391 = vpop.f32.mrb[0].mxu0
  %v392 = vadd.f32 0.0, %v391
  %v393 = vpop.f32.mrb[0].mxu0
  %394 = vmatprep.mubr.f32.mxu0 0.0
  %395 = vmatmul.mubr.f32.gmra.mrb[0].mxu0 %v252
  %v396 = vpop.f32.mrb[0].mxu0
  %v397 = vadd.f32 0.0, %v396
  %v398 = vpop.f32.mrb[0].mxu0
  %399 = vmatprep.mubr.f32.mxu0 0.0
  %400 = vmatmul.mubr.f32.gmra.mrb[0].mxu0 %v257
  %v401 = vpop.f32.mrb[0].mxu0
  %v402 = vadd.f32 0.0, %v401
  %v403 = vpop.f32.mrb[0].mxu0
  %404 = vmatprep.mubr.f32.mxu0 0.0
  %405 = vmatmul.mubr.f32.gmra.mrb[0].mxu0 %v262
  %v406 = vpop.f32.mrb[0].mxu0
  %v407 = vadd.f32 0.0, %v406
  %v408 = vpop.f32.mrb[0].mxu0
  %409 = vmatprep.mubr.f32.mxu0 0.0
  %410 = vmatmul.mubr.f32.gmra.mrb[0].mxu0 %v267
  %v411 = vpop.f32.mrb[0].mxu0
  %v412 = vadd.f32 0.0, %v411
  %v413 = vpop.f32.mrb[0].mxu0
  %414 = vmatprep.mubr.f32.mxu0 0.0
  %415 = vmatmul.mubr.f32.gmra.mrb[0].mxu0 %v272
  %v416 = vpop.f32.mrb[0].mxu0
  %v417 = vadd.f32 0.0, %v416
  %v418 = vpop.f32.mrb[0].mxu0
  %419 = vmatprep.mubr.f32.mxu0 0.0
  %420 = vmatmul.mubr.f32.gmra.mrb[0].mxu0 %v277
  %v421 = vpop.f32.mrb[0].mxu0
  %v422 = vadd.f32 0.0, %v421
  %v423 = vpop.f32.mrb[0].mxu0
  %424 = vmatprep.mubr.f32.mxu0 0.0
  %425 = vmatmul.mubr.f32.gmra.mrb[0].mxu0 %v282
  %v426 = vpop.f32.mrb[0].mxu0
  %v427 = vadd.f32 0.0, %v426
  %v428 = vpop.f32.mrb[0].mxu0
  %429 = vmatprep.mubr.f32.mxu0 0.0
  %430 = vmatmul.mubr.f32.gmra.mrb[0].mxu0 %v287
  %v431 = vpop.f32.mrb[0].mxu0
  %v432 = vadd.f32 0.0, %v431
  %v433 = vpop.f32.mrb[0].mxu0
  %434 = vmatprep.mubr.f32.mxu0 0.0
  %435 = vmatmul.mubr.f32.gmra.mrb[0].mxu0 %v292
  %v436 = vpop.f32.mrb[0].mxu0
  %v437 = vadd.f32 0.0, %v436
  %v438 = vpop.f32.mrb[0].mxu0
  %439 = vmatprep.mubr.f32.mxu0 0.0
  %440 = vmatmul.mubr.f32.gmra.mrb[0].mxu0 %v297
  %v441 = vpop.f32.mrb[0].mxu0
  %v442 = vadd.f32 0.0, %v441
  %v443 = vpop.f32.mrb[0].mxu0
  %444 = vmatprep.mubr.f32.mxu0 0.0
  %445 = vmatmul.mubr.f32.gmra.mrb[0].mxu0 %v302
  %v446 = vpop.f32.mrb[0].mxu0
  %v447 = vadd.f32 0.0, %v446
  %v448 = vpop.f32.mrb[0].mxu0
  %449 = vmatprep.mubr.f32.mxu0 0.0
  %450 = vmatmul.mubr.f32.gmra.mrb[0].mxu0 %v307
  %v451 = vpop.f32.mrb[0].mxu0
  %v452 = vadd.f32 0.0, %v451
  %v453 = vpop.f32.mrb[0].mxu0
  %454 = vmatprep.mubr.f32.mxu0 0.0
  %455 = vmatmul.mubr.f32.gmra.mrb[0].mxu0 %v312
  %v456 = vpop.f32.mrb[0].mxu0
  %v457 = vadd.f32 0.0, %v456
  %v458 = vpop.f32.mrb[0].mxu0
  %459 = vmatprep.mubr.f32.mxu0 0.0
  %460 = vmatmul.mubr.f32.gmra.mrb[0].mxu0 %v317
  %v461 = vpop.f32.mrb[0].mxu0
  %v462 = vadd.f32 0.0, %v461
  %v463 = vpop.f32.mrb[0].mxu0
  %464 = vmatprep.mubr.f32.mxu0 0.0
  %465 = vmatmul.mubr.f32.gmra.mrb[0].mxu0 %v322
  %v466 = vpop.f32.mrb[0].mxu0
  %v467 = vadd.f32 0.0, %v466
  %v468 = vpop.f32.mrb[0].mxu0
  %469 = vdwg.mxu0
  %470 = vxpose.xlu0.b32.start [1/16] %v392, 128
  %471 = vxpose.xlu0.b32.cont [2/16] %v397, 128
  %472 = vxpose.xlu0.b32.cont [3/16] %v402, 128
  %473 = vxpose.xlu0.b32.cont [4/16] %v407, 128
  %474 = vxpose.xlu0.b32.cont [5/16] %v412, 128
  %475 = vxpose.xlu0.b32.cont [6/16] %v417, 128
  %476 = vxpose.xlu0.b32.cont [7/16] %v422, 128
  %477 = vxpose.xlu0.b32.cont [8/16] %v427, 128
  %478 = vxpose.xlu0.b32.cont [9/16] %v432, 128
  %479 = vxpose.xlu0.b32.cont [10/16] %v437, 128
  %480 = vxpose.xlu0.b32.cont [11/16] %v442, 128
  %481 = vxpose.xlu0.b32.cont [12/16] %v447, 128
  %482 = vxpose.xlu0.b32.cont [13/16] %v452, 128
  %483 = vxpose.xlu0.b32.cont [14/16] %v457, 128
  %484 = vxpose.xlu0.b32.cont [15/16] %v462, 128
  %485 = vxpose.xlu0.b32.end [16/16] %v467, 128
  %v486 = vpop.trf.xlu0
  %v487 = vpop.trf.xlu0
  %v488 = vpop.trf.xlu0
  %v489 = vpop.trf.xlu0
  %v490 = vpop.trf.xlu0
  %v491 = vpop.trf.xlu0
  %v492 = vpop.trf.xlu0
  %v493 = vpop.trf.xlu0
  %v494 = vpop.trf.xlu0
  %v495 = vpop.trf.xlu0
  %v496 = vpop.trf.xlu0
  %v497 = vpop.trf.xlu0
  %v498 = vpop.trf.xlu0
  %v499 = vpop.trf.xlu0
  %v500 = vpop.trf.xlu0
  %v501 = vpop.trf.xlu0
  %503 = vset.pattern.permute.xlu0 0
  %504 = vperm.xlu0 %503, %v392
  %v505 = vpop.permute.xlu0 %504
  %508 = vset.pattern.permute.xlu0 0
  %509 = vperm.xlu0 %508, %v397
  %v510 = vpop.permute.xlu0 %509
  %513 = vset.pattern.permute.xlu0 0
  %514 = vperm.xlu0 %513, %v402
  %v515 = vpop.permute.xlu0 %514
  %518 = vset.pattern.permute.xlu0 0
  %519 = vperm.xlu0 %518, %v407
  %v520 = vpop.permute.xlu0 %519
  %523 = vset.pattern.permute.xlu0 0
  %524 = vperm.xlu0 %523, %v412
  %v525 = vpop.permute.xlu0 %524
  %528 = vset.pattern.permute.xlu0 0
  %529 = vperm.xlu0 %528, %v417
  %v530 = vpop.permute.xlu0 %529
  %533 = vset.pattern.permute.xlu0 0
  %534 = vperm.xlu0 %533, %v422
  %v535 = vpop.permute.xlu0 %534
  %538 = vset.pattern.permute.xlu0 0
  %539 = vperm.xlu0 %538, %v427
  %v540 = vpop.permute.xlu0 %539
  %543 = vset.pattern.permute.xlu0 0
  %544 = vperm.xlu0 %543, %v432
  %v545 = vpop.permute.xlu0 %544
  %548 = vset.pattern.permute.xlu0 0
  %549 = vperm.xlu0 %548, %v437
  %v550 = vpop.permute.xlu0 %549
  %553 = vset.pattern.permute.xlu0 0
  %554 = vperm.xlu0 %553, %v442
  %v555 = vpop.permute.xlu0 %554
  %558 = vset.pattern.permute.xlu0 0
  %559 = vperm.xlu0 %558, %v447
  %v560 = vpop.permute.xlu0 %559
  %563 = vset.pattern.permute.xlu0 0
  %564 = vperm.xlu0 %563, %v452
  %v565 = vpop.permute.xlu0 %564
  %568 = vset.pattern.permute.xlu0 0
  %569 = vperm.xlu0 %568, %v457
  %v570 = vpop.permute.xlu0 %569
  %573 = vset.pattern.permute.xlu0 0
  %574 = vperm.xlu0 %573, %v462
  %v575 = vpop.permute.xlu0 %574
  %578 = vset.pattern.permute.xlu0 0
  %579 = vperm.xlu0 %578, %v467
  %v580 = vpop.permute.xlu0 %579
  %v582 = vlaneseq
  %v583 = vshrl.u32 %v582, 7
  %v584 = vsub.s32 4, %v583
  %v585 = vrot.slane %v486, %v584
  %v586 = vadd.f32 %v505, %v585
  %v587 = vadd.f32 %v510, %v585
  %v588 = vadd.f32 %v515, %v585
  %v589 = vadd.f32 %v520, %v585
  %v590 = vadd.f32 %v525, %v585
  %v591 = vadd.f32 %v530, %v585
  %v592 = vadd.f32 %v535, %v585
  %v593 = vadd.f32 %v540, %v585
  %v594 = vadd.f32 %v545, %v585
  %v595 = vadd.f32 %v550, %v585
  %v596 = vadd.f32 %v555, %v585
  %v597 = vadd.f32 %v560, %v585
  %v598 = vadd.f32 %v565, %v585
  %v599 = vadd.f32 %v570, %v585
  %v600 = vadd.f32 %v575, %v585
  %v601 = vadd.f32 %v580, %v585
  %v602 = vmul.f32 %v586, 0.2
  %v603 = vmul.f32 %v587, 0.2
  %v604 = vmul.f32 %v588, 0.2
  %v605 = vmul.f32 %v589, 0.2
  %v606 = vmul.f32 %v590, 0.2
  %v607 = vmul.f32 %v591, 0.2
  %v608 = vmul.f32 %v592, 0.2
  %v609 = vmul.f32 %v593, 0.2
  %v610 = vmul.f32 %v594, 0.2
  %v611 = vmul.f32 %v595, 0.2
  %v612 = vmul.f32 %v596, 0.2
  %v613 = vmul.f32 %v597, 0.2
  %v614 = vmul.f32 %v598, 0.2
  %v615 = vmul.f32 %v599, 0.2
  %v616 = vmul.f32 %v600, 0.2
  %v617 = vmul.f32 %v601, 0.2
  %v618 = vmax.f32 %v586, %v602
  %v619 = vmax.f32 %v587, %v603
  %v620 = vmax.f32 %v588, %v604
  %v621 = vmax.f32 %v589, %v605
  %v622 = vmax.f32 %v590, %v606
  %v623 = vmax.f32 %v591, %v607
  %v624 = vmax.f32 %v592, %v608
  %v625 = vmax.f32 %v593, %v609
  %v626 = vmax.f32 %v594, %v610
  %v627 = vmax.f32 %v595, %v611
  %v628 = vmax.f32 %v596, %v612
  %v629 = vmax.f32 %v597, %v613
  %v630 = vmax.f32 %v598, %v614
  %v631 = vmax.f32 %v599, %v615
  %v632 = vmax.f32 %v600, %v616
  %v633 = vmax.f32 %v601, %v617
  %v634 = vadd.f32 %v618, %v74
  %v635 = vadd.f32 %v619, %v75
  %v636 = vadd.f32 %v620, %v76
  %v637 = vadd.f32 %v621, %v77
  %v638 = vadd.f32 %v622, %v78
  %v639 = vadd.f32 %v623, %v79
  %v640 = vadd.f32 %v624, %v80
  %v641 = vadd.f32 %v625, %v81
  %v642 = vadd.f32 %v626, %v82
  %v643 = vadd.f32 %v627, %v83
  %v644 = vadd.f32 %v628, %v84
  %v645 = vadd.f32 %v629, %v85
  %v646 = vadd.f32 %v630, %v86
  %v647 = vadd.f32 %v631, %v87
  %v648 = vadd.f32 %v632, %v88
  %v649 = vadd.f32 %v633, %v89
  %650 = vmax.xlane.f32.xlu0 %v634
  %v651 = vpop.xlane.xlu0 %650
  %652 = vmax.xlane.f32.xlu0 %v635
  %v653 = vpop.xlane.xlu0 %652
  %654 = vmax.xlane.f32.xlu0 %v636
  %v655 = vpop.xlane.xlu0 %654
  %656 = vmax.xlane.f32.xlu0 %v637
  %v657 = vpop.xlane.xlu0 %656
  %658 = vmax.xlane.f32.xlu0 %v638
  %v659 = vpop.xlane.xlu0 %658
  %660 = vmax.xlane.f32.xlu0 %v639
  %v661 = vpop.xlane.xlu0 %660
  %662 = vmax.xlane.f32.xlu0 %v640
  %v663 = vpop.xlane.xlu0 %662
  %664 = vmax.xlane.f32.xlu0 %v641
  %v665 = vpop.xlane.xlu0 %664
  %666 = vmax.xlane.f32.xlu0 %v642
  %v667 = vpop.xlane.xlu0 %666
  %668 = vmax.xlane.f32.xlu0 %v643
  %v669 = vpop.xlane.xlu0 %668
  %670 = vmax.xlane.f32.xlu0 %v644
  %v671 = vpop.xlane.xlu0 %670
  %672 = vmax.xlane.f32.xlu0 %v645
  %v673 = vpop.xlane.xlu0 %672
  %674 = vmax.xlane.f32.xlu0 %v646
  %v675 = vpop.xlane.xlu0 %674
  %676 = vmax.xlane.f32.xlu0 %v647
  %v677 = vpop.xlane.xlu0 %676
  %678 = vmax.xlane.f32.xlu0 %v648
  %v679 = vpop.xlane.xlu0 %678
  %680 = vmax.xlane.f32.xlu0 %v649
  %v681 = vpop.xlane.xlu0 %680
  %v682 = vsub.f32 %v634, %v651
  %v683 = vsub.f32 %v635, %v653
  %v684 = vsub.f32 %v636, %v655
  %v685 = vsub.f32 %v637, %v657
  %v686 = vsub.f32 %v638, %v659
  %v687 = vsub.f32 %v639, %v661
  %v688 = vsub.f32 %v640, %v663
  %v689 = vsub.f32 %v641, %v665
  %v690 = vsub.f32 %v642, %v667
  %v691 = vsub.f32 %v643, %v669
  %v692 = vsub.f32 %v644, %v671
  %v693 = vsub.f32 %v645, %v673
  %v694 = vsub.f32 %v646, %v675
  %v695 = vsub.f32 %v647, %v677
  %v696 = vsub.f32 %v648, %v679
  %v697 = vsub.f32 %v649, %v681
  %v698 = vmul.f32 %v682, 1.442695
  %v699 = vpow.pop %v698
  %v700 = vmul.f32 %v683, 1.442695
  %v701 = vpow.pop %v700
  %v702 = vmul.f32 %v684, 1.442695
  %v703 = vpow.pop %v702
  %v704 = vmul.f32 %v685, 1.442695
  %v705 = vpow.pop %v704
  %v706 = vmul.f32 %v686, 1.442695
  %v707 = vpow.pop %v706
  %v708 = vmul.f32 %v687, 1.442695
  %v709 = vpow.pop %v708
  %v710 = vmul.f32 %v688, 1.442695
  %v711 = vpow.pop %v710
  %v712 = vmul.f32 %v689, 1.442695
  %v713 = vpow.pop %v712
  %v714 = vmul.f32 %v690, 1.442695
  %v715 = vpow.pop %v714
  %v716 = vmul.f32 %v691, 1.442695
  %v717 = vpow.pop %v716
  %v718 = vmul.f32 %v692, 1.442695
  %v719 = vpow.pop %v718
  %v720 = vmul.f32 %v693, 1.442695
  %v721 = vpow.pop %v720
  %v722 = vmul.f32 %v694, 1.442695
  %v723 = vpow.pop %v722
  %v724 = vmul.f32 %v695, 1.442695
  %v725 = vpow.pop %v724
  %v726 = vmul.f32 %v696, 1.442695
  %v727 = vpow.pop %v726
  %v728 = vmul.f32 %v697, 1.442695
  %v729 = vpow.pop %v728
  %730 = vadd.xlane.f32.xlu0 %v699
  %v731 = vpop.xlane.xlu0 %730
  %732 = vadd.xlane.f32.xlu0 %v701
  %v733 = vpop.xlane.xlu0 %732
  %734 = vadd.xlane.f32.xlu0 %v703
  %v735 = vpop.xlane.xlu0 %734
  %736 = vadd.xlane.f32.xlu0 %v705
  %v737 = vpop.xlane.xlu0 %736
  %738 = vadd.xlane.f32.xlu0 %v707
  %v739 = vpop.xlane.xlu0 %738
  %740 = vadd.xlane.f32.xlu0 %v709
  %v741 = vpop.xlane.xlu0 %740
  %742 = vadd.xlane.f32.xlu0 %v711
  %v743 = vpop.xlane.xlu0 %742
  %744 = vadd.xlane.f32.xlu0 %v713
  %v745 = vpop.xlane.xlu0 %744
  %746 = vadd.xlane.f32.xlu0 %v715
  %v747 = vpop.xlane.xlu0 %746
  %748 = vadd.xlane.f32.xlu0 %v717
  %v749 = vpop.xlane.xlu0 %748
  %750 = vadd.xlane.f32.xlu0 %v719
  %v751 = vpop.xlane.xlu0 %750
  %752 = vadd.xlane.f32.xlu0 %v721
  %v753 = vpop.xlane.xlu0 %752
  %754 = vadd.xlane.f32.xlu0 %v723
  %v755 = vpop.xlane.xlu0 %754
  %756 = vadd.xlane.f32.xlu0 %v725
  %v757 = vpop.xlane.xlu0 %756
  %758 = vadd.xlane.f32.xlu0 %v727
  %v759 = vpop.xlane.xlu0 %758
  %760 = vadd.xlane.f32.xlu0 %v729
  %v761 = vpop.xlane.xlu0 %760
  %762 = vmatprep.subr.mxu0 0.0
  %763 = vmatpush1.msra.mxu0 %v247
  %764 = vmatprep.subr.mxu0 0.0
  %765 = vmatpush1.msra.mxu0 %v252
  %766 = vmatprep.subr.mxu0 0.0
  %767 = vmatpush1.msra.mxu0 %v257
  %768 = vmatprep.subr.mxu0 0.0
  %769 = vmatpush1.msra.mxu0 %v262
  %770 = vmatprep.subr.mxu0 0.0
  %771 = vmatpush1.msra.mxu0 %v267
  %772 = vmatprep.subr.mxu0 0.0
  %773 = vmatpush1.msra.mxu0 %v272
  %774 = vmatprep.subr.mxu0 0.0
  %775 = vmatpush1.msra.mxu0 %v277
  %776 = vmatprep.subr.mxu0 0.0
  %777 = vmatpush1.msra.mxu0 %v282
  %778 = vmatprep.subr.mxu0 0.0
  %779 = vmatpush1.msra.mxu0 %v287
  %780 = vmatprep.subr.mxu0 0.0
  %781 = vmatpush1.msra.mxu0 %v292
  %782 = vmatprep.subr.mxu0 0.0
  %783 = vmatpush1.msra.mxu0 %v297
  %784 = vmatprep.subr.mxu0 0.0
  %785 = vmatpush1.msra.mxu0 %v302
  %786 = vmatprep.subr.mxu0 0.0
  %787 = vmatpush1.msra.mxu0 %v307
  %788 = vmatprep.subr.mxu0 0.0
  %789 = vmatpush1.msra.mxu0 %v312
  %790 = vmatprep.subr.mxu0 0.0
  %791 = vmatpush1.msra.mxu0 %v317
  %792 = vmatprep.subr.mxu0 0.0
  %793 = vmatpush1.msra.mxu0 %v322
  %794 = vmatprep.subr.mxu0 0.0
  %795 = vmatpush1.msra.mxu0 0.0
  %796 = vmatprep.subr.mxu0 0.0
  %797 = vmatpush1.msra.mxu0 0.0
  %798 = vmatprep.subr.mxu0 0.0
  %799 = vmatpush1.msra.mxu0 0.0
  %800 = vmatprep.subr.mxu0 0.0
  %801 = vmatpush1.msra.mxu0 0.0
  %802 = vmatprep.subr.mxu0 0.0
  %803 = vmatpush1.msra.mxu0 0.0
  %804 = vmatprep.subr.mxu0 0.0
  %805 = vmatpush1.msra.mxu0 0.0
  %806 = vmatprep.subr.mxu0 0.0
  %807 = vmatpush1.msra.mxu0 0.0
  %808 = vmatprep.subr.mxu0 0.0
  %809 = vmatpush1.msra.mxu0 0.0
  %810 = vmatprep.subr.mxu0 0.0
  %811 = vmatpush1.msra.mxu0 0.0
  %812 = vmatprep.subr.mxu0 0.0
  %813 = vmatpush1.msra.mxu0 0.0
  %814 = vmatprep.subr.mxu0 0.0
  %815 = vmatpush1.msra.mxu0 0.0
  %816 = vmatprep.subr.mxu0 0.0
  %817 = vmatpush1.msra.mxu0 0.0
  %818 = vmatprep.subr.mxu0 0.0
  %819 = vmatpush1.msra.mxu0 0.0
  %820 = vmatprep.subr.mxu0 0.0
  %821 = vmatpush1.msra.mxu0 0.0
  %822 = vmatprep.subr.mxu0 0.0
  %823 = vmatpush1.msra.mxu0 0.0
  %824 = vmatprep.subr.mxu0 0.0
  %825 = vmatpush1.msra.mxu0 0.0
  %826 = vmatprep.mubr.f32.mxu0 0.0
  %827 = vmatmul.mubr.f32.gmra.mrb[0].mxu0 %v699
  %v828 = vpop.f32.mrb[0].mxu0
  %v829 = vadd.f32 0.0, %v828
  %v830 = vpop.f32.mrb[0].mxu0
  %831 = vmatprep.mubr.f32.mxu0 0.0
  %832 = vmatmul.mubr.f32.gmra.mrb[0].mxu0 %v701
  %v833 = vpop.f32.mrb[0].mxu0
  %v834 = vadd.f32 0.0, %v833
  %v835 = vpop.f32.mrb[0].mxu0
  %836 = vmatprep.mubr.f32.mxu0 0.0
  %837 = vmatmul.mubr.f32.gmra.mrb[0].mxu0 %v703
  %v838 = vpop.f32.mrb[0].mxu0
  %v839 = vadd.f32 0.0, %v838
  %v840 = vpop.f32.mrb[0].mxu0
  %841 = vmatprep.mubr.f32.mxu0 0.0
  %842 = vmatmul.mubr.f32.gmra.mrb[0].mxu0 %v705
  %v843 = vpop.f32.mrb[0].mxu0
  %v844 = vadd.f32 0.0, %v843
  %v845 = vpop.f32.mrb[0].mxu0
  %846 = vmatprep.mubr.f32.mxu0 0.0
  %847 = vmatmul.mubr.f32.gmra.mrb[0].mxu0 %v707
  %v848 = vpop.f32.mrb[0].mxu0
  %v849 = vadd.f32 0.0, %v848
  %v850 = vpop.f32.mrb[0].mxu0
  %851 = vmatprep.mubr.f32.mxu0 0.0
  %852 = vmatmul.mubr.f32.gmra.mrb[0].mxu0 %v709
  %v853 = vpop.f32.mrb[0].mxu0
  %v854 = vadd.f32 0.0, %v853
  %v855 = vpop.f32.mrb[0].mxu0
  %856 = vmatprep.mubr.f32.mxu0 0.0
  %857 = vmatmul.mubr.f32.gmra.mrb[0].mxu0 %v711
  %v858 = vpop.f32.mrb[0].mxu0
  %v859 = vadd.f32 0.0, %v858
  %v860 = vpop.f32.mrb[0].mxu0
  %861 = vmatprep.mubr.f32.mxu0 0.0
  %862 = vmatmul.mubr.f32.gmra.mrb[0].mxu0 %v713
  %v863 = vpop.f32.mrb[0].mxu0
  %v864 = vadd.f32 0.0, %v863
  %v865 = vpop.f32.mrb[0].mxu0
  %866 = vmatprep.mubr.f32.mxu0 0.0
  %867 = vmatmul.mubr.f32.gmra.mrb[0].mxu0 %v715
  %v868 = vpop.f32.mrb[0].mxu0
  %v869 = vadd.f32 0.0, %v868
  %v870 = vpop.f32.mrb[0].mxu0
  %871 = vmatprep.mubr.f32.mxu0 0.0
  %872 = vmatmul.mubr.f32.gmra.mrb[0].mxu0 %v717
  %v873 = vpop.f32.mrb[0].mxu0
  %v874 = vadd.f32 0.0, %v873
  %v875 = vpop.f32.mrb[0].mxu0
  %876 = vmatprep.mubr.f32.mxu0 0.0
  %877 = vmatmul.mubr.f32.gmra.mrb[0].mxu0 %v719
  %v878 = vpop.f32.mrb[0].mxu0
  %v879 = vadd.f32 0.0, %v878
  %v880 = vpop.f32.mrb[0].mxu0
  %881 = vmatprep.mubr.f32.mxu0 0.0
  %882 = vmatmul.mubr.f32.gmra.mrb[0].mxu0 %v721
  %v883 = vpop.f32.mrb[0].mxu0
  %v884 = vadd.f32 0.0, %v883
  %v885 = vpop.f32.mrb[0].mxu0
  %886 = vmatprep.mubr.f32.mxu0 0.0
  %887 = vmatmul.mubr.f32.gmra.mrb[0].mxu0 %v723
  %v888 = vpop.f32.mrb[0].mxu0
  %v889 = vadd.f32 0.0, %v888
  %v890 = vpop.f32.mrb[0].mxu0
  %891 = vmatprep.mubr.f32.mxu0 0.0
  %892 = vmatmul.mubr.f32.gmra.mrb[0].mxu0 %v725
  %v893 = vpop.f32.mrb[0].mxu0
  %v894 = vadd.f32 0.0, %v893
  %v895 = vpop.f32.mrb[0].mxu0
  %896 = vmatprep.mubr.f32.mxu0 0.0
  %897 = vmatmul.mubr.f32.gmra.mrb[0].mxu0 %v727
  %v898 = vpop.f32.mrb[0].mxu0
  %v899 = vadd.f32 0.0, %v898
  %v900 = vpop.f32.mrb[0].mxu0
  %901 = vmatprep.mubr.f32.mxu0 0.0
  %902 = vmatmul.mubr.f32.gmra.mrb[0].mxu0 %v729
  %v903 = vpop.f32.mrb[0].mxu0
  %v904 = vadd.f32 0.0, %v903
  %v905 = vpop.f32.mrb[0].mxu0
  %906 = vdwg.mxu0
  %v907 = vrcp.pop %v731
  %v908 = vrcp.pop %v733
  %v909 = vrcp.pop %v735
  %v910 = vrcp.pop %v737
  %v911 = vrcp.pop %v739
  %v912 = vrcp.pop %v741
  %v913 = vrcp.pop %v743
  %v914 = vrcp.pop %v745
  %v915 = vrcp.pop %v747
  %v916 = vrcp.pop %v749
  %v917 = vrcp.pop %v751
  %v918 = vrcp.pop %v753
  %v919 = vrcp.pop %v755
  %v920 = vrcp.pop %v757
  %v921 = vrcp.pop %v759
  %v922 = vrcp.pop %v761
  %v923 = vmul.f32 %v829, %v907
  %v924 = vmul.f32 %v834, %v908
  %v925 = vmul.f32 %v839, %v909
  %v926 = vmul.f32 %v844, %v910
  %v927 = vmul.f32 %v849, %v911
  %v928 = vmul.f32 %v854, %v912
  %v929 = vmul.f32 %v859, %v913
  %v930 = vmul.f32 %v864, %v914
  %v931 = vmul.f32 %v869, %v915
  %v932 = vmul.f32 %v874, %v916
  %v933 = vmul.f32 %v879, %v917
  %v934 = vmul.f32 %v884, %v918
  %v935 = vmul.f32 %v889, %v919
  %v936 = vmul.f32 %v894, %v920
  %v937 = vmul.f32 %v899, %v921
  %v938 = vmul.f32 %v904, %v922
  %939 = vset.pattern.permute.xlu0 1
  %940 = vperm.xlu0 %939, %v392
  %v941 = vpop.permute.xlu0 %940
  %943 = vset.pattern.permute.xlu0 1
  %944 = vperm.xlu0 %943, %v397
  %v945 = vpop.permute.xlu0 %944
  %947 = vset.pattern.permute.xlu0 1
  %948 = vperm.xlu0 %947, %v402
  %v949 = vpop.permute.xlu0 %948
  %951 = vset.pattern.permute.xlu0 1
  %952 = vperm.xlu0 %951, %v407
  %v953 = vpop.permute.xlu0 %952
  %955 = vset.pattern.permute.xlu0 1
  %956 = vperm.xlu0 %955, %v412
  %v957 = vpop.permute.xlu0 %956
  %959 = vset.pattern.permute.xlu0 1
  %960 = vperm.xlu0 %959, %v417
  %v961 = vpop.permute.xlu0 %960
  %963 = vset.pattern.permute.xlu0 1
  %964 = vperm.xlu0 %963, %v422
  %v965 = vpop.permute.xlu0 %964
  %967 = vset.pattern.permute.xlu0 1
  %968 = vperm.xlu0 %967, %v427
  %v969 = vpop.permute.xlu0 %968
  %971 = vset.pattern.permute.xlu0 1
  %972 = vperm.xlu0 %971, %v432
  %v973 = vpop.permute.xlu0 %972
  %975 = vset.pattern.permute.xlu0 1
  %976 = vperm.xlu0 %975, %v437
  %v977 = vpop.permute.xlu0 %976
  %979 = vset.pattern.permute.xlu0 1
  %980 = vperm.xlu0 %979, %v442
  %v981 = vpop.permute.xlu0 %980
  %983 = vset.pattern.permute.xlu0 1
  %984 = vperm.xlu0 %983, %v447
  %v985 = vpop.permute.xlu0 %984
  %987 = vset.pattern.permute.xlu0 1
  %988 = vperm.xlu0 %987, %v452
  %v989 = vpop.permute.xlu0 %988
  %991 = vset.pattern.permute.xlu0 1
  %992 = vperm.xlu0 %991, %v457
  %v993 = vpop.permute.xlu0 %992
  %995 = vset.pattern.permute.xlu0 1
  %996 = vperm.xlu0 %995, %v462
  %v997 = vpop.permute.xlu0 %996
  %999 = vset.pattern.permute.xlu0 1
  %1000 = vperm.xlu0 %999, %v467
  %v1001 = vpop.permute.xlu0 %1000
  %v1003 = vlaneseq
  %v1004 = vshrl.u32 %v1003, 7
  %v1005 = vsub.s32 5, %v1004
  %v1006 = vrot.slane %v486, %v1005
  %v1007 = vadd.f32 %v941, %v1006
  %v1008 = vadd.f32 %v945, %v1006
  %v1009 = vadd.f32 %v949, %v1006
  %v1010 = vadd.f32 %v953, %v1006
  %v1011 = vadd.f32 %v957, %v1006
  %v1012 = vadd.f32 %v961, %v1006
  %v1013 = vadd.f32 %v965, %v1006
  %v1014 = vadd.f32 %v969, %v1006
  %v1015 = vadd.f32 %v973, %v1006
  %v1016 = vadd.f32 %v977, %v1006
  %v1017 = vadd.f32 %v981, %v1006
  %v1018 = vadd.f32 %v985, %v1006
  %v1019 = vadd.f32 %v989, %v1006
  %v1020 = vadd.f32 %v993, %v1006
  %v1021 = vadd.f32 %v997, %v1006
  %v1022 = vadd.f32 %v1001, %v1006
  %v1023 = vmul.f32 %v1007, 0.2
  %v1024 = vmul.f32 %v1008, 0.2
  %v1025 = vmul.f32 %v1009, 0.2
  %v1026 = vmul.f32 %v1010, 0.2
  %v1027 = vmul.f32 %v1011, 0.2
  %v1028 = vmul.f32 %v1012, 0.2
  %v1029 = vmul.f32 %v1013, 0.2
  %v1030 = vmul.f32 %v1014, 0.2
  %v1031 = vmul.f32 %v1015, 0.2
  %v1032 = vmul.f32 %v1016, 0.2
  %v1033 = vmul.f32 %v1017, 0.2
  %v1034 = vmul.f32 %v1018, 0.2
  %v1035 = vmul.f32 %v1019, 0.2
  %v1036 = vmul.f32 %v1020, 0.2
  %v1037 = vmul.f32 %v1021, 0.2
  %v1038 = vmul.f32 %v1022, 0.2
  %v1039 = vmax.f32 %v1007, %v1023
  %v1040 = vmax.f32 %v1008, %v1024
  %v1041 = vmax.f32 %v1009, %v1025
  %v1042 = vmax.f32 %v1010, %v1026
  %v1043 = vmax.f32 %v1011, %v1027
  %v1044 = vmax.f32 %v1012, %v1028
  %v1045 = vmax.f32 %v1013, %v1029
  %v1046 = vmax.f32 %v1014, %v1030
  %v1047 = vmax.f32 %v1015, %v1031
  %v1048 = vmax.f32 %v1016, %v1032
  %v1049 = vmax.f32 %v1017, %v1033
  %v1050 = vmax.f32 %v1018, %v1034
  %v1051 = vmax.f32 %v1019, %v1035
  %v1052 = vmax.f32 %v1020, %v1036
  %v1053 = vmax.f32 %v1021, %v1037
  %v1054 = vmax.f32 %v1022, %v1038
  %v1055 = vadd.f32 %v1039, %v74
  %v1056 = vadd.f32 %v1040, %v75
  %v1057 = vadd.f32 %v1041, %v76
  %v1058 = vadd.f32 %v1042, %v77
  %v1059 = vadd.f32 %v1043, %v78
  %v1060 = vadd.f32 %v1044, %v79
  %v1061 = vadd.f32 %v1045, %v80
  %v1062 = vadd.f32 %v1046, %v81
  %v1063 = vadd.f32 %v1047, %v82
  %v1064 = vadd.f32 %v1048, %v83
  %v1065 = vadd.f32 %v1049, %v84
  %v1066 = vadd.f32 %v1050, %v85
  %v1067 = vadd.f32 %v1051, %v86
  %v1068 = vadd.f32 %v1052, %v87
  %v1069 = vadd.f32 %v1053, %v88
  %v1070 = vadd.f32 %v1054, %v89
  %1071 = vmax.xlane.f32.xlu0 %v1055
  %v1072 = vpop.xlane.xlu0 %1071
  %1073 = vmax.xlane.f32.xlu0 %v1056
  %v1074 = vpop.xlane.xlu0 %1073
  %1075 = vmax.xlane.f32.xlu0 %v1057
  %v1076 = vpop.xlane.xlu0 %1075
  %1077 = vmax.xlane.f32.xlu0 %v1058
  %v1078 = vpop.xlane.xlu0 %1077
  %1079 = vmax.xlane.f32.xlu0 %v1059
  %v1080 = vpop.xlane.xlu0 %1079
  %1081 = vmax.xlane.f32.xlu0 %v1060
  %v1082 = vpop.xlane.xlu0 %1081
  %1083 = vmax.xlane.f32.xlu0 %v1061
  %v1084 = vpop.xlane.xlu0 %1083
  %1085 = vmax.xlane.f32.xlu0 %v1062
  %v1086 = vpop.xlane.xlu0 %1085
  %1087 = vmax.xlane.f32.xlu0 %v1063
  %v1088 = vpop.xlane.xlu0 %1087
  %1089 = vmax.xlane.f32.xlu0 %v1064
  %v1090 = vpop.xlane.xlu0 %1089
  %1091 = vmax.xlane.f32.xlu0 %v1065
  %v1092 = vpop.xlane.xlu0 %1091
  %1093 = vmax.xlane.f32.xlu0 %v1066
  %v1094 = vpop.xlane.xlu0 %1093
  %1095 = vmax.xlane.f32.xlu0 %v1067
  %v1096 = vpop.xlane.xlu0 %1095
  %1097 = vmax.xlane.f32.xlu0 %v1068
  %v1098 = vpop.xlane.xlu0 %1097
  %1099 = vmax.xlane.f32.xlu0 %v1069
  %v1100 = vpop.xlane.xlu0 %1099
  %1101 = vmax.xlane.f32.xlu0 %v1070
  %v1102 = vpop.xlane.xlu0 %1101
  %v1103 = vsub.f32 %v1055, %v1072
  %v1104 = vsub.f32 %v1056, %v1074
  %v1105 = vsub.f32 %v1057, %v1076
  %v1106 = vsub.f32 %v1058, %v1078
  %v1107 = vsub.f32 %v1059, %v1080
  %v1108 = vsub.f32 %v1060, %v1082
  %v1109 = vsub.f32 %v1061, %v1084
  %v1110 = vsub.f32 %v1062, %v1086
  %v1111 = vsub.f32 %v1063, %v1088
  %v1112 = vsub.f32 %v1064, %v1090
  %v1113 = vsub.f32 %v1065, %v1092
  %v1114 = vsub.f32 %v1066, %v1094
  %v1115 = vsub.f32 %v1067, %v1096
  %v1116 = vsub.f32 %v1068, %v1098
  %v1117 = vsub.f32 %v1069, %v1100
  %v1118 = vsub.f32 %v1070, %v1102
  %v1119 = vmul.f32 %v1103, 1.442695
  %v1120 = vpow.pop %v1119
  %v1121 = vmul.f32 %v1104, 1.442695
  %v1122 = vpow.pop %v1121
  %v1123 = vmul.f32 %v1105, 1.442695
  %v1124 = vpow.pop %v1123
  %v1125 = vmul.f32 %v1106, 1.442695
  %v1126 = vpow.pop %v1125
  %v1127 = vmul.f32 %v1107, 1.442695
  %v1128 = vpow.pop %v1127
  %v1129 = vmul.f32 %v1108, 1.442695
  %v1130 = vpow.pop %v1129
  %v1131 = vmul.f32 %v1109, 1.442695
  %v1132 = vpow.pop %v1131
  %v1133 = vmul.f32 %v1110, 1.442695
  %v1134 = vpow.pop %v1133
  %v1135 = vmul.f32 %v1111, 1.442695
  %v1136 = vpow.pop %v1135
  %v1137 = vmul.f32 %v1112, 1.442695
  %v1138 = vpow.pop %v1137
  %v1139 = vmul.f32 %v1113, 1.442695
  %v1140 = vpow.pop %v1139
  %v1141 = vmul.f32 %v1114, 1.442695
  %v1142 = vpow.pop %v1141
  %v1143 = vmul.f32 %v1115, 1.442695
  %v1144 = vpow.pop %v1143
  %v1145 = vmul.f32 %v1116, 1.442695
  %v1146 = vpow.pop %v1145
  %v1147 = vmul.f32 %v1117, 1.442695
  %v1148 = vpow.pop %v1147
  %v1149 = vmul.f32 %v1118, 1.442695
  %v1150 = vpow.pop %v1149
  %1151 = vadd.xlane.f32.xlu0 %v1120
  %v1152 = vpop.xlane.xlu0 %1151
  %1153 = vadd.xlane.f32.xlu0 %v1122
  %v1154 = vpop.xlane.xlu0 %1153
  %1155 = vadd.xlane.f32.xlu0 %v1124
  %v1156 = vpop.xlane.xlu0 %1155
  %1157 = vadd.xlane.f32.xlu0 %v1126
  %v1158 = vpop.xlane.xlu0 %1157
  %1159 = vadd.xlane.f32.xlu0 %v1128
  %v1160 = vpop.xlane.xlu0 %1159
  %1161 = vadd.xlane.f32.xlu0 %v1130
  %v1162 = vpop.xlane.xlu0 %1161
  %1163 = vadd.xlane.f32.xlu0 %v1132
  %v1164 = vpop.xlane.xlu0 %1163
  %1165 = vadd.xlane.f32.xlu0 %v1134
  %v1166 = vpop.xlane.xlu0 %1165
  %1167 = vadd.xlane.f32.xlu0 %v1136
  %v1168 = vpop.xlane.xlu0 %1167
  %1169 = vadd.xlane.f32.xlu0 %v1138
  %v1170 = vpop.xlane.xlu0 %1169
  %1171 = vadd.xlane.f32.xlu0 %v1140
  %v1172 = vpop.xlane.xlu0 %1171
  %1173 = vadd.xlane.f32.xlu0 %v1142
  %v1174 = vpop.xlane.xlu0 %1173
  %1175 = vadd.xlane.f32.xlu0 %v1144
  %v1176 = vpop.xlane.xlu0 %1175
  %1177 = vadd.xlane.f32.xlu0 %v1146
  %v1178 = vpop.xlane.xlu0 %1177
  %1179 = vadd.xlane.f32.xlu0 %v1148
  %v1180 = vpop.xlane.xlu0 %1179
  %1181 = vadd.xlane.f32.xlu0 %v1150
  %v1182 = vpop.xlane.xlu0 %1181
  %1199 = vrot.lane.b32.xlu0 %v247, 96
  %v1200 = vpop.permute.xlu0 %1199
  %1201 = vrot.lane.b32.xlu0 %v252, 96
  %v1202 = vpop.permute.xlu0 %1201
  %1203 = vrot.lane.b32.xlu0 %v257, 96
  %v1204 = vpop.permute.xlu0 %1203
  %1205 = vrot.lane.b32.xlu0 %v262, 96
  %v1206 = vpop.permute.xlu0 %1205
  %1207 = vrot.lane.b32.xlu0 %v267, 96
  %v1208 = vpop.permute.xlu0 %1207
  %1209 = vrot.lane.b32.xlu0 %v272, 96
  %v1210 = vpop.permute.xlu0 %1209
  %1211 = vrot.lane.b32.xlu0 %v277, 96
  %v1212 = vpop.permute.xlu0 %1211
  %1213 = vrot.lane.b32.xlu0 %v282, 96
  %v1214 = vpop.permute.xlu0 %1213
  %1215 = vrot.lane.b32.xlu0 %v287, 96
  %v1216 = vpop.permute.xlu0 %1215
  %1217 = vrot.lane.b32.xlu0 %v292, 96
  %v1218 = vpop.permute.xlu0 %1217
  %1219 = vrot.lane.b32.xlu0 %v297, 96
  %v1220 = vpop.permute.xlu0 %1219
  %1221 = vrot.lane.b32.xlu0 %v302, 96
  %v1222 = vpop.permute.xlu0 %1221
  %1223 = vrot.lane.b32.xlu0 %v307, 96
  %v1224 = vpop.permute.xlu0 %1223
  %1225 = vrot.lane.b32.xlu0 %v312, 96
  %v1226 = vpop.permute.xlu0 %1225
  %1227 = vrot.lane.b32.xlu0 %v317, 96
  %v1228 = vpop.permute.xlu0 %1227
  %1229 = vrot.lane.b32.xlu0 %v322, 96
  %v1230 = vpop.permute.xlu0 %1229
  %1247 = vmatprep.subr.mxu0 0.0
  %1248 = vmatpush1.msra.mxu0 %v1200
  %1249 = vmatprep.subr.mxu0 0.0
  %1250 = vmatpush1.msra.mxu0 %v1202
  %1251 = vmatprep.subr.mxu0 0.0
  %1252 = vmatpush1.msra.mxu0 %v1204
  %1253 = vmatprep.subr.mxu0 0.0
  %1254 = vmatpush1.msra.mxu0 %v1206
  %1255 = vmatprep.subr.mxu0 0.0
  %1256 = vmatpush1.msra.mxu0 %v1208
  %1257 = vmatprep.subr.mxu0 0.0
  %1258 = vmatpush1.msra.mxu0 %v1210
  %1259 = vmatprep.subr.mxu0 0.0
  %1260 = vmatpush1.msra.mxu0 %v1212
  %1261 = vmatprep.subr.mxu0 0.0
  %1262 = vmatpush1.msra.mxu0 %v1214
  %1263 = vmatprep.subr.mxu0 0.0
  %1264 = vmatpush1.msra.mxu0 %v1216
  %1265 = vmatprep.subr.mxu0 0.0
  %1266 = vmatpush1.msra.mxu0 %v1218
  %1267 = vmatprep.subr.mxu0 0.0
  %1268 = vmatpush1.msra.mxu0 %v1220
  %1269 = vmatprep.subr.mxu0 0.0
  %1270 = vmatpush1.msra.mxu0 %v1222
  %1271 = vmatprep.subr.mxu0 0.0
  %1272 = vmatpush1.msra.mxu0 %v1224
  %1273 = vmatprep.subr.mxu0 0.0
  %1274 = vmatpush1.msra.mxu0 %v1226
  %1275 = vmatprep.subr.mxu0 0.0
  %1276 = vmatpush1.msra.mxu0 %v1228
  %1277 = vmatprep.subr.mxu0 0.0
  %1278 = vmatpush1.msra.mxu0 %v1230
  %1279 = vmatprep.subr.mxu0 0.0
  %1280 = vmatpush1.msra.mxu0 0.0
  %1281 = vmatprep.subr.mxu0 0.0
  %1282 = vmatpush1.msra.mxu0 0.0
  %1283 = vmatprep.subr.mxu0 0.0
  %1284 = vmatpush1.msra.mxu0 0.0
  %1285 = vmatprep.subr.mxu0 0.0
  %1286 = vmatpush1.msra.mxu0 0.0
  %1287 = vmatprep.subr.mxu0 0.0
  %1288 = vmatpush1.msra.mxu0 0.0
  %1289 = vmatprep.subr.mxu0 0.0
  %1290 = vmatpush1.msra.mxu0 0.0
  %1291 = vmatprep.subr.mxu0 0.0
  %1292 = vmatpush1.msra.mxu0 0.0
  %1293 = vmatprep.subr.mxu0 0.0
  %1294 = vmatpush1.msra.mxu0 0.0
  %1295 = vmatprep.subr.mxu0 0.0
  %1296 = vmatpush1.msra.mxu0 0.0
  %1297 = vmatprep.subr.mxu0 0.0
  %1298 = vmatpush1.msra.mxu0 0.0
  %1299 = vmatprep.subr.mxu0 0.0
  %1300 = vmatpush1.msra.mxu0 0.0
  %1301 = vmatprep.subr.mxu0 0.0
  %1302 = vmatpush1.msra.mxu0 0.0
  %1303 = vmatprep.subr.mxu0 0.0
  %1304 = vmatpush1.msra.mxu0 0.0
  %1305 = vmatprep.subr.mxu0 0.0
  %1306 = vmatpush1.msra.mxu0 0.0
  %1307 = vmatprep.subr.mxu0 0.0
  %1308 = vmatpush1.msra.mxu0 0.0
  %1309 = vmatprep.subr.mxu0 0.0
  %1310 = vmatpush1.msra.mxu0 0.0
  %1311 = vmatprep.mubr.f32.mxu0 0.0
  %1312 = vmatmul.mubr.f32.gmra.mrb[0].mxu0 %v1120
  %v1313 = vpop.f32.mrb[0].mxu0
  %v1314 = vadd.f32 0.0, %v1313
  %v1315 = vpop.f32.mrb[0].mxu0
  %1316 = vmatprep.mubr.f32.mxu0 0.0
  %1317 = vmatmul.mubr.f32.gmra.mrb[0].mxu0 %v1122
  %v1318 = vpop.f32.mrb[0].mxu0
  %v1319 = vadd.f32 0.0, %v1318
  %v1320 = vpop.f32.mrb[0].mxu0
  %1321 = vmatprep.mubr.f32.mxu0 0.0
  %1322 = vmatmul.mubr.f32.gmra.mrb[0].mxu0 %v1124
  %v1323 = vpop.f32.mrb[0].mxu0
  %v1324 = vadd.f32 0.0, %v1323
  %v1325 = vpop.f32.mrb[0].mxu0
  %1326 = vmatprep.mubr.f32.mxu0 0.0
  %1327 = vmatmul.mubr.f32.gmra.mrb[0].mxu0 %v1126
  %v1328 = vpop.f32.mrb[0].mxu0
  %v1329 = vadd.f32 0.0, %v1328
  %v1330 = vpop.f32.mrb[0].mxu0
  %1331 = vmatprep.mubr.f32.mxu0 0.0
  %1332 = vmatmul.mubr.f32.gmra.mrb[0].mxu0 %v1128
  %v1333 = vpop.f32.mrb[0].mxu0
  %v1334 = vadd.f32 0.0, %v1333
  %v1335 = vpop.f32.mrb[0].mxu0
  %1336 = vmatprep.mubr.f32.mxu0 0.0
  %1337 = vmatmul.mubr.f32.gmra.mrb[0].mxu0 %v1130
  %v1338 = vpop.f32.mrb[0].mxu0
  %v1339 = vadd.f32 0.0, %v1338
  %v1340 = vpop.f32.mrb[0].mxu0
  %1341 = vmatprep.mubr.f32.mxu0 0.0
  %1342 = vmatmul.mubr.f32.gmra.mrb[0].mxu0 %v1132
  %v1343 = vpop.f32.mrb[0].mxu0
  %v1344 = vadd.f32 0.0, %v1343
  %v1345 = vpop.f32.mrb[0].mxu0
  %1346 = vmatprep.mubr.f32.mxu0 0.0
  %1347 = vmatmul.mubr.f32.gmra.mrb[0].mxu0 %v1134
  %v1348 = vpop.f32.mrb[0].mxu0
  %v1349 = vadd.f32 0.0, %v1348
  %v1350 = vpop.f32.mrb[0].mxu0
  %1351 = vmatprep.mubr.f32.mxu0 0.0
  %1352 = vmatmul.mubr.f32.gmra.mrb[0].mxu0 %v1136
  %v1353 = vpop.f32.mrb[0].mxu0
  %v1354 = vadd.f32 0.0, %v1353
  %v1355 = vpop.f32.mrb[0].mxu0
  %1356 = vmatprep.mubr.f32.mxu0 0.0
  %1357 = vmatmul.mubr.f32.gmra.mrb[0].mxu0 %v1138
  %v1358 = vpop.f32.mrb[0].mxu0
  %v1359 = vadd.f32 0.0, %v1358
  %v1360 = vpop.f32.mrb[0].mxu0
  %1361 = vmatprep.mubr.f32.mxu0 0.0
  %1362 = vmatmul.mubr.f32.gmra.mrb[0].mxu0 %v1140
  %v1363 = vpop.f32.mrb[0].mxu0
  %v1364 = vadd.f32 0.0, %v1363
  %v1365 = vpop.f32.mrb[0].mxu0
  %1366 = vmatprep.mubr.f32.mxu0 0.0
  %1367 = vmatmul.mubr.f32.gmra.mrb[0].mxu0 %v1142
  %v1368 = vpop.f32.mrb[0].mxu0
  %v1369 = vadd.f32 0.0, %v1368
  %v1370 = vpop.f32.mrb[0].mxu0
  %1371 = vmatprep.mubr.f32.mxu0 0.0
  %1372 = vmatmul.mubr.f32.gmra.mrb[0].mxu0 %v1144
  %v1373 = vpop.f32.mrb[0].mxu0
  %v1374 = vadd.f32 0.0, %v1373
  %v1375 = vpop.f32.mrb[0].mxu0
  %1376 = vmatprep.mubr.f32.mxu0 0.0
  %1377 = vmatmul.mubr.f32.gmra.mrb[0].mxu0 %v1146
  %v1378 = vpop.f32.mrb[0].mxu0
  %v1379 = vadd.f32 0.0, %v1378
  %v1380 = vpop.f32.mrb[0].mxu0
  %1381 = vmatprep.mubr.f32.mxu0 0.0
  %1382 = vmatmul.mubr.f32.gmra.mrb[0].mxu0 %v1148
  %v1383 = vpop.f32.mrb[0].mxu0
  %v1384 = vadd.f32 0.0, %v1383
  %v1385 = vpop.f32.mrb[0].mxu0
  %1386 = vmatprep.mubr.f32.mxu0 0.0
  %1387 = vmatmul.mubr.f32.gmra.mrb[0].mxu0 %v1150
  %v1388 = vpop.f32.mrb[0].mxu0
  %v1389 = vadd.f32 0.0, %v1388
  %v1390 = vpop.f32.mrb[0].mxu0
  %1391 = vdwg.mxu0
  %v1392 = vrcp.pop %v1152
  %v1393 = vrcp.pop %v1154
  %v1394 = vrcp.pop %v1156
  %v1395 = vrcp.pop %v1158
  %v1396 = vrcp.pop %v1160
  %v1397 = vrcp.pop %v1162
  %v1398 = vrcp.pop %v1164
  %v1399 = vrcp.pop %v1166
  %v1400 = vrcp.pop %v1168
  %v1401 = vrcp.pop %v1170
  %v1402 = vrcp.pop %v1172
  %v1403 = vrcp.pop %v1174
  %v1404 = vrcp.pop %v1176
  %v1405 = vrcp.pop %v1178
  %v1406 = vrcp.pop %v1180
  %v1407 = vrcp.pop %v1182
  %v1408 = vmul.f32 %v1314, %v1392
  %v1409 = vmul.f32 %v1319, %v1393
  %v1410 = vmul.f32 %v1324, %v1394
  %v1411 = vmul.f32 %v1329, %v1395
  %v1412 = vmul.f32 %v1334, %v1396
  %v1413 = vmul.f32 %v1339, %v1397
  %v1414 = vmul.f32 %v1344, %v1398
  %v1415 = vmul.f32 %v1349, %v1399
  %v1416 = vmul.f32 %v1354, %v1400
  %v1417 = vmul.f32 %v1359, %v1401
  %v1418 = vmul.f32 %v1364, %v1402
  %v1419 = vmul.f32 %v1369, %v1403
  %v1420 = vmul.f32 %v1374, %v1404
  %v1421 = vmul.f32 %v1379, %v1405
  %v1422 = vmul.f32 %v1384, %v1406
  %v1423 = vmul.f32 %v1389, %v1407
  %1424 = vset.pattern.permute.xlu0 2
  %1425 = vperm.xlu0 %1424, %v392
  %v1426 = vpop.permute.xlu0 %1425
  %1428 = vset.pattern.permute.xlu0 2
  %1429 = vperm.xlu0 %1428, %v397
  %v1430 = vpop.permute.xlu0 %1429
  %1432 = vset.pattern.permute.xlu0 2
  %1433 = vperm.xlu0 %1432, %v402
  %v1434 = vpop.permute.xlu0 %1433
  %1436 = vset.pattern.permute.xlu0 2
  %1437 = vperm.xlu0 %1436, %v407
  %v1438 = vpop.permute.xlu0 %1437
  %1440 = vset.pattern.permute.xlu0 2
  %1441 = vperm.xlu0 %1440, %v412
  %v1442 = vpop.permute.xlu0 %1441
  %1444 = vset.pattern.permute.xlu0 2
  %1445 = vperm.xlu0 %1444, %v417
  %v1446 = vpop.permute.xlu0 %1445
  %1448 = vset.pattern.permute.xlu0 2
  %1449 = vperm.xlu0 %1448, %v422
  %v1450 = vpop.permute.xlu0 %1449
  %1452 = vset.pattern.permute.xlu0 2
  %1453 = vperm.xlu0 %1452, %v427
  %v1454 = vpop.permute.xlu0 %1453
  %1456 = vset.pattern.permute.xlu0 2
  %1457 = vperm.xlu0 %1456, %v432
  %v1458 = vpop.permute.xlu0 %1457
  %1460 = vset.pattern.permute.xlu0 2
  %1461 = vperm.xlu0 %1460, %v437
  %v1462 = vpop.permute.xlu0 %1461
  %1464 = vset.pattern.permute.xlu0 2
  %1465 = vperm.xlu0 %1464, %v442
  %v1466 = vpop.permute.xlu0 %1465
  %1468 = vset.pattern.permute.xlu0 2
  %1469 = vperm.xlu0 %1468, %v447
  %v1470 = vpop.permute.xlu0 %1469
  %1472 = vset.pattern.permute.xlu0 2
  %1473 = vperm.xlu0 %1472, %v452
  %v1474 = vpop.permute.xlu0 %1473
  %1476 = vset.pattern.permute.xlu0 2
  %1477 = vperm.xlu0 %1476, %v457
  %v1478 = vpop.permute.xlu0 %1477
  %1480 = vset.pattern.permute.xlu0 2
  %1481 = vperm.xlu0 %1480, %v462
  %v1482 = vpop.permute.xlu0 %1481
  %1484 = vset.pattern.permute.xlu0 2
  %1485 = vperm.xlu0 %1484, %v467
  %v1486 = vpop.permute.xlu0 %1485
  %v1488 = vlaneseq
  %v1489 = vshrl.u32 %v1488, 7
  %v1490 = vsub.s32 6, %v1489
  %v1491 = vrot.slane %v486, %v1490
  %v1492 = vadd.f32 %v1426, %v1491
  %v1493 = vadd.f32 %v1430, %v1491
  %v1494 = vadd.f32 %v1434, %v1491
  %v1495 = vadd.f32 %v1438, %v1491
  %v1496 = vadd.f32 %v1442, %v1491
  %v1497 = vadd.f32 %v1446, %v1491
  %v1498 = vadd.f32 %v1450, %v1491
  %v1499 = vadd.f32 %v1454, %v1491
  %v1500 = vadd.f32 %v1458, %v1491
  %v1501 = vadd.f32 %v1462, %v1491
  %v1502 = vadd.f32 %v1466, %v1491
  %v1503 = vadd.f32 %v1470, %v1491
  %v1504 = vadd.f32 %v1474, %v1491
  %v1505 = vadd.f32 %v1478, %v1491
  %v1506 = vadd.f32 %v1482, %v1491
  %v1507 = vadd.f32 %v1486, %v1491
  %v1508 = vmul.f32 %v1492, 0.2
  %v1509 = vmul.f32 %v1493, 0.2
  %v1510 = vmul.f32 %v1494, 0.2
  %v1511 = vmul.f32 %v1495, 0.2
  %v1512 = vmul.f32 %v1496, 0.2
  %v1513 = vmul.f32 %v1497, 0.2
  %v1514 = vmul.f32 %v1498, 0.2
  %v1515 = vmul.f32 %v1499, 0.2
  %v1516 = vmul.f32 %v1500, 0.2
  %v1517 = vmul.f32 %v1501, 0.2
  %v1518 = vmul.f32 %v1502, 0.2
  %v1519 = vmul.f32 %v1503, 0.2
  %v1520 = vmul.f32 %v1504, 0.2
  %v1521 = vmul.f32 %v1505, 0.2
  %v1522 = vmul.f32 %v1506, 0.2
  %v1523 = vmul.f32 %v1507, 0.2
  %v1524 = vmax.f32 %v1492, %v1508
  %v1525 = vmax.f32 %v1493, %v1509
  %v1526 = vmax.f32 %v1494, %v1510
  %v1527 = vmax.f32 %v1495, %v1511
  %v1528 = vmax.f32 %v1496, %v1512
  %v1529 = vmax.f32 %v1497, %v1513
  %v1530 = vmax.f32 %v1498, %v1514
  %v1531 = vmax.f32 %v1499, %v1515
  %v1532 = vmax.f32 %v1500, %v1516
  %v1533 = vmax.f32 %v1501, %v1517
  %v1534 = vmax.f32 %v1502, %v1518
  %v1535 = vmax.f32 %v1503, %v1519
  %v1536 = vmax.f32 %v1504, %v1520
  %v1537 = vmax.f32 %v1505, %v1521
  %v1538 = vmax.f32 %v1506, %v1522
  %v1539 = vmax.f32 %v1507, %v1523
  %v1540 = vadd.f32 %v1524, %v74
  %v1541 = vadd.f32 %v1525, %v75
  %v1542 = vadd.f32 %v1526, %v76
  %v1543 = vadd.f32 %v1527, %v77
  %v1544 = vadd.f32 %v1528, %v78
  %v1545 = vadd.f32 %v1529, %v79
  %v1546 = vadd.f32 %v1530, %v80
  %v1547 = vadd.f32 %v1531, %v81
  %v1548 = vadd.f32 %v1532, %v82
  %v1549 = vadd.f32 %v1533, %v83
  %v1550 = vadd.f32 %v1534, %v84
  %v1551 = vadd.f32 %v1535, %v85
  %v1552 = vadd.f32 %v1536, %v86
  %v1553 = vadd.f32 %v1537, %v87
  %v1554 = vadd.f32 %v1538, %v88
  %v1555 = vadd.f32 %v1539, %v89
  %1556 = vmax.xlane.f32.xlu0 %v1540
  %v1557 = vpop.xlane.xlu0 %1556
  %1558 = vmax.xlane.f32.xlu0 %v1541
  %v1559 = vpop.xlane.xlu0 %1558
  %1560 = vmax.xlane.f32.xlu0 %v1542
  %v1561 = vpop.xlane.xlu0 %1560
  %1562 = vmax.xlane.f32.xlu0 %v1543
  %v1563 = vpop.xlane.xlu0 %1562
  %1564 = vmax.xlane.f32.xlu0 %v1544
  %v1565 = vpop.xlane.xlu0 %1564
  %1566 = vmax.xlane.f32.xlu0 %v1545
  %v1567 = vpop.xlane.xlu0 %1566
  %1568 = vmax.xlane.f32.xlu0 %v1546
  %v1569 = vpop.xlane.xlu0 %1568
  %1570 = vmax.xlane.f32.xlu0 %v1547
  %v1571 = vpop.xlane.xlu0 %1570
  %1572 = vmax.xlane.f32.xlu0 %v1548
  %v1573 = vpop.xlane.xlu0 %1572
  %1574 = vmax.xlane.f32.xlu0 %v1549
  %v1575 = vpop.xlane.xlu0 %1574
  %1576 = vmax.xlane.f32.xlu0 %v1550
  %v1577 = vpop.xlane.xlu0 %1576
  %1578 = vmax.xlane.f32.xlu0 %v1551
  %v1579 = vpop.xlane.xlu0 %1578
  %1580 = vmax.xlane.f32.xlu0 %v1552
  %v1581 = vpop.xlane.xlu0 %1580
  %1582 = vmax.xlane.f32.xlu0 %v1553
  %v1583 = vpop.xlane.xlu0 %1582
  %1584 = vmax.xlane.f32.xlu0 %v1554
  %v1585 = vpop.xlane.xlu0 %1584
  %1586 = vmax.xlane.f32.xlu0 %v1555
  %v1587 = vpop.xlane.xlu0 %1586
  %v1588 = vsub.f32 %v1540, %v1557
  %v1589 = vsub.f32 %v1541, %v1559
  %v1590 = vsub.f32 %v1542, %v1561
  %v1591 = vsub.f32 %v1543, %v1563
  %v1592 = vsub.f32 %v1544, %v1565
  %v1593 = vsub.f32 %v1545, %v1567
  %v1594 = vsub.f32 %v1546, %v1569
  %v1595 = vsub.f32 %v1547, %v1571
  %v1596 = vsub.f32 %v1548, %v1573
  %v1597 = vsub.f32 %v1549, %v1575
  %v1598 = vsub.f32 %v1550, %v1577
  %v1599 = vsub.f32 %v1551, %v1579
  %v1600 = vsub.f32 %v1552, %v1581
  %v1601 = vsub.f32 %v1553, %v1583
  %v1602 = vsub.f32 %v1554, %v1585
  %v1603 = vsub.f32 %v1555, %v1587
  %v1604 = vmul.f32 %v1588, 1.442695
  %v1605 = vpow.pop %v1604
  %v1606 = vmul.f32 %v1589, 1.442695
  %v1607 = vpow.pop %v1606
  %v1608 = vmul.f32 %v1590, 1.442695
  %v1609 = vpow.pop %v1608
  %v1610 = vmul.f32 %v1591, 1.442695
  %v1611 = vpow.pop %v1610
  %v1612 = vmul.f32 %v1592, 1.442695
  %v1613 = vpow.pop %v1612
  %v1614 = vmul.f32 %v1593, 1.442695
  %v1615 = vpow.pop %v1614
  %v1616 = vmul.f32 %v1594, 1.442695
  %v1617 = vpow.pop %v1616
  %v1618 = vmul.f32 %v1595, 1.442695
  %v1619 = vpow.pop %v1618
  %v1620 = vmul.f32 %v1596, 1.442695
  %v1621 = vpow.pop %v1620
  %v1622 = vmul.f32 %v1597, 1.442695
  %v1623 = vpow.pop %v1622
  %v1624 = vmul.f32 %v1598, 1.442695
  %v1625 = vpow.pop %v1624
  %v1626 = vmul.f32 %v1599, 1.442695
  %v1627 = vpow.pop %v1626
  %v1628 = vmul.f32 %v1600, 1.442695
  %v1629 = vpow.pop %v1628
  %v1630 = vmul.f32 %v1601, 1.442695
  %v1631 = vpow.pop %v1630
  %v1632 = vmul.f32 %v1602, 1.442695
  %v1633 = vpow.pop %v1632
  %v1634 = vmul.f32 %v1603, 1.442695
  %v1635 = vpow.pop %v1634
  %1636 = vadd.xlane.f32.xlu0 %v1605
  %v1637 = vpop.xlane.xlu0 %1636
  %1638 = vadd.xlane.f32.xlu0 %v1607
  %v1639 = vpop.xlane.xlu0 %1638
  %1640 = vadd.xlane.f32.xlu0 %v1609
  %v1641 = vpop.xlane.xlu0 %1640
  %1642 = vadd.xlane.f32.xlu0 %v1611
  %v1643 = vpop.xlane.xlu0 %1642
  %1644 = vadd.xlane.f32.xlu0 %v1613
  %v1645 = vpop.xlane.xlu0 %1644
  %1646 = vadd.xlane.f32.xlu0 %v1615
  %v1647 = vpop.xlane.xlu0 %1646
  %1648 = vadd.xlane.f32.xlu0 %v1617
  %v1649 = vpop.xlane.xlu0 %1648
  %1650 = vadd.xlane.f32.xlu0 %v1619
  %v1651 = vpop.xlane.xlu0 %1650
  %1652 = vadd.xlane.f32.xlu0 %v1621
  %v1653 = vpop.xlane.xlu0 %1652
  %1654 = vadd.xlane.f32.xlu0 %v1623
  %v1655 = vpop.xlane.xlu0 %1654
  %1656 = vadd.xlane.f32.xlu0 %v1625
  %v1657 = vpop.xlane.xlu0 %1656
  %1658 = vadd.xlane.f32.xlu0 %v1627
  %v1659 = vpop.xlane.xlu0 %1658
  %1660 = vadd.xlane.f32.xlu0 %v1629
  %v1661 = vpop.xlane.xlu0 %1660
  %1662 = vadd.xlane.f32.xlu0 %v1631
  %v1663 = vpop.xlane.xlu0 %1662
  %1664 = vadd.xlane.f32.xlu0 %v1633
  %v1665 = vpop.xlane.xlu0 %1664
  %1666 = vadd.xlane.f32.xlu0 %v1635
  %v1667 = vpop.xlane.xlu0 %1666
  %1668 = vrot.lane.b32.xlu0 %v247, 64
  %v1669 = vpop.permute.xlu0 %1668
  %1670 = vrot.lane.b32.xlu0 %v252, 64
  %v1671 = vpop.permute.xlu0 %1670
  %1672 = vrot.lane.b32.xlu0 %v257, 64
  %v1673 = vpop.permute.xlu0 %1672
  %1674 = vrot.lane.b32.xlu0 %v262, 64
  %v1675 = vpop.permute.xlu0 %1674
  %1676 = vrot.lane.b32.xlu0 %v267, 64
  %v1677 = vpop.permute.xlu0 %1676
  %1678 = vrot.lane.b32.xlu0 %v272, 64
  %v1679 = vpop.permute.xlu0 %1678
  %1680 = vrot.lane.b32.xlu0 %v277, 64
  %v1681 = vpop.permute.xlu0 %1680
  %1682 = vrot.lane.b32.xlu0 %v282, 64
  %v1683 = vpop.permute.xlu0 %1682
  %1684 = vrot.lane.b32.xlu0 %v287, 64
  %v1685 = vpop.permute.xlu0 %1684
  %1686 = vrot.lane.b32.xlu0 %v292, 64
  %v1687 = vpop.permute.xlu0 %1686
  %1688 = vrot.lane.b32.xlu0 %v297, 64
  %v1689 = vpop.permute.xlu0 %1688
  %1690 = vrot.lane.b32.xlu0 %v302, 64
  %v1691 = vpop.permute.xlu0 %1690
  %1692 = vrot.lane.b32.xlu0 %v307, 64
  %v1693 = vpop.permute.xlu0 %1692
  %1694 = vrot.lane.b32.xlu0 %v312, 64
  %v1695 = vpop.permute.xlu0 %1694
  %1696 = vrot.lane.b32.xlu0 %v317, 64
  %v1697 = vpop.permute.xlu0 %1696
  %1698 = vrot.lane.b32.xlu0 %v322, 64
  %v1699 = vpop.permute.xlu0 %1698
  %1716 = vmatprep.subr.mxu0 0.0
  %1717 = vmatpush1.msra.mxu0 %v1669
  %1718 = vmatprep.subr.mxu0 0.0
  %1719 = vmatpush1.msra.mxu0 %v1671
  %1720 = vmatprep.subr.mxu0 0.0
  %1721 = vmatpush1.msra.mxu0 %v1673
  %1722 = vmatprep.subr.mxu0 0.0
  %1723 = vmatpush1.msra.mxu0 %v1675
  %1724 = vmatprep.subr.mxu0 0.0
  %1725 = vmatpush1.msra.mxu0 %v1677
  %1726 = vmatprep.subr.mxu0 0.0
  %1727 = vmatpush1.msra.mxu0 %v1679
  %1728 = vmatprep.subr.mxu0 0.0
  %1729 = vmatpush1.msra.mxu0 %v1681
  %1730 = vmatprep.subr.mxu0 0.0
  %1731 = vmatpush1.msra.mxu0 %v1683
  %1732 = vmatprep.subr.mxu0 0.0
  %1733 = vmatpush1.msra.mxu0 %v1685
  %1734 = vmatprep.subr.mxu0 0.0
  %1735 = vmatpush1.msra.mxu0 %v1687
  %1736 = vmatprep.subr.mxu0 0.0
  %1737 = vmatpush1.msra.mxu0 %v1689
  %1738 = vmatprep.subr.mxu0 0.0
  %1739 = vmatpush1.msra.mxu0 %v1691
  %1740 = vmatprep.subr.mxu0 0.0
  %1741 = vmatpush1.msra.mxu0 %v1693
  %1742 = vmatprep.subr.mxu0 0.0
  %1743 = vmatpush1.msra.mxu0 %v1695
  %1744 = vmatprep.subr.mxu0 0.0
  %1745 = vmatpush1.msra.mxu0 %v1697
  %1746 = vmatprep.subr.mxu0 0.0
  %1747 = vmatpush1.msra.mxu0 %v1699
  %1748 = vmatprep.subr.mxu0 0.0
  %1749 = vmatpush1.msra.mxu0 0.0
  %1750 = vmatprep.subr.mxu0 0.0
  %1751 = vmatpush1.msra.mxu0 0.0
  %1752 = vmatprep.subr.mxu0 0.0
  %1753 = vmatpush1.msra.mxu0 0.0
  %1754 = vmatprep.subr.mxu0 0.0
  %1755 = vmatpush1.msra.mxu0 0.0
  %1756 = vmatprep.subr.mxu0 0.0
  %1757 = vmatpush1.msra.mxu0 0.0
  %1758 = vmatprep.subr.mxu0 0.0
  %1759 = vmatpush1.msra.mxu0 0.0
  %1760 = vmatprep.subr.mxu0 0.0
  %1761 = vmatpush1.msra.mxu0 0.0
  %1762 = vmatprep.subr.mxu0 0.0
  %1763 = vmatpush1.msra.mxu0 0.0
  %1764 = vmatprep.subr.mxu0 0.0
  %1765 = vmatpush1.msra.mxu0 0.0
  %1766 = vmatprep.subr.mxu0 0.0
  %1767 = vmatpush1.msra.mxu0 0.0
  %1768 = vmatprep.subr.mxu0 0.0
  %1769 = vmatpush1.msra.mxu0 0.0
  %1770 = vmatprep.subr.mxu0 0.0
  %1771 = vmatpush1.msra.mxu0 0.0
  %1772 = vmatprep.subr.mxu0 0.0
  %1773 = vmatpush1.msra.mxu0 0.0
  %1774 = vmatprep.subr.mxu0 0.0
  %1775 = vmatpush1.msra.mxu0 0.0
  %1776 = vmatprep.subr.mxu0 0.0
  %1777 = vmatpush1.msra.mxu0 0.0
  %1778 = vmatprep.subr.mxu0 0.0
  %1779 = vmatpush1.msra.mxu0 0.0
  %1780 = vmatprep.mubr.f32.mxu0 0.0
  %1781 = vmatmul.mubr.f32.gmra.mrb[0].mxu0 %v1605
  %v1782 = vpop.f32.mrb[0].mxu0
  %v1783 = vadd.f32 0.0, %v1782
  %v1784 = vpop.f32.mrb[0].mxu0
  %1785 = vmatprep.mubr.f32.mxu0 0.0
  %1786 = vmatmul.mubr.f32.gmra.mrb[0].mxu0 %v1607
  %v1787 = vpop.f32.mrb[0].mxu0
  %v1788 = vadd.f32 0.0, %v1787
  %v1789 = vpop.f32.mrb[0].mxu0
  %1790 = vmatprep.mubr.f32.mxu0 0.0
  %1791 = vmatmul.mubr.f32.gmra.mrb[0].mxu0 %v1609
  %v1792 = vpop.f32.mrb[0].mxu0
  %v1793 = vadd.f32 0.0, %v1792
  %v1794 = vpop.f32.mrb[0].mxu0
  %1795 = vmatprep.mubr.f32.mxu0 0.0
  %1796 = vmatmul.mubr.f32.gmra.mrb[0].mxu0 %v1611
  %v1797 = vpop.f32.mrb[0].mxu0
  %v1798 = vadd.f32 0.0, %v1797
  %v1799 = vpop.f32.mrb[0].mxu0
  %1800 = vmatprep.mubr.f32.mxu0 0.0
  %1801 = vmatmul.mubr.f32.gmra.mrb[0].mxu0 %v1613
  %v1802 = vpop.f32.mrb[0].mxu0
  %v1803 = vadd.f32 0.0, %v1802
  %v1804 = vpop.f32.mrb[0].mxu0
  %1805 = vmatprep.mubr.f32.mxu0 0.0
  %1806 = vmatmul.mubr.f32.gmra.mrb[0].mxu0 %v1615
  %v1807 = vpop.f32.mrb[0].mxu0
  %v1808 = vadd.f32 0.0, %v1807
  %v1809 = vpop.f32.mrb[0].mxu0
  %1810 = vmatprep.mubr.f32.mxu0 0.0
  %1811 = vmatmul.mubr.f32.gmra.mrb[0].mxu0 %v1617
  %v1812 = vpop.f32.mrb[0].mxu0
  %v1813 = vadd.f32 0.0, %v1812
  %v1814 = vpop.f32.mrb[0].mxu0
  %1815 = vmatprep.mubr.f32.mxu0 0.0
  %1816 = vmatmul.mubr.f32.gmra.mrb[0].mxu0 %v1619
  %v1817 = vpop.f32.mrb[0].mxu0
  %v1818 = vadd.f32 0.0, %v1817
  %v1819 = vpop.f32.mrb[0].mxu0
  %1820 = vmatprep.mubr.f32.mxu0 0.0
  %1821 = vmatmul.mubr.f32.gmra.mrb[0].mxu0 %v1621
  %v1822 = vpop.f32.mrb[0].mxu0
  %v1823 = vadd.f32 0.0, %v1822
  %v1824 = vpop.f32.mrb[0].mxu0
  %1825 = vmatprep.mubr.f32.mxu0 0.0
  %1826 = vmatmul.mubr.f32.gmra.mrb[0].mxu0 %v1623
  %v1827 = vpop.f32.mrb[0].mxu0
  %v1828 = vadd.f32 0.0, %v1827
  %v1829 = vpop.f32.mrb[0].mxu0
  %1830 = vmatprep.mubr.f32.mxu0 0.0
  %1831 = vmatmul.mubr.f32.gmra.mrb[0].mxu0 %v1625
  %v1832 = vpop.f32.mrb[0].mxu0
  %v1833 = vadd.f32 0.0, %v1832
  %v1834 = vpop.f32.mrb[0].mxu0
  %1835 = vmatprep.mubr.f32.mxu0 0.0
  %1836 = vmatmul.mubr.f32.gmra.mrb[0].mxu0 %v1627
  %v1837 = vpop.f32.mrb[0].mxu0
  %v1838 = vadd.f32 0.0, %v1837
  %v1839 = vpop.f32.mrb[0].mxu0
  %1840 = vmatprep.mubr.f32.mxu0 0.0
  %1841 = vmatmul.mubr.f32.gmra.mrb[0].mxu0 %v1629
  %v1842 = vpop.f32.mrb[0].mxu0
  %v1843 = vadd.f32 0.0, %v1842
  %v1844 = vpop.f32.mrb[0].mxu0
  %1845 = vmatprep.mubr.f32.mxu0 0.0
  %1846 = vmatmul.mubr.f32.gmra.mrb[0].mxu0 %v1631
  %v1847 = vpop.f32.mrb[0].mxu0
  %v1848 = vadd.f32 0.0, %v1847
  %v1849 = vpop.f32.mrb[0].mxu0
  %1850 = vmatprep.mubr.f32.mxu0 0.0
  %1851 = vmatmul.mubr.f32.gmra.mrb[0].mxu0 %v1633
  %v1852 = vpop.f32.mrb[0].mxu0
  %v1853 = vadd.f32 0.0, %v1852
  %v1854 = vpop.f32.mrb[0].mxu0
  %1855 = vmatprep.mubr.f32.mxu0 0.0
  %1856 = vmatmul.mubr.f32.gmra.mrb[0].mxu0 %v1635
  %v1857 = vpop.f32.mrb[0].mxu0
  %v1858 = vadd.f32 0.0, %v1857
  %v1859 = vpop.f32.mrb[0].mxu0
  %1860 = vdwg.mxu0
  %v1861 = vrcp.pop %v1637
  %v1862 = vrcp.pop %v1639
  %v1863 = vrcp.pop %v1641
  %v1864 = vrcp.pop %v1643
  %v1865 = vrcp.pop %v1645
  %v1866 = vrcp.pop %v1647
  %v1867 = vrcp.pop %v1649
  %v1868 = vrcp.pop %v1651
  %v1869 = vrcp.pop %v1653
  %v1870 = vrcp.pop %v1655
  %v1871 = vrcp.pop %v1657
  %v1872 = vrcp.pop %v1659
  %v1873 = vrcp.pop %v1661
  %v1874 = vrcp.pop %v1663
  %v1875 = vrcp.pop %v1665
  %v1876 = vrcp.pop %v1667
  %v1877 = vmul.f32 %v1783, %v1861
  %v1878 = vmul.f32 %v1788, %v1862
  %v1879 = vmul.f32 %v1793, %v1863
  %v1880 = vmul.f32 %v1798, %v1864
  %v1881 = vmul.f32 %v1803, %v1865
  %v1882 = vmul.f32 %v1808, %v1866
  %v1883 = vmul.f32 %v1813, %v1867
  %v1884 = vmul.f32 %v1818, %v1868
  %v1885 = vmul.f32 %v1823, %v1869
  %v1886 = vmul.f32 %v1828, %v1870
  %v1887 = vmul.f32 %v1833, %v1871
  %v1888 = vmul.f32 %v1838, %v1872
  %v1889 = vmul.f32 %v1843, %v1873
  %v1890 = vmul.f32 %v1848, %v1874
  %v1891 = vmul.f32 %v1853, %v1875
  %v1892 = vmul.f32 %v1858, %v1876
  %1893 = vset.pattern.permute.xlu0 3
  %1894 = vperm.xlu0 %1893, %v392
  %v1895 = vpop.permute.xlu0 %1894
  %1897 = vset.pattern.permute.xlu0 3
  %1898 = vperm.xlu0 %1897, %v397
  %v1899 = vpop.permute.xlu0 %1898
  %1901 = vset.pattern.permute.xlu0 3
  %1902 = vperm.xlu0 %1901, %v402
  %v1903 = vpop.permute.xlu0 %1902
  %1905 = vset.pattern.permute.xlu0 3
  %1906 = vperm.xlu0 %1905, %v407
  %v1907 = vpop.permute.xlu0 %1906
  %1909 = vset.pattern.permute.xlu0 3
  %1910 = vperm.xlu0 %1909, %v412
  %v1911 = vpop.permute.xlu0 %1910
  %1913 = vset.pattern.permute.xlu0 3
  %1914 = vperm.xlu0 %1913, %v417
  %v1915 = vpop.permute.xlu0 %1914
  %1917 = vset.pattern.permute.xlu0 3
  %1918 = vperm.xlu0 %1917, %v422
  %v1919 = vpop.permute.xlu0 %1918
  %1921 = vset.pattern.permute.xlu0 3
  %1922 = vperm.xlu0 %1921, %v427
  %v1923 = vpop.permute.xlu0 %1922
  %1925 = vset.pattern.permute.xlu0 3
  %1926 = vperm.xlu0 %1925, %v432
  %v1927 = vpop.permute.xlu0 %1926
  %1929 = vset.pattern.permute.xlu0 3
  %1930 = vperm.xlu0 %1929, %v437
  %v1931 = vpop.permute.xlu0 %1930
  %1933 = vset.pattern.permute.xlu0 3
  %1934 = vperm.xlu0 %1933, %v442
  %v1935 = vpop.permute.xlu0 %1934
  %1937 = vset.pattern.permute.xlu0 3
  %1938 = vperm.xlu0 %1937, %v447
  %v1939 = vpop.permute.xlu0 %1938
  %1941 = vset.pattern.permute.xlu0 3
  %1942 = vperm.xlu0 %1941, %v452
  %v1943 = vpop.permute.xlu0 %1942
  %1945 = vset.pattern.permute.xlu0 3
  %1946 = vperm.xlu0 %1945, %v457
  %v1947 = vpop.permute.xlu0 %1946
  %1949 = vset.pattern.permute.xlu0 3
  %1950 = vperm.xlu0 %1949, %v462
  %v1951 = vpop.permute.xlu0 %1950
  %1953 = vset.pattern.permute.xlu0 3
  %1954 = vperm.xlu0 %1953, %v467
  %v1955 = vpop.permute.xlu0 %1954
  %v1957 = vlaneseq
  %v1958 = vshrl.u32 %v1957, 7
  %v1959 = vsub.s32 7, %v1958
  %v1960 = vrot.slane %v486, %v1959
  %v1961 = vadd.f32 %v1895, %v1960
  %v1962 = vadd.f32 %v1899, %v1960
  %v1963 = vadd.f32 %v1903, %v1960
  %v1964 = vadd.f32 %v1907, %v1960
  %v1965 = vadd.f32 %v1911, %v1960
  %v1966 = vadd.f32 %v1915, %v1960
  %v1967 = vadd.f32 %v1919, %v1960
  %v1968 = vadd.f32 %v1923, %v1960
  %v1969 = vadd.f32 %v1927, %v1960
  %v1970 = vadd.f32 %v1931, %v1960
  %v1971 = vadd.f32 %v1935, %v1960
  %v1972 = vadd.f32 %v1939, %v1960
  %v1973 = vadd.f32 %v1943, %v1960
  %v1974 = vadd.f32 %v1947, %v1960
  %v1975 = vadd.f32 %v1951, %v1960
  %v1976 = vadd.f32 %v1955, %v1960
  %v1977 = vmul.f32 %v1961, 0.2
  %v1978 = vmul.f32 %v1962, 0.2
  %v1979 = vmul.f32 %v1963, 0.2
  %v1980 = vmul.f32 %v1964, 0.2
  %v1981 = vmul.f32 %v1965, 0.2
  %v1982 = vmul.f32 %v1966, 0.2
  %v1983 = vmul.f32 %v1967, 0.2
  %v1984 = vmul.f32 %v1968, 0.2
  %v1985 = vmul.f32 %v1969, 0.2
  %v1986 = vmul.f32 %v1970, 0.2
  %v1987 = vmul.f32 %v1971, 0.2
  %v1988 = vmul.f32 %v1972, 0.2
  %v1989 = vmul.f32 %v1973, 0.2
  %v1990 = vmul.f32 %v1974, 0.2
  %v1991 = vmul.f32 %v1975, 0.2
  %v1992 = vmul.f32 %v1976, 0.2
  %v1993 = vmax.f32 %v1961, %v1977
  %v1994 = vmax.f32 %v1962, %v1978
  %v1995 = vmax.f32 %v1963, %v1979
  %v1996 = vmax.f32 %v1964, %v1980
  %v1997 = vmax.f32 %v1965, %v1981
  %v1998 = vmax.f32 %v1966, %v1982
  %v1999 = vmax.f32 %v1967, %v1983
  %v2000 = vmax.f32 %v1968, %v1984
  %v2001 = vmax.f32 %v1969, %v1985
  %v2002 = vmax.f32 %v1970, %v1986
  %v2003 = vmax.f32 %v1971, %v1987
  %v2004 = vmax.f32 %v1972, %v1988
  %v2005 = vmax.f32 %v1973, %v1989
  %v2006 = vmax.f32 %v1974, %v1990
  %v2007 = vmax.f32 %v1975, %v1991
  %v2008 = vmax.f32 %v1976, %v1992
  %v2009 = vadd.f32 %v1993, %v74
  %v2010 = vadd.f32 %v1994, %v75
  %v2011 = vadd.f32 %v1995, %v76
  %v2012 = vadd.f32 %v1996, %v77
  %v2013 = vadd.f32 %v1997, %v78
  %v2014 = vadd.f32 %v1998, %v79
  %v2015 = vadd.f32 %v1999, %v80
  %v2016 = vadd.f32 %v2000, %v81
  %v2017 = vadd.f32 %v2001, %v82
  %v2018 = vadd.f32 %v2002, %v83
  %v2019 = vadd.f32 %v2003, %v84
  %v2020 = vadd.f32 %v2004, %v85
  %v2021 = vadd.f32 %v2005, %v86
  %v2022 = vadd.f32 %v2006, %v87
  %v2023 = vadd.f32 %v2007, %v88
  %v2024 = vadd.f32 %v2008, %v89
  %2025 = vmax.xlane.f32.xlu0 %v2009
  %v2026 = vpop.xlane.xlu0 %2025
  %2027 = vmax.xlane.f32.xlu0 %v2010
  %v2028 = vpop.xlane.xlu0 %2027
  %2029 = vmax.xlane.f32.xlu0 %v2011
  %v2030 = vpop.xlane.xlu0 %2029
  %2031 = vmax.xlane.f32.xlu0 %v2012
  %v2032 = vpop.xlane.xlu0 %2031
  %2033 = vmax.xlane.f32.xlu0 %v2013
  %v2034 = vpop.xlane.xlu0 %2033
  %2035 = vmax.xlane.f32.xlu0 %v2014
  %v2036 = vpop.xlane.xlu0 %2035
  %2037 = vmax.xlane.f32.xlu0 %v2015
  %v2038 = vpop.xlane.xlu0 %2037
  %2039 = vmax.xlane.f32.xlu0 %v2016
  %v2040 = vpop.xlane.xlu0 %2039
  %2041 = vmax.xlane.f32.xlu0 %v2017
  %v2042 = vpop.xlane.xlu0 %2041
  %2043 = vmax.xlane.f32.xlu0 %v2018
  %v2044 = vpop.xlane.xlu0 %2043
  %2045 = vmax.xlane.f32.xlu0 %v2019
  %v2046 = vpop.xlane.xlu0 %2045
  %2047 = vmax.xlane.f32.xlu0 %v2020
  %v2048 = vpop.xlane.xlu0 %2047
  %2049 = vmax.xlane.f32.xlu0 %v2021
  %v2050 = vpop.xlane.xlu0 %2049
  %2051 = vmax.xlane.f32.xlu0 %v2022
  %v2052 = vpop.xlane.xlu0 %2051
  %2053 = vmax.xlane.f32.xlu0 %v2023
  %v2054 = vpop.xlane.xlu0 %2053
  %2055 = vmax.xlane.f32.xlu0 %v2024
  %v2056 = vpop.xlane.xlu0 %2055
  %v2057 = vsub.f32 %v2009, %v2026
  %v2058 = vsub.f32 %v2010, %v2028
  %v2059 = vsub.f32 %v2011, %v2030
  %v2060 = vsub.f32 %v2012, %v2032
  %v2061 = vsub.f32 %v2013, %v2034
  %v2062 = vsub.f32 %v2014, %v2036
  %v2063 = vsub.f32 %v2015, %v2038
  %v2064 = vsub.f32 %v2016, %v2040
  %v2065 = vsub.f32 %v2017, %v2042
  %v2066 = vsub.f32 %v2018, %v2044
  %v2067 = vsub.f32 %v2019, %v2046
  %v2068 = vsub.f32 %v2020, %v2048
  %v2069 = vsub.f32 %v2021, %v2050
  %v2070 = vsub.f32 %v2022, %v2052
  %v2071 = vsub.f32 %v2023, %v2054
  %v2072 = vsub.f32 %v2024, %v2056
  %v2073 = vmul.f32 %v2057, 1.442695
  %v2074 = vpow.pop %v2073
  %v2075 = vmul.f32 %v2058, 1.442695
  %v2076 = vpow.pop %v2075
  %v2077 = vmul.f32 %v2059, 1.442695
  %v2078 = vpow.pop %v2077
  %v2079 = vmul.f32 %v2060, 1.442695
  %v2080 = vpow.pop %v2079
  %v2081 = vmul.f32 %v2061, 1.442695
  %v2082 = vpow.pop %v2081
  %v2083 = vmul.f32 %v2062, 1.442695
  %v2084 = vpow.pop %v2083
  %v2085 = vmul.f32 %v2063, 1.442695
  %v2086 = vpow.pop %v2085
  %v2087 = vmul.f32 %v2064, 1.442695
  %v2088 = vpow.pop %v2087
  %v2089 = vmul.f32 %v2065, 1.442695
  %v2090 = vpow.pop %v2089
  %v2091 = vmul.f32 %v2066, 1.442695
  %v2092 = vpow.pop %v2091
  %v2093 = vmul.f32 %v2067, 1.442695
  %v2094 = vpow.pop %v2093
  %v2095 = vmul.f32 %v2068, 1.442695
  %v2096 = vpow.pop %v2095
  %v2097 = vmul.f32 %v2069, 1.442695
  %v2098 = vpow.pop %v2097
  %v2099 = vmul.f32 %v2070, 1.442695
  %v2100 = vpow.pop %v2099
  %v2101 = vmul.f32 %v2071, 1.442695
  %v2102 = vpow.pop %v2101
  %v2103 = vmul.f32 %v2072, 1.442695
  %v2104 = vpow.pop %v2103
  %2105 = vadd.xlane.f32.xlu0 %v2074
  %v2106 = vpop.xlane.xlu0 %2105
  %2107 = vadd.xlane.f32.xlu0 %v2076
  %v2108 = vpop.xlane.xlu0 %2107
  %2109 = vadd.xlane.f32.xlu0 %v2078
  %v2110 = vpop.xlane.xlu0 %2109
  %2111 = vadd.xlane.f32.xlu0 %v2080
  %v2112 = vpop.xlane.xlu0 %2111
  %2113 = vadd.xlane.f32.xlu0 %v2082
  %v2114 = vpop.xlane.xlu0 %2113
  %2115 = vadd.xlane.f32.xlu0 %v2084
  %v2116 = vpop.xlane.xlu0 %2115
  %2117 = vadd.xlane.f32.xlu0 %v2086
  %v2118 = vpop.xlane.xlu0 %2117
  %2119 = vadd.xlane.f32.xlu0 %v2088
  %v2120 = vpop.xlane.xlu0 %2119
  %2121 = vadd.xlane.f32.xlu0 %v2090
  %v2122 = vpop.xlane.xlu0 %2121
  %2123 = vadd.xlane.f32.xlu0 %v2092
  %v2124 = vpop.xlane.xlu0 %2123
  %2125 = vadd.xlane.f32.xlu0 %v2094
  %v2126 = vpop.xlane.xlu0 %2125
  %2127 = vadd.xlane.f32.xlu0 %v2096
  %v2128 = vpop.xlane.xlu0 %2127
  %2129 = vadd.xlane.f32.xlu0 %v2098
  %v2130 = vpop.xlane.xlu0 %2129
  %2131 = vadd.xlane.f32.xlu0 %v2100
  %v2132 = vpop.xlane.xlu0 %2131
  %2133 = vadd.xlane.f32.xlu0 %v2102
  %v2134 = vpop.xlane.xlu0 %2133
  %2135 = vadd.xlane.f32.xlu0 %v2104
  %v2136 = vpop.xlane.xlu0 %2135
  %2137 = vrot.lane.b32.xlu0 %v247, 32
  %v2138 = vpop.permute.xlu0 %2137
  %2139 = vrot.lane.b32.xlu0 %v252, 32
  %v2140 = vpop.permute.xlu0 %2139
  %2141 = vrot.lane.b32.xlu0 %v257, 32
  %v2142 = vpop.permute.xlu0 %2141
  %2143 = vrot.lane.b32.xlu0 %v262, 32
  %v2144 = vpop.permute.xlu0 %2143
  %2145 = vrot.lane.b32.xlu0 %v267, 32
  %v2146 = vpop.permute.xlu0 %2145
  %2147 = vrot.lane.b32.xlu0 %v272, 32
  %v2148 = vpop.permute.xlu0 %2147
  %2149 = vrot.lane.b32.xlu0 %v277, 32
  %v2150 = vpop.permute.xlu0 %2149
  %2151 = vrot.lane.b32.xlu0 %v282, 32
  %v2152 = vpop.permute.xlu0 %2151
  %2153 = vrot.lane.b32.xlu0 %v287, 32
  %v2154 = vpop.permute.xlu0 %2153
  %2155 = vrot.lane.b32.xlu0 %v292, 32
  %v2156 = vpop.permute.xlu0 %2155
  %2157 = vrot.lane.b32.xlu0 %v297, 32
  %v2158 = vpop.permute.xlu0 %2157
  %2159 = vrot.lane.b32.xlu0 %v302, 32
  %v2160 = vpop.permute.xlu0 %2159
  %2161 = vrot.lane.b32.xlu0 %v307, 32
  %v2162 = vpop.permute.xlu0 %2161
  %2163 = vrot.lane.b32.xlu0 %v312, 32
  %v2164 = vpop.permute.xlu0 %2163
  %2165 = vrot.lane.b32.xlu0 %v317, 32
  %v2166 = vpop.permute.xlu0 %2165
  %2167 = vrot.lane.b32.xlu0 %v322, 32
  %v2168 = vpop.permute.xlu0 %2167
  %2185 = vmatprep.subr.mxu0 0.0
  %2186 = vmatpush1.msra.mxu0 %v2138
  %2187 = vmatprep.subr.mxu0 0.0
  %2188 = vmatpush1.msra.mxu0 %v2140
  %2189 = vmatprep.subr.mxu0 0.0
  %2190 = vmatpush1.msra.mxu0 %v2142
  %2191 = vmatprep.subr.mxu0 0.0
  %2192 = vmatpush1.msra.mxu0 %v2144
  %2193 = vmatprep.subr.mxu0 0.0
  %2194 = vmatpush1.msra.mxu0 %v2146
  %2195 = vmatprep.subr.mxu0 0.0
  %2196 = vmatpush1.msra.mxu0 %v2148
  %2197 = vmatprep.subr.mxu0 0.0
  %2198 = vmatpush1.msra.mxu0 %v2150
  %2199 = vmatprep.subr.mxu0 0.0
  %2200 = vmatpush1.msra.mxu0 %v2152
  %2201 = vmatprep.subr.mxu0 0.0
  %2202 = vmatpush1.msra.mxu0 %v2154
  %2203 = vmatprep.subr.mxu0 0.0
  %2204 = vmatpush1.msra.mxu0 %v2156
  %2205 = vmatprep.subr.mxu0 0.0
  %2206 = vmatpush1.msra.mxu0 %v2158
  %2207 = vmatprep.subr.mxu0 0.0
  %2208 = vmatpush1.msra.mxu0 %v2160
  %2209 = vmatprep.subr.mxu0 0.0
  %2210 = vmatpush1.msra.mxu0 %v2162
  %2211 = vmatprep.subr.mxu0 0.0
  %2212 = vmatpush1.msra.mxu0 %v2164
  %2213 = vmatprep.subr.mxu0 0.0
  %2214 = vmatpush1.msra.mxu0 %v2166
  %2215 = vmatprep.subr.mxu0 0.0
  %2216 = vmatpush1.msra.mxu0 %v2168
  %2217 = vmatprep.subr.mxu0 0.0
  %2218 = vmatpush1.msra.mxu0 0.0
  %2219 = vmatprep.subr.mxu0 0.0
  %2220 = vmatpush1.msra.mxu0 0.0
  %2221 = vmatprep.subr.mxu0 0.0
  %2222 = vmatpush1.msra.mxu0 0.0
  %2223 = vmatprep.subr.mxu0 0.0
  %2224 = vmatpush1.msra.mxu0 0.0
  %2225 = vmatprep.subr.mxu0 0.0
  %2226 = vmatpush1.msra.mxu0 0.0
  %2227 = vmatprep.subr.mxu0 0.0
  %2228 = vmatpush1.msra.mxu0 0.0
  %2229 = vmatprep.subr.mxu0 0.0
  %2230 = vmatpush1.msra.mxu0 0.0
  %2231 = vmatprep.subr.mxu0 0.0
  %2232 = vmatpush1.msra.mxu0 0.0
  %2233 = vmatprep.subr.mxu0 0.0
  %2234 = vmatpush1.msra.mxu0 0.0
  %2235 = vmatprep.subr.mxu0 0.0
  %2236 = vmatpush1.msra.mxu0 0.0
  %2237 = vmatprep.subr.mxu0 0.0
  %2238 = vmatpush1.msra.mxu0 0.0
  %2239 = vmatprep.subr.mxu0 0.0
  %2240 = vmatpush1.msra.mxu0 0.0
  %2241 = vmatprep.subr.mxu0 0.0
  %2242 = vmatpush1.msra.mxu0 0.0
  %2243 = vmatprep.subr.mxu0 0.0
  %2244 = vmatpush1.msra.mxu0 0.0
  %2245 = vmatprep.subr.mxu0 0.0
  %2246 = vmatpush1.msra.mxu0 0.0
  %2247 = vmatprep.subr.mxu0 0.0
  %2248 = vmatpush1.msra.mxu0 0.0
  %2249 = vmatprep.mubr.f32.mxu0 0.0
  %2250 = vmatmul.mubr.f32.gmra.mrb[0].mxu0 %v2074
  %v2251 = vpop.f32.mrb[0].mxu0
  %v2252 = vadd.f32 0.0, %v2251
  %v2253 = vpop.f32.mrb[0].mxu0
  %2254 = vmatprep.mubr.f32.mxu0 0.0
  %2255 = vmatmul.mubr.f32.gmra.mrb[0].mxu0 %v2076
  %v2256 = vpop.f32.mrb[0].mxu0
  %v2257 = vadd.f32 0.0, %v2256
  %v2258 = vpop.f32.mrb[0].mxu0
  %2259 = vmatprep.mubr.f32.mxu0 0.0
  %2260 = vmatmul.mubr.f32.gmra.mrb[0].mxu0 %v2078
  %v2261 = vpop.f32.mrb[0].mxu0
  %v2262 = vadd.f32 0.0, %v2261
  %v2263 = vpop.f32.mrb[0].mxu0
  %2264 = vmatprep.mubr.f32.mxu0 0.0
  %2265 = vmatmul.mubr.f32.gmra.mrb[0].mxu0 %v2080
  %v2266 = vpop.f32.mrb[0].mxu0
  %v2267 = vadd.f32 0.0, %v2266
  %v2268 = vpop.f32.mrb[0].mxu0
  %2269 = vmatprep.mubr.f32.mxu0 0.0
  %2270 = vmatmul.mubr.f32.gmra.mrb[0].mxu0 %v2082
  %v2271 = vpop.f32.mrb[0].mxu0
  %v2272 = vadd.f32 0.0, %v2271
  %v2273 = vpop.f32.mrb[0].mxu0
  %2274 = vmatprep.mubr.f32.mxu0 0.0
  %2275 = vmatmul.mubr.f32.gmra.mrb[0].mxu0 %v2084
  %v2276 = vpop.f32.mrb[0].mxu0
  %v2277 = vadd.f32 0.0, %v2276
  %v2278 = vpop.f32.mrb[0].mxu0
  %2279 = vmatprep.mubr.f32.mxu0 0.0
  %2280 = vmatmul.mubr.f32.gmra.mrb[0].mxu0 %v2086
  %v2281 = vpop.f32.mrb[0].mxu0
  %v2282 = vadd.f32 0.0, %v2281
  %v2283 = vpop.f32.mrb[0].mxu0
  %2284 = vmatprep.mubr.f32.mxu0 0.0
  %2285 = vmatmul.mubr.f32.gmra.mrb[0].mxu0 %v2088
  %v2286 = vpop.f32.mrb[0].mxu0
  %v2287 = vadd.f32 0.0, %v2286
  %v2288 = vpop.f32.mrb[0].mxu0
  %2289 = vmatprep.mubr.f32.mxu0 0.0
  %2290 = vmatmul.mubr.f32.gmra.mrb[0].mxu0 %v2090
  %v2291 = vpop.f32.mrb[0].mxu0
  %v2292 = vadd.f32 0.0, %v2291
  %v2293 = vpop.f32.mrb[0].mxu0
  %2294 = vmatprep.mubr.f32.mxu0 0.0
  %2295 = vmatmul.mubr.f32.gmra.mrb[0].mxu0 %v2092
  %v2296 = vpop.f32.mrb[0].mxu0
  %v2297 = vadd.f32 0.0, %v2296
  %v2298 = vpop.f32.mrb[0].mxu0
  %2299 = vmatprep.mubr.f32.mxu0 0.0
  %2300 = vmatmul.mubr.f32.gmra.mrb[0].mxu0 %v2094
  %v2301 = vpop.f32.mrb[0].mxu0
  %v2302 = vadd.f32 0.0, %v2301
  %v2303 = vpop.f32.mrb[0].mxu0
  %2304 = vmatprep.mubr.f32.mxu0 0.0
  %2305 = vmatmul.mubr.f32.gmra.mrb[0].mxu0 %v2096
  %v2306 = vpop.f32.mrb[0].mxu0
  %v2307 = vadd.f32 0.0, %v2306
  %v2308 = vpop.f32.mrb[0].mxu0
  %2309 = vmatprep.mubr.f32.mxu0 0.0
  %2310 = vmatmul.mubr.f32.gmra.mrb[0].mxu0 %v2098
  %v2311 = vpop.f32.mrb[0].mxu0
  %v2312 = vadd.f32 0.0, %v2311
  %v2313 = vpop.f32.mrb[0].mxu0
  %2314 = vmatprep.mubr.f32.mxu0 0.0
  %2315 = vmatmul.mubr.f32.gmra.mrb[0].mxu0 %v2100
  %v2316 = vpop.f32.mrb[0].mxu0
  %v2317 = vadd.f32 0.0, %v2316
  %v2318 = vpop.f32.mrb[0].mxu0
  %2319 = vmatprep.mubr.f32.mxu0 0.0
  %2320 = vmatmul.mubr.f32.gmra.mrb[0].mxu0 %v2102
  %v2321 = vpop.f32.mrb[0].mxu0
  %v2322 = vadd.f32 0.0, %v2321
  %v2323 = vpop.f32.mrb[0].mxu0
  %2324 = vmatprep.mubr.f32.mxu0 0.0
  %2325 = vmatmul.mubr.f32.gmra.mrb[0].mxu0 %v2104
  %v2326 = vpop.f32.mrb[0].mxu0
  %v2327 = vadd.f32 0.0, %v2326
  %v2328 = vpop.f32.mrb[0].mxu0
  %2329 = vdwg.mxu0
  %v2330 = vrcp.pop %v2106
  %v2331 = vrcp.pop %v2108
  %v2332 = vrcp.pop %v2110
  %v2333 = vrcp.pop %v2112
  %v2334 = vrcp.pop %v2114
  %v2335 = vrcp.pop %v2116
  %v2336 = vrcp.pop %v2118
  %v2337 = vrcp.pop %v2120
  %v2338 = vrcp.pop %v2122
  %v2339 = vrcp.pop %v2124
  %v2340 = vrcp.pop %v2126
  %v2341 = vrcp.pop %v2128
  %v2342 = vrcp.pop %v2130
  %v2343 = vrcp.pop %v2132
  %v2344 = vrcp.pop %v2134
  %v2345 = vrcp.pop %v2136
  %v2346 = vmul.f32 %v2252, %v2330
  %v2347 = vmul.f32 %v2257, %v2331
  %v2348 = vmul.f32 %v2262, %v2332
  %v2349 = vmul.f32 %v2267, %v2333
  %v2350 = vmul.f32 %v2272, %v2334
  %v2351 = vmul.f32 %v2277, %v2335
  %v2352 = vmul.f32 %v2282, %v2336
  %v2353 = vmul.f32 %v2287, %v2337
  %v2354 = vmul.f32 %v2292, %v2338
  %v2355 = vmul.f32 %v2297, %v2339
  %v2356 = vmul.f32 %v2302, %v2340
  %v2357 = vmul.f32 %v2307, %v2341
  %v2358 = vmul.f32 %v2312, %v2342
  %v2359 = vmul.f32 %v2317, %v2343
  %v2360 = vmul.f32 %v2322, %v2344
  %v2361 = vmul.f32 %v2327, %v2345
  %2378 = vrot.lane.b32.xlu0 %v1408, 32
  %v2379 = vpop.permute.xlu0 %2378
  %2380 = vrot.lane.b32.xlu0 %v1409, 32
  %v2381 = vpop.permute.xlu0 %2380
  %2382 = vrot.lane.b32.xlu0 %v1410, 32
  %v2383 = vpop.permute.xlu0 %2382
  %2384 = vrot.lane.b32.xlu0 %v1411, 32
  %v2385 = vpop.permute.xlu0 %2384
  %2386 = vrot.lane.b32.xlu0 %v1412, 32
  %v2387 = vpop.permute.xlu0 %2386
  %2388 = vrot.lane.b32.xlu0 %v1413, 32
  %v2389 = vpop.permute.xlu0 %2388
  %2390 = vrot.lane.b32.xlu0 %v1414, 32
  %v2391 = vpop.permute.xlu0 %2390
  %2392 = vrot.lane.b32.xlu0 %v1415, 32
  %v2393 = vpop.permute.xlu0 %2392
  %2394 = vrot.lane.b32.xlu0 %v1416, 32
  %v2395 = vpop.permute.xlu0 %2394
  %2396 = vrot.lane.b32.xlu0 %v1417, 32
  %v2397 = vpop.permute.xlu0 %2396
  %2398 = vrot.lane.b32.xlu0 %v1418, 32
  %v2399 = vpop.permute.xlu0 %2398
  %2400 = vrot.lane.b32.xlu0 %v1419, 32
  %v2401 = vpop.permute.xlu0 %2400
  %2402 = vrot.lane.b32.xlu0 %v1420, 32
  %v2403 = vpop.permute.xlu0 %2402
  %2404 = vrot.lane.b32.xlu0 %v1421, 32
  %v2405 = vpop.permute.xlu0 %2404
  %2406 = vrot.lane.b32.xlu0 %v1422, 32
  %v2407 = vpop.permute.xlu0 %2406
  %2408 = vrot.lane.b32.xlu0 %v1423, 32
  %v2409 = vpop.permute.xlu0 %2408
  %2442 = vrot.lane.b32.xlu0 %v1877, 64
  %v2443 = vpop.permute.xlu0 %2442
  %2444 = vrot.lane.b32.xlu0 %v1878, 64
  %v2445 = vpop.permute.xlu0 %2444
  %2446 = vrot.lane.b32.xlu0 %v1879, 64
  %v2447 = vpop.permute.xlu0 %2446
  %2448 = vrot.lane.b32.xlu0 %v1880, 64
  %v2449 = vpop.permute.xlu0 %2448
  %2450 = vrot.lane.b32.xlu0 %v1881, 64
  %v2451 = vpop.permute.xlu0 %2450
  %2452 = vrot.lane.b32.xlu0 %v1882, 64
  %v2453 = vpop.permute.xlu0 %2452
  %2454 = vrot.lane.b32.xlu0 %v1883, 64
  %v2455 = vpop.permute.xlu0 %2454
  %2456 = vrot.lane.b32.xlu0 %v1884, 64
  %v2457 = vpop.permute.xlu0 %2456
  %2458 = vrot.lane.b32.xlu0 %v1885, 64
  %v2459 = vpop.permute.xlu0 %2458
  %2460 = vrot.lane.b32.xlu0 %v1886, 64
  %v2461 = vpop.permute.xlu0 %2460
  %2462 = vrot.lane.b32.xlu0 %v1887, 64
  %v2463 = vpop.permute.xlu0 %2462
  %2464 = vrot.lane.b32.xlu0 %v1888, 64
  %v2465 = vpop.permute.xlu0 %2464
  %2466 = vrot.lane.b32.xlu0 %v1889, 64
  %v2467 = vpop.permute.xlu0 %2466
  %2468 = vrot.lane.b32.xlu0 %v1890, 64
  %v2469 = vpop.permute.xlu0 %2468
  %2470 = vrot.lane.b32.xlu0 %v1891, 64
  %v2471 = vpop.permute.xlu0 %2470
  %2472 = vrot.lane.b32.xlu0 %v1892, 64
  %v2473 = vpop.permute.xlu0 %2472
  %2506 = vrot.lane.b32.xlu0 %v2346, 96
  %v2507 = vpop.permute.xlu0 %2506
  %2508 = vrot.lane.b32.xlu0 %v2347, 96
  %v2509 = vpop.permute.xlu0 %2508
  %2510 = vrot.lane.b32.xlu0 %v2348, 96
  %v2511 = vpop.permute.xlu0 %2510
  %2512 = vrot.lane.b32.xlu0 %v2349, 96
  %v2513 = vpop.permute.xlu0 %2512
  %2514 = vrot.lane.b32.xlu0 %v2350, 96
  %v2515 = vpop.permute.xlu0 %2514
  %2516 = vrot.lane.b32.xlu0 %v2351, 96
  %v2517 = vpop.permute.xlu0 %2516
  %2518 = vrot.lane.b32.xlu0 %v2352, 96
  %v2519 = vpop.permute.xlu0 %2518
  %2520 = vrot.lane.b32.xlu0 %v2353, 96
  %v2521 = vpop.permute.xlu0 %2520
  %2522 = vrot.lane.b32.xlu0 %v2354, 96
  %v2523 = vpop.permute.xlu0 %2522
  %2524 = vrot.lane.b32.xlu0 %v2355, 96
  %v2525 = vpop.permute.xlu0 %2524
  %2526 = vrot.lane.b32.xlu0 %v2356, 96
  %v2527 = vpop.permute.xlu0 %2526
  %2528 = vrot.lane.b32.xlu0 %v2357, 96
  %v2529 = vpop.permute.xlu0 %2528
  %2530 = vrot.lane.b32.xlu0 %v2358, 96
  %v2531 = vpop.permute.xlu0 %2530
  %2532 = vrot.lane.b32.xlu0 %v2359, 96
  %v2533 = vpop.permute.xlu0 %2532
  %2534 = vrot.lane.b32.xlu0 %v2360, 96
  %v2535 = vpop.permute.xlu0 %2534
  %2536 = vrot.lane.b32.xlu0 %v2361, 96
  %v2537 = vpop.permute.xlu0 %2536
  %vm2554 = vcmask 261120
  %v2555 = vsel %vm2554, %v923, %v2379
  %v2556 = vsel %vm2554, %v924, %v2381
  %v2557 = vsel %vm2554, %v925, %v2383
  %v2558 = vsel %vm2554, %v926, %v2385
  %v2559 = vsel %vm2554, %v927, %v2387
  %v2560 = vsel %vm2554, %v928, %v2389
  %v2561 = vsel %vm2554, %v929, %v2391
  %v2562 = vsel %vm2554, %v930, %v2393
  %v2563 = vsel %vm2554, %v931, %v2395
  %v2564 = vsel %vm2554, %v932, %v2397
  %v2565 = vsel %vm2554, %v933, %v2399
  %v2566 = vsel %vm2554, %v934, %v2401
  %v2567 = vsel %vm2554, %v935, %v2403
  %v2568 = vsel %vm2554, %v936, %v2405
  %v2569 = vsel %vm2554, %v937, %v2407
  %v2570 = vsel %vm2554, %v938, %v2409
  %v2571 = vsel %vm131, %v2555, %v2443
  %v2572 = vsel %vm131, %v2556, %v2445
  %v2573 = vsel %vm131, %v2557, %v2447
  %v2574 = vsel %vm131, %v2558, %v2449
  %v2575 = vsel %vm131, %v2559, %v2451
  %v2576 = vsel %vm131, %v2560, %v2453
  %v2577 = vsel %vm131, %v2561, %v2455
  %v2578 = vsel %vm131, %v2562, %v2457
  %v2579 = vsel %vm131, %v2563, %v2459
  %v2580 = vsel %vm131, %v2564, %v2461
  %v2581 = vsel %vm131, %v2565, %v2463
  %v2582 = vsel %vm131, %v2566, %v2465
  %v2583 = vsel %vm131, %v2567, %v2467
  %v2584 = vsel %vm131, %v2568, %v2469
  %v2585 = vsel %vm131, %v2569, %v2471
  %v2586 = vsel %vm131, %v2570, %v2473
  %vm2587 = vcmask 785408
  %v2588 = vsel %vm2587, %v2571, %v2507
  %v2589 = vsel %vm2587, %v2572, %v2509
  %v2590 = vsel %vm2587, %v2573, %v2511
  %v2591 = vsel %vm2587, %v2574, %v2513
  %v2592 = vsel %vm2587, %v2575, %v2515
  %v2593 = vsel %vm2587, %v2576, %v2517
  %v2594 = vsel %vm2587, %v2577, %v2519
  %v2595 = vsel %vm2587, %v2578, %v2521
  %v2596 = vsel %vm2587, %v2579, %v2523
  %v2597 = vsel %vm2587, %v2580, %v2525
  %v2598 = vsel %vm2587, %v2581, %v2527
  %v2599 = vsel %vm2587, %v2582, %v2529
  %v2600 = vsel %vm2587, %v2583, %v2531
  %v2601 = vsel %vm2587, %v2584, %v2533
  %v2602 = vsel %vm2587, %v2585, %v2535
  %v2603 = vsel %vm2587, %v2586, %v2537
  %v2605 = vlaneseq
  %v2606 = vshrl.u32 %v2605, 7
  %v2607 = vsub.s32 0, %v2606
  %v2608 = vrot.slane %v130, %v2607
  %v2610 = vadd.f32 %v2588, %v2608
  %v2611 = vadd.f32 %v2589, %v2608
  %v2612 = vadd.f32 %v2590, %v2608
  %v2613 = vadd.f32 %v2591, %v2608
  %v2614 = vadd.f32 %v2592, %v2608
  %v2615 = vadd.f32 %v2593, %v2608
  %v2616 = vadd.f32 %v2594, %v2608
  %v2617 = vadd.f32 %v2595, %v2608
  %v2618 = vadd.f32 %v2596, %v2608
  %v2619 = vadd.f32 %v2597, %v2608
  %v2620 = vadd.f32 %v2598, %v2608
  %v2621 = vadd.f32 %v2599, %v2608
  %v2622 = vadd.f32 %v2600, %v2608
  %v2623 = vadd.f32 %v2601, %v2608
  %v2624 = vadd.f32 %v2602, %v2608
  %v2625 = vadd.f32 %v2603, %v2608
  %v2626 = vld [vmem:[%s5] sm:$0x1]
  %v2627 = vld [vmem:[%s6] sm:$0x1]
  %v2628 = vld [vmem:[%s7] sm:$0x1]
  %v2629 = vadd.f32 %v2610, %v2611
  %v2630 = vadd.f32 %v2629, %v2612
  %v2631 = vadd.f32 %v2630, %v2613
  %v2632 = vadd.f32 %v2631, %v2614
  %v2633 = vadd.f32 %v2632, %v2615
  %v2634 = vadd.f32 %v2633, %v2616
  %v2635 = vadd.f32 %v2634, %v2617
  %v2636 = vadd.f32 %v2635, %v2618
  %v2637 = vadd.f32 %v2636, %v2619
  %v2638 = vadd.f32 %v2637, %v2620
  %v2639 = vadd.f32 %v2638, %v2621
  %v2640 = vadd.f32 %v2639, %v2622
  %v2641 = vadd.f32 %v2640, %v2623
  %v2642 = vadd.f32 %v2641, %v2624
  %v2643 = vadd.f32 %v2642, %v2625
  %v2644 = vrot.slane %v2643, 4
  %v2645 = vadd.f32 %v2643, %v2644
  %v2646 = vrot.slane %v2645, 2
  %v2647 = vadd.f32 %v2645, %v2646
  %v2648 = vrot.slane %v2647, 1
  %v2649 = vadd.f32 %v2647, %v2648
  %v2650 = vmul.f32 %v2649, 0.0078125
  %v2651 = vmul.f32 %v2628, %v2650
  %v2653 = vlaneseq
  %v2654 = vshrl.u32 %v2653, 7
  %v2655 = vsub.s32 0, %v2654
  %v2656 = vrot.slane %v2651, %v2655
  %v2658 = vsub.f32 %v2610, %v2656
  %v2659 = vsub.f32 %v2611, %v2656
  %v2660 = vsub.f32 %v2612, %v2656
  %v2661 = vsub.f32 %v2613, %v2656
  %v2662 = vsub.f32 %v2614, %v2656
  %v2663 = vsub.f32 %v2615, %v2656
  %v2664 = vsub.f32 %v2616, %v2656
  %v2665 = vsub.f32 %v2617, %v2656
  %v2666 = vsub.f32 %v2618, %v2656
  %v2667 = vsub.f32 %v2619, %v2656
  %v2668 = vsub.f32 %v2620, %v2656
  %v2669 = vsub.f32 %v2621, %v2656
  %v2670 = vsub.f32 %v2622, %v2656
  %v2671 = vsub.f32 %v2623, %v2656
  %v2672 = vsub.f32 %v2624, %v2656
  %v2673 = vsub.f32 %v2625, %v2656
  %v2674 = vmul.f32 %v2658, %v2658
  %v2675 = vmul.f32 %v2659, %v2659
  %v2676 = vmul.f32 %v2660, %v2660
  %v2677 = vmul.f32 %v2661, %v2661
  %v2678 = vmul.f32 %v2662, %v2662
  %v2679 = vmul.f32 %v2663, %v2663
  %v2680 = vmul.f32 %v2664, %v2664
  %v2681 = vmul.f32 %v2665, %v2665
  %v2682 = vmul.f32 %v2666, %v2666
  %v2683 = vmul.f32 %v2667, %v2667
  %v2684 = vmul.f32 %v2668, %v2668
  %v2685 = vmul.f32 %v2669, %v2669
  %v2686 = vmul.f32 %v2670, %v2670
  %v2687 = vmul.f32 %v2671, %v2671
  %v2688 = vmul.f32 %v2672, %v2672
  %v2689 = vmul.f32 %v2673, %v2673
  %v2690 = vadd.f32 %v2674, %v2675
  %v2691 = vadd.f32 %v2690, %v2676
  %v2692 = vadd.f32 %v2691, %v2677
  %v2693 = vadd.f32 %v2692, %v2678
  %v2694 = vadd.f32 %v2693, %v2679
  %v2695 = vadd.f32 %v2694, %v2680
  %v2696 = vadd.f32 %v2695, %v2681
  %v2697 = vadd.f32 %v2696, %v2682
  %v2698 = vadd.f32 %v2697, %v2683
  %v2699 = vadd.f32 %v2698, %v2684
  %v2700 = vadd.f32 %v2699, %v2685
  %v2701 = vadd.f32 %v2700, %v2686
  %v2702 = vadd.f32 %v2701, %v2687
  %v2703 = vadd.f32 %v2702, %v2688
  %v2704 = vadd.f32 %v2703, %v2689
  %v2705 = vrot.slane %v2704, 4
  %v2706 = vadd.f32 %v2704, %v2705
  %v2707 = vrot.slane %v2706, 2
  %v2708 = vadd.f32 %v2706, %v2707
  %v2709 = vrot.slane %v2708, 1
  %v2710 = vadd.f32 %v2708, %v2709
  %v2711 = vmul.f32 %v2710, 0.0078125
  %v2713 = vlaneseq
  %v2714 = vshrl.u32 %v2713, 7
  %v2715 = vsub.s32 0, %v2714
  %v2716 = vrot.slane %v2626, %v2715
  %v2718 = vmul.f32 %v2716, %v2658
  %v2719 = vmul.f32 %v2716, %v2659
  %v2720 = vmul.f32 %v2716, %v2660
  %v2721 = vmul.f32 %v2716, %v2661
  %v2722 = vmul.f32 %v2716, %v2662
  %v2723 = vmul.f32 %v2716, %v2663
  %v2724 = vmul.f32 %v2716, %v2664
  %v2725 = vmul.f32 %v2716, %v2665
  %v2726 = vmul.f32 %v2716, %v2666
  %v2727 = vmul.f32 %v2716, %v2667
  %v2728 = vmul.f32 %v2716, %v2668
  %v2729 = vmul.f32 %v2716, %v2669
  %v2730 = vmul.f32 %v2716, %v2670
  %v2731 = vmul.f32 %v2716, %v2671
  %v2732 = vmul.f32 %v2716, %v2672
  %v2733 = vmul.f32 %v2716, %v2673
  %v2734 = vadd.f32 %v2711, 1e-05
  %v2735 = vrsqrt.pop %v2734
  %v2736 = vmul.f32 %v2718, %v2735
  %v2737 = vmul.f32 %v2719, %v2735
  %v2738 = vmul.f32 %v2720, %v2735
  %v2739 = vmul.f32 %v2721, %v2735
  %v2740 = vmul.f32 %v2722, %v2735
  %v2741 = vmul.f32 %v2723, %v2735
  %v2742 = vmul.f32 %v2724, %v2735
  %v2743 = vmul.f32 %v2725, %v2735
  %v2744 = vmul.f32 %v2726, %v2735
  %v2745 = vmul.f32 %v2727, %v2735
  %v2746 = vmul.f32 %v2728, %v2735
  %v2747 = vmul.f32 %v2729, %v2735
  %v2748 = vmul.f32 %v2730, %v2735
  %v2749 = vmul.f32 %v2731, %v2735
  %v2750 = vmul.f32 %v2732, %v2735
  %v2751 = vmul.f32 %v2733, %v2735
  %v2753 = vlaneseq
  %v2754 = vshrl.u32 %v2753, 7
  %v2755 = vsub.s32 0, %v2754
  %v2756 = vrot.slane %v2627, %v2755
  %v2758 = vadd.f32 %v2736, %v2756
  %v2759 = vadd.f32 %v2737, %v2756
  %v2760 = vadd.f32 %v2738, %v2756
  %v2761 = vadd.f32 %v2739, %v2756
  %v2762 = vadd.f32 %v2740, %v2756
  %v2763 = vadd.f32 %v2741, %v2756
  %v2764 = vadd.f32 %v2742, %v2756
  %v2765 = vadd.f32 %v2743, %v2756
  %v2766 = vadd.f32 %v2744, %v2756
  %v2767 = vadd.f32 %v2745, %v2756
  %v2768 = vadd.f32 %v2746, %v2756
  %v2769 = vadd.f32 %v2747, %v2756
  %v2770 = vadd.f32 %v2748, %v2756
  %v2771 = vadd.f32 %v2749, %v2756
  %v2772 = vadd.f32 %v2750, %v2756
  %v2773 = vadd.f32 %v2751, %v2756
  %v2774 = vmin.f32 %v2758, 0.0
  %v2775 = vmin.f32 %v2759, 0.0
  %v2776 = vmin.f32 %v2760, 0.0
  %v2777 = vmin.f32 %v2761, 0.0
  %v2778 = vmin.f32 %v2762, 0.0
  %v2779 = vmin.f32 %v2763, 0.0
  %v2780 = vmin.f32 %v2764, 0.0
  %v2781 = vmin.f32 %v2765, 0.0
  %v2782 = vmin.f32 %v2766, 0.0
  %v2783 = vmin.f32 %v2767, 0.0
  %v2784 = vmin.f32 %v2768, 0.0
  %v2785 = vmin.f32 %v2769, 0.0
  %v2786 = vmin.f32 %v2770, 0.0
  %v2787 = vmin.f32 %v2771, 0.0
  %v2788 = vmin.f32 %v2772, 0.0
  %v2789 = vmin.f32 %v2773, 0.0
  %v2790 = vmul.f32 %v2774, 1.442695
  %v2791 = vpow.pop %v2790
  %v2792 = vmul.f32 %v2775, 1.442695
  %v2793 = vpow.pop %v2792
  %v2794 = vmul.f32 %v2776, 1.442695
  %v2795 = vpow.pop %v2794
  %v2796 = vmul.f32 %v2777, 1.442695
  %v2797 = vpow.pop %v2796
  %v2798 = vmul.f32 %v2778, 1.442695
  %v2799 = vpow.pop %v2798
  %v2800 = vmul.f32 %v2779, 1.442695
  %v2801 = vpow.pop %v2800
  %v2802 = vmul.f32 %v2780, 1.442695
  %v2803 = vpow.pop %v2802
  %v2804 = vmul.f32 %v2781, 1.442695
  %v2805 = vpow.pop %v2804
  %v2806 = vmul.f32 %v2782, 1.442695
  %v2807 = vpow.pop %v2806
  %v2808 = vmul.f32 %v2783, 1.442695
  %v2809 = vpow.pop %v2808
  %v2810 = vmul.f32 %v2784, 1.442695
  %v2811 = vpow.pop %v2810
  %v2812 = vmul.f32 %v2785, 1.442695
  %v2813 = vpow.pop %v2812
  %v2814 = vmul.f32 %v2786, 1.442695
  %v2815 = vpow.pop %v2814
  %v2816 = vmul.f32 %v2787, 1.442695
  %v2817 = vpow.pop %v2816
  %v2818 = vmul.f32 %v2788, 1.442695
  %v2819 = vpow.pop %v2818
  %v2820 = vmul.f32 %v2789, 1.442695
  %v2821 = vpow.pop %v2820
  %v2822 = vsub.f32 %v2791, 1.0
  %v2823 = vsub.f32 %v2793, 1.0
  %v2824 = vsub.f32 %v2795, 1.0
  %v2825 = vsub.f32 %v2797, 1.0
  %v2826 = vsub.f32 %v2799, 1.0
  %v2827 = vsub.f32 %v2801, 1.0
  %v2828 = vsub.f32 %v2803, 1.0
  %v2829 = vsub.f32 %v2805, 1.0
  %v2830 = vsub.f32 %v2807, 1.0
  %v2831 = vsub.f32 %v2809, 1.0
  %v2832 = vsub.f32 %v2811, 1.0
  %v2833 = vsub.f32 %v2813, 1.0
  %v2834 = vsub.f32 %v2815, 1.0
  %v2835 = vsub.f32 %v2817, 1.0
  %v2836 = vsub.f32 %v2819, 1.0
  %v2837 = vsub.f32 %v2821, 1.0
  %vm2838 = vcmp.gt.f32.partialorder %v2758, 0.0
  %vm2839 = vcmp.gt.f32.partialorder %v2759, 0.0
  %vm2840 = vcmp.gt.f32.partialorder %v2760, 0.0
  %vm2841 = vcmp.gt.f32.partialorder %v2761, 0.0
  %vm2842 = vcmp.gt.f32.partialorder %v2762, 0.0
  %vm2843 = vcmp.gt.f32.partialorder %v2763, 0.0
  %vm2844 = vcmp.gt.f32.partialorder %v2764, 0.0
  %vm2845 = vcmp.gt.f32.partialorder %v2765, 0.0
  %vm2846 = vcmp.gt.f32.partialorder %v2766, 0.0
  %vm2847 = vcmp.gt.f32.partialorder %v2767, 0.0
  %vm2848 = vcmp.gt.f32.partialorder %v2768, 0.0
  %vm2849 = vcmp.gt.f32.partialorder %v2769, 0.0
  %vm2850 = vcmp.gt.f32.partialorder %v2770, 0.0
  %vm2851 = vcmp.gt.f32.partialorder %v2771, 0.0
  %vm2852 = vcmp.gt.f32.partialorder %v2772, 0.0
  %vm2853 = vcmp.gt.f32.partialorder %v2773, 0.0
  %v2854 = vsel %vm2838, %v2758, %v2822
  %v2855 = vsel %vm2839, %v2759, %v2823
  %v2856 = vsel %vm2840, %v2760, %v2824
  %v2857 = vsel %vm2841, %v2761, %v2825
  %v2858 = vsel %vm2842, %v2762, %v2826
  %v2859 = vsel %vm2843, %v2763, %v2827
  %v2860 = vsel %vm2844, %v2764, %v2828
  %v2861 = vsel %vm2845, %v2765, %v2829
  %v2862 = vsel %vm2846, %v2766, %v2830
  %v2863 = vsel %vm2847, %v2767, %v2831
  %v2864 = vsel %vm2848, %v2768, %v2832
  %v2865 = vsel %vm2849, %v2769, %v2833
  %v2866 = vsel %vm2850, %v2770, %v2834
  %v2867 = vsel %vm2851, %v2771, %v2835
  %v2868 = vsel %vm2852, %v2772, %v2836
  %v2869 = vsel %vm2853, %v2773, %v2837
  %v2870 = vld [vmem:[%s8] sm:$0xff]
  %v2871 = vld [vmem:[%s8 + $0x8] sm:$0xff]
  %v2872 = vld [vmem:[%s8 + $0x10] sm:$0xff]
  %v2873 = vld [vmem:[%s8 + $0x18] sm:$0xff]
  %v2874 = vld [vmem:[%s8 + $0x20] sm:$0xff]
  %v2875 = vld [vmem:[%s8 + $0x28] sm:$0xff]
  %v2876 = vld [vmem:[%s8 + $0x30] sm:$0xff]
  %v2877 = vld [vmem:[%s8 + $0x38] sm:$0xff]
  %v2878 = vld [vmem:[%s8 + $0x40] sm:$0xff]
  %v2879 = vld [vmem:[%s8 + $0x48] sm:$0xff]
  %v2880 = vld [vmem:[%s8 + $0x50] sm:$0xff]
  %v2881 = vld [vmem:[%s8 + $0x58] sm:$0xff]
  %v2882 = vld [vmem:[%s8 + $0x60] sm:$0xff]
  %v2883 = vld [vmem:[%s8 + $0x68] sm:$0xff]
  %v2884 = vld [vmem:[%s8 + $0x70] sm:$0xff]
  %v2885 = vld [vmem:[%s8 + $0x78] sm:$0xff]
  %v2886 = vld [vmem:[%s9] sm:$0xff]
  %v2887 = vld [vmem:[%s9 + $0x8] sm:$0xff]
  %v2888 = vld [vmem:[%s9 + $0x10] sm:$0xff]
  %v2889 = vld [vmem:[%s9 + $0x18] sm:$0xff]
  %v2890 = vld [vmem:[%s9 + $0x20] sm:$0xff]
  %v2891 = vld [vmem:[%s9 + $0x28] sm:$0xff]
  %v2892 = vld [vmem:[%s9 + $0x30] sm:$0xff]
  %v2893 = vld [vmem:[%s9 + $0x38] sm:$0xff]
  %v2894 = vld [vmem:[%s9 + $0x40] sm:$0xff]
  %v2895 = vld [vmem:[%s9 + $0x48] sm:$0xff]
  %v2896 = vld [vmem:[%s9 + $0x50] sm:$0xff]
  %v2897 = vld [vmem:[%s9 + $0x58] sm:$0xff]
  %v2898 = vld [vmem:[%s9 + $0x60] sm:$0xff]
  %v2899 = vld [vmem:[%s9 + $0x68] sm:$0xff]
  %v2900 = vld [vmem:[%s9 + $0x70] sm:$0xff]
  %v2901 = vld [vmem:[%s9 + $0x78] sm:$0xff]
  %v2902 = vld [vmem:[%s10] sm:$0x1]
  %2903 = vmatprep.subr.mxu0 0.0
  %2904 = vmatpush1.msra.mxu0 %v2870
  %2905 = vmatprep.subr.mxu0 0.0
  %2906 = vmatpush1.msra.mxu0 %v2871
  %2907 = vmatprep.subr.mxu0 0.0
  %2908 = vmatpush1.msra.mxu0 %v2872
  %2909 = vmatprep.subr.mxu0 0.0
  %2910 = vmatpush1.msra.mxu0 %v2873
  %2911 = vmatprep.subr.mxu0 0.0
  %2912 = vmatpush1.msra.mxu0 %v2874
  %2913 = vmatprep.subr.mxu0 0.0
  %2914 = vmatpush1.msra.mxu0 %v2875
  %2915 = vmatprep.subr.mxu0 0.0
  %2916 = vmatpush1.msra.mxu0 %v2876
  %2917 = vmatprep.subr.mxu0 0.0
  %2918 = vmatpush1.msra.mxu0 %v2877
  %2919 = vmatprep.subr.mxu0 0.0
  %2920 = vmatpush1.msra.mxu0 %v2878
  %2921 = vmatprep.subr.mxu0 0.0
  %2922 = vmatpush1.msra.mxu0 %v2879
  %2923 = vmatprep.subr.mxu0 0.0
  %2924 = vmatpush1.msra.mxu0 %v2880
  %2925 = vmatprep.subr.mxu0 0.0
  %2926 = vmatpush1.msra.mxu0 %v2881
  %2927 = vmatprep.subr.mxu0 0.0
  %2928 = vmatpush1.msra.mxu0 %v2882
  %2929 = vmatprep.subr.mxu0 0.0
  %2930 = vmatpush1.msra.mxu0 %v2883
  %2931 = vmatprep.subr.mxu0 0.0
  %2932 = vmatpush1.msra.mxu0 %v2884
  %2933 = vmatprep.subr.mxu0 0.0
  %2934 = vmatpush1.msra.mxu0 %v2885
  %2935 = vmatprep.subr.mxu0 0.0
  %2936 = vmatpush1.msra.mxu0 0.0
  %2937 = vmatprep.subr.mxu0 0.0
  %2938 = vmatpush1.msra.mxu0 0.0
  %2939 = vmatprep.subr.mxu0 0.0
  %2940 = vmatpush1.msra.mxu0 0.0
  %2941 = vmatprep.subr.mxu0 0.0
  %2942 = vmatpush1.msra.mxu0 0.0
  %2943 = vmatprep.subr.mxu0 0.0
  %2944 = vmatpush1.msra.mxu0 0.0
  %2945 = vmatprep.subr.mxu0 0.0
  %2946 = vmatpush1.msra.mxu0 0.0
  %2947 = vmatprep.subr.mxu0 0.0
  %2948 = vmatpush1.msra.mxu0 0.0
  %2949 = vmatprep.subr.mxu0 0.0
  %2950 = vmatpush1.msra.mxu0 0.0
  %2951 = vmatprep.subr.mxu0 0.0
  %2952 = vmatpush1.msra.mxu0 0.0
  %2953 = vmatprep.subr.mxu0 0.0
  %2954 = vmatpush1.msra.mxu0 0.0
  %2955 = vmatprep.subr.mxu0 0.0
  %2956 = vmatpush1.msra.mxu0 0.0
  %2957 = vmatprep.subr.mxu0 0.0
  %2958 = vmatpush1.msra.mxu0 0.0
  %2959 = vmatprep.subr.mxu0 0.0
  %2960 = vmatpush1.msra.mxu0 0.0
  %2961 = vmatprep.subr.mxu0 0.0
  %2962 = vmatpush1.msra.mxu0 0.0
  %2963 = vmatprep.subr.mxu0 0.0
  %2964 = vmatpush1.msra.mxu0 0.0
  %2965 = vmatprep.subr.mxu0 0.0
  %2966 = vmatpush1.msra.mxu0 0.0
  %2967 = vmatprep.mubr.f32.mxu0 0.0
  %2968 = vmatmul.mubr.f32.gmra.mrb[0].mxu0 %v2854
  %v2969 = vpop.f32.mrb[0].mxu0
  %v2970 = vadd.f32 0.0, %v2969
  %v2971 = vpop.f32.mrb[0].mxu0
  %2972 = vmatprep.mubr.f32.mxu0 0.0
  %2973 = vmatmul.mubr.f32.gmra.mrb[0].mxu0 %v2855
  %v2974 = vpop.f32.mrb[0].mxu0
  %v2975 = vadd.f32 0.0, %v2974
  %v2976 = vpop.f32.mrb[0].mxu0
  %2977 = vmatprep.mubr.f32.mxu0 0.0
  %2978 = vmatmul.mubr.f32.gmra.mrb[0].mxu0 %v2856
  %v2979 = vpop.f32.mrb[0].mxu0
  %v2980 = vadd.f32 0.0, %v2979
  %v2981 = vpop.f32.mrb[0].mxu0
  %2982 = vmatprep.mubr.f32.mxu0 0.0
  %2983 = vmatmul.mubr.f32.gmra.mrb[0].mxu0 %v2857
  %v2984 = vpop.f32.mrb[0].mxu0
  %v2985 = vadd.f32 0.0, %v2984
  %v2986 = vpop.f32.mrb[0].mxu0
  %2987 = vmatprep.mubr.f32.mxu0 0.0
  %2988 = vmatmul.mubr.f32.gmra.mrb[0].mxu0 %v2858
  %v2989 = vpop.f32.mrb[0].mxu0
  %v2990 = vadd.f32 0.0, %v2989
  %v2991 = vpop.f32.mrb[0].mxu0
  %2992 = vmatprep.mubr.f32.mxu0 0.0
  %2993 = vmatmul.mubr.f32.gmra.mrb[0].mxu0 %v2859
  %v2994 = vpop.f32.mrb[0].mxu0
  %v2995 = vadd.f32 0.0, %v2994
  %v2996 = vpop.f32.mrb[0].mxu0
  %2997 = vmatprep.mubr.f32.mxu0 0.0
  %2998 = vmatmul.mubr.f32.gmra.mrb[0].mxu0 %v2860
  %v2999 = vpop.f32.mrb[0].mxu0
  %v3000 = vadd.f32 0.0, %v2999
  %v3001 = vpop.f32.mrb[0].mxu0
  %3002 = vmatprep.mubr.f32.mxu0 0.0
  %3003 = vmatmul.mubr.f32.gmra.mrb[0].mxu0 %v2861
  %v3004 = vpop.f32.mrb[0].mxu0
  %v3005 = vadd.f32 0.0, %v3004
  %v3006 = vpop.f32.mrb[0].mxu0
  %3007 = vmatprep.mubr.f32.mxu0 0.0
  %3008 = vmatmul.mubr.f32.gmra.mrb[0].mxu0 %v2862
  %v3009 = vpop.f32.mrb[0].mxu0
  %v3010 = vadd.f32 0.0, %v3009
  %v3011 = vpop.f32.mrb[0].mxu0
  %3012 = vmatprep.mubr.f32.mxu0 0.0
  %3013 = vmatmul.mubr.f32.gmra.mrb[0].mxu0 %v2863
  %v3014 = vpop.f32.mrb[0].mxu0
  %v3015 = vadd.f32 0.0, %v3014
  %v3016 = vpop.f32.mrb[0].mxu0
  %3017 = vmatprep.mubr.f32.mxu0 0.0
  %3018 = vmatmul.mubr.f32.gmra.mrb[0].mxu0 %v2864
  %v3019 = vpop.f32.mrb[0].mxu0
  %v3020 = vadd.f32 0.0, %v3019
  %v3021 = vpop.f32.mrb[0].mxu0
  %3022 = vmatprep.mubr.f32.mxu0 0.0
  %3023 = vmatmul.mubr.f32.gmra.mrb[0].mxu0 %v2865
  %v3024 = vpop.f32.mrb[0].mxu0
  %v3025 = vadd.f32 0.0, %v3024
  %v3026 = vpop.f32.mrb[0].mxu0
  %3027 = vmatprep.mubr.f32.mxu0 0.0
  %3028 = vmatmul.mubr.f32.gmra.mrb[0].mxu0 %v2866
  %v3029 = vpop.f32.mrb[0].mxu0
  %v3030 = vadd.f32 0.0, %v3029
  %v3031 = vpop.f32.mrb[0].mxu0
  %3032 = vmatprep.mubr.f32.mxu0 0.0
  %3033 = vmatmul.mubr.f32.gmra.mrb[0].mxu0 %v2867
  %v3034 = vpop.f32.mrb[0].mxu0
  %v3035 = vadd.f32 0.0, %v3034
  %v3036 = vpop.f32.mrb[0].mxu0
  %3037 = vmatprep.mubr.f32.mxu0 0.0
  %3038 = vmatmul.mubr.f32.gmra.mrb[0].mxu0 %v2868
  %v3039 = vpop.f32.mrb[0].mxu0
  %v3040 = vadd.f32 0.0, %v3039
  %v3041 = vpop.f32.mrb[0].mxu0
  %3042 = vmatprep.mubr.f32.mxu0 0.0
  %3043 = vmatmul.mubr.f32.gmra.mrb[0].mxu0 %v2869
  %v3044 = vpop.f32.mrb[0].mxu0
  %v3045 = vadd.f32 0.0, %v3044
  %v3046 = vpop.f32.mrb[0].mxu0
  %3047 = vdwg.mxu0
  %3048 = vmatprep.subr.mxu0 0.0
  %3049 = vmatpush1.msra.mxu0 %v2886
  %3050 = vmatprep.subr.mxu0 0.0
  %3051 = vmatpush1.msra.mxu0 %v2887
  %3052 = vmatprep.subr.mxu0 0.0
  %3053 = vmatpush1.msra.mxu0 %v2888
  %3054 = vmatprep.subr.mxu0 0.0
  %3055 = vmatpush1.msra.mxu0 %v2889
  %3056 = vmatprep.subr.mxu0 0.0
  %3057 = vmatpush1.msra.mxu0 %v2890
  %3058 = vmatprep.subr.mxu0 0.0
  %3059 = vmatpush1.msra.mxu0 %v2891
  %3060 = vmatprep.subr.mxu0 0.0
  %3061 = vmatpush1.msra.mxu0 %v2892
  %3062 = vmatprep.subr.mxu0 0.0
  %3063 = vmatpush1.msra.mxu0 %v2893
  %3064 = vmatprep.subr.mxu0 0.0
  %3065 = vmatpush1.msra.mxu0 %v2894
  %3066 = vmatprep.subr.mxu0 0.0
  %3067 = vmatpush1.msra.mxu0 %v2895
  %3068 = vmatprep.subr.mxu0 0.0
  %3069 = vmatpush1.msra.mxu0 %v2896
  %3070 = vmatprep.subr.mxu0 0.0
  %3071 = vmatpush1.msra.mxu0 %v2897
  %3072 = vmatprep.subr.mxu0 0.0
  %3073 = vmatpush1.msra.mxu0 %v2898
  %3074 = vmatprep.subr.mxu0 0.0
  %3075 = vmatpush1.msra.mxu0 %v2899
  %3076 = vmatprep.subr.mxu0 0.0
  %3077 = vmatpush1.msra.mxu0 %v2900
  %3078 = vmatprep.subr.mxu0 0.0
  %3079 = vmatpush1.msra.mxu0 %v2901
  %3080 = vmatprep.subr.mxu0 0.0
  %3081 = vmatpush1.msra.mxu0 0.0
  %3082 = vmatprep.subr.mxu0 0.0
  %3083 = vmatpush1.msra.mxu0 0.0
  %3084 = vmatprep.subr.mxu0 0.0
  %3085 = vmatpush1.msra.mxu0 0.0
  %3086 = vmatprep.subr.mxu0 0.0
  %3087 = vmatpush1.msra.mxu0 0.0
  %3088 = vmatprep.subr.mxu0 0.0
  %3089 = vmatpush1.msra.mxu0 0.0
  %3090 = vmatprep.subr.mxu0 0.0
  %3091 = vmatpush1.msra.mxu0 0.0
  %3092 = vmatprep.subr.mxu0 0.0
  %3093 = vmatpush1.msra.mxu0 0.0
  %3094 = vmatprep.subr.mxu0 0.0
  %3095 = vmatpush1.msra.mxu0 0.0
  %3096 = vmatprep.subr.mxu0 0.0
  %3097 = vmatpush1.msra.mxu0 0.0
  %3098 = vmatprep.subr.mxu0 0.0
  %3099 = vmatpush1.msra.mxu0 0.0
  %3100 = vmatprep.subr.mxu0 0.0
  %3101 = vmatpush1.msra.mxu0 0.0
  %3102 = vmatprep.subr.mxu0 0.0
  %3103 = vmatpush1.msra.mxu0 0.0
  %3104 = vmatprep.subr.mxu0 0.0
  %3105 = vmatpush1.msra.mxu0 0.0
  %3106 = vmatprep.subr.mxu0 0.0
  %3107 = vmatpush1.msra.mxu0 0.0
  %3108 = vmatprep.subr.mxu0 0.0
  %3109 = vmatpush1.msra.mxu0 0.0
  %3110 = vmatprep.subr.mxu0 0.0
  %3111 = vmatpush1.msra.mxu0 0.0
  %3112 = vmatprep.mubr.f32.mxu0 0.0
  %3113 = vmatmul.mubr.f32.gmra.mrb[0].mxu0 %v2970
  %v3114 = vpop.f32.mrb[0].mxu0
  %v3115 = vadd.f32 0.0, %v3114
  %v3116 = vpop.f32.mrb[0].mxu0
  %3117 = vmatprep.mubr.f32.mxu0 0.0
  %3118 = vmatmul.mubr.f32.gmra.mrb[0].mxu0 %v2975
  %v3119 = vpop.f32.mrb[0].mxu0
  %v3120 = vadd.f32 0.0, %v3119
  %v3121 = vpop.f32.mrb[0].mxu0
  %3122 = vmatprep.mubr.f32.mxu0 0.0
  %3123 = vmatmul.mubr.f32.gmra.mrb[0].mxu0 %v2980
  %v3124 = vpop.f32.mrb[0].mxu0
  %v3125 = vadd.f32 0.0, %v3124
  %v3126 = vpop.f32.mrb[0].mxu0
  %3127 = vmatprep.mubr.f32.mxu0 0.0
  %3128 = vmatmul.mubr.f32.gmra.mrb[0].mxu0 %v2985
  %v3129 = vpop.f32.mrb[0].mxu0
  %v3130 = vadd.f32 0.0, %v3129
  %v3131 = vpop.f32.mrb[0].mxu0
  %3132 = vmatprep.mubr.f32.mxu0 0.0
  %3133 = vmatmul.mubr.f32.gmra.mrb[0].mxu0 %v2990
  %v3134 = vpop.f32.mrb[0].mxu0
  %v3135 = vadd.f32 0.0, %v3134
  %v3136 = vpop.f32.mrb[0].mxu0
  %3137 = vmatprep.mubr.f32.mxu0 0.0
  %3138 = vmatmul.mubr.f32.gmra.mrb[0].mxu0 %v2995
  %v3139 = vpop.f32.mrb[0].mxu0
  %v3140 = vadd.f32 0.0, %v3139
  %v3141 = vpop.f32.mrb[0].mxu0
  %3142 = vmatprep.mubr.f32.mxu0 0.0
  %3143 = vmatmul.mubr.f32.gmra.mrb[0].mxu0 %v3000
  %v3144 = vpop.f32.mrb[0].mxu0
  %v3145 = vadd.f32 0.0, %v3144
  %v3146 = vpop.f32.mrb[0].mxu0
  %3147 = vmatprep.mubr.f32.mxu0 0.0
  %3148 = vmatmul.mubr.f32.gmra.mrb[0].mxu0 %v3005
  %v3149 = vpop.f32.mrb[0].mxu0
  %v3150 = vadd.f32 0.0, %v3149
  %v3151 = vpop.f32.mrb[0].mxu0
  %3152 = vmatprep.mubr.f32.mxu0 0.0
  %3153 = vmatmul.mubr.f32.gmra.mrb[0].mxu0 %v3010
  %v3154 = vpop.f32.mrb[0].mxu0
  %v3155 = vadd.f32 0.0, %v3154
  %v3156 = vpop.f32.mrb[0].mxu0
  %3157 = vmatprep.mubr.f32.mxu0 0.0
  %3158 = vmatmul.mubr.f32.gmra.mrb[0].mxu0 %v3015
  %v3159 = vpop.f32.mrb[0].mxu0
  %v3160 = vadd.f32 0.0, %v3159
  %v3161 = vpop.f32.mrb[0].mxu0
  %3162 = vmatprep.mubr.f32.mxu0 0.0
  %3163 = vmatmul.mubr.f32.gmra.mrb[0].mxu0 %v3020
  %v3164 = vpop.f32.mrb[0].mxu0
  %v3165 = vadd.f32 0.0, %v3164
  %v3166 = vpop.f32.mrb[0].mxu0
  %3167 = vmatprep.mubr.f32.mxu0 0.0
  %3168 = vmatmul.mubr.f32.gmra.mrb[0].mxu0 %v3025
  %v3169 = vpop.f32.mrb[0].mxu0
  %v3170 = vadd.f32 0.0, %v3169
  %v3171 = vpop.f32.mrb[0].mxu0
  %3172 = vmatprep.mubr.f32.mxu0 0.0
  %3173 = vmatmul.mubr.f32.gmra.mrb[0].mxu0 %v3030
  %v3174 = vpop.f32.mrb[0].mxu0
  %v3175 = vadd.f32 0.0, %v3174
  %v3176 = vpop.f32.mrb[0].mxu0
  %3177 = vmatprep.mubr.f32.mxu0 0.0
  %3178 = vmatmul.mubr.f32.gmra.mrb[0].mxu0 %v3035
  %v3179 = vpop.f32.mrb[0].mxu0
  %v3180 = vadd.f32 0.0, %v3179
  %v3181 = vpop.f32.mrb[0].mxu0
  %3182 = vmatprep.mubr.f32.mxu0 0.0
  %3183 = vmatmul.mubr.f32.gmra.mrb[0].mxu0 %v3040
  %v3184 = vpop.f32.mrb[0].mxu0
  %v3185 = vadd.f32 0.0, %v3184
  %v3186 = vpop.f32.mrb[0].mxu0
  %3187 = vmatprep.mubr.f32.mxu0 0.0
  %3188 = vmatmul.mubr.f32.gmra.mrb[0].mxu0 %v3045
  %v3189 = vpop.f32.mrb[0].mxu0
  %v3190 = vadd.f32 0.0, %v3189
  %v3191 = vpop.f32.mrb[0].mxu0
  %3192 = vdwg.mxu0
  %3193 = vxpose.xlu0.b32.start [1/16] %v3115, 128
  %3194 = vxpose.xlu0.b32.cont [2/16] %v3120, 128
  %3195 = vxpose.xlu0.b32.cont [3/16] %v3125, 128
  %3196 = vxpose.xlu0.b32.cont [4/16] %v3130, 128
  %3197 = vxpose.xlu0.b32.cont [5/16] %v3135, 128
  %3198 = vxpose.xlu0.b32.cont [6/16] %v3140, 128
  %3199 = vxpose.xlu0.b32.cont [7/16] %v3145, 128
  %3200 = vxpose.xlu0.b32.cont [8/16] %v3150, 128
  %3201 = vxpose.xlu0.b32.cont [9/16] %v3155, 128
  %3202 = vxpose.xlu0.b32.cont [10/16] %v3160, 128
  %3203 = vxpose.xlu0.b32.cont [11/16] %v3165, 128
  %3204 = vxpose.xlu0.b32.cont [12/16] %v3170, 128
  %3205 = vxpose.xlu0.b32.cont [13/16] %v3175, 128
  %3206 = vxpose.xlu0.b32.cont [14/16] %v3180, 128
  %3207 = vxpose.xlu0.b32.cont [15/16] %v3185, 128
  %3208 = vxpose.xlu0.b32.end [16/16] %v3190, 128
  %v3209 = vpop.trf.xlu0
  %v3210 = vpop.trf.xlu0
  %v3211 = vpop.trf.xlu0
  %v3212 = vpop.trf.xlu0
  %v3213 = vpop.trf.xlu0
  %v3214 = vpop.trf.xlu0
  %v3215 = vpop.trf.xlu0
  %v3216 = vpop.trf.xlu0
  %v3217 = vpop.trf.xlu0
  %v3218 = vpop.trf.xlu0
  %v3219 = vpop.trf.xlu0
  %v3220 = vpop.trf.xlu0
  %v3221 = vpop.trf.xlu0
  %v3222 = vpop.trf.xlu0
  %v3223 = vpop.trf.xlu0
  %v3224 = vpop.trf.xlu0
  %3226 = vset.pattern.permute.xlu0 0
  %3227 = vperm.xlu0 %3226, %v3115
  %v3228 = vpop.permute.xlu0 %3227
  %3231 = vset.pattern.permute.xlu0 0
  %3232 = vperm.xlu0 %3231, %v3120
  %v3233 = vpop.permute.xlu0 %3232
  %3236 = vset.pattern.permute.xlu0 0
  %3237 = vperm.xlu0 %3236, %v3125
  %v3238 = vpop.permute.xlu0 %3237
  %3241 = vset.pattern.permute.xlu0 0
  %3242 = vperm.xlu0 %3241, %v3130
  %v3243 = vpop.permute.xlu0 %3242
  %3246 = vset.pattern.permute.xlu0 0
  %3247 = vperm.xlu0 %3246, %v3135
  %v3248 = vpop.permute.xlu0 %3247
  %3251 = vset.pattern.permute.xlu0 0
  %3252 = vperm.xlu0 %3251, %v3140
  %v3253 = vpop.permute.xlu0 %3252
  %3256 = vset.pattern.permute.xlu0 0
  %3257 = vperm.xlu0 %3256, %v3145
  %v3258 = vpop.permute.xlu0 %3257
  %3261 = vset.pattern.permute.xlu0 0
  %3262 = vperm.xlu0 %3261, %v3150
  %v3263 = vpop.permute.xlu0 %3262
  %3266 = vset.pattern.permute.xlu0 0
  %3267 = vperm.xlu0 %3266, %v3155
  %v3268 = vpop.permute.xlu0 %3267
  %3271 = vset.pattern.permute.xlu0 0
  %3272 = vperm.xlu0 %3271, %v3160
  %v3273 = vpop.permute.xlu0 %3272
  %3276 = vset.pattern.permute.xlu0 0
  %3277 = vperm.xlu0 %3276, %v3165
  %v3278 = vpop.permute.xlu0 %3277
  %3281 = vset.pattern.permute.xlu0 0
  %3282 = vperm.xlu0 %3281, %v3170
  %v3283 = vpop.permute.xlu0 %3282
  %3286 = vset.pattern.permute.xlu0 0
  %3287 = vperm.xlu0 %3286, %v3175
  %v3288 = vpop.permute.xlu0 %3287
  %3291 = vset.pattern.permute.xlu0 0
  %3292 = vperm.xlu0 %3291, %v3180
  %v3293 = vpop.permute.xlu0 %3292
  %3296 = vset.pattern.permute.xlu0 0
  %3297 = vperm.xlu0 %3296, %v3185
  %v3298 = vpop.permute.xlu0 %3297
  %3301 = vset.pattern.permute.xlu0 0
  %3302 = vperm.xlu0 %3301, %v3190
  %v3303 = vpop.permute.xlu0 %3302
  %v3305 = vlaneseq
  %v3306 = vshrl.u32 %v3305, 7
  %v3307 = vsub.s32 4, %v3306
  %v3308 = vrot.slane %v3209, %v3307
  %v3309 = vadd.f32 %v3228, %v3308
  %v3310 = vadd.f32 %v3233, %v3308
  %v3311 = vadd.f32 %v3238, %v3308
  %v3312 = vadd.f32 %v3243, %v3308
  %v3313 = vadd.f32 %v3248, %v3308
  %v3314 = vadd.f32 %v3253, %v3308
  %v3315 = vadd.f32 %v3258, %v3308
  %v3316 = vadd.f32 %v3263, %v3308
  %v3317 = vadd.f32 %v3268, %v3308
  %v3318 = vadd.f32 %v3273, %v3308
  %v3319 = vadd.f32 %v3278, %v3308
  %v3320 = vadd.f32 %v3283, %v3308
  %v3321 = vadd.f32 %v3288, %v3308
  %v3322 = vadd.f32 %v3293, %v3308
  %v3323 = vadd.f32 %v3298, %v3308
  %v3324 = vadd.f32 %v3303, %v3308
  %v3325 = vmul.f32 %v3309, 0.2
  %v3326 = vmul.f32 %v3310, 0.2
  %v3327 = vmul.f32 %v3311, 0.2
  %v3328 = vmul.f32 %v3312, 0.2
  %v3329 = vmul.f32 %v3313, 0.2
  %v3330 = vmul.f32 %v3314, 0.2
  %v3331 = vmul.f32 %v3315, 0.2
  %v3332 = vmul.f32 %v3316, 0.2
  %v3333 = vmul.f32 %v3317, 0.2
  %v3334 = vmul.f32 %v3318, 0.2
  %v3335 = vmul.f32 %v3319, 0.2
  %v3336 = vmul.f32 %v3320, 0.2
  %v3337 = vmul.f32 %v3321, 0.2
  %v3338 = vmul.f32 %v3322, 0.2
  %v3339 = vmul.f32 %v3323, 0.2
  %v3340 = vmul.f32 %v3324, 0.2
  %v3341 = vmax.f32 %v3309, %v3325
  %v3342 = vmax.f32 %v3310, %v3326
  %v3343 = vmax.f32 %v3311, %v3327
  %v3344 = vmax.f32 %v3312, %v3328
  %v3345 = vmax.f32 %v3313, %v3329
  %v3346 = vmax.f32 %v3314, %v3330
  %v3347 = vmax.f32 %v3315, %v3331
  %v3348 = vmax.f32 %v3316, %v3332
  %v3349 = vmax.f32 %v3317, %v3333
  %v3350 = vmax.f32 %v3318, %v3334
  %v3351 = vmax.f32 %v3319, %v3335
  %v3352 = vmax.f32 %v3320, %v3336
  %v3353 = vmax.f32 %v3321, %v3337
  %v3354 = vmax.f32 %v3322, %v3338
  %v3355 = vmax.f32 %v3323, %v3339
  %v3356 = vmax.f32 %v3324, %v3340
  %v3357 = vadd.f32 %v3341, %v74
  %v3358 = vadd.f32 %v3342, %v75
  %v3359 = vadd.f32 %v3343, %v76
  %v3360 = vadd.f32 %v3344, %v77
  %v3361 = vadd.f32 %v3345, %v78
  %v3362 = vadd.f32 %v3346, %v79
  %v3363 = vadd.f32 %v3347, %v80
  %v3364 = vadd.f32 %v3348, %v81
  %v3365 = vadd.f32 %v3349, %v82
  %v3366 = vadd.f32 %v3350, %v83
  %v3367 = vadd.f32 %v3351, %v84
  %v3368 = vadd.f32 %v3352, %v85
  %v3369 = vadd.f32 %v3353, %v86
  %v3370 = vadd.f32 %v3354, %v87
  %v3371 = vadd.f32 %v3355, %v88
  %v3372 = vadd.f32 %v3356, %v89
  %3373 = vmax.xlane.f32.xlu0 %v3357
  %v3374 = vpop.xlane.xlu0 %3373
  %3375 = vmax.xlane.f32.xlu0 %v3358
  %v3376 = vpop.xlane.xlu0 %3375
  %3377 = vmax.xlane.f32.xlu0 %v3359
  %v3378 = vpop.xlane.xlu0 %3377
  %3379 = vmax.xlane.f32.xlu0 %v3360
  %v3380 = vpop.xlane.xlu0 %3379
  %3381 = vmax.xlane.f32.xlu0 %v3361
  %v3382 = vpop.xlane.xlu0 %3381
  %3383 = vmax.xlane.f32.xlu0 %v3362
  %v3384 = vpop.xlane.xlu0 %3383
  %3385 = vmax.xlane.f32.xlu0 %v3363
  %v3386 = vpop.xlane.xlu0 %3385
  %3387 = vmax.xlane.f32.xlu0 %v3364
  %v3388 = vpop.xlane.xlu0 %3387
  %3389 = vmax.xlane.f32.xlu0 %v3365
  %v3390 = vpop.xlane.xlu0 %3389
  %3391 = vmax.xlane.f32.xlu0 %v3366
  %v3392 = vpop.xlane.xlu0 %3391
  %3393 = vmax.xlane.f32.xlu0 %v3367
  %v3394 = vpop.xlane.xlu0 %3393
  %3395 = vmax.xlane.f32.xlu0 %v3368
  %v3396 = vpop.xlane.xlu0 %3395
  %3397 = vmax.xlane.f32.xlu0 %v3369
  %v3398 = vpop.xlane.xlu0 %3397
  %3399 = vmax.xlane.f32.xlu0 %v3370
  %v3400 = vpop.xlane.xlu0 %3399
  %3401 = vmax.xlane.f32.xlu0 %v3371
  %v3402 = vpop.xlane.xlu0 %3401
  %3403 = vmax.xlane.f32.xlu0 %v3372
  %v3404 = vpop.xlane.xlu0 %3403
  %v3405 = vsub.f32 %v3357, %v3374
  %v3406 = vsub.f32 %v3358, %v3376
  %v3407 = vsub.f32 %v3359, %v3378
  %v3408 = vsub.f32 %v3360, %v3380
  %v3409 = vsub.f32 %v3361, %v3382
  %v3410 = vsub.f32 %v3362, %v3384
  %v3411 = vsub.f32 %v3363, %v3386
  %v3412 = vsub.f32 %v3364, %v3388
  %v3413 = vsub.f32 %v3365, %v3390
  %v3414 = vsub.f32 %v3366, %v3392
  %v3415 = vsub.f32 %v3367, %v3394
  %v3416 = vsub.f32 %v3368, %v3396
  %v3417 = vsub.f32 %v3369, %v3398
  %v3418 = vsub.f32 %v3370, %v3400
  %v3419 = vsub.f32 %v3371, %v3402
  %v3420 = vsub.f32 %v3372, %v3404
  %v3421 = vmul.f32 %v3405, 1.442695
  %v3422 = vpow.pop %v3421
  %v3423 = vmul.f32 %v3406, 1.442695
  %v3424 = vpow.pop %v3423
  %v3425 = vmul.f32 %v3407, 1.442695
  %v3426 = vpow.pop %v3425
  %v3427 = vmul.f32 %v3408, 1.442695
  %v3428 = vpow.pop %v3427
  %v3429 = vmul.f32 %v3409, 1.442695
  %v3430 = vpow.pop %v3429
  %v3431 = vmul.f32 %v3410, 1.442695
  %v3432 = vpow.pop %v3431
  %v3433 = vmul.f32 %v3411, 1.442695
  %v3434 = vpow.pop %v3433
  %v3435 = vmul.f32 %v3412, 1.442695
  %v3436 = vpow.pop %v3435
  %v3437 = vmul.f32 %v3413, 1.442695
  %v3438 = vpow.pop %v3437
  %v3439 = vmul.f32 %v3414, 1.442695
  %v3440 = vpow.pop %v3439
  %v3441 = vmul.f32 %v3415, 1.442695
  %v3442 = vpow.pop %v3441
  %v3443 = vmul.f32 %v3416, 1.442695
  %v3444 = vpow.pop %v3443
  %v3445 = vmul.f32 %v3417, 1.442695
  %v3446 = vpow.pop %v3445
  %v3447 = vmul.f32 %v3418, 1.442695
  %v3448 = vpow.pop %v3447
  %v3449 = vmul.f32 %v3419, 1.442695
  %v3450 = vpow.pop %v3449
  %v3451 = vmul.f32 %v3420, 1.442695
  %v3452 = vpow.pop %v3451
  %3453 = vadd.xlane.f32.xlu0 %v3422
  %v3454 = vpop.xlane.xlu0 %3453
  %3455 = vadd.xlane.f32.xlu0 %v3424
  %v3456 = vpop.xlane.xlu0 %3455
  %3457 = vadd.xlane.f32.xlu0 %v3426
  %v3458 = vpop.xlane.xlu0 %3457
  %3459 = vadd.xlane.f32.xlu0 %v3428
  %v3460 = vpop.xlane.xlu0 %3459
  %3461 = vadd.xlane.f32.xlu0 %v3430
  %v3462 = vpop.xlane.xlu0 %3461
  %3463 = vadd.xlane.f32.xlu0 %v3432
  %v3464 = vpop.xlane.xlu0 %3463
  %3465 = vadd.xlane.f32.xlu0 %v3434
  %v3466 = vpop.xlane.xlu0 %3465
  %3467 = vadd.xlane.f32.xlu0 %v3436
  %v3468 = vpop.xlane.xlu0 %3467
  %3469 = vadd.xlane.f32.xlu0 %v3438
  %v3470 = vpop.xlane.xlu0 %3469
  %3471 = vadd.xlane.f32.xlu0 %v3440
  %v3472 = vpop.xlane.xlu0 %3471
  %3473 = vadd.xlane.f32.xlu0 %v3442
  %v3474 = vpop.xlane.xlu0 %3473
  %3475 = vadd.xlane.f32.xlu0 %v3444
  %v3476 = vpop.xlane.xlu0 %3475
  %3477 = vadd.xlane.f32.xlu0 %v3446
  %v3478 = vpop.xlane.xlu0 %3477
  %3479 = vadd.xlane.f32.xlu0 %v3448
  %v3480 = vpop.xlane.xlu0 %3479
  %3481 = vadd.xlane.f32.xlu0 %v3450
  %v3482 = vpop.xlane.xlu0 %3481
  %3483 = vadd.xlane.f32.xlu0 %v3452
  %v3484 = vpop.xlane.xlu0 %3483
  %3485 = vmatprep.subr.mxu0 0.0
  %3486 = vmatpush1.msra.mxu0 %v2970
  %3487 = vmatprep.subr.mxu0 0.0
  %3488 = vmatpush1.msra.mxu0 %v2975
  %3489 = vmatprep.subr.mxu0 0.0
  %3490 = vmatpush1.msra.mxu0 %v2980
  %3491 = vmatprep.subr.mxu0 0.0
  %3492 = vmatpush1.msra.mxu0 %v2985
  %3493 = vmatprep.subr.mxu0 0.0
  %3494 = vmatpush1.msra.mxu0 %v2990
  %3495 = vmatprep.subr.mxu0 0.0
  %3496 = vmatpush1.msra.mxu0 %v2995
  %3497 = vmatprep.subr.mxu0 0.0
  %3498 = vmatpush1.msra.mxu0 %v3000
  %3499 = vmatprep.subr.mxu0 0.0
  %3500 = vmatpush1.msra.mxu0 %v3005
  %3501 = vmatprep.subr.mxu0 0.0
  %3502 = vmatpush1.msra.mxu0 %v3010
  %3503 = vmatprep.subr.mxu0 0.0
  %3504 = vmatpush1.msra.mxu0 %v3015
  %3505 = vmatprep.subr.mxu0 0.0
  %3506 = vmatpush1.msra.mxu0 %v3020
  %3507 = vmatprep.subr.mxu0 0.0
  %3508 = vmatpush1.msra.mxu0 %v3025
  %3509 = vmatprep.subr.mxu0 0.0
  %3510 = vmatpush1.msra.mxu0 %v3030
  %3511 = vmatprep.subr.mxu0 0.0
  %3512 = vmatpush1.msra.mxu0 %v3035
  %3513 = vmatprep.subr.mxu0 0.0
  %3514 = vmatpush1.msra.mxu0 %v3040
  %3515 = vmatprep.subr.mxu0 0.0
  %3516 = vmatpush1.msra.mxu0 %v3045
  %3517 = vmatprep.subr.mxu0 0.0
  %3518 = vmatpush1.msra.mxu0 0.0
  %3519 = vmatprep.subr.mxu0 0.0
  %3520 = vmatpush1.msra.mxu0 0.0
  %3521 = vmatprep.subr.mxu0 0.0
  %3522 = vmatpush1.msra.mxu0 0.0
  %3523 = vmatprep.subr.mxu0 0.0
  %3524 = vmatpush1.msra.mxu0 0.0
  %3525 = vmatprep.subr.mxu0 0.0
  %3526 = vmatpush1.msra.mxu0 0.0
  %3527 = vmatprep.subr.mxu0 0.0
  %3528 = vmatpush1.msra.mxu0 0.0
  %3529 = vmatprep.subr.mxu0 0.0
  %3530 = vmatpush1.msra.mxu0 0.0
  %3531 = vmatprep.subr.mxu0 0.0
  %3532 = vmatpush1.msra.mxu0 0.0
  %3533 = vmatprep.subr.mxu0 0.0
  %3534 = vmatpush1.msra.mxu0 0.0
  %3535 = vmatprep.subr.mxu0 0.0
  %3536 = vmatpush1.msra.mxu0 0.0
  %3537 = vmatprep.subr.mxu0 0.0
  %3538 = vmatpush1.msra.mxu0 0.0
  %3539 = vmatprep.subr.mxu0 0.0
  %3540 = vmatpush1.msra.mxu0 0.0
  %3541 = vmatprep.subr.mxu0 0.0
  %3542 = vmatpush1.msra.mxu0 0.0
  %3543 = vmatprep.subr.mxu0 0.0
  %3544 = vmatpush1.msra.mxu0 0.0
  %3545 = vmatprep.subr.mxu0 0.0
  %3546 = vmatpush1.msra.mxu0 0.0
  %3547 = vmatprep.subr.mxu0 0.0
  %3548 = vmatpush1.msra.mxu0 0.0
  %3549 = vmatprep.mubr.f32.mxu0 0.0
  %3550 = vmatmul.mubr.f32.gmra.mrb[0].mxu0 %v3422
  %v3551 = vpop.f32.mrb[0].mxu0
  %v3552 = vadd.f32 0.0, %v3551
  %v3553 = vpop.f32.mrb[0].mxu0
  %3554 = vmatprep.mubr.f32.mxu0 0.0
  %3555 = vmatmul.mubr.f32.gmra.mrb[0].mxu0 %v3424
  %v3556 = vpop.f32.mrb[0].mxu0
  %v3557 = vadd.f32 0.0, %v3556
  %v3558 = vpop.f32.mrb[0].mxu0
  %3559 = vmatprep.mubr.f32.mxu0 0.0
  %3560 = vmatmul.mubr.f32.gmra.mrb[0].mxu0 %v3426
  %v3561 = vpop.f32.mrb[0].mxu0
  %v3562 = vadd.f32 0.0, %v3561
  %v3563 = vpop.f32.mrb[0].mxu0
  %3564 = vmatprep.mubr.f32.mxu0 0.0
  %3565 = vmatmul.mubr.f32.gmra.mrb[0].mxu0 %v3428
  %v3566 = vpop.f32.mrb[0].mxu0
  %v3567 = vadd.f32 0.0, %v3566
  %v3568 = vpop.f32.mrb[0].mxu0
  %3569 = vmatprep.mubr.f32.mxu0 0.0
  %3570 = vmatmul.mubr.f32.gmra.mrb[0].mxu0 %v3430
  %v3571 = vpop.f32.mrb[0].mxu0
  %v3572 = vadd.f32 0.0, %v3571
  %v3573 = vpop.f32.mrb[0].mxu0
  %3574 = vmatprep.mubr.f32.mxu0 0.0
  %3575 = vmatmul.mubr.f32.gmra.mrb[0].mxu0 %v3432
  %v3576 = vpop.f32.mrb[0].mxu0
  %v3577 = vadd.f32 0.0, %v3576
  %v3578 = vpop.f32.mrb[0].mxu0
  %3579 = vmatprep.mubr.f32.mxu0 0.0
  %3580 = vmatmul.mubr.f32.gmra.mrb[0].mxu0 %v3434
  %v3581 = vpop.f32.mrb[0].mxu0
  %v3582 = vadd.f32 0.0, %v3581
  %v3583 = vpop.f32.mrb[0].mxu0
  %3584 = vmatprep.mubr.f32.mxu0 0.0
  %3585 = vmatmul.mubr.f32.gmra.mrb[0].mxu0 %v3436
  %v3586 = vpop.f32.mrb[0].mxu0
  %v3587 = vadd.f32 0.0, %v3586
  %v3588 = vpop.f32.mrb[0].mxu0
  %3589 = vmatprep.mubr.f32.mxu0 0.0
  %3590 = vmatmul.mubr.f32.gmra.mrb[0].mxu0 %v3438
  %v3591 = vpop.f32.mrb[0].mxu0
  %v3592 = vadd.f32 0.0, %v3591
  %v3593 = vpop.f32.mrb[0].mxu0
  %3594 = vmatprep.mubr.f32.mxu0 0.0
  %3595 = vmatmul.mubr.f32.gmra.mrb[0].mxu0 %v3440
  %v3596 = vpop.f32.mrb[0].mxu0
  %v3597 = vadd.f32 0.0, %v3596
  %v3598 = vpop.f32.mrb[0].mxu0
  %3599 = vmatprep.mubr.f32.mxu0 0.0
  %3600 = vmatmul.mubr.f32.gmra.mrb[0].mxu0 %v3442
  %v3601 = vpop.f32.mrb[0].mxu0
  %v3602 = vadd.f32 0.0, %v3601
  %v3603 = vpop.f32.mrb[0].mxu0
  %3604 = vmatprep.mubr.f32.mxu0 0.0
  %3605 = vmatmul.mubr.f32.gmra.mrb[0].mxu0 %v3444
  %v3606 = vpop.f32.mrb[0].mxu0
  %v3607 = vadd.f32 0.0, %v3606
  %v3608 = vpop.f32.mrb[0].mxu0
  %3609 = vmatprep.mubr.f32.mxu0 0.0
  %3610 = vmatmul.mubr.f32.gmra.mrb[0].mxu0 %v3446
  %v3611 = vpop.f32.mrb[0].mxu0
  %v3612 = vadd.f32 0.0, %v3611
  %v3613 = vpop.f32.mrb[0].mxu0
  %3614 = vmatprep.mubr.f32.mxu0 0.0
  %3615 = vmatmul.mubr.f32.gmra.mrb[0].mxu0 %v3448
  %v3616 = vpop.f32.mrb[0].mxu0
  %v3617 = vadd.f32 0.0, %v3616
  %v3618 = vpop.f32.mrb[0].mxu0
  %3619 = vmatprep.mubr.f32.mxu0 0.0
  %3620 = vmatmul.mubr.f32.gmra.mrb[0].mxu0 %v3450
  %v3621 = vpop.f32.mrb[0].mxu0
  %v3622 = vadd.f32 0.0, %v3621
  %v3623 = vpop.f32.mrb[0].mxu0
  %3624 = vmatprep.mubr.f32.mxu0 0.0
  %3625 = vmatmul.mubr.f32.gmra.mrb[0].mxu0 %v3452
  %v3626 = vpop.f32.mrb[0].mxu0
  %v3627 = vadd.f32 0.0, %v3626
  %v3628 = vpop.f32.mrb[0].mxu0
  %3629 = vdwg.mxu0
  %v3630 = vrcp.pop %v3454
  %v3631 = vrcp.pop %v3456
  %v3632 = vrcp.pop %v3458
  %v3633 = vrcp.pop %v3460
  %v3634 = vrcp.pop %v3462
  %v3635 = vrcp.pop %v3464
  %v3636 = vrcp.pop %v3466
  %v3637 = vrcp.pop %v3468
  %v3638 = vrcp.pop %v3470
  %v3639 = vrcp.pop %v3472
  %v3640 = vrcp.pop %v3474
  %v3641 = vrcp.pop %v3476
  %v3642 = vrcp.pop %v3478
  %v3643 = vrcp.pop %v3480
  %v3644 = vrcp.pop %v3482
  %v3645 = vrcp.pop %v3484
  %v3646 = vmul.f32 %v3552, %v3630
  %v3647 = vmul.f32 %v3557, %v3631
  %v3648 = vmul.f32 %v3562, %v3632
  %v3649 = vmul.f32 %v3567, %v3633
  %v3650 = vmul.f32 %v3572, %v3634
  %v3651 = vmul.f32 %v3577, %v3635
  %v3652 = vmul.f32 %v3582, %v3636
  %v3653 = vmul.f32 %v3587, %v3637
  %v3654 = vmul.f32 %v3592, %v3638
  %v3655 = vmul.f32 %v3597, %v3639
  %v3656 = vmul.f32 %v3602, %v3640
  %v3657 = vmul.f32 %v3607, %v3641
  %v3658 = vmul.f32 %v3612, %v3642
  %v3659 = vmul.f32 %v3617, %v3643
  %v3660 = vmul.f32 %v3622, %v3644
  %v3661 = vmul.f32 %v3627, %v3645
  %3662 = vset.pattern.permute.xlu0 1
  %3663 = vperm.xlu0 %3662, %v3115
  %v3664 = vpop.permute.xlu0 %3663
  %3666 = vset.pattern.permute.xlu0 1
  %3667 = vperm.xlu0 %3666, %v3120
  %v3668 = vpop.permute.xlu0 %3667
  %3670 = vset.pattern.permute.xlu0 1
  %3671 = vperm.xlu0 %3670, %v3125
  %v3672 = vpop.permute.xlu0 %3671
  %3674 = vset.pattern.permute.xlu0 1
  %3675 = vperm.xlu0 %3674, %v3130
  %v3676 = vpop.permute.xlu0 %3675
  %3678 = vset.pattern.permute.xlu0 1
  %3679 = vperm.xlu0 %3678, %v3135
  %v3680 = vpop.permute.xlu0 %3679
  %3682 = vset.pattern.permute.xlu0 1
  %3683 = vperm.xlu0 %3682, %v3140
  %v3684 = vpop.permute.xlu0 %3683
  %3686 = vset.pattern.permute.xlu0 1
  %3687 = vperm.xlu0 %3686, %v3145
  %v3688 = vpop.permute.xlu0 %3687
  %3690 = vset.pattern.permute.xlu0 1
  %3691 = vperm.xlu0 %3690, %v3150
  %v3692 = vpop.permute.xlu0 %3691
  %3694 = vset.pattern.permute.xlu0 1
  %3695 = vperm.xlu0 %3694, %v3155
  %v3696 = vpop.permute.xlu0 %3695
  %3698 = vset.pattern.permute.xlu0 1
  %3699 = vperm.xlu0 %3698, %v3160
  %v3700 = vpop.permute.xlu0 %3699
  %3702 = vset.pattern.permute.xlu0 1
  %3703 = vperm.xlu0 %3702, %v3165
  %v3704 = vpop.permute.xlu0 %3703
  %3706 = vset.pattern.permute.xlu0 1
  %3707 = vperm.xlu0 %3706, %v3170
  %v3708 = vpop.permute.xlu0 %3707
  %3710 = vset.pattern.permute.xlu0 1
  %3711 = vperm.xlu0 %3710, %v3175
  %v3712 = vpop.permute.xlu0 %3711
  %3714 = vset.pattern.permute.xlu0 1
  %3715 = vperm.xlu0 %3714, %v3180
  %v3716 = vpop.permute.xlu0 %3715
  %3718 = vset.pattern.permute.xlu0 1
  %3719 = vperm.xlu0 %3718, %v3185
  %v3720 = vpop.permute.xlu0 %3719
  %3722 = vset.pattern.permute.xlu0 1
  %3723 = vperm.xlu0 %3722, %v3190
  %v3724 = vpop.permute.xlu0 %3723
  %v3726 = vlaneseq
  %v3727 = vshrl.u32 %v3726, 7
  %v3728 = vsub.s32 5, %v3727
  %v3729 = vrot.slane %v3209, %v3728
  %v3730 = vadd.f32 %v3664, %v3729
  %v3731 = vadd.f32 %v3668, %v3729
  %v3732 = vadd.f32 %v3672, %v3729
  %v3733 = vadd.f32 %v3676, %v3729
  %v3734 = vadd.f32 %v3680, %v3729
  %v3735 = vadd.f32 %v3684, %v3729
  %v3736 = vadd.f32 %v3688, %v3729
  %v3737 = vadd.f32 %v3692, %v3729
  %v3738 = vadd.f32 %v3696, %v3729
  %v3739 = vadd.f32 %v3700, %v3729
  %v3740 = vadd.f32 %v3704, %v3729
  %v3741 = vadd.f32 %v3708, %v3729
  %v3742 = vadd.f32 %v3712, %v3729
  %v3743 = vadd.f32 %v3716, %v3729
  %v3744 = vadd.f32 %v3720, %v3729
  %v3745 = vadd.f32 %v3724, %v3729
  %v3746 = vmul.f32 %v3730, 0.2
  %v3747 = vmul.f32 %v3731, 0.2
  %v3748 = vmul.f32 %v3732, 0.2
  %v3749 = vmul.f32 %v3733, 0.2
  %v3750 = vmul.f32 %v3734, 0.2
  %v3751 = vmul.f32 %v3735, 0.2
  %v3752 = vmul.f32 %v3736, 0.2
  %v3753 = vmul.f32 %v3737, 0.2
  %v3754 = vmul.f32 %v3738, 0.2
  %v3755 = vmul.f32 %v3739, 0.2
  %v3756 = vmul.f32 %v3740, 0.2
  %v3757 = vmul.f32 %v3741, 0.2
  %v3758 = vmul.f32 %v3742, 0.2
  %v3759 = vmul.f32 %v3743, 0.2
  %v3760 = vmul.f32 %v3744, 0.2
  %v3761 = vmul.f32 %v3745, 0.2
  %v3762 = vmax.f32 %v3730, %v3746
  %v3763 = vmax.f32 %v3731, %v3747
  %v3764 = vmax.f32 %v3732, %v3748
  %v3765 = vmax.f32 %v3733, %v3749
  %v3766 = vmax.f32 %v3734, %v3750
  %v3767 = vmax.f32 %v3735, %v3751
  %v3768 = vmax.f32 %v3736, %v3752
  %v3769 = vmax.f32 %v3737, %v3753
  %v3770 = vmax.f32 %v3738, %v3754
  %v3771 = vmax.f32 %v3739, %v3755
  %v3772 = vmax.f32 %v3740, %v3756
  %v3773 = vmax.f32 %v3741, %v3757
  %v3774 = vmax.f32 %v3742, %v3758
  %v3775 = vmax.f32 %v3743, %v3759
  %v3776 = vmax.f32 %v3744, %v3760
  %v3777 = vmax.f32 %v3745, %v3761
  %v3778 = vadd.f32 %v3762, %v74
  %v3779 = vadd.f32 %v3763, %v75
  %v3780 = vadd.f32 %v3764, %v76
  %v3781 = vadd.f32 %v3765, %v77
  %v3782 = vadd.f32 %v3766, %v78
  %v3783 = vadd.f32 %v3767, %v79
  %v3784 = vadd.f32 %v3768, %v80
  %v3785 = vadd.f32 %v3769, %v81
  %v3786 = vadd.f32 %v3770, %v82
  %v3787 = vadd.f32 %v3771, %v83
  %v3788 = vadd.f32 %v3772, %v84
  %v3789 = vadd.f32 %v3773, %v85
  %v3790 = vadd.f32 %v3774, %v86
  %v3791 = vadd.f32 %v3775, %v87
  %v3792 = vadd.f32 %v3776, %v88
  %v3793 = vadd.f32 %v3777, %v89
  %3794 = vmax.xlane.f32.xlu0 %v3778
  %v3795 = vpop.xlane.xlu0 %3794
  %3796 = vmax.xlane.f32.xlu0 %v3779
  %v3797 = vpop.xlane.xlu0 %3796
  %3798 = vmax.xlane.f32.xlu0 %v3780
  %v3799 = vpop.xlane.xlu0 %3798
  %3800 = vmax.xlane.f32.xlu0 %v3781
  %v3801 = vpop.xlane.xlu0 %3800
  %3802 = vmax.xlane.f32.xlu0 %v3782
  %v3803 = vpop.xlane.xlu0 %3802
  %3804 = vmax.xlane.f32.xlu0 %v3783
  %v3805 = vpop.xlane.xlu0 %3804
  %3806 = vmax.xlane.f32.xlu0 %v3784
  %v3807 = vpop.xlane.xlu0 %3806
  %3808 = vmax.xlane.f32.xlu0 %v3785
  %v3809 = vpop.xlane.xlu0 %3808
  %3810 = vmax.xlane.f32.xlu0 %v3786
  %v3811 = vpop.xlane.xlu0 %3810
  %3812 = vmax.xlane.f32.xlu0 %v3787
  %v3813 = vpop.xlane.xlu0 %3812
  %3814 = vmax.xlane.f32.xlu0 %v3788
  %v3815 = vpop.xlane.xlu0 %3814
  %3816 = vmax.xlane.f32.xlu0 %v3789
  %v3817 = vpop.xlane.xlu0 %3816
  %3818 = vmax.xlane.f32.xlu0 %v3790
  %v3819 = vpop.xlane.xlu0 %3818
  %3820 = vmax.xlane.f32.xlu0 %v3791
  %v3821 = vpop.xlane.xlu0 %3820
  %3822 = vmax.xlane.f32.xlu0 %v3792
  %v3823 = vpop.xlane.xlu0 %3822
  %3824 = vmax.xlane.f32.xlu0 %v3793
  %v3825 = vpop.xlane.xlu0 %3824
  %v3826 = vsub.f32 %v3778, %v3795
  %v3827 = vsub.f32 %v3779, %v3797
  %v3828 = vsub.f32 %v3780, %v3799
  %v3829 = vsub.f32 %v3781, %v3801
  %v3830 = vsub.f32 %v3782, %v3803
  %v3831 = vsub.f32 %v3783, %v3805
  %v3832 = vsub.f32 %v3784, %v3807
  %v3833 = vsub.f32 %v3785, %v3809
  %v3834 = vsub.f32 %v3786, %v3811
  %v3835 = vsub.f32 %v3787, %v3813
  %v3836 = vsub.f32 %v3788, %v3815
  %v3837 = vsub.f32 %v3789, %v3817
  %v3838 = vsub.f32 %v3790, %v3819
  %v3839 = vsub.f32 %v3791, %v3821
  %v3840 = vsub.f32 %v3792, %v3823
  %v3841 = vsub.f32 %v3793, %v3825
  %v3842 = vmul.f32 %v3826, 1.442695
  %v3843 = vpow.pop %v3842
  %v3844 = vmul.f32 %v3827, 1.442695
  %v3845 = vpow.pop %v3844
  %v3846 = vmul.f32 %v3828, 1.442695
  %v3847 = vpow.pop %v3846
  %v3848 = vmul.f32 %v3829, 1.442695
  %v3849 = vpow.pop %v3848
  %v3850 = vmul.f32 %v3830, 1.442695
  %v3851 = vpow.pop %v3850
  %v3852 = vmul.f32 %v3831, 1.442695
  %v3853 = vpow.pop %v3852
  %v3854 = vmul.f32 %v3832, 1.442695
  %v3855 = vpow.pop %v3854
  %v3856 = vmul.f32 %v3833, 1.442695
  %v3857 = vpow.pop %v3856
  %v3858 = vmul.f32 %v3834, 1.442695
  %v3859 = vpow.pop %v3858
  %v3860 = vmul.f32 %v3835, 1.442695
  %v3861 = vpow.pop %v3860
  %v3862 = vmul.f32 %v3836, 1.442695
  %v3863 = vpow.pop %v3862
  %v3864 = vmul.f32 %v3837, 1.442695
  %v3865 = vpow.pop %v3864
  %v3866 = vmul.f32 %v3838, 1.442695
  %v3867 = vpow.pop %v3866
  %v3868 = vmul.f32 %v3839, 1.442695
  %v3869 = vpow.pop %v3868
  %v3870 = vmul.f32 %v3840, 1.442695
  %v3871 = vpow.pop %v3870
  %v3872 = vmul.f32 %v3841, 1.442695
  %v3873 = vpow.pop %v3872
  %3874 = vadd.xlane.f32.xlu0 %v3843
  %v3875 = vpop.xlane.xlu0 %3874
  %3876 = vadd.xlane.f32.xlu0 %v3845
  %v3877 = vpop.xlane.xlu0 %3876
  %3878 = vadd.xlane.f32.xlu0 %v3847
  %v3879 = vpop.xlane.xlu0 %3878
  %3880 = vadd.xlane.f32.xlu0 %v3849
  %v3881 = vpop.xlane.xlu0 %3880
  %3882 = vadd.xlane.f32.xlu0 %v3851
  %v3883 = vpop.xlane.xlu0 %3882
  %3884 = vadd.xlane.f32.xlu0 %v3853
  %v3885 = vpop.xlane.xlu0 %3884
  %3886 = vadd.xlane.f32.xlu0 %v3855
  %v3887 = vpop.xlane.xlu0 %3886
  %3888 = vadd.xlane.f32.xlu0 %v3857
  %v3889 = vpop.xlane.xlu0 %3888
  %3890 = vadd.xlane.f32.xlu0 %v3859
  %v3891 = vpop.xlane.xlu0 %3890
  %3892 = vadd.xlane.f32.xlu0 %v3861
  %v3893 = vpop.xlane.xlu0 %3892
  %3894 = vadd.xlane.f32.xlu0 %v3863
  %v3895 = vpop.xlane.xlu0 %3894
  %3896 = vadd.xlane.f32.xlu0 %v3865
  %v3897 = vpop.xlane.xlu0 %3896
  %3898 = vadd.xlane.f32.xlu0 %v3867
  %v3899 = vpop.xlane.xlu0 %3898
  %3900 = vadd.xlane.f32.xlu0 %v3869
  %v3901 = vpop.xlane.xlu0 %3900
  %3902 = vadd.xlane.f32.xlu0 %v3871
  %v3903 = vpop.xlane.xlu0 %3902
  %3904 = vadd.xlane.f32.xlu0 %v3873
  %v3905 = vpop.xlane.xlu0 %3904
  %3922 = vrot.lane.b32.xlu0 %v2970, 96
  %v3923 = vpop.permute.xlu0 %3922
  %3924 = vrot.lane.b32.xlu0 %v2975, 96
  %v3925 = vpop.permute.xlu0 %3924
  %3926 = vrot.lane.b32.xlu0 %v2980, 96
  %v3927 = vpop.permute.xlu0 %3926
  %3928 = vrot.lane.b32.xlu0 %v2985, 96
  %v3929 = vpop.permute.xlu0 %3928
  %3930 = vrot.lane.b32.xlu0 %v2990, 96
  %v3931 = vpop.permute.xlu0 %3930
  %3932 = vrot.lane.b32.xlu0 %v2995, 96
  %v3933 = vpop.permute.xlu0 %3932
  %3934 = vrot.lane.b32.xlu0 %v3000, 96
  %v3935 = vpop.permute.xlu0 %3934
  %3936 = vrot.lane.b32.xlu0 %v3005, 96
  %v3937 = vpop.permute.xlu0 %3936
  %3938 = vrot.lane.b32.xlu0 %v3010, 96
  %v3939 = vpop.permute.xlu0 %3938
  %3940 = vrot.lane.b32.xlu0 %v3015, 96
  %v3941 = vpop.permute.xlu0 %3940
  %3942 = vrot.lane.b32.xlu0 %v3020, 96
  %v3943 = vpop.permute.xlu0 %3942
  %3944 = vrot.lane.b32.xlu0 %v3025, 96
  %v3945 = vpop.permute.xlu0 %3944
  %3946 = vrot.lane.b32.xlu0 %v3030, 96
  %v3947 = vpop.permute.xlu0 %3946
  %3948 = vrot.lane.b32.xlu0 %v3035, 96
  %v3949 = vpop.permute.xlu0 %3948
  %3950 = vrot.lane.b32.xlu0 %v3040, 96
  %v3951 = vpop.permute.xlu0 %3950
  %3952 = vrot.lane.b32.xlu0 %v3045, 96
  %v3953 = vpop.permute.xlu0 %3952
  %3970 = vmatprep.subr.mxu0 0.0
  %3971 = vmatpush1.msra.mxu0 %v3923
  %3972 = vmatprep.subr.mxu0 0.0
  %3973 = vmatpush1.msra.mxu0 %v3925
  %3974 = vmatprep.subr.mxu0 0.0
  %3975 = vmatpush1.msra.mxu0 %v3927
  %3976 = vmatprep.subr.mxu0 0.0
  %3977 = vmatpush1.msra.mxu0 %v3929
  %3978 = vmatprep.subr.mxu0 0.0
  %3979 = vmatpush1.msra.mxu0 %v3931
  %3980 = vmatprep.subr.mxu0 0.0
  %3981 = vmatpush1.msra.mxu0 %v3933
  %3982 = vmatprep.subr.mxu0 0.0
  %3983 = vmatpush1.msra.mxu0 %v3935
  %3984 = vmatprep.subr.mxu0 0.0
  %3985 = vmatpush1.msra.mxu0 %v3937
  %3986 = vmatprep.subr.mxu0 0.0
  %3987 = vmatpush1.msra.mxu0 %v3939
  %3988 = vmatprep.subr.mxu0 0.0
  %3989 = vmatpush1.msra.mxu0 %v3941
  %3990 = vmatprep.subr.mxu0 0.0
  %3991 = vmatpush1.msra.mxu0 %v3943
  %3992 = vmatprep.subr.mxu0 0.0
  %3993 = vmatpush1.msra.mxu0 %v3945
  %3994 = vmatprep.subr.mxu0 0.0
  %3995 = vmatpush1.msra.mxu0 %v3947
  %3996 = vmatprep.subr.mxu0 0.0
  %3997 = vmatpush1.msra.mxu0 %v3949
  %3998 = vmatprep.subr.mxu0 0.0
  %3999 = vmatpush1.msra.mxu0 %v3951
  %4000 = vmatprep.subr.mxu0 0.0
  %4001 = vmatpush1.msra.mxu0 %v3953
  %4002 = vmatprep.subr.mxu0 0.0
  %4003 = vmatpush1.msra.mxu0 0.0
  %4004 = vmatprep.subr.mxu0 0.0
  %4005 = vmatpush1.msra.mxu0 0.0
  %4006 = vmatprep.subr.mxu0 0.0
  %4007 = vmatpush1.msra.mxu0 0.0
  %4008 = vmatprep.subr.mxu0 0.0
  %4009 = vmatpush1.msra.mxu0 0.0
  %4010 = vmatprep.subr.mxu0 0.0
  %4011 = vmatpush1.msra.mxu0 0.0
  %4012 = vmatprep.subr.mxu0 0.0
  %4013 = vmatpush1.msra.mxu0 0.0
  %4014 = vmatprep.subr.mxu0 0.0
  %4015 = vmatpush1.msra.mxu0 0.0
  %4016 = vmatprep.subr.mxu0 0.0
  %4017 = vmatpush1.msra.mxu0 0.0
  %4018 = vmatprep.subr.mxu0 0.0
  %4019 = vmatpush1.msra.mxu0 0.0
  %4020 = vmatprep.subr.mxu0 0.0
  %4021 = vmatpush1.msra.mxu0 0.0
  %4022 = vmatprep.subr.mxu0 0.0
  %4023 = vmatpush1.msra.mxu0 0.0
  %4024 = vmatprep.subr.mxu0 0.0
  %4025 = vmatpush1.msra.mxu0 0.0
  %4026 = vmatprep.subr.mxu0 0.0
  %4027 = vmatpush1.msra.mxu0 0.0
  %4028 = vmatprep.subr.mxu0 0.0
  %4029 = vmatpush1.msra.mxu0 0.0
  %4030 = vmatprep.subr.mxu0 0.0
  %4031 = vmatpush1.msra.mxu0 0.0
  %4032 = vmatprep.subr.mxu0 0.0
  %4033 = vmatpush1.msra.mxu0 0.0
  %4034 = vmatprep.mubr.f32.mxu0 0.0
  %4035 = vmatmul.mubr.f32.gmra.mrb[0].mxu0 %v3843
  %v4036 = vpop.f32.mrb[0].mxu0
  %v4037 = vadd.f32 0.0, %v4036
  %v4038 = vpop.f32.mrb[0].mxu0
  %4039 = vmatprep.mubr.f32.mxu0 0.0
  %4040 = vmatmul.mubr.f32.gmra.mrb[0].mxu0 %v3845
  %v4041 = vpop.f32.mrb[0].mxu0
  %v4042 = vadd.f32 0.0, %v4041
  %v4043 = vpop.f32.mrb[0].mxu0
  %4044 = vmatprep.mubr.f32.mxu0 0.0
  %4045 = vmatmul.mubr.f32.gmra.mrb[0].mxu0 %v3847
  %v4046 = vpop.f32.mrb[0].mxu0
  %v4047 = vadd.f32 0.0, %v4046
  %v4048 = vpop.f32.mrb[0].mxu0
  %4049 = vmatprep.mubr.f32.mxu0 0.0
  %4050 = vmatmul.mubr.f32.gmra.mrb[0].mxu0 %v3849
  %v4051 = vpop.f32.mrb[0].mxu0
  %v4052 = vadd.f32 0.0, %v4051
  %v4053 = vpop.f32.mrb[0].mxu0
  %4054 = vmatprep.mubr.f32.mxu0 0.0
  %4055 = vmatmul.mubr.f32.gmra.mrb[0].mxu0 %v3851
  %v4056 = vpop.f32.mrb[0].mxu0
  %v4057 = vadd.f32 0.0, %v4056
  %v4058 = vpop.f32.mrb[0].mxu0
  %4059 = vmatprep.mubr.f32.mxu0 0.0
  %4060 = vmatmul.mubr.f32.gmra.mrb[0].mxu0 %v3853
  %v4061 = vpop.f32.mrb[0].mxu0
  %v4062 = vadd.f32 0.0, %v4061
  %v4063 = vpop.f32.mrb[0].mxu0
  %4064 = vmatprep.mubr.f32.mxu0 0.0
  %4065 = vmatmul.mubr.f32.gmra.mrb[0].mxu0 %v3855
  %v4066 = vpop.f32.mrb[0].mxu0
  %v4067 = vadd.f32 0.0, %v4066
  %v4068 = vpop.f32.mrb[0].mxu0
  %4069 = vmatprep.mubr.f32.mxu0 0.0
  %4070 = vmatmul.mubr.f32.gmra.mrb[0].mxu0 %v3857
  %v4071 = vpop.f32.mrb[0].mxu0
  %v4072 = vadd.f32 0.0, %v4071
  %v4073 = vpop.f32.mrb[0].mxu0
  %4074 = vmatprep.mubr.f32.mxu0 0.0
  %4075 = vmatmul.mubr.f32.gmra.mrb[0].mxu0 %v3859
  %v4076 = vpop.f32.mrb[0].mxu0
  %v4077 = vadd.f32 0.0, %v4076
  %v4078 = vpop.f32.mrb[0].mxu0
  %4079 = vmatprep.mubr.f32.mxu0 0.0
  %4080 = vmatmul.mubr.f32.gmra.mrb[0].mxu0 %v3861
  %v4081 = vpop.f32.mrb[0].mxu0
  %v4082 = vadd.f32 0.0, %v4081
  %v4083 = vpop.f32.mrb[0].mxu0
  %4084 = vmatprep.mubr.f32.mxu0 0.0
  %4085 = vmatmul.mubr.f32.gmra.mrb[0].mxu0 %v3863
  %v4086 = vpop.f32.mrb[0].mxu0
  %v4087 = vadd.f32 0.0, %v4086
  %v4088 = vpop.f32.mrb[0].mxu0
  %4089 = vmatprep.mubr.f32.mxu0 0.0
  %4090 = vmatmul.mubr.f32.gmra.mrb[0].mxu0 %v3865
  %v4091 = vpop.f32.mrb[0].mxu0
  %v4092 = vadd.f32 0.0, %v4091
  %v4093 = vpop.f32.mrb[0].mxu0
  %4094 = vmatprep.mubr.f32.mxu0 0.0
  %4095 = vmatmul.mubr.f32.gmra.mrb[0].mxu0 %v3867
  %v4096 = vpop.f32.mrb[0].mxu0
  %v4097 = vadd.f32 0.0, %v4096
  %v4098 = vpop.f32.mrb[0].mxu0
  %4099 = vmatprep.mubr.f32.mxu0 0.0
  %4100 = vmatmul.mubr.f32.gmra.mrb[0].mxu0 %v3869
  %v4101 = vpop.f32.mrb[0].mxu0
  %v4102 = vadd.f32 0.0, %v4101
  %v4103 = vpop.f32.mrb[0].mxu0
  %4104 = vmatprep.mubr.f32.mxu0 0.0
  %4105 = vmatmul.mubr.f32.gmra.mrb[0].mxu0 %v3871
  %v4106 = vpop.f32.mrb[0].mxu0
  %v4107 = vadd.f32 0.0, %v4106
  %v4108 = vpop.f32.mrb[0].mxu0
  %4109 = vmatprep.mubr.f32.mxu0 0.0
  %4110 = vmatmul.mubr.f32.gmra.mrb[0].mxu0 %v3873
  %v4111 = vpop.f32.mrb[0].mxu0
  %v4112 = vadd.f32 0.0, %v4111
  %v4113 = vpop.f32.mrb[0].mxu0
  %4114 = vdwg.mxu0
  %v4115 = vrcp.pop %v3875
  %v4116 = vrcp.pop %v3877
  %v4117 = vrcp.pop %v3879
  %v4118 = vrcp.pop %v3881
  %v4119 = vrcp.pop %v3883
  %v4120 = vrcp.pop %v3885
  %v4121 = vrcp.pop %v3887
  %v4122 = vrcp.pop %v3889
  %v4123 = vrcp.pop %v3891
  %v4124 = vrcp.pop %v3893
  %v4125 = vrcp.pop %v3895
  %v4126 = vrcp.pop %v3897
  %v4127 = vrcp.pop %v3899
  %v4128 = vrcp.pop %v3901
  %v4129 = vrcp.pop %v3903
  %v4130 = vrcp.pop %v3905
  %v4131 = vmul.f32 %v4037, %v4115
  %v4132 = vmul.f32 %v4042, %v4116
  %v4133 = vmul.f32 %v4047, %v4117
  %v4134 = vmul.f32 %v4052, %v4118
  %v4135 = vmul.f32 %v4057, %v4119
  %v4136 = vmul.f32 %v4062, %v4120
  %v4137 = vmul.f32 %v4067, %v4121
  %v4138 = vmul.f32 %v4072, %v4122
  %v4139 = vmul.f32 %v4077, %v4123
  %v4140 = vmul.f32 %v4082, %v4124
  %v4141 = vmul.f32 %v4087, %v4125
  %v4142 = vmul.f32 %v4092, %v4126
  %v4143 = vmul.f32 %v4097, %v4127
  %v4144 = vmul.f32 %v4102, %v4128
  %v4145 = vmul.f32 %v4107, %v4129
  %v4146 = vmul.f32 %v4112, %v4130
  %4147 = vset.pattern.permute.xlu0 2
  %4148 = vperm.xlu0 %4147, %v3115
  %v4149 = vpop.permute.xlu0 %4148
  %4151 = vset.pattern.permute.xlu0 2
  %4152 = vperm.xlu0 %4151, %v3120
  %v4153 = vpop.permute.xlu0 %4152
  %4155 = vset.pattern.permute.xlu0 2
  %4156 = vperm.xlu0 %4155, %v3125
  %v4157 = vpop.permute.xlu0 %4156
  %4159 = vset.pattern.permute.xlu0 2
  %4160 = vperm.xlu0 %4159, %v3130
  %v4161 = vpop.permute.xlu0 %4160
  %4163 = vset.pattern.permute.xlu0 2
  %4164 = vperm.xlu0 %4163, %v3135
  %v4165 = vpop.permute.xlu0 %4164
  %4167 = vset.pattern.permute.xlu0 2
  %4168 = vperm.xlu0 %4167, %v3140
  %v4169 = vpop.permute.xlu0 %4168
  %4171 = vset.pattern.permute.xlu0 2
  %4172 = vperm.xlu0 %4171, %v3145
  %v4173 = vpop.permute.xlu0 %4172
  %4175 = vset.pattern.permute.xlu0 2
  %4176 = vperm.xlu0 %4175, %v3150
  %v4177 = vpop.permute.xlu0 %4176
  %4179 = vset.pattern.permute.xlu0 2
  %4180 = vperm.xlu0 %4179, %v3155
  %v4181 = vpop.permute.xlu0 %4180
  %4183 = vset.pattern.permute.xlu0 2
  %4184 = vperm.xlu0 %4183, %v3160
  %v4185 = vpop.permute.xlu0 %4184
  %4187 = vset.pattern.permute.xlu0 2
  %4188 = vperm.xlu0 %4187, %v3165
  %v4189 = vpop.permute.xlu0 %4188
  %4191 = vset.pattern.permute.xlu0 2
  %4192 = vperm.xlu0 %4191, %v3170
  %v4193 = vpop.permute.xlu0 %4192
  %4195 = vset.pattern.permute.xlu0 2
  %4196 = vperm.xlu0 %4195, %v3175
  %v4197 = vpop.permute.xlu0 %4196
  %4199 = vset.pattern.permute.xlu0 2
  %4200 = vperm.xlu0 %4199, %v3180
  %v4201 = vpop.permute.xlu0 %4200
  %4203 = vset.pattern.permute.xlu0 2
  %4204 = vperm.xlu0 %4203, %v3185
  %v4205 = vpop.permute.xlu0 %4204
  %4207 = vset.pattern.permute.xlu0 2
  %4208 = vperm.xlu0 %4207, %v3190
  %v4209 = vpop.permute.xlu0 %4208
  %v4211 = vlaneseq
  %v4212 = vshrl.u32 %v4211, 7
  %v4213 = vsub.s32 6, %v4212
  %v4214 = vrot.slane %v3209, %v4213
  %v4215 = vadd.f32 %v4149, %v4214
  %v4216 = vadd.f32 %v4153, %v4214
  %v4217 = vadd.f32 %v4157, %v4214
  %v4218 = vadd.f32 %v4161, %v4214
  %v4219 = vadd.f32 %v4165, %v4214
  %v4220 = vadd.f32 %v4169, %v4214
  %v4221 = vadd.f32 %v4173, %v4214
  %v4222 = vadd.f32 %v4177, %v4214
  %v4223 = vadd.f32 %v4181, %v4214
  %v4224 = vadd.f32 %v4185, %v4214
  %v4225 = vadd.f32 %v4189, %v4214
  %v4226 = vadd.f32 %v4193, %v4214
  %v4227 = vadd.f32 %v4197, %v4214
  %v4228 = vadd.f32 %v4201, %v4214
  %v4229 = vadd.f32 %v4205, %v4214
  %v4230 = vadd.f32 %v4209, %v4214
  %v4231 = vmul.f32 %v4215, 0.2
  %v4232 = vmul.f32 %v4216, 0.2
  %v4233 = vmul.f32 %v4217, 0.2
  %v4234 = vmul.f32 %v4218, 0.2
  %v4235 = vmul.f32 %v4219, 0.2
  %v4236 = vmul.f32 %v4220, 0.2
  %v4237 = vmul.f32 %v4221, 0.2
  %v4238 = vmul.f32 %v4222, 0.2
  %v4239 = vmul.f32 %v4223, 0.2
  %v4240 = vmul.f32 %v4224, 0.2
  %v4241 = vmul.f32 %v4225, 0.2
  %v4242 = vmul.f32 %v4226, 0.2
  %v4243 = vmul.f32 %v4227, 0.2
  %v4244 = vmul.f32 %v4228, 0.2
  %v4245 = vmul.f32 %v4229, 0.2
  %v4246 = vmul.f32 %v4230, 0.2
  %v4247 = vmax.f32 %v4215, %v4231
  %v4248 = vmax.f32 %v4216, %v4232
  %v4249 = vmax.f32 %v4217, %v4233
  %v4250 = vmax.f32 %v4218, %v4234
  %v4251 = vmax.f32 %v4219, %v4235
  %v4252 = vmax.f32 %v4220, %v4236
  %v4253 = vmax.f32 %v4221, %v4237
  %v4254 = vmax.f32 %v4222, %v4238
  %v4255 = vmax.f32 %v4223, %v4239
  %v4256 = vmax.f32 %v4224, %v4240
  %v4257 = vmax.f32 %v4225, %v4241
  %v4258 = vmax.f32 %v4226, %v4242
  %v4259 = vmax.f32 %v4227, %v4243
  %v4260 = vmax.f32 %v4228, %v4244
  %v4261 = vmax.f32 %v4229, %v4245
  %v4262 = vmax.f32 %v4230, %v4246
  %v4263 = vadd.f32 %v4247, %v74
  %v4264 = vadd.f32 %v4248, %v75
  %v4265 = vadd.f32 %v4249, %v76
  %v4266 = vadd.f32 %v4250, %v77
  %v4267 = vadd.f32 %v4251, %v78
  %v4268 = vadd.f32 %v4252, %v79
  %v4269 = vadd.f32 %v4253, %v80
  %v4270 = vadd.f32 %v4254, %v81
  %v4271 = vadd.f32 %v4255, %v82
  %v4272 = vadd.f32 %v4256, %v83
  %v4273 = vadd.f32 %v4257, %v84
  %v4274 = vadd.f32 %v4258, %v85
  %v4275 = vadd.f32 %v4259, %v86
  %v4276 = vadd.f32 %v4260, %v87
  %v4277 = vadd.f32 %v4261, %v88
  %v4278 = vadd.f32 %v4262, %v89
  %4279 = vmax.xlane.f32.xlu0 %v4263
  %v4280 = vpop.xlane.xlu0 %4279
  %4281 = vmax.xlane.f32.xlu0 %v4264
  %v4282 = vpop.xlane.xlu0 %4281
  %4283 = vmax.xlane.f32.xlu0 %v4265
  %v4284 = vpop.xlane.xlu0 %4283
  %4285 = vmax.xlane.f32.xlu0 %v4266
  %v4286 = vpop.xlane.xlu0 %4285
  %4287 = vmax.xlane.f32.xlu0 %v4267
  %v4288 = vpop.xlane.xlu0 %4287
  %4289 = vmax.xlane.f32.xlu0 %v4268
  %v4290 = vpop.xlane.xlu0 %4289
  %4291 = vmax.xlane.f32.xlu0 %v4269
  %v4292 = vpop.xlane.xlu0 %4291
  %4293 = vmax.xlane.f32.xlu0 %v4270
  %v4294 = vpop.xlane.xlu0 %4293
  %4295 = vmax.xlane.f32.xlu0 %v4271
  %v4296 = vpop.xlane.xlu0 %4295
  %4297 = vmax.xlane.f32.xlu0 %v4272
  %v4298 = vpop.xlane.xlu0 %4297
  %4299 = vmax.xlane.f32.xlu0 %v4273
  %v4300 = vpop.xlane.xlu0 %4299
  %4301 = vmax.xlane.f32.xlu0 %v4274
  %v4302 = vpop.xlane.xlu0 %4301
  %4303 = vmax.xlane.f32.xlu0 %v4275
  %v4304 = vpop.xlane.xlu0 %4303
  %4305 = vmax.xlane.f32.xlu0 %v4276
  %v4306 = vpop.xlane.xlu0 %4305
  %4307 = vmax.xlane.f32.xlu0 %v4277
  %v4308 = vpop.xlane.xlu0 %4307
  %4309 = vmax.xlane.f32.xlu0 %v4278
  %v4310 = vpop.xlane.xlu0 %4309
  %v4311 = vsub.f32 %v4263, %v4280
  %v4312 = vsub.f32 %v4264, %v4282
  %v4313 = vsub.f32 %v4265, %v4284
  %v4314 = vsub.f32 %v4266, %v4286
  %v4315 = vsub.f32 %v4267, %v4288
  %v4316 = vsub.f32 %v4268, %v4290
  %v4317 = vsub.f32 %v4269, %v4292
  %v4318 = vsub.f32 %v4270, %v4294
  %v4319 = vsub.f32 %v4271, %v4296
  %v4320 = vsub.f32 %v4272, %v4298
  %v4321 = vsub.f32 %v4273, %v4300
  %v4322 = vsub.f32 %v4274, %v4302
  %v4323 = vsub.f32 %v4275, %v4304
  %v4324 = vsub.f32 %v4276, %v4306
  %v4325 = vsub.f32 %v4277, %v4308
  %v4326 = vsub.f32 %v4278, %v4310
  %v4327 = vmul.f32 %v4311, 1.442695
  %v4328 = vpow.pop %v4327
  %v4329 = vmul.f32 %v4312, 1.442695
  %v4330 = vpow.pop %v4329
  %v4331 = vmul.f32 %v4313, 1.442695
  %v4332 = vpow.pop %v4331
  %v4333 = vmul.f32 %v4314, 1.442695
  %v4334 = vpow.pop %v4333
  %v4335 = vmul.f32 %v4315, 1.442695
  %v4336 = vpow.pop %v4335
  %v4337 = vmul.f32 %v4316, 1.442695
  %v4338 = vpow.pop %v4337
  %v4339 = vmul.f32 %v4317, 1.442695
  %v4340 = vpow.pop %v4339
  %v4341 = vmul.f32 %v4318, 1.442695
  %v4342 = vpow.pop %v4341
  %v4343 = vmul.f32 %v4319, 1.442695
  %v4344 = vpow.pop %v4343
  %v4345 = vmul.f32 %v4320, 1.442695
  %v4346 = vpow.pop %v4345
  %v4347 = vmul.f32 %v4321, 1.442695
  %v4348 = vpow.pop %v4347
  %v4349 = vmul.f32 %v4322, 1.442695
  %v4350 = vpow.pop %v4349
  %v4351 = vmul.f32 %v4323, 1.442695
  %v4352 = vpow.pop %v4351
  %v4353 = vmul.f32 %v4324, 1.442695
  %v4354 = vpow.pop %v4353
  %v4355 = vmul.f32 %v4325, 1.442695
  %v4356 = vpow.pop %v4355
  %v4357 = vmul.f32 %v4326, 1.442695
  %v4358 = vpow.pop %v4357
  %4359 = vadd.xlane.f32.xlu0 %v4328
  %v4360 = vpop.xlane.xlu0 %4359
  %4361 = vadd.xlane.f32.xlu0 %v4330
  %v4362 = vpop.xlane.xlu0 %4361
  %4363 = vadd.xlane.f32.xlu0 %v4332
  %v4364 = vpop.xlane.xlu0 %4363
  %4365 = vadd.xlane.f32.xlu0 %v4334
  %v4366 = vpop.xlane.xlu0 %4365
  %4367 = vadd.xlane.f32.xlu0 %v4336
  %v4368 = vpop.xlane.xlu0 %4367
  %4369 = vadd.xlane.f32.xlu0 %v4338
  %v4370 = vpop.xlane.xlu0 %4369
  %4371 = vadd.xlane.f32.xlu0 %v4340
  %v4372 = vpop.xlane.xlu0 %4371
  %4373 = vadd.xlane.f32.xlu0 %v4342
  %v4374 = vpop.xlane.xlu0 %4373
  %4375 = vadd.xlane.f32.xlu0 %v4344
  %v4376 = vpop.xlane.xlu0 %4375
  %4377 = vadd.xlane.f32.xlu0 %v4346
  %v4378 = vpop.xlane.xlu0 %4377
  %4379 = vadd.xlane.f32.xlu0 %v4348
  %v4380 = vpop.xlane.xlu0 %4379
  %4381 = vadd.xlane.f32.xlu0 %v4350
  %v4382 = vpop.xlane.xlu0 %4381
  %4383 = vadd.xlane.f32.xlu0 %v4352
  %v4384 = vpop.xlane.xlu0 %4383
  %4385 = vadd.xlane.f32.xlu0 %v4354
  %v4386 = vpop.xlane.xlu0 %4385
  %4387 = vadd.xlane.f32.xlu0 %v4356
  %v4388 = vpop.xlane.xlu0 %4387
  %4389 = vadd.xlane.f32.xlu0 %v4358
  %v4390 = vpop.xlane.xlu0 %4389
  %4391 = vrot.lane.b32.xlu0 %v2970, 64
  %v4392 = vpop.permute.xlu0 %4391
  %4393 = vrot.lane.b32.xlu0 %v2975, 64
  %v4394 = vpop.permute.xlu0 %4393
  %4395 = vrot.lane.b32.xlu0 %v2980, 64
  %v4396 = vpop.permute.xlu0 %4395
  %4397 = vrot.lane.b32.xlu0 %v2985, 64
  %v4398 = vpop.permute.xlu0 %4397
  %4399 = vrot.lane.b32.xlu0 %v2990, 64
  %v4400 = vpop.permute.xlu0 %4399
  %4401 = vrot.lane.b32.xlu0 %v2995, 64
  %v4402 = vpop.permute.xlu0 %4401
  %4403 = vrot.lane.b32.xlu0 %v3000, 64
  %v4404 = vpop.permute.xlu0 %4403
  %4405 = vrot.lane.b32.xlu0 %v3005, 64
  %v4406 = vpop.permute.xlu0 %4405
  %4407 = vrot.lane.b32.xlu0 %v3010, 64
  %v4408 = vpop.permute.xlu0 %4407
  %4409 = vrot.lane.b32.xlu0 %v3015, 64
  %v4410 = vpop.permute.xlu0 %4409
  %4411 = vrot.lane.b32.xlu0 %v3020, 64
  %v4412 = vpop.permute.xlu0 %4411
  %4413 = vrot.lane.b32.xlu0 %v3025, 64
  %v4414 = vpop.permute.xlu0 %4413
  %4415 = vrot.lane.b32.xlu0 %v3030, 64
  %v4416 = vpop.permute.xlu0 %4415
  %4417 = vrot.lane.b32.xlu0 %v3035, 64
  %v4418 = vpop.permute.xlu0 %4417
  %4419 = vrot.lane.b32.xlu0 %v3040, 64
  %v4420 = vpop.permute.xlu0 %4419
  %4421 = vrot.lane.b32.xlu0 %v3045, 64
  %v4422 = vpop.permute.xlu0 %4421
  %4439 = vmatprep.subr.mxu0 0.0
  %4440 = vmatpush1.msra.mxu0 %v4392
  %4441 = vmatprep.subr.mxu0 0.0
  %4442 = vmatpush1.msra.mxu0 %v4394
  %4443 = vmatprep.subr.mxu0 0.0
  %4444 = vmatpush1.msra.mxu0 %v4396
  %4445 = vmatprep.subr.mxu0 0.0
  %4446 = vmatpush1.msra.mxu0 %v4398
  %4447 = vmatprep.subr.mxu0 0.0
  %4448 = vmatpush1.msra.mxu0 %v4400
  %4449 = vmatprep.subr.mxu0 0.0
  %4450 = vmatpush1.msra.mxu0 %v4402
  %4451 = vmatprep.subr.mxu0 0.0
  %4452 = vmatpush1.msra.mxu0 %v4404
  %4453 = vmatprep.subr.mxu0 0.0
  %4454 = vmatpush1.msra.mxu0 %v4406
  %4455 = vmatprep.subr.mxu0 0.0
  %4456 = vmatpush1.msra.mxu0 %v4408
  %4457 = vmatprep.subr.mxu0 0.0
  %4458 = vmatpush1.msra.mxu0 %v4410
  %4459 = vmatprep.subr.mxu0 0.0
  %4460 = vmatpush1.msra.mxu0 %v4412
  %4461 = vmatprep.subr.mxu0 0.0
  %4462 = vmatpush1.msra.mxu0 %v4414
  %4463 = vmatprep.subr.mxu0 0.0
  %4464 = vmatpush1.msra.mxu0 %v4416
  %4465 = vmatprep.subr.mxu0 0.0
  %4466 = vmatpush1.msra.mxu0 %v4418
  %4467 = vmatprep.subr.mxu0 0.0
  %4468 = vmatpush1.msra.mxu0 %v4420
  %4469 = vmatprep.subr.mxu0 0.0
  %4470 = vmatpush1.msra.mxu0 %v4422
  %4471 = vmatprep.subr.mxu0 0.0
  %4472 = vmatpush1.msra.mxu0 0.0
  %4473 = vmatprep.subr.mxu0 0.0
  %4474 = vmatpush1.msra.mxu0 0.0
  %4475 = vmatprep.subr.mxu0 0.0
  %4476 = vmatpush1.msra.mxu0 0.0
  %4477 = vmatprep.subr.mxu0 0.0
  %4478 = vmatpush1.msra.mxu0 0.0
  %4479 = vmatprep.subr.mxu0 0.0
  %4480 = vmatpush1.msra.mxu0 0.0
  %4481 = vmatprep.subr.mxu0 0.0
  %4482 = vmatpush1.msra.mxu0 0.0
  %4483 = vmatprep.subr.mxu0 0.0
  %4484 = vmatpush1.msra.mxu0 0.0
  %4485 = vmatprep.subr.mxu0 0.0
  %4486 = vmatpush1.msra.mxu0 0.0
  %4487 = vmatprep.subr.mxu0 0.0
  %4488 = vmatpush1.msra.mxu0 0.0
  %4489 = vmatprep.subr.mxu0 0.0
  %4490 = vmatpush1.msra.mxu0 0.0
  %4491 = vmatprep.subr.mxu0 0.0
  %4492 = vmatpush1.msra.mxu0 0.0
  %4493 = vmatprep.subr.mxu0 0.0
  %4494 = vmatpush1.msra.mxu0 0.0
  %4495 = vmatprep.subr.mxu0 0.0
  %4496 = vmatpush1.msra.mxu0 0.0
  %4497 = vmatprep.subr.mxu0 0.0
  %4498 = vmatpush1.msra.mxu0 0.0
  %4499 = vmatprep.subr.mxu0 0.0
  %4500 = vmatpush1.msra.mxu0 0.0
  %4501 = vmatprep.subr.mxu0 0.0
  %4502 = vmatpush1.msra.mxu0 0.0
  %4503 = vmatprep.mubr.f32.mxu0 0.0
  %4504 = vmatmul.mubr.f32.gmra.mrb[0].mxu0 %v4328
  %v4505 = vpop.f32.mrb[0].mxu0
  %v4506 = vadd.f32 0.0, %v4505
  %v4507 = vpop.f32.mrb[0].mxu0
  %4508 = vmatprep.mubr.f32.mxu0 0.0
  %4509 = vmatmul.mubr.f32.gmra.mrb[0].mxu0 %v4330
  %v4510 = vpop.f32.mrb[0].mxu0
  %v4511 = vadd.f32 0.0, %v4510
  %v4512 = vpop.f32.mrb[0].mxu0
  %4513 = vmatprep.mubr.f32.mxu0 0.0
  %4514 = vmatmul.mubr.f32.gmra.mrb[0].mxu0 %v4332
  %v4515 = vpop.f32.mrb[0].mxu0
  %v4516 = vadd.f32 0.0, %v4515
  %v4517 = vpop.f32.mrb[0].mxu0
  %4518 = vmatprep.mubr.f32.mxu0 0.0
  %4519 = vmatmul.mubr.f32.gmra.mrb[0].mxu0 %v4334
  %v4520 = vpop.f32.mrb[0].mxu0
  %v4521 = vadd.f32 0.0, %v4520
  %v4522 = vpop.f32.mrb[0].mxu0
  %4523 = vmatprep.mubr.f32.mxu0 0.0
  %4524 = vmatmul.mubr.f32.gmra.mrb[0].mxu0 %v4336
  %v4525 = vpop.f32.mrb[0].mxu0
  %v4526 = vadd.f32 0.0, %v4525
  %v4527 = vpop.f32.mrb[0].mxu0
  %4528 = vmatprep.mubr.f32.mxu0 0.0
  %4529 = vmatmul.mubr.f32.gmra.mrb[0].mxu0 %v4338
  %v4530 = vpop.f32.mrb[0].mxu0
  %v4531 = vadd.f32 0.0, %v4530
  %v4532 = vpop.f32.mrb[0].mxu0
  %4533 = vmatprep.mubr.f32.mxu0 0.0
  %4534 = vmatmul.mubr.f32.gmra.mrb[0].mxu0 %v4340
  %v4535 = vpop.f32.mrb[0].mxu0
  %v4536 = vadd.f32 0.0, %v4535
  %v4537 = vpop.f32.mrb[0].mxu0
  %4538 = vmatprep.mubr.f32.mxu0 0.0
  %4539 = vmatmul.mubr.f32.gmra.mrb[0].mxu0 %v4342
  %v4540 = vpop.f32.mrb[0].mxu0
  %v4541 = vadd.f32 0.0, %v4540
  %v4542 = vpop.f32.mrb[0].mxu0
  %4543 = vmatprep.mubr.f32.mxu0 0.0
  %4544 = vmatmul.mubr.f32.gmra.mrb[0].mxu0 %v4344
  %v4545 = vpop.f32.mrb[0].mxu0
  %v4546 = vadd.f32 0.0, %v4545
  %v4547 = vpop.f32.mrb[0].mxu0
  %4548 = vmatprep.mubr.f32.mxu0 0.0
  %4549 = vmatmul.mubr.f32.gmra.mrb[0].mxu0 %v4346
  %v4550 = vpop.f32.mrb[0].mxu0
  %v4551 = vadd.f32 0.0, %v4550
  %v4552 = vpop.f32.mrb[0].mxu0
  %4553 = vmatprep.mubr.f32.mxu0 0.0
  %4554 = vmatmul.mubr.f32.gmra.mrb[0].mxu0 %v4348
  %v4555 = vpop.f32.mrb[0].mxu0
  %v4556 = vadd.f32 0.0, %v4555
  %v4557 = vpop.f32.mrb[0].mxu0
  %4558 = vmatprep.mubr.f32.mxu0 0.0
  %4559 = vmatmul.mubr.f32.gmra.mrb[0].mxu0 %v4350
  %v4560 = vpop.f32.mrb[0].mxu0
  %v4561 = vadd.f32 0.0, %v4560
  %v4562 = vpop.f32.mrb[0].mxu0
  %4563 = vmatprep.mubr.f32.mxu0 0.0
  %4564 = vmatmul.mubr.f32.gmra.mrb[0].mxu0 %v4352
  %v4565 = vpop.f32.mrb[0].mxu0
  %v4566 = vadd.f32 0.0, %v4565
  %v4567 = vpop.f32.mrb[0].mxu0
  %4568 = vmatprep.mubr.f32.mxu0 0.0
  %4569 = vmatmul.mubr.f32.gmra.mrb[0].mxu0 %v4354
  %v4570 = vpop.f32.mrb[0].mxu0
  %v4571 = vadd.f32 0.0, %v4570
  %v4572 = vpop.f32.mrb[0].mxu0
  %4573 = vmatprep.mubr.f32.mxu0 0.0
  %4574 = vmatmul.mubr.f32.gmra.mrb[0].mxu0 %v4356
  %v4575 = vpop.f32.mrb[0].mxu0
  %v4576 = vadd.f32 0.0, %v4575
  %v4577 = vpop.f32.mrb[0].mxu0
  %4578 = vmatprep.mubr.f32.mxu0 0.0
  %4579 = vmatmul.mubr.f32.gmra.mrb[0].mxu0 %v4358
  %v4580 = vpop.f32.mrb[0].mxu0
  %v4581 = vadd.f32 0.0, %v4580
  %v4582 = vpop.f32.mrb[0].mxu0
  %4583 = vdwg.mxu0
  %v4584 = vrcp.pop %v4360
  %v4585 = vrcp.pop %v4362
  %v4586 = vrcp.pop %v4364
  %v4587 = vrcp.pop %v4366
  %v4588 = vrcp.pop %v4368
  %v4589 = vrcp.pop %v4370
  %v4590 = vrcp.pop %v4372
  %v4591 = vrcp.pop %v4374
  %v4592 = vrcp.pop %v4376
  %v4593 = vrcp.pop %v4378
  %v4594 = vrcp.pop %v4380
  %v4595 = vrcp.pop %v4382
  %v4596 = vrcp.pop %v4384
  %v4597 = vrcp.pop %v4386
  %v4598 = vrcp.pop %v4388
  %v4599 = vrcp.pop %v4390
  %v4600 = vmul.f32 %v4506, %v4584
  %v4601 = vmul.f32 %v4511, %v4585
  %v4602 = vmul.f32 %v4516, %v4586
  %v4603 = vmul.f32 %v4521, %v4587
  %v4604 = vmul.f32 %v4526, %v4588
  %v4605 = vmul.f32 %v4531, %v4589
  %v4606 = vmul.f32 %v4536, %v4590
  %v4607 = vmul.f32 %v4541, %v4591
  %v4608 = vmul.f32 %v4546, %v4592
  %v4609 = vmul.f32 %v4551, %v4593
  %v4610 = vmul.f32 %v4556, %v4594
  %v4611 = vmul.f32 %v4561, %v4595
  %v4612 = vmul.f32 %v4566, %v4596
  %v4613 = vmul.f32 %v4571, %v4597
  %v4614 = vmul.f32 %v4576, %v4598
  %v4615 = vmul.f32 %v4581, %v4599
  %4616 = vset.pattern.permute.xlu0 3
  %4617 = vperm.xlu0 %4616, %v3115
  %v4618 = vpop.permute.xlu0 %4617
  %4620 = vset.pattern.permute.xlu0 3
  %4621 = vperm.xlu0 %4620, %v3120
  %v4622 = vpop.permute.xlu0 %4621
  %4624 = vset.pattern.permute.xlu0 3
  %4625 = vperm.xlu0 %4624, %v3125
  %v4626 = vpop.permute.xlu0 %4625
  %4628 = vset.pattern.permute.xlu0 3
  %4629 = vperm.xlu0 %4628, %v3130
  %v4630 = vpop.permute.xlu0 %4629
  %4632 = vset.pattern.permute.xlu0 3
  %4633 = vperm.xlu0 %4632, %v3135
  %v4634 = vpop.permute.xlu0 %4633
  %4636 = vset.pattern.permute.xlu0 3
  %4637 = vperm.xlu0 %4636, %v3140
  %v4638 = vpop.permute.xlu0 %4637
  %4640 = vset.pattern.permute.xlu0 3
  %4641 = vperm.xlu0 %4640, %v3145
  %v4642 = vpop.permute.xlu0 %4641
  %4644 = vset.pattern.permute.xlu0 3
  %4645 = vperm.xlu0 %4644, %v3150
  %v4646 = vpop.permute.xlu0 %4645
  %4648 = vset.pattern.permute.xlu0 3
  %4649 = vperm.xlu0 %4648, %v3155
  %v4650 = vpop.permute.xlu0 %4649
  %4652 = vset.pattern.permute.xlu0 3
  %4653 = vperm.xlu0 %4652, %v3160
  %v4654 = vpop.permute.xlu0 %4653
  %4656 = vset.pattern.permute.xlu0 3
  %4657 = vperm.xlu0 %4656, %v3165
  %v4658 = vpop.permute.xlu0 %4657
  %4660 = vset.pattern.permute.xlu0 3
  %4661 = vperm.xlu0 %4660, %v3170
  %v4662 = vpop.permute.xlu0 %4661
  %4664 = vset.pattern.permute.xlu0 3
  %4665 = vperm.xlu0 %4664, %v3175
  %v4666 = vpop.permute.xlu0 %4665
  %4668 = vset.pattern.permute.xlu0 3
  %4669 = vperm.xlu0 %4668, %v3180
  %v4670 = vpop.permute.xlu0 %4669
  %4672 = vset.pattern.permute.xlu0 3
  %4673 = vperm.xlu0 %4672, %v3185
  %v4674 = vpop.permute.xlu0 %4673
  %4676 = vset.pattern.permute.xlu0 3
  %4677 = vperm.xlu0 %4676, %v3190
  %v4678 = vpop.permute.xlu0 %4677
  %v4680 = vlaneseq
  %v4681 = vshrl.u32 %v4680, 7
  %v4682 = vsub.s32 7, %v4681
  %v4683 = vrot.slane %v3209, %v4682
  %v4684 = vadd.f32 %v4618, %v4683
  %v4685 = vadd.f32 %v4622, %v4683
  %v4686 = vadd.f32 %v4626, %v4683
  %v4687 = vadd.f32 %v4630, %v4683
  %v4688 = vadd.f32 %v4634, %v4683
  %v4689 = vadd.f32 %v4638, %v4683
  %v4690 = vadd.f32 %v4642, %v4683
  %v4691 = vadd.f32 %v4646, %v4683
  %v4692 = vadd.f32 %v4650, %v4683
  %v4693 = vadd.f32 %v4654, %v4683
  %v4694 = vadd.f32 %v4658, %v4683
  %v4695 = vadd.f32 %v4662, %v4683
  %v4696 = vadd.f32 %v4666, %v4683
  %v4697 = vadd.f32 %v4670, %v4683
  %v4698 = vadd.f32 %v4674, %v4683
  %v4699 = vadd.f32 %v4678, %v4683
  %v4700 = vmul.f32 %v4684, 0.2
  %v4701 = vmul.f32 %v4685, 0.2
  %v4702 = vmul.f32 %v4686, 0.2
  %v4703 = vmul.f32 %v4687, 0.2
  %v4704 = vmul.f32 %v4688, 0.2
  %v4705 = vmul.f32 %v4689, 0.2
  %v4706 = vmul.f32 %v4690, 0.2
  %v4707 = vmul.f32 %v4691, 0.2
  %v4708 = vmul.f32 %v4692, 0.2
  %v4709 = vmul.f32 %v4693, 0.2
  %v4710 = vmul.f32 %v4694, 0.2
  %v4711 = vmul.f32 %v4695, 0.2
  %v4712 = vmul.f32 %v4696, 0.2
  %v4713 = vmul.f32 %v4697, 0.2
  %v4714 = vmul.f32 %v4698, 0.2
  %v4715 = vmul.f32 %v4699, 0.2
  %v4716 = vmax.f32 %v4684, %v4700
  %v4717 = vmax.f32 %v4685, %v4701
  %v4718 = vmax.f32 %v4686, %v4702
  %v4719 = vmax.f32 %v4687, %v4703
  %v4720 = vmax.f32 %v4688, %v4704
  %v4721 = vmax.f32 %v4689, %v4705
  %v4722 = vmax.f32 %v4690, %v4706
  %v4723 = vmax.f32 %v4691, %v4707
  %v4724 = vmax.f32 %v4692, %v4708
  %v4725 = vmax.f32 %v4693, %v4709
  %v4726 = vmax.f32 %v4694, %v4710
  %v4727 = vmax.f32 %v4695, %v4711
  %v4728 = vmax.f32 %v4696, %v4712
  %v4729 = vmax.f32 %v4697, %v4713
  %v4730 = vmax.f32 %v4698, %v4714
  %v4731 = vmax.f32 %v4699, %v4715
  %v4732 = vadd.f32 %v4716, %v74
  %v4733 = vadd.f32 %v4717, %v75
  %v4734 = vadd.f32 %v4718, %v76
  %v4735 = vadd.f32 %v4719, %v77
  %v4736 = vadd.f32 %v4720, %v78
  %v4737 = vadd.f32 %v4721, %v79
  %v4738 = vadd.f32 %v4722, %v80
  %v4739 = vadd.f32 %v4723, %v81
  %v4740 = vadd.f32 %v4724, %v82
  %v4741 = vadd.f32 %v4725, %v83
  %v4742 = vadd.f32 %v4726, %v84
  %v4743 = vadd.f32 %v4727, %v85
  %v4744 = vadd.f32 %v4728, %v86
  %v4745 = vadd.f32 %v4729, %v87
  %v4746 = vadd.f32 %v4730, %v88
  %v4747 = vadd.f32 %v4731, %v89
  %4748 = vmax.xlane.f32.xlu0 %v4732
  %v4749 = vpop.xlane.xlu0 %4748
  %4750 = vmax.xlane.f32.xlu0 %v4733
  %v4751 = vpop.xlane.xlu0 %4750
  %4752 = vmax.xlane.f32.xlu0 %v4734
  %v4753 = vpop.xlane.xlu0 %4752
  %4754 = vmax.xlane.f32.xlu0 %v4735
  %v4755 = vpop.xlane.xlu0 %4754
  %4756 = vmax.xlane.f32.xlu0 %v4736
  %v4757 = vpop.xlane.xlu0 %4756
  %4758 = vmax.xlane.f32.xlu0 %v4737
  %v4759 = vpop.xlane.xlu0 %4758
  %4760 = vmax.xlane.f32.xlu0 %v4738
  %v4761 = vpop.xlane.xlu0 %4760
  %4762 = vmax.xlane.f32.xlu0 %v4739
  %v4763 = vpop.xlane.xlu0 %4762
  %4764 = vmax.xlane.f32.xlu0 %v4740
  %v4765 = vpop.xlane.xlu0 %4764
  %4766 = vmax.xlane.f32.xlu0 %v4741
  %v4767 = vpop.xlane.xlu0 %4766
  %4768 = vmax.xlane.f32.xlu0 %v4742
  %v4769 = vpop.xlane.xlu0 %4768
  %4770 = vmax.xlane.f32.xlu0 %v4743
  %v4771 = vpop.xlane.xlu0 %4770
  %4772 = vmax.xlane.f32.xlu0 %v4744
  %v4773 = vpop.xlane.xlu0 %4772
  %4774 = vmax.xlane.f32.xlu0 %v4745
  %v4775 = vpop.xlane.xlu0 %4774
  %4776 = vmax.xlane.f32.xlu0 %v4746
  %v4777 = vpop.xlane.xlu0 %4776
  %4778 = vmax.xlane.f32.xlu0 %v4747
  %v4779 = vpop.xlane.xlu0 %4778
  %v4780 = vsub.f32 %v4732, %v4749
  %v4781 = vsub.f32 %v4733, %v4751
  %v4782 = vsub.f32 %v4734, %v4753
  %v4783 = vsub.f32 %v4735, %v4755
  %v4784 = vsub.f32 %v4736, %v4757
  %v4785 = vsub.f32 %v4737, %v4759
  %v4786 = vsub.f32 %v4738, %v4761
  %v4787 = vsub.f32 %v4739, %v4763
  %v4788 = vsub.f32 %v4740, %v4765
  %v4789 = vsub.f32 %v4741, %v4767
  %v4790 = vsub.f32 %v4742, %v4769
  %v4791 = vsub.f32 %v4743, %v4771
  %v4792 = vsub.f32 %v4744, %v4773
  %v4793 = vsub.f32 %v4745, %v4775
  %v4794 = vsub.f32 %v4746, %v4777
  %v4795 = vsub.f32 %v4747, %v4779
  %v4796 = vmul.f32 %v4780, 1.442695
  %v4797 = vpow.pop %v4796
  %v4798 = vmul.f32 %v4781, 1.442695
  %v4799 = vpow.pop %v4798
  %v4800 = vmul.f32 %v4782, 1.442695
  %v4801 = vpow.pop %v4800
  %v4802 = vmul.f32 %v4783, 1.442695
  %v4803 = vpow.pop %v4802
  %v4804 = vmul.f32 %v4784, 1.442695
  %v4805 = vpow.pop %v4804
  %v4806 = vmul.f32 %v4785, 1.442695
  %v4807 = vpow.pop %v4806
  %v4808 = vmul.f32 %v4786, 1.442695
  %v4809 = vpow.pop %v4808
  %v4810 = vmul.f32 %v4787, 1.442695
  %v4811 = vpow.pop %v4810
  %v4812 = vmul.f32 %v4788, 1.442695
  %v4813 = vpow.pop %v4812
  %v4814 = vmul.f32 %v4789, 1.442695
  %v4815 = vpow.pop %v4814
  %v4816 = vmul.f32 %v4790, 1.442695
  %v4817 = vpow.pop %v4816
  %v4818 = vmul.f32 %v4791, 1.442695
  %v4819 = vpow.pop %v4818
  %v4820 = vmul.f32 %v4792, 1.442695
  %v4821 = vpow.pop %v4820
  %v4822 = vmul.f32 %v4793, 1.442695
  %v4823 = vpow.pop %v4822
  %v4824 = vmul.f32 %v4794, 1.442695
  %v4825 = vpow.pop %v4824
  %v4826 = vmul.f32 %v4795, 1.442695
  %v4827 = vpow.pop %v4826
  %4828 = vadd.xlane.f32.xlu0 %v4797
  %v4829 = vpop.xlane.xlu0 %4828
  %4830 = vadd.xlane.f32.xlu0 %v4799
  %v4831 = vpop.xlane.xlu0 %4830
  %4832 = vadd.xlane.f32.xlu0 %v4801
  %v4833 = vpop.xlane.xlu0 %4832
  %4834 = vadd.xlane.f32.xlu0 %v4803
  %v4835 = vpop.xlane.xlu0 %4834
  %4836 = vadd.xlane.f32.xlu0 %v4805
  %v4837 = vpop.xlane.xlu0 %4836
  %4838 = vadd.xlane.f32.xlu0 %v4807
  %v4839 = vpop.xlane.xlu0 %4838
  %4840 = vadd.xlane.f32.xlu0 %v4809
  %v4841 = vpop.xlane.xlu0 %4840
  %4842 = vadd.xlane.f32.xlu0 %v4811
  %v4843 = vpop.xlane.xlu0 %4842
  %4844 = vadd.xlane.f32.xlu0 %v4813
  %v4845 = vpop.xlane.xlu0 %4844
  %4846 = vadd.xlane.f32.xlu0 %v4815
  %v4847 = vpop.xlane.xlu0 %4846
  %4848 = vadd.xlane.f32.xlu0 %v4817
  %v4849 = vpop.xlane.xlu0 %4848
  %4850 = vadd.xlane.f32.xlu0 %v4819
  %v4851 = vpop.xlane.xlu0 %4850
  %4852 = vadd.xlane.f32.xlu0 %v4821
  %v4853 = vpop.xlane.xlu0 %4852
  %4854 = vadd.xlane.f32.xlu0 %v4823
  %v4855 = vpop.xlane.xlu0 %4854
  %4856 = vadd.xlane.f32.xlu0 %v4825
  %v4857 = vpop.xlane.xlu0 %4856
  %4858 = vadd.xlane.f32.xlu0 %v4827
  %v4859 = vpop.xlane.xlu0 %4858
  %4860 = vrot.lane.b32.xlu0 %v2970, 32
  %v4861 = vpop.permute.xlu0 %4860
  %4862 = vrot.lane.b32.xlu0 %v2975, 32
  %v4863 = vpop.permute.xlu0 %4862
  %4864 = vrot.lane.b32.xlu0 %v2980, 32
  %v4865 = vpop.permute.xlu0 %4864
  %4866 = vrot.lane.b32.xlu0 %v2985, 32
  %v4867 = vpop.permute.xlu0 %4866
  %4868 = vrot.lane.b32.xlu0 %v2990, 32
  %v4869 = vpop.permute.xlu0 %4868
  %4870 = vrot.lane.b32.xlu0 %v2995, 32
  %v4871 = vpop.permute.xlu0 %4870
  %4872 = vrot.lane.b32.xlu0 %v3000, 32
  %v4873 = vpop.permute.xlu0 %4872
  %4874 = vrot.lane.b32.xlu0 %v3005, 32
  %v4875 = vpop.permute.xlu0 %4874
  %4876 = vrot.lane.b32.xlu0 %v3010, 32
  %v4877 = vpop.permute.xlu0 %4876
  %4878 = vrot.lane.b32.xlu0 %v3015, 32
  %v4879 = vpop.permute.xlu0 %4878
  %4880 = vrot.lane.b32.xlu0 %v3020, 32
  %v4881 = vpop.permute.xlu0 %4880
  %4882 = vrot.lane.b32.xlu0 %v3025, 32
  %v4883 = vpop.permute.xlu0 %4882
  %4884 = vrot.lane.b32.xlu0 %v3030, 32
  %v4885 = vpop.permute.xlu0 %4884
  %4886 = vrot.lane.b32.xlu0 %v3035, 32
  %v4887 = vpop.permute.xlu0 %4886
  %4888 = vrot.lane.b32.xlu0 %v3040, 32
  %v4889 = vpop.permute.xlu0 %4888
  %4890 = vrot.lane.b32.xlu0 %v3045, 32
  %v4891 = vpop.permute.xlu0 %4890
  %4908 = vmatprep.subr.mxu0 0.0
  %4909 = vmatpush1.msra.mxu0 %v4861
  %4910 = vmatprep.subr.mxu0 0.0
  %4911 = vmatpush1.msra.mxu0 %v4863
  %4912 = vmatprep.subr.mxu0 0.0
  %4913 = vmatpush1.msra.mxu0 %v4865
  %4914 = vmatprep.subr.mxu0 0.0
  %4915 = vmatpush1.msra.mxu0 %v4867
  %4916 = vmatprep.subr.mxu0 0.0
  %4917 = vmatpush1.msra.mxu0 %v4869
  %4918 = vmatprep.subr.mxu0 0.0
  %4919 = vmatpush1.msra.mxu0 %v4871
  %4920 = vmatprep.subr.mxu0 0.0
  %4921 = vmatpush1.msra.mxu0 %v4873
  %4922 = vmatprep.subr.mxu0 0.0
  %4923 = vmatpush1.msra.mxu0 %v4875
  %4924 = vmatprep.subr.mxu0 0.0
  %4925 = vmatpush1.msra.mxu0 %v4877
  %4926 = vmatprep.subr.mxu0 0.0
  %4927 = vmatpush1.msra.mxu0 %v4879
  %4928 = vmatprep.subr.mxu0 0.0
  %4929 = vmatpush1.msra.mxu0 %v4881
  %4930 = vmatprep.subr.mxu0 0.0
  %4931 = vmatpush1.msra.mxu0 %v4883
  %4932 = vmatprep.subr.mxu0 0.0
  %4933 = vmatpush1.msra.mxu0 %v4885
  %4934 = vmatprep.subr.mxu0 0.0
  %4935 = vmatpush1.msra.mxu0 %v4887
  %4936 = vmatprep.subr.mxu0 0.0
  %4937 = vmatpush1.msra.mxu0 %v4889
  %4938 = vmatprep.subr.mxu0 0.0
  %4939 = vmatpush1.msra.mxu0 %v4891
  %4940 = vmatprep.subr.mxu0 0.0
  %4941 = vmatpush1.msra.mxu0 0.0
  %4942 = vmatprep.subr.mxu0 0.0
  %4943 = vmatpush1.msra.mxu0 0.0
  %4944 = vmatprep.subr.mxu0 0.0
  %4945 = vmatpush1.msra.mxu0 0.0
  %4946 = vmatprep.subr.mxu0 0.0
  %4947 = vmatpush1.msra.mxu0 0.0
  %4948 = vmatprep.subr.mxu0 0.0
  %4949 = vmatpush1.msra.mxu0 0.0
  %4950 = vmatprep.subr.mxu0 0.0
  %4951 = vmatpush1.msra.mxu0 0.0
  %4952 = vmatprep.subr.mxu0 0.0
  %4953 = vmatpush1.msra.mxu0 0.0
  %4954 = vmatprep.subr.mxu0 0.0
  %4955 = vmatpush1.msra.mxu0 0.0
  %4956 = vmatprep.subr.mxu0 0.0
  %4957 = vmatpush1.msra.mxu0 0.0
  %4958 = vmatprep.subr.mxu0 0.0
  %4959 = vmatpush1.msra.mxu0 0.0
  %4960 = vmatprep.subr.mxu0 0.0
  %4961 = vmatpush1.msra.mxu0 0.0
  %4962 = vmatprep.subr.mxu0 0.0
  %4963 = vmatpush1.msra.mxu0 0.0
  %4964 = vmatprep.subr.mxu0 0.0
  %4965 = vmatpush1.msra.mxu0 0.0
  %4966 = vmatprep.subr.mxu0 0.0
  %4967 = vmatpush1.msra.mxu0 0.0
  %4968 = vmatprep.subr.mxu0 0.0
  %4969 = vmatpush1.msra.mxu0 0.0
  %4970 = vmatprep.subr.mxu0 0.0
  %4971 = vmatpush1.msra.mxu0 0.0
  %4972 = vmatprep.mubr.f32.mxu0 0.0
  %4973 = vmatmul.mubr.f32.gmra.mrb[0].mxu0 %v4797
  %v4974 = vpop.f32.mrb[0].mxu0
  %v4975 = vadd.f32 0.0, %v4974
  %v4976 = vpop.f32.mrb[0].mxu0
  %4977 = vmatprep.mubr.f32.mxu0 0.0
  %4978 = vmatmul.mubr.f32.gmra.mrb[0].mxu0 %v4799
  %v4979 = vpop.f32.mrb[0].mxu0
  %v4980 = vadd.f32 0.0, %v4979
  %v4981 = vpop.f32.mrb[0].mxu0
  %4982 = vmatprep.mubr.f32.mxu0 0.0
  %4983 = vmatmul.mubr.f32.gmra.mrb[0].mxu0 %v4801
  %v4984 = vpop.f32.mrb[0].mxu0
  %v4985 = vadd.f32 0.0, %v4984
  %v4986 = vpop.f32.mrb[0].mxu0
  %4987 = vmatprep.mubr.f32.mxu0 0.0
  %4988 = vmatmul.mubr.f32.gmra.mrb[0].mxu0 %v4803
  %v4989 = vpop.f32.mrb[0].mxu0
  %v4990 = vadd.f32 0.0, %v4989
  %v4991 = vpop.f32.mrb[0].mxu0
  %4992 = vmatprep.mubr.f32.mxu0 0.0
  %4993 = vmatmul.mubr.f32.gmra.mrb[0].mxu0 %v4805
  %v4994 = vpop.f32.mrb[0].mxu0
  %v4995 = vadd.f32 0.0, %v4994
  %v4996 = vpop.f32.mrb[0].mxu0
  %4997 = vmatprep.mubr.f32.mxu0 0.0
  %4998 = vmatmul.mubr.f32.gmra.mrb[0].mxu0 %v4807
  %v4999 = vpop.f32.mrb[0].mxu0
  %v5000 = vadd.f32 0.0, %v4999
  %v5001 = vpop.f32.mrb[0].mxu0
  %5002 = vmatprep.mubr.f32.mxu0 0.0
  %5003 = vmatmul.mubr.f32.gmra.mrb[0].mxu0 %v4809
  %v5004 = vpop.f32.mrb[0].mxu0
  %v5005 = vadd.f32 0.0, %v5004
  %v5006 = vpop.f32.mrb[0].mxu0
  %5007 = vmatprep.mubr.f32.mxu0 0.0
  %5008 = vmatmul.mubr.f32.gmra.mrb[0].mxu0 %v4811
  %v5009 = vpop.f32.mrb[0].mxu0
  %v5010 = vadd.f32 0.0, %v5009
  %v5011 = vpop.f32.mrb[0].mxu0
  %5012 = vmatprep.mubr.f32.mxu0 0.0
  %5013 = vmatmul.mubr.f32.gmra.mrb[0].mxu0 %v4813
  %v5014 = vpop.f32.mrb[0].mxu0
  %v5015 = vadd.f32 0.0, %v5014
  %v5016 = vpop.f32.mrb[0].mxu0
  %5017 = vmatprep.mubr.f32.mxu0 0.0
  %5018 = vmatmul.mubr.f32.gmra.mrb[0].mxu0 %v4815
  %v5019 = vpop.f32.mrb[0].mxu0
  %v5020 = vadd.f32 0.0, %v5019
  %v5021 = vpop.f32.mrb[0].mxu0
  %5022 = vmatprep.mubr.f32.mxu0 0.0
  %5023 = vmatmul.mubr.f32.gmra.mrb[0].mxu0 %v4817
  %v5024 = vpop.f32.mrb[0].mxu0
  %v5025 = vadd.f32 0.0, %v5024
  %v5026 = vpop.f32.mrb[0].mxu0
  %5027 = vmatprep.mubr.f32.mxu0 0.0
  %5028 = vmatmul.mubr.f32.gmra.mrb[0].mxu0 %v4819
  %v5029 = vpop.f32.mrb[0].mxu0
  %v5030 = vadd.f32 0.0, %v5029
  %v5031 = vpop.f32.mrb[0].mxu0
  %5032 = vmatprep.mubr.f32.mxu0 0.0
  %5033 = vmatmul.mubr.f32.gmra.mrb[0].mxu0 %v4821
  %v5034 = vpop.f32.mrb[0].mxu0
  %v5035 = vadd.f32 0.0, %v5034
  %v5036 = vpop.f32.mrb[0].mxu0
  %5037 = vmatprep.mubr.f32.mxu0 0.0
  %5038 = vmatmul.mubr.f32.gmra.mrb[0].mxu0 %v4823
  %v5039 = vpop.f32.mrb[0].mxu0
  %v5040 = vadd.f32 0.0, %v5039
  %v5041 = vpop.f32.mrb[0].mxu0
  %5042 = vmatprep.mubr.f32.mxu0 0.0
  %5043 = vmatmul.mubr.f32.gmra.mrb[0].mxu0 %v4825
  %v5044 = vpop.f32.mrb[0].mxu0
  %v5045 = vadd.f32 0.0, %v5044
  %v5046 = vpop.f32.mrb[0].mxu0
  %5047 = vmatprep.mubr.f32.mxu0 0.0
  %5048 = vmatmul.mubr.f32.gmra.mrb[0].mxu0 %v4827
  %v5049 = vpop.f32.mrb[0].mxu0
  %v5050 = vadd.f32 0.0, %v5049
  %v5051 = vpop.f32.mrb[0].mxu0
  %5052 = vdwg.mxu0
  %v5053 = vrcp.pop %v4829
  %v5054 = vrcp.pop %v4831
  %v5055 = vrcp.pop %v4833
  %v5056 = vrcp.pop %v4835
  %v5057 = vrcp.pop %v4837
  %v5058 = vrcp.pop %v4839
  %v5059 = vrcp.pop %v4841
  %v5060 = vrcp.pop %v4843
  %v5061 = vrcp.pop %v4845
  %v5062 = vrcp.pop %v4847
  %v5063 = vrcp.pop %v4849
  %v5064 = vrcp.pop %v4851
  %v5065 = vrcp.pop %v4853
  %v5066 = vrcp.pop %v4855
  %v5067 = vrcp.pop %v4857
  %v5068 = vrcp.pop %v4859
  %v5069 = vmul.f32 %v4975, %v5053
  %v5070 = vmul.f32 %v4980, %v5054
  %v5071 = vmul.f32 %v4985, %v5055
  %v5072 = vmul.f32 %v4990, %v5056
  %v5073 = vmul.f32 %v4995, %v5057
  %v5074 = vmul.f32 %v5000, %v5058
  %v5075 = vmul.f32 %v5005, %v5059
  %v5076 = vmul.f32 %v5010, %v5060
  %v5077 = vmul.f32 %v5015, %v5061
  %v5078 = vmul.f32 %v5020, %v5062
  %v5079 = vmul.f32 %v5025, %v5063
  %v5080 = vmul.f32 %v5030, %v5064
  %v5081 = vmul.f32 %v5035, %v5065
  %v5082 = vmul.f32 %v5040, %v5066
  %v5083 = vmul.f32 %v5045, %v5067
  %v5084 = vmul.f32 %v5050, %v5068
  %5101 = vrot.lane.b32.xlu0 %v4131, 32
  %v5102 = vpop.permute.xlu0 %5101
  %5103 = vrot.lane.b32.xlu0 %v4132, 32
  %v5104 = vpop.permute.xlu0 %5103
  %5105 = vrot.lane.b32.xlu0 %v4133, 32
  %v5106 = vpop.permute.xlu0 %5105
  %5107 = vrot.lane.b32.xlu0 %v4134, 32
  %v5108 = vpop.permute.xlu0 %5107
  %5109 = vrot.lane.b32.xlu0 %v4135, 32
  %v5110 = vpop.permute.xlu0 %5109
  %5111 = vrot.lane.b32.xlu0 %v4136, 32
  %v5112 = vpop.permute.xlu0 %5111
  %5113 = vrot.lane.b32.xlu0 %v4137, 32
  %v5114 = vpop.permute.xlu0 %5113
  %5115 = vrot.lane.b32.xlu0 %v4138, 32
  %v5116 = vpop.permute.xlu0 %5115
  %5117 = vrot.lane.b32.xlu0 %v4139, 32
  %v5118 = vpop.permute.xlu0 %5117
  %5119 = vrot.lane.b32.xlu0 %v4140, 32
  %v5120 = vpop.permute.xlu0 %5119
  %5121 = vrot.lane.b32.xlu0 %v4141, 32
  %v5122 = vpop.permute.xlu0 %5121
  %5123 = vrot.lane.b32.xlu0 %v4142, 32
  %v5124 = vpop.permute.xlu0 %5123
  %5125 = vrot.lane.b32.xlu0 %v4143, 32
  %v5126 = vpop.permute.xlu0 %5125
  %5127 = vrot.lane.b32.xlu0 %v4144, 32
  %v5128 = vpop.permute.xlu0 %5127
  %5129 = vrot.lane.b32.xlu0 %v4145, 32
  %v5130 = vpop.permute.xlu0 %5129
  %5131 = vrot.lane.b32.xlu0 %v4146, 32
  %v5132 = vpop.permute.xlu0 %5131
  %5165 = vrot.lane.b32.xlu0 %v4600, 64
  %v5166 = vpop.permute.xlu0 %5165
  %5167 = vrot.lane.b32.xlu0 %v4601, 64
  %v5168 = vpop.permute.xlu0 %5167
  %5169 = vrot.lane.b32.xlu0 %v4602, 64
  %v5170 = vpop.permute.xlu0 %5169
  %5171 = vrot.lane.b32.xlu0 %v4603, 64
  %v5172 = vpop.permute.xlu0 %5171
  %5173 = vrot.lane.b32.xlu0 %v4604, 64
  %v5174 = vpop.permute.xlu0 %5173
  %5175 = vrot.lane.b32.xlu0 %v4605, 64
  %v5176 = vpop.permute.xlu0 %5175
  %5177 = vrot.lane.b32.xlu0 %v4606, 64
  %v5178 = vpop.permute.xlu0 %5177
  %5179 = vrot.lane.b32.xlu0 %v4607, 64
  %v5180 = vpop.permute.xlu0 %5179
  %5181 = vrot.lane.b32.xlu0 %v4608, 64
  %v5182 = vpop.permute.xlu0 %5181
  %5183 = vrot.lane.b32.xlu0 %v4609, 64
  %v5184 = vpop.permute.xlu0 %5183
  %5185 = vrot.lane.b32.xlu0 %v4610, 64
  %v5186 = vpop.permute.xlu0 %5185
  %5187 = vrot.lane.b32.xlu0 %v4611, 64
  %v5188 = vpop.permute.xlu0 %5187
  %5189 = vrot.lane.b32.xlu0 %v4612, 64
  %v5190 = vpop.permute.xlu0 %5189
  %5191 = vrot.lane.b32.xlu0 %v4613, 64
  %v5192 = vpop.permute.xlu0 %5191
  %5193 = vrot.lane.b32.xlu0 %v4614, 64
  %v5194 = vpop.permute.xlu0 %5193
  %5195 = vrot.lane.b32.xlu0 %v4615, 64
  %v5196 = vpop.permute.xlu0 %5195
  %5229 = vrot.lane.b32.xlu0 %v5069, 96
  %v5230 = vpop.permute.xlu0 %5229
  %5231 = vrot.lane.b32.xlu0 %v5070, 96
  %v5232 = vpop.permute.xlu0 %5231
  %5233 = vrot.lane.b32.xlu0 %v5071, 96
  %v5234 = vpop.permute.xlu0 %5233
  %5235 = vrot.lane.b32.xlu0 %v5072, 96
  %v5236 = vpop.permute.xlu0 %5235
  %5237 = vrot.lane.b32.xlu0 %v5073, 96
  %v5238 = vpop.permute.xlu0 %5237
  %5239 = vrot.lane.b32.xlu0 %v5074, 96
  %v5240 = vpop.permute.xlu0 %5239
  %5241 = vrot.lane.b32.xlu0 %v5075, 96
  %v5242 = vpop.permute.xlu0 %5241
  %5243 = vrot.lane.b32.xlu0 %v5076, 96
  %v5244 = vpop.permute.xlu0 %5243
  %5245 = vrot.lane.b32.xlu0 %v5077, 96
  %v5246 = vpop.permute.xlu0 %5245
  %5247 = vrot.lane.b32.xlu0 %v5078, 96
  %v5248 = vpop.permute.xlu0 %5247
  %5249 = vrot.lane.b32.xlu0 %v5079, 96
  %v5250 = vpop.permute.xlu0 %5249
  %5251 = vrot.lane.b32.xlu0 %v5080, 96
  %v5252 = vpop.permute.xlu0 %5251
  %5253 = vrot.lane.b32.xlu0 %v5081, 96
  %v5254 = vpop.permute.xlu0 %5253
  %5255 = vrot.lane.b32.xlu0 %v5082, 96
  %v5256 = vpop.permute.xlu0 %5255
  %5257 = vrot.lane.b32.xlu0 %v5083, 96
  %v5258 = vpop.permute.xlu0 %5257
  %5259 = vrot.lane.b32.xlu0 %v5084, 96
  %v5260 = vpop.permute.xlu0 %5259
  %v5277 = vsel %vm2554, %v3646, %v5102
  %v5278 = vsel %vm2554, %v3647, %v5104
  %v5279 = vsel %vm2554, %v3648, %v5106
  %v5280 = vsel %vm2554, %v3649, %v5108
  %v5281 = vsel %vm2554, %v3650, %v5110
  %v5282 = vsel %vm2554, %v3651, %v5112
  %v5283 = vsel %vm2554, %v3652, %v5114
  %v5284 = vsel %vm2554, %v3653, %v5116
  %v5285 = vsel %vm2554, %v3654, %v5118
  %v5286 = vsel %vm2554, %v3655, %v5120
  %v5287 = vsel %vm2554, %v3656, %v5122
  %v5288 = vsel %vm2554, %v3657, %v5124
  %v5289 = vsel %vm2554, %v3658, %v5126
  %v5290 = vsel %vm2554, %v3659, %v5128
  %v5291 = vsel %vm2554, %v3660, %v5130
  %v5292 = vsel %vm2554, %v3661, %v5132
  %v5293 = vsel %vm131, %v5277, %v5166
  %v5294 = vsel %vm131, %v5278, %v5168
  %v5295 = vsel %vm131, %v5279, %v5170
  %v5296 = vsel %vm131, %v5280, %v5172
  %v5297 = vsel %vm131, %v5281, %v5174
  %v5298 = vsel %vm131, %v5282, %v5176
  %v5299 = vsel %vm131, %v5283, %v5178
  %v5300 = vsel %vm131, %v5284, %v5180
  %v5301 = vsel %vm131, %v5285, %v5182
  %v5302 = vsel %vm131, %v5286, %v5184
  %v5303 = vsel %vm131, %v5287, %v5186
  %v5304 = vsel %vm131, %v5288, %v5188
  %v5305 = vsel %vm131, %v5289, %v5190
  %v5306 = vsel %vm131, %v5290, %v5192
  %v5307 = vsel %vm131, %v5291, %v5194
  %v5308 = vsel %vm131, %v5292, %v5196
  %v5309 = vsel %vm2587, %v5293, %v5230
  %v5310 = vsel %vm2587, %v5294, %v5232
  %v5311 = vsel %vm2587, %v5295, %v5234
  %v5312 = vsel %vm2587, %v5296, %v5236
  %v5313 = vsel %vm2587, %v5297, %v5238
  %v5314 = vsel %vm2587, %v5298, %v5240
  %v5315 = vsel %vm2587, %v5299, %v5242
  %v5316 = vsel %vm2587, %v5300, %v5244
  %v5317 = vsel %vm2587, %v5301, %v5246
  %v5318 = vsel %vm2587, %v5302, %v5248
  %v5319 = vsel %vm2587, %v5303, %v5250
  %v5320 = vsel %vm2587, %v5304, %v5252
  %v5321 = vsel %vm2587, %v5305, %v5254
  %v5322 = vsel %vm2587, %v5306, %v5256
  %v5323 = vsel %vm2587, %v5307, %v5258
  %v5324 = vsel %vm2587, %v5308, %v5260
  %v5326 = vlaneseq
  %v5327 = vshrl.u32 %v5326, 7
  %v5328 = vsub.s32 0, %v5327
  %v5329 = vrot.slane %v2902, %v5328
  %v5331 = vadd.f32 %v5309, %v5329
  %v5332 = vadd.f32 %v5310, %v5329
  %v5333 = vadd.f32 %v5311, %v5329
  %v5334 = vadd.f32 %v5312, %v5329
  %v5335 = vadd.f32 %v5313, %v5329
  %v5336 = vadd.f32 %v5314, %v5329
  %v5337 = vadd.f32 %v5315, %v5329
  %v5338 = vadd.f32 %v5316, %v5329
  %v5339 = vadd.f32 %v5317, %v5329
  %v5340 = vadd.f32 %v5318, %v5329
  %v5341 = vadd.f32 %v5319, %v5329
  %v5342 = vadd.f32 %v5320, %v5329
  %v5343 = vadd.f32 %v5321, %v5329
  %v5344 = vadd.f32 %v5322, %v5329
  %v5345 = vadd.f32 %v5323, %v5329
  %v5346 = vadd.f32 %v5324, %v5329
  %v5347 = vld [vmem:[%s11] sm:$0x1]
  %v5348 = vld [vmem:[%s12] sm:$0x1]
  %v5349 = vld [vmem:[%s13] sm:$0x1]
  %v5350 = vadd.f32 %v5331, %v5332
  %v5351 = vadd.f32 %v5350, %v5333
  %v5352 = vadd.f32 %v5351, %v5334
  %v5353 = vadd.f32 %v5352, %v5335
  %v5354 = vadd.f32 %v5353, %v5336
  %v5355 = vadd.f32 %v5354, %v5337
  %v5356 = vadd.f32 %v5355, %v5338
  %v5357 = vadd.f32 %v5356, %v5339
  %v5358 = vadd.f32 %v5357, %v5340
  %v5359 = vadd.f32 %v5358, %v5341
  %v5360 = vadd.f32 %v5359, %v5342
  %v5361 = vadd.f32 %v5360, %v5343
  %v5362 = vadd.f32 %v5361, %v5344
  %v5363 = vadd.f32 %v5362, %v5345
  %v5364 = vadd.f32 %v5363, %v5346
  %v5365 = vrot.slane %v5364, 4
  %v5366 = vadd.f32 %v5364, %v5365
  %v5367 = vrot.slane %v5366, 2
  %v5368 = vadd.f32 %v5366, %v5367
  %v5369 = vrot.slane %v5368, 1
  %v5370 = vadd.f32 %v5368, %v5369
  %v5371 = vmul.f32 %v5370, 0.0078125
  %v5372 = vmul.f32 %v5349, %v5371
  %v5374 = vlaneseq
  %v5375 = vshrl.u32 %v5374, 7
  %v5376 = vsub.s32 0, %v5375
  %v5377 = vrot.slane %v5372, %v5376
  %v5379 = vsub.f32 %v5331, %v5377
  %v5380 = vsub.f32 %v5332, %v5377
  %v5381 = vsub.f32 %v5333, %v5377
  %v5382 = vsub.f32 %v5334, %v5377
  %v5383 = vsub.f32 %v5335, %v5377
  %v5384 = vsub.f32 %v5336, %v5377
  %v5385 = vsub.f32 %v5337, %v5377
  %v5386 = vsub.f32 %v5338, %v5377
  %v5387 = vsub.f32 %v5339, %v5377
  %v5388 = vsub.f32 %v5340, %v5377
  %v5389 = vsub.f32 %v5341, %v5377
  %v5390 = vsub.f32 %v5342, %v5377
  %v5391 = vsub.f32 %v5343, %v5377
  %v5392 = vsub.f32 %v5344, %v5377
  %v5393 = vsub.f32 %v5345, %v5377
  %v5394 = vsub.f32 %v5346, %v5377
  %v5395 = vmul.f32 %v5379, %v5379
  %v5396 = vmul.f32 %v5380, %v5380
  %v5397 = vmul.f32 %v5381, %v5381
  %v5398 = vmul.f32 %v5382, %v5382
  %v5399 = vmul.f32 %v5383, %v5383
  %v5400 = vmul.f32 %v5384, %v5384
  %v5401 = vmul.f32 %v5385, %v5385
  %v5402 = vmul.f32 %v5386, %v5386
  %v5403 = vmul.f32 %v5387, %v5387
  %v5404 = vmul.f32 %v5388, %v5388
  %v5405 = vmul.f32 %v5389, %v5389
  %v5406 = vmul.f32 %v5390, %v5390
  %v5407 = vmul.f32 %v5391, %v5391
  %v5408 = vmul.f32 %v5392, %v5392
  %v5409 = vmul.f32 %v5393, %v5393
  %v5410 = vmul.f32 %v5394, %v5394
  %v5411 = vadd.f32 %v5395, %v5396
  %v5412 = vadd.f32 %v5411, %v5397
  %v5413 = vadd.f32 %v5412, %v5398
  %v5414 = vadd.f32 %v5413, %v5399
  %v5415 = vadd.f32 %v5414, %v5400
  %v5416 = vadd.f32 %v5415, %v5401
  %v5417 = vadd.f32 %v5416, %v5402
  %v5418 = vadd.f32 %v5417, %v5403
  %v5419 = vadd.f32 %v5418, %v5404
  %v5420 = vadd.f32 %v5419, %v5405
  %v5421 = vadd.f32 %v5420, %v5406
  %v5422 = vadd.f32 %v5421, %v5407
  %v5423 = vadd.f32 %v5422, %v5408
  %v5424 = vadd.f32 %v5423, %v5409
  %v5425 = vadd.f32 %v5424, %v5410
  %v5426 = vrot.slane %v5425, 4
  %v5427 = vadd.f32 %v5425, %v5426
  %v5428 = vrot.slane %v5427, 2
  %v5429 = vadd.f32 %v5427, %v5428
  %v5430 = vrot.slane %v5429, 1
  %v5431 = vadd.f32 %v5429, %v5430
  %v5432 = vmul.f32 %v5431, 0.0078125
  %v5434 = vlaneseq
  %v5435 = vshrl.u32 %v5434, 7
  %v5436 = vsub.s32 0, %v5435
  %v5437 = vrot.slane %v5347, %v5436
  %v5439 = vmul.f32 %v5437, %v5379
  %v5440 = vmul.f32 %v5437, %v5380
  %v5441 = vmul.f32 %v5437, %v5381
  %v5442 = vmul.f32 %v5437, %v5382
  %v5443 = vmul.f32 %v5437, %v5383
  %v5444 = vmul.f32 %v5437, %v5384
  %v5445 = vmul.f32 %v5437, %v5385
  %v5446 = vmul.f32 %v5437, %v5386
  %v5447 = vmul.f32 %v5437, %v5387
  %v5448 = vmul.f32 %v5437, %v5388
  %v5449 = vmul.f32 %v5437, %v5389
  %v5450 = vmul.f32 %v5437, %v5390
  %v5451 = vmul.f32 %v5437, %v5391
  %v5452 = vmul.f32 %v5437, %v5392
  %v5453 = vmul.f32 %v5437, %v5393
  %v5454 = vmul.f32 %v5437, %v5394
  %v5455 = vadd.f32 %v5432, 1e-05
  %v5456 = vrsqrt.pop %v5455
  %v5457 = vmul.f32 %v5439, %v5456
  %v5458 = vmul.f32 %v5440, %v5456
  %v5459 = vmul.f32 %v5441, %v5456
  %v5460 = vmul.f32 %v5442, %v5456
  %v5461 = vmul.f32 %v5443, %v5456
  %v5462 = vmul.f32 %v5444, %v5456
  %v5463 = vmul.f32 %v5445, %v5456
  %v5464 = vmul.f32 %v5446, %v5456
  %v5465 = vmul.f32 %v5447, %v5456
  %v5466 = vmul.f32 %v5448, %v5456
  %v5467 = vmul.f32 %v5449, %v5456
  %v5468 = vmul.f32 %v5450, %v5456
  %v5469 = vmul.f32 %v5451, %v5456
  %v5470 = vmul.f32 %v5452, %v5456
  %v5471 = vmul.f32 %v5453, %v5456
  %v5472 = vmul.f32 %v5454, %v5456
  %v5474 = vlaneseq
  %v5475 = vshrl.u32 %v5474, 7
  %v5476 = vsub.s32 0, %v5475
  %v5477 = vrot.slane %v5348, %v5476
  %v5479 = vadd.f32 %v5457, %v5477
  %v5480 = vadd.f32 %v5458, %v5477
  %v5481 = vadd.f32 %v5459, %v5477
  %v5482 = vadd.f32 %v5460, %v5477
  %v5483 = vadd.f32 %v5461, %v5477
  %v5484 = vadd.f32 %v5462, %v5477
  %v5485 = vadd.f32 %v5463, %v5477
  %v5486 = vadd.f32 %v5464, %v5477
  %v5487 = vadd.f32 %v5465, %v5477
  %v5488 = vadd.f32 %v5466, %v5477
  %v5489 = vadd.f32 %v5467, %v5477
  %v5490 = vadd.f32 %v5468, %v5477
  %v5491 = vadd.f32 %v5469, %v5477
  %v5492 = vadd.f32 %v5470, %v5477
  %v5493 = vadd.f32 %v5471, %v5477
  %v5494 = vadd.f32 %v5472, %v5477
  %v5495 = vmin.f32 %v5479, 0.0
  %v5496 = vmin.f32 %v5480, 0.0
  %v5497 = vmin.f32 %v5481, 0.0
  %v5498 = vmin.f32 %v5482, 0.0
  %v5499 = vmin.f32 %v5483, 0.0
  %v5500 = vmin.f32 %v5484, 0.0
  %v5501 = vmin.f32 %v5485, 0.0
  %v5502 = vmin.f32 %v5486, 0.0
  %v5503 = vmin.f32 %v5487, 0.0
  %v5504 = vmin.f32 %v5488, 0.0
  %v5505 = vmin.f32 %v5489, 0.0
  %v5506 = vmin.f32 %v5490, 0.0
  %v5507 = vmin.f32 %v5491, 0.0
  %v5508 = vmin.f32 %v5492, 0.0
  %v5509 = vmin.f32 %v5493, 0.0
  %v5510 = vmin.f32 %v5494, 0.0
  %v5511 = vmul.f32 %v5495, 1.442695
  %v5512 = vpow.pop %v5511
  %v5513 = vmul.f32 %v5496, 1.442695
  %v5514 = vpow.pop %v5513
  %v5515 = vmul.f32 %v5497, 1.442695
  %v5516 = vpow.pop %v5515
  %v5517 = vmul.f32 %v5498, 1.442695
  %v5518 = vpow.pop %v5517
  %v5519 = vmul.f32 %v5499, 1.442695
  %v5520 = vpow.pop %v5519
  %v5521 = vmul.f32 %v5500, 1.442695
  %v5522 = vpow.pop %v5521
  %v5523 = vmul.f32 %v5501, 1.442695
  %v5524 = vpow.pop %v5523
  %v5525 = vmul.f32 %v5502, 1.442695
  %v5526 = vpow.pop %v5525
  %v5527 = vmul.f32 %v5503, 1.442695
  %v5528 = vpow.pop %v5527
  %v5529 = vmul.f32 %v5504, 1.442695
  %v5530 = vpow.pop %v5529
  %v5531 = vmul.f32 %v5505, 1.442695
  %v5532 = vpow.pop %v5531
  %v5533 = vmul.f32 %v5506, 1.442695
  %v5534 = vpow.pop %v5533
  %v5535 = vmul.f32 %v5507, 1.442695
  %v5536 = vpow.pop %v5535
  %v5537 = vmul.f32 %v5508, 1.442695
  %v5538 = vpow.pop %v5537
  %v5539 = vmul.f32 %v5509, 1.442695
  %v5540 = vpow.pop %v5539
  %v5541 = vmul.f32 %v5510, 1.442695
  %v5542 = vpow.pop %v5541
  %v5543 = vsub.f32 %v5512, 1.0
  %v5544 = vsub.f32 %v5514, 1.0
  %v5545 = vsub.f32 %v5516, 1.0
  %v5546 = vsub.f32 %v5518, 1.0
  %v5547 = vsub.f32 %v5520, 1.0
  %v5548 = vsub.f32 %v5522, 1.0
  %v5549 = vsub.f32 %v5524, 1.0
  %v5550 = vsub.f32 %v5526, 1.0
  %v5551 = vsub.f32 %v5528, 1.0
  %v5552 = vsub.f32 %v5530, 1.0
  %v5553 = vsub.f32 %v5532, 1.0
  %v5554 = vsub.f32 %v5534, 1.0
  %v5555 = vsub.f32 %v5536, 1.0
  %v5556 = vsub.f32 %v5538, 1.0
  %v5557 = vsub.f32 %v5540, 1.0
  %v5558 = vsub.f32 %v5542, 1.0
  %vm5559 = vcmp.gt.f32.partialorder %v5479, 0.0
  %vm5560 = vcmp.gt.f32.partialorder %v5480, 0.0
  %vm5561 = vcmp.gt.f32.partialorder %v5481, 0.0
  %vm5562 = vcmp.gt.f32.partialorder %v5482, 0.0
  %vm5563 = vcmp.gt.f32.partialorder %v5483, 0.0
  %vm5564 = vcmp.gt.f32.partialorder %v5484, 0.0
  %vm5565 = vcmp.gt.f32.partialorder %v5485, 0.0
  %vm5566 = vcmp.gt.f32.partialorder %v5486, 0.0
  %vm5567 = vcmp.gt.f32.partialorder %v5487, 0.0
  %vm5568 = vcmp.gt.f32.partialorder %v5488, 0.0
  %vm5569 = vcmp.gt.f32.partialorder %v5489, 0.0
  %vm5570 = vcmp.gt.f32.partialorder %v5490, 0.0
  %vm5571 = vcmp.gt.f32.partialorder %v5491, 0.0
  %vm5572 = vcmp.gt.f32.partialorder %v5492, 0.0
  %vm5573 = vcmp.gt.f32.partialorder %v5493, 0.0
  %vm5574 = vcmp.gt.f32.partialorder %v5494, 0.0
  %v5575 = vsel %vm5559, %v5479, %v5543
  %v5576 = vsel %vm5560, %v5480, %v5544
  %v5577 = vsel %vm5561, %v5481, %v5545
  %v5578 = vsel %vm5562, %v5482, %v5546
  %v5579 = vsel %vm5563, %v5483, %v5547
  %v5580 = vsel %vm5564, %v5484, %v5548
  %v5581 = vsel %vm5565, %v5485, %v5549
  %v5582 = vsel %vm5566, %v5486, %v5550
  %v5583 = vsel %vm5567, %v5487, %v5551
  %v5584 = vsel %vm5568, %v5488, %v5552
  %v5585 = vsel %vm5569, %v5489, %v5553
  %v5586 = vsel %vm5570, %v5490, %v5554
  %v5587 = vsel %vm5571, %v5491, %v5555
  %v5588 = vsel %vm5572, %v5492, %v5556
  %v5589 = vsel %vm5573, %v5493, %v5557
  %v5590 = vsel %vm5574, %v5494, %v5558
  %v5591 = vld [vmem:[%s14] sm:$0xff]
  %v5592 = vld [vmem:[%s14 + $0x8] sm:$0xff]
  %v5593 = vld [vmem:[%s14 + $0x10] sm:$0xff]
  %v5594 = vld [vmem:[%s14 + $0x18] sm:$0xff]
  %v5595 = vld [vmem:[%s14 + $0x20] sm:$0xff]
  %v5596 = vld [vmem:[%s14 + $0x28] sm:$0xff]
  %v5597 = vld [vmem:[%s14 + $0x30] sm:$0xff]
  %v5598 = vld [vmem:[%s14 + $0x38] sm:$0xff]
  %v5599 = vld [vmem:[%s14 + $0x40] sm:$0xff]
  %v5600 = vld [vmem:[%s14 + $0x48] sm:$0xff]
  %v5601 = vld [vmem:[%s14 + $0x50] sm:$0xff]
  %v5602 = vld [vmem:[%s14 + $0x58] sm:$0xff]
  %v5603 = vld [vmem:[%s14 + $0x60] sm:$0xff]
  %v5604 = vld [vmem:[%s14 + $0x68] sm:$0xff]
  %v5605 = vld [vmem:[%s14 + $0x70] sm:$0xff]
  %v5606 = vld [vmem:[%s14 + $0x78] sm:$0xff]
  %v5607 = vld [vmem:[%s15] sm:$0xff]
  %v5608 = vld [vmem:[%s15 + $0x8] sm:$0xff]
  %v5609 = vld [vmem:[%s15 + $0x10] sm:$0xff]
  %v5610 = vld [vmem:[%s15 + $0x18] sm:$0xff]
  %v5611 = vld [vmem:[%s15 + $0x20] sm:$0xff]
  %v5612 = vld [vmem:[%s15 + $0x28] sm:$0xff]
  %v5613 = vld [vmem:[%s15 + $0x30] sm:$0xff]
  %v5614 = vld [vmem:[%s15 + $0x38] sm:$0xff]
  %v5615 = vld [vmem:[%s15 + $0x40] sm:$0xff]
  %v5616 = vld [vmem:[%s15 + $0x48] sm:$0xff]
  %v5617 = vld [vmem:[%s15 + $0x50] sm:$0xff]
  %v5618 = vld [vmem:[%s15 + $0x58] sm:$0xff]
  %v5619 = vld [vmem:[%s15 + $0x60] sm:$0xff]
  %v5620 = vld [vmem:[%s15 + $0x68] sm:$0xff]
  %v5621 = vld [vmem:[%s15 + $0x70] sm:$0xff]
  %v5622 = vld [vmem:[%s15 + $0x78] sm:$0xff]
  %v5623 = vld [vmem:[%s16] sm:$0x1]
  %5624 = vmatprep.subr.mxu0 0.0
  %5625 = vmatpush1.msra.mxu0 %v5591
  %5626 = vmatprep.subr.mxu0 0.0
  %5627 = vmatpush1.msra.mxu0 %v5592
  %5628 = vmatprep.subr.mxu0 0.0
  %5629 = vmatpush1.msra.mxu0 %v5593
  %5630 = vmatprep.subr.mxu0 0.0
  %5631 = vmatpush1.msra.mxu0 %v5594
  %5632 = vmatprep.subr.mxu0 0.0
  %5633 = vmatpush1.msra.mxu0 %v5595
  %5634 = vmatprep.subr.mxu0 0.0
  %5635 = vmatpush1.msra.mxu0 %v5596
  %5636 = vmatprep.subr.mxu0 0.0
  %5637 = vmatpush1.msra.mxu0 %v5597
  %5638 = vmatprep.subr.mxu0 0.0
  %5639 = vmatpush1.msra.mxu0 %v5598
  %5640 = vmatprep.subr.mxu0 0.0
  %5641 = vmatpush1.msra.mxu0 %v5599
  %5642 = vmatprep.subr.mxu0 0.0
  %5643 = vmatpush1.msra.mxu0 %v5600
  %5644 = vmatprep.subr.mxu0 0.0
  %5645 = vmatpush1.msra.mxu0 %v5601
  %5646 = vmatprep.subr.mxu0 0.0
  %5647 = vmatpush1.msra.mxu0 %v5602
  %5648 = vmatprep.subr.mxu0 0.0
  %5649 = vmatpush1.msra.mxu0 %v5603
  %5650 = vmatprep.subr.mxu0 0.0
  %5651 = vmatpush1.msra.mxu0 %v5604
  %5652 = vmatprep.subr.mxu0 0.0
  %5653 = vmatpush1.msra.mxu0 %v5605
  %5654 = vmatprep.subr.mxu0 0.0
  %5655 = vmatpush1.msra.mxu0 %v5606
  %5656 = vmatprep.subr.mxu0 0.0
  %5657 = vmatpush1.msra.mxu0 0.0
  %5658 = vmatprep.subr.mxu0 0.0
  %5659 = vmatpush1.msra.mxu0 0.0
  %5660 = vmatprep.subr.mxu0 0.0
  %5661 = vmatpush1.msra.mxu0 0.0
  %5662 = vmatprep.subr.mxu0 0.0
  %5663 = vmatpush1.msra.mxu0 0.0
  %5664 = vmatprep.subr.mxu0 0.0
  %5665 = vmatpush1.msra.mxu0 0.0
  %5666 = vmatprep.subr.mxu0 0.0
  %5667 = vmatpush1.msra.mxu0 0.0
  %5668 = vmatprep.subr.mxu0 0.0
  %5669 = vmatpush1.msra.mxu0 0.0
  %5670 = vmatprep.subr.mxu0 0.0
  %5671 = vmatpush1.msra.mxu0 0.0
  %5672 = vmatprep.subr.mxu0 0.0
  %5673 = vmatpush1.msra.mxu0 0.0
  %5674 = vmatprep.subr.mxu0 0.0
  %5675 = vmatpush1.msra.mxu0 0.0
  %5676 = vmatprep.subr.mxu0 0.0
  %5677 = vmatpush1.msra.mxu0 0.0
  %5678 = vmatprep.subr.mxu0 0.0
  %5679 = vmatpush1.msra.mxu0 0.0
  %5680 = vmatprep.subr.mxu0 0.0
  %5681 = vmatpush1.msra.mxu0 0.0
  %5682 = vmatprep.subr.mxu0 0.0
  %5683 = vmatpush1.msra.mxu0 0.0
  %5684 = vmatprep.subr.mxu0 0.0
  %5685 = vmatpush1.msra.mxu0 0.0
  %5686 = vmatprep.subr.mxu0 0.0
  %5687 = vmatpush1.msra.mxu0 0.0
  %5688 = vmatprep.mubr.f32.mxu0 0.0
  %5689 = vmatmul.mubr.f32.gmra.mrb[0].mxu0 %v5575
  %v5690 = vpop.f32.mrb[0].mxu0
  %v5691 = vadd.f32 0.0, %v5690
  %v5692 = vpop.f32.mrb[0].mxu0
  %5693 = vmatprep.mubr.f32.mxu0 0.0
  %5694 = vmatmul.mubr.f32.gmra.mrb[0].mxu0 %v5576
  %v5695 = vpop.f32.mrb[0].mxu0
  %v5696 = vadd.f32 0.0, %v5695
  %v5697 = vpop.f32.mrb[0].mxu0
  %5698 = vmatprep.mubr.f32.mxu0 0.0
  %5699 = vmatmul.mubr.f32.gmra.mrb[0].mxu0 %v5577
  %v5700 = vpop.f32.mrb[0].mxu0
  %v5701 = vadd.f32 0.0, %v5700
  %v5702 = vpop.f32.mrb[0].mxu0
  %5703 = vmatprep.mubr.f32.mxu0 0.0
  %5704 = vmatmul.mubr.f32.gmra.mrb[0].mxu0 %v5578
  %v5705 = vpop.f32.mrb[0].mxu0
  %v5706 = vadd.f32 0.0, %v5705
  %v5707 = vpop.f32.mrb[0].mxu0
  %5708 = vmatprep.mubr.f32.mxu0 0.0
  %5709 = vmatmul.mubr.f32.gmra.mrb[0].mxu0 %v5579
  %v5710 = vpop.f32.mrb[0].mxu0
  %v5711 = vadd.f32 0.0, %v5710
  %v5712 = vpop.f32.mrb[0].mxu0
  %5713 = vmatprep.mubr.f32.mxu0 0.0
  %5714 = vmatmul.mubr.f32.gmra.mrb[0].mxu0 %v5580
  %v5715 = vpop.f32.mrb[0].mxu0
  %v5716 = vadd.f32 0.0, %v5715
  %v5717 = vpop.f32.mrb[0].mxu0
  %5718 = vmatprep.mubr.f32.mxu0 0.0
  %5719 = vmatmul.mubr.f32.gmra.mrb[0].mxu0 %v5581
  %v5720 = vpop.f32.mrb[0].mxu0
  %v5721 = vadd.f32 0.0, %v5720
  %v5722 = vpop.f32.mrb[0].mxu0
  %5723 = vmatprep.mubr.f32.mxu0 0.0
  %5724 = vmatmul.mubr.f32.gmra.mrb[0].mxu0 %v5582
  %v5725 = vpop.f32.mrb[0].mxu0
  %v5726 = vadd.f32 0.0, %v5725
  %v5727 = vpop.f32.mrb[0].mxu0
  %5728 = vmatprep.mubr.f32.mxu0 0.0
  %5729 = vmatmul.mubr.f32.gmra.mrb[0].mxu0 %v5583
  %v5730 = vpop.f32.mrb[0].mxu0
  %v5731 = vadd.f32 0.0, %v5730
  %v5732 = vpop.f32.mrb[0].mxu0
  %5733 = vmatprep.mubr.f32.mxu0 0.0
  %5734 = vmatmul.mubr.f32.gmra.mrb[0].mxu0 %v5584
  %v5735 = vpop.f32.mrb[0].mxu0
  %v5736 = vadd.f32 0.0, %v5735
  %v5737 = vpop.f32.mrb[0].mxu0
  %5738 = vmatprep.mubr.f32.mxu0 0.0
  %5739 = vmatmul.mubr.f32.gmra.mrb[0].mxu0 %v5585
  %v5740 = vpop.f32.mrb[0].mxu0
  %v5741 = vadd.f32 0.0, %v5740
  %v5742 = vpop.f32.mrb[0].mxu0
  %5743 = vmatprep.mubr.f32.mxu0 0.0
  %5744 = vmatmul.mubr.f32.gmra.mrb[0].mxu0 %v5586
  %v5745 = vpop.f32.mrb[0].mxu0
  %v5746 = vadd.f32 0.0, %v5745
  %v5747 = vpop.f32.mrb[0].mxu0
  %5748 = vmatprep.mubr.f32.mxu0 0.0
  %5749 = vmatmul.mubr.f32.gmra.mrb[0].mxu0 %v5587
  %v5750 = vpop.f32.mrb[0].mxu0
  %v5751 = vadd.f32 0.0, %v5750
  %v5752 = vpop.f32.mrb[0].mxu0
  %5753 = vmatprep.mubr.f32.mxu0 0.0
  %5754 = vmatmul.mubr.f32.gmra.mrb[0].mxu0 %v5588
  %v5755 = vpop.f32.mrb[0].mxu0
  %v5756 = vadd.f32 0.0, %v5755
  %v5757 = vpop.f32.mrb[0].mxu0
  %5758 = vmatprep.mubr.f32.mxu0 0.0
  %5759 = vmatmul.mubr.f32.gmra.mrb[0].mxu0 %v5589
  %v5760 = vpop.f32.mrb[0].mxu0
  %v5761 = vadd.f32 0.0, %v5760
  %v5762 = vpop.f32.mrb[0].mxu0
  %5763 = vmatprep.mubr.f32.mxu0 0.0
  %5764 = vmatmul.mubr.f32.gmra.mrb[0].mxu0 %v5590
  %v5765 = vpop.f32.mrb[0].mxu0
  %v5766 = vadd.f32 0.0, %v5765
  %v5767 = vpop.f32.mrb[0].mxu0
  %5768 = vdwg.mxu0
  %5769 = vmatprep.subr.mxu0 0.0
  %5770 = vmatpush1.msra.mxu0 %v5607
  %5771 = vmatprep.subr.mxu0 0.0
  %5772 = vmatpush1.msra.mxu0 %v5608
  %5773 = vmatprep.subr.mxu0 0.0
  %5774 = vmatpush1.msra.mxu0 %v5609
  %5775 = vmatprep.subr.mxu0 0.0
  %5776 = vmatpush1.msra.mxu0 %v5610
  %5777 = vmatprep.subr.mxu0 0.0
  %5778 = vmatpush1.msra.mxu0 %v5611
  %5779 = vmatprep.subr.mxu0 0.0
  %5780 = vmatpush1.msra.mxu0 %v5612
  %5781 = vmatprep.subr.mxu0 0.0
  %5782 = vmatpush1.msra.mxu0 %v5613
  %5783 = vmatprep.subr.mxu0 0.0
  %5784 = vmatpush1.msra.mxu0 %v5614
  %5785 = vmatprep.subr.mxu0 0.0
  %5786 = vmatpush1.msra.mxu0 %v5615
  %5787 = vmatprep.subr.mxu0 0.0
  %5788 = vmatpush1.msra.mxu0 %v5616
  %5789 = vmatprep.subr.mxu0 0.0
  %5790 = vmatpush1.msra.mxu0 %v5617
  %5791 = vmatprep.subr.mxu0 0.0
  %5792 = vmatpush1.msra.mxu0 %v5618
  %5793 = vmatprep.subr.mxu0 0.0
  %5794 = vmatpush1.msra.mxu0 %v5619
  %5795 = vmatprep.subr.mxu0 0.0
  %5796 = vmatpush1.msra.mxu0 %v5620
  %5797 = vmatprep.subr.mxu0 0.0
  %5798 = vmatpush1.msra.mxu0 %v5621
  %5799 = vmatprep.subr.mxu0 0.0
  %5800 = vmatpush1.msra.mxu0 %v5622
  %5801 = vmatprep.subr.mxu0 0.0
  %5802 = vmatpush1.msra.mxu0 0.0
  %5803 = vmatprep.subr.mxu0 0.0
  %5804 = vmatpush1.msra.mxu0 0.0
  %5805 = vmatprep.subr.mxu0 0.0
  %5806 = vmatpush1.msra.mxu0 0.0
  %5807 = vmatprep.subr.mxu0 0.0
  %5808 = vmatpush1.msra.mxu0 0.0
  %5809 = vmatprep.subr.mxu0 0.0
  %5810 = vmatpush1.msra.mxu0 0.0
  %5811 = vmatprep.subr.mxu0 0.0
  %5812 = vmatpush1.msra.mxu0 0.0
  %5813 = vmatprep.subr.mxu0 0.0
  %5814 = vmatpush1.msra.mxu0 0.0
  %5815 = vmatprep.subr.mxu0 0.0
  %5816 = vmatpush1.msra.mxu0 0.0
  %5817 = vmatprep.subr.mxu0 0.0
  %5818 = vmatpush1.msra.mxu0 0.0
  %5819 = vmatprep.subr.mxu0 0.0
  %5820 = vmatpush1.msra.mxu0 0.0
  %5821 = vmatprep.subr.mxu0 0.0
  %5822 = vmatpush1.msra.mxu0 0.0
  %5823 = vmatprep.subr.mxu0 0.0
  %5824 = vmatpush1.msra.mxu0 0.0
  %5825 = vmatprep.subr.mxu0 0.0
  %5826 = vmatpush1.msra.mxu0 0.0
  %5827 = vmatprep.subr.mxu0 0.0
  %5828 = vmatpush1.msra.mxu0 0.0
  %5829 = vmatprep.subr.mxu0 0.0
  %5830 = vmatpush1.msra.mxu0 0.0
  %5831 = vmatprep.subr.mxu0 0.0
  %5832 = vmatpush1.msra.mxu0 0.0
  %5833 = vmatprep.mubr.f32.mxu0 0.0
  %5834 = vmatmul.mubr.f32.gmra.mrb[0].mxu0 %v5691
  %v5835 = vpop.f32.mrb[0].mxu0
  %v5836 = vadd.f32 0.0, %v5835
  %v5837 = vpop.f32.mrb[0].mxu0
  %5838 = vmatprep.mubr.f32.mxu0 0.0
  %5839 = vmatmul.mubr.f32.gmra.mrb[0].mxu0 %v5696
  %v5840 = vpop.f32.mrb[0].mxu0
  %v5841 = vadd.f32 0.0, %v5840
  %v5842 = vpop.f32.mrb[0].mxu0
  %5843 = vmatprep.mubr.f32.mxu0 0.0
  %5844 = vmatmul.mubr.f32.gmra.mrb[0].mxu0 %v5701
  %v5845 = vpop.f32.mrb[0].mxu0
  %v5846 = vadd.f32 0.0, %v5845
  %v5847 = vpop.f32.mrb[0].mxu0
  %5848 = vmatprep.mubr.f32.mxu0 0.0
  %5849 = vmatmul.mubr.f32.gmra.mrb[0].mxu0 %v5706
  %v5850 = vpop.f32.mrb[0].mxu0
  %v5851 = vadd.f32 0.0, %v5850
  %v5852 = vpop.f32.mrb[0].mxu0
  %5853 = vmatprep.mubr.f32.mxu0 0.0
  %5854 = vmatmul.mubr.f32.gmra.mrb[0].mxu0 %v5711
  %v5855 = vpop.f32.mrb[0].mxu0
  %v5856 = vadd.f32 0.0, %v5855
  %v5857 = vpop.f32.mrb[0].mxu0
  %5858 = vmatprep.mubr.f32.mxu0 0.0
  %5859 = vmatmul.mubr.f32.gmra.mrb[0].mxu0 %v5716
  %v5860 = vpop.f32.mrb[0].mxu0
  %v5861 = vadd.f32 0.0, %v5860
  %v5862 = vpop.f32.mrb[0].mxu0
  %5863 = vmatprep.mubr.f32.mxu0 0.0
  %5864 = vmatmul.mubr.f32.gmra.mrb[0].mxu0 %v5721
  %v5865 = vpop.f32.mrb[0].mxu0
  %v5866 = vadd.f32 0.0, %v5865
  %v5867 = vpop.f32.mrb[0].mxu0
  %5868 = vmatprep.mubr.f32.mxu0 0.0
  %5869 = vmatmul.mubr.f32.gmra.mrb[0].mxu0 %v5726
  %v5870 = vpop.f32.mrb[0].mxu0
  %v5871 = vadd.f32 0.0, %v5870
  %v5872 = vpop.f32.mrb[0].mxu0
  %5873 = vmatprep.mubr.f32.mxu0 0.0
  %5874 = vmatmul.mubr.f32.gmra.mrb[0].mxu0 %v5731
  %v5875 = vpop.f32.mrb[0].mxu0
  %v5876 = vadd.f32 0.0, %v5875
  %v5877 = vpop.f32.mrb[0].mxu0
  %5878 = vmatprep.mubr.f32.mxu0 0.0
  %5879 = vmatmul.mubr.f32.gmra.mrb[0].mxu0 %v5736
  %v5880 = vpop.f32.mrb[0].mxu0
  %v5881 = vadd.f32 0.0, %v5880
  %v5882 = vpop.f32.mrb[0].mxu0
  %5883 = vmatprep.mubr.f32.mxu0 0.0
  %5884 = vmatmul.mubr.f32.gmra.mrb[0].mxu0 %v5741
  %v5885 = vpop.f32.mrb[0].mxu0
  %v5886 = vadd.f32 0.0, %v5885
  %v5887 = vpop.f32.mrb[0].mxu0
  %5888 = vmatprep.mubr.f32.mxu0 0.0
  %5889 = vmatmul.mubr.f32.gmra.mrb[0].mxu0 %v5746
  %v5890 = vpop.f32.mrb[0].mxu0
  %v5891 = vadd.f32 0.0, %v5890
  %v5892 = vpop.f32.mrb[0].mxu0
  %5893 = vmatprep.mubr.f32.mxu0 0.0
  %5894 = vmatmul.mubr.f32.gmra.mrb[0].mxu0 %v5751
  %v5895 = vpop.f32.mrb[0].mxu0
  %v5896 = vadd.f32 0.0, %v5895
  %v5897 = vpop.f32.mrb[0].mxu0
  %5898 = vmatprep.mubr.f32.mxu0 0.0
  %5899 = vmatmul.mubr.f32.gmra.mrb[0].mxu0 %v5756
  %v5900 = vpop.f32.mrb[0].mxu0
  %v5901 = vadd.f32 0.0, %v5900
  %v5902 = vpop.f32.mrb[0].mxu0
  %5903 = vmatprep.mubr.f32.mxu0 0.0
  %5904 = vmatmul.mubr.f32.gmra.mrb[0].mxu0 %v5761
  %v5905 = vpop.f32.mrb[0].mxu0
  %v5906 = vadd.f32 0.0, %v5905
  %v5907 = vpop.f32.mrb[0].mxu0
  %5908 = vmatprep.mubr.f32.mxu0 0.0
  %5909 = vmatmul.mubr.f32.gmra.mrb[0].mxu0 %v5766
  %v5910 = vpop.f32.mrb[0].mxu0
  %v5911 = vadd.f32 0.0, %v5910
  %v5912 = vpop.f32.mrb[0].mxu0
  %5913 = vdwg.mxu0
  %5914 = vxpose.xlu0.b32.start [1/16] %v5836, 128
  %5915 = vxpose.xlu0.b32.cont [2/16] %v5841, 128
  %5916 = vxpose.xlu0.b32.cont [3/16] %v5846, 128
  %5917 = vxpose.xlu0.b32.cont [4/16] %v5851, 128
  %5918 = vxpose.xlu0.b32.cont [5/16] %v5856, 128
  %5919 = vxpose.xlu0.b32.cont [6/16] %v5861, 128
  %5920 = vxpose.xlu0.b32.cont [7/16] %v5866, 128
  %5921 = vxpose.xlu0.b32.cont [8/16] %v5871, 128
  %5922 = vxpose.xlu0.b32.cont [9/16] %v5876, 128
  %5923 = vxpose.xlu0.b32.cont [10/16] %v5881, 128
  %5924 = vxpose.xlu0.b32.cont [11/16] %v5886, 128
  %5925 = vxpose.xlu0.b32.cont [12/16] %v5891, 128
  %5926 = vxpose.xlu0.b32.cont [13/16] %v5896, 128
  %5927 = vxpose.xlu0.b32.cont [14/16] %v5901, 128
  %5928 = vxpose.xlu0.b32.cont [15/16] %v5906, 128
  %5929 = vxpose.xlu0.b32.end [16/16] %v5911, 128
  %v5930 = vpop.trf.xlu0
  %v5931 = vpop.trf.xlu0
  %v5932 = vpop.trf.xlu0
  %v5933 = vpop.trf.xlu0
  %v5934 = vpop.trf.xlu0
  %v5935 = vpop.trf.xlu0
  %v5936 = vpop.trf.xlu0
  %v5937 = vpop.trf.xlu0
  %v5938 = vpop.trf.xlu0
  %v5939 = vpop.trf.xlu0
  %v5940 = vpop.trf.xlu0
  %v5941 = vpop.trf.xlu0
  %v5942 = vpop.trf.xlu0
  %v5943 = vpop.trf.xlu0
  %v5944 = vpop.trf.xlu0
  %v5945 = vpop.trf.xlu0
  %5947 = vset.pattern.permute.xlu0 0
  %5948 = vperm.xlu0 %5947, %v5836
  %v5949 = vpop.permute.xlu0 %5948
  %5952 = vset.pattern.permute.xlu0 0
  %5953 = vperm.xlu0 %5952, %v5841
  %v5954 = vpop.permute.xlu0 %5953
  %5957 = vset.pattern.permute.xlu0 0
  %5958 = vperm.xlu0 %5957, %v5846
  %v5959 = vpop.permute.xlu0 %5958
  %5962 = vset.pattern.permute.xlu0 0
  %5963 = vperm.xlu0 %5962, %v5851
  %v5964 = vpop.permute.xlu0 %5963
  %5967 = vset.pattern.permute.xlu0 0
  %5968 = vperm.xlu0 %5967, %v5856
  %v5969 = vpop.permute.xlu0 %5968
  %5972 = vset.pattern.permute.xlu0 0
  %5973 = vperm.xlu0 %5972, %v5861
  %v5974 = vpop.permute.xlu0 %5973
  %5977 = vset.pattern.permute.xlu0 0
  %5978 = vperm.xlu0 %5977, %v5866
  %v5979 = vpop.permute.xlu0 %5978
  %5982 = vset.pattern.permute.xlu0 0
  %5983 = vperm.xlu0 %5982, %v5871
  %v5984 = vpop.permute.xlu0 %5983
  %5987 = vset.pattern.permute.xlu0 0
  %5988 = vperm.xlu0 %5987, %v5876
  %v5989 = vpop.permute.xlu0 %5988
  %5992 = vset.pattern.permute.xlu0 0
  %5993 = vperm.xlu0 %5992, %v5881
  %v5994 = vpop.permute.xlu0 %5993
  %5997 = vset.pattern.permute.xlu0 0
  %5998 = vperm.xlu0 %5997, %v5886
  %v5999 = vpop.permute.xlu0 %5998
  %6002 = vset.pattern.permute.xlu0 0
  %6003 = vperm.xlu0 %6002, %v5891
  %v6004 = vpop.permute.xlu0 %6003
  %6007 = vset.pattern.permute.xlu0 0
  %6008 = vperm.xlu0 %6007, %v5896
  %v6009 = vpop.permute.xlu0 %6008
  %6012 = vset.pattern.permute.xlu0 0
  %6013 = vperm.xlu0 %6012, %v5901
  %v6014 = vpop.permute.xlu0 %6013
  %6017 = vset.pattern.permute.xlu0 0
  %6018 = vperm.xlu0 %6017, %v5906
  %v6019 = vpop.permute.xlu0 %6018
  %6022 = vset.pattern.permute.xlu0 0
  %6023 = vperm.xlu0 %6022, %v5911
  %v6024 = vpop.permute.xlu0 %6023
  %v6026 = vlaneseq
  %v6027 = vshrl.u32 %v6026, 7
  %v6028 = vsub.s32 4, %v6027
  %v6029 = vrot.slane %v5930, %v6028
  %v6030 = vadd.f32 %v5949, %v6029
  %v6031 = vadd.f32 %v5954, %v6029
  %v6032 = vadd.f32 %v5959, %v6029
  %v6033 = vadd.f32 %v5964, %v6029
  %v6034 = vadd.f32 %v5969, %v6029
  %v6035 = vadd.f32 %v5974, %v6029
  %v6036 = vadd.f32 %v5979, %v6029
  %v6037 = vadd.f32 %v5984, %v6029
  %v6038 = vadd.f32 %v5989, %v6029
  %v6039 = vadd.f32 %v5994, %v6029
  %v6040 = vadd.f32 %v5999, %v6029
  %v6041 = vadd.f32 %v6004, %v6029
  %v6042 = vadd.f32 %v6009, %v6029
  %v6043 = vadd.f32 %v6014, %v6029
  %v6044 = vadd.f32 %v6019, %v6029
  %v6045 = vadd.f32 %v6024, %v6029
  %v6046 = vmul.f32 %v6030, 0.2
  %v6047 = vmul.f32 %v6031, 0.2
  %v6048 = vmul.f32 %v6032, 0.2
  %v6049 = vmul.f32 %v6033, 0.2
  %v6050 = vmul.f32 %v6034, 0.2
  %v6051 = vmul.f32 %v6035, 0.2
  %v6052 = vmul.f32 %v6036, 0.2
  %v6053 = vmul.f32 %v6037, 0.2
  %v6054 = vmul.f32 %v6038, 0.2
  %v6055 = vmul.f32 %v6039, 0.2
  %v6056 = vmul.f32 %v6040, 0.2
  %v6057 = vmul.f32 %v6041, 0.2
  %v6058 = vmul.f32 %v6042, 0.2
  %v6059 = vmul.f32 %v6043, 0.2
  %v6060 = vmul.f32 %v6044, 0.2
  %v6061 = vmul.f32 %v6045, 0.2
  %v6062 = vmax.f32 %v6030, %v6046
  %v6063 = vmax.f32 %v6031, %v6047
  %v6064 = vmax.f32 %v6032, %v6048
  %v6065 = vmax.f32 %v6033, %v6049
  %v6066 = vmax.f32 %v6034, %v6050
  %v6067 = vmax.f32 %v6035, %v6051
  %v6068 = vmax.f32 %v6036, %v6052
  %v6069 = vmax.f32 %v6037, %v6053
  %v6070 = vmax.f32 %v6038, %v6054
  %v6071 = vmax.f32 %v6039, %v6055
  %v6072 = vmax.f32 %v6040, %v6056
  %v6073 = vmax.f32 %v6041, %v6057
  %v6074 = vmax.f32 %v6042, %v6058
  %v6075 = vmax.f32 %v6043, %v6059
  %v6076 = vmax.f32 %v6044, %v6060
  %v6077 = vmax.f32 %v6045, %v6061
  %v6078 = vadd.f32 %v6062, %v74
  %v6079 = vadd.f32 %v6063, %v75
  %v6080 = vadd.f32 %v6064, %v76
  %v6081 = vadd.f32 %v6065, %v77
  %v6082 = vadd.f32 %v6066, %v78
  %v6083 = vadd.f32 %v6067, %v79
  %v6084 = vadd.f32 %v6068, %v80
  %v6085 = vadd.f32 %v6069, %v81
  %v6086 = vadd.f32 %v6070, %v82
  %v6087 = vadd.f32 %v6071, %v83
  %v6088 = vadd.f32 %v6072, %v84
  %v6089 = vadd.f32 %v6073, %v85
  %v6090 = vadd.f32 %v6074, %v86
  %v6091 = vadd.f32 %v6075, %v87
  %v6092 = vadd.f32 %v6076, %v88
  %v6093 = vadd.f32 %v6077, %v89
  %6094 = vmax.xlane.f32.xlu0 %v6078
  %v6095 = vpop.xlane.xlu0 %6094
  %6096 = vmax.xlane.f32.xlu0 %v6079
  %v6097 = vpop.xlane.xlu0 %6096
  %6098 = vmax.xlane.f32.xlu0 %v6080
  %v6099 = vpop.xlane.xlu0 %6098
  %6100 = vmax.xlane.f32.xlu0 %v6081
  %v6101 = vpop.xlane.xlu0 %6100
  %6102 = vmax.xlane.f32.xlu0 %v6082
  %v6103 = vpop.xlane.xlu0 %6102
  %6104 = vmax.xlane.f32.xlu0 %v6083
  %v6105 = vpop.xlane.xlu0 %6104
  %6106 = vmax.xlane.f32.xlu0 %v6084
  %v6107 = vpop.xlane.xlu0 %6106
  %6108 = vmax.xlane.f32.xlu0 %v6085
  %v6109 = vpop.xlane.xlu0 %6108
  %6110 = vmax.xlane.f32.xlu0 %v6086
  %v6111 = vpop.xlane.xlu0 %6110
  %6112 = vmax.xlane.f32.xlu0 %v6087
  %v6113 = vpop.xlane.xlu0 %6112
  %6114 = vmax.xlane.f32.xlu0 %v6088
  %v6115 = vpop.xlane.xlu0 %6114
  %6116 = vmax.xlane.f32.xlu0 %v6089
  %v6117 = vpop.xlane.xlu0 %6116
  %6118 = vmax.xlane.f32.xlu0 %v6090
  %v6119 = vpop.xlane.xlu0 %6118
  %6120 = vmax.xlane.f32.xlu0 %v6091
  %v6121 = vpop.xlane.xlu0 %6120
  %6122 = vmax.xlane.f32.xlu0 %v6092
  %v6123 = vpop.xlane.xlu0 %6122
  %6124 = vmax.xlane.f32.xlu0 %v6093
  %v6125 = vpop.xlane.xlu0 %6124
  %v6126 = vsub.f32 %v6078, %v6095
  %v6127 = vsub.f32 %v6079, %v6097
  %v6128 = vsub.f32 %v6080, %v6099
  %v6129 = vsub.f32 %v6081, %v6101
  %v6130 = vsub.f32 %v6082, %v6103
  %v6131 = vsub.f32 %v6083, %v6105
  %v6132 = vsub.f32 %v6084, %v6107
  %v6133 = vsub.f32 %v6085, %v6109
  %v6134 = vsub.f32 %v6086, %v6111
  %v6135 = vsub.f32 %v6087, %v6113
  %v6136 = vsub.f32 %v6088, %v6115
  %v6137 = vsub.f32 %v6089, %v6117
  %v6138 = vsub.f32 %v6090, %v6119
  %v6139 = vsub.f32 %v6091, %v6121
  %v6140 = vsub.f32 %v6092, %v6123
  %v6141 = vsub.f32 %v6093, %v6125
  %v6142 = vmul.f32 %v6126, 1.442695
  %v6143 = vpow.pop %v6142
  %v6144 = vmul.f32 %v6127, 1.442695
  %v6145 = vpow.pop %v6144
  %v6146 = vmul.f32 %v6128, 1.442695
  %v6147 = vpow.pop %v6146
  %v6148 = vmul.f32 %v6129, 1.442695
  %v6149 = vpow.pop %v6148
  %v6150 = vmul.f32 %v6130, 1.442695
  %v6151 = vpow.pop %v6150
  %v6152 = vmul.f32 %v6131, 1.442695
  %v6153 = vpow.pop %v6152
  %v6154 = vmul.f32 %v6132, 1.442695
  %v6155 = vpow.pop %v6154
  %v6156 = vmul.f32 %v6133, 1.442695
  %v6157 = vpow.pop %v6156
  %v6158 = vmul.f32 %v6134, 1.442695
  %v6159 = vpow.pop %v6158
  %v6160 = vmul.f32 %v6135, 1.442695
  %v6161 = vpow.pop %v6160
  %v6162 = vmul.f32 %v6136, 1.442695
  %v6163 = vpow.pop %v6162
  %v6164 = vmul.f32 %v6137, 1.442695
  %v6165 = vpow.pop %v6164
  %v6166 = vmul.f32 %v6138, 1.442695
  %v6167 = vpow.pop %v6166
  %v6168 = vmul.f32 %v6139, 1.442695
  %v6169 = vpow.pop %v6168
  %v6170 = vmul.f32 %v6140, 1.442695
  %v6171 = vpow.pop %v6170
  %v6172 = vmul.f32 %v6141, 1.442695
  %v6173 = vpow.pop %v6172
  %6174 = vadd.xlane.f32.xlu0 %v6143
  %v6175 = vpop.xlane.xlu0 %6174
  %6176 = vadd.xlane.f32.xlu0 %v6145
  %v6177 = vpop.xlane.xlu0 %6176
  %6178 = vadd.xlane.f32.xlu0 %v6147
  %v6179 = vpop.xlane.xlu0 %6178
  %6180 = vadd.xlane.f32.xlu0 %v6149
  %v6181 = vpop.xlane.xlu0 %6180
  %6182 = vadd.xlane.f32.xlu0 %v6151
  %v6183 = vpop.xlane.xlu0 %6182
  %6184 = vadd.xlane.f32.xlu0 %v6153
  %v6185 = vpop.xlane.xlu0 %6184
  %6186 = vadd.xlane.f32.xlu0 %v6155
  %v6187 = vpop.xlane.xlu0 %6186
  %6188 = vadd.xlane.f32.xlu0 %v6157
  %v6189 = vpop.xlane.xlu0 %6188
  %6190 = vadd.xlane.f32.xlu0 %v6159
  %v6191 = vpop.xlane.xlu0 %6190
  %6192 = vadd.xlane.f32.xlu0 %v6161
  %v6193 = vpop.xlane.xlu0 %6192
  %6194 = vadd.xlane.f32.xlu0 %v6163
  %v6195 = vpop.xlane.xlu0 %6194
  %6196 = vadd.xlane.f32.xlu0 %v6165
  %v6197 = vpop.xlane.xlu0 %6196
  %6198 = vadd.xlane.f32.xlu0 %v6167
  %v6199 = vpop.xlane.xlu0 %6198
  %6200 = vadd.xlane.f32.xlu0 %v6169
  %v6201 = vpop.xlane.xlu0 %6200
  %6202 = vadd.xlane.f32.xlu0 %v6171
  %v6203 = vpop.xlane.xlu0 %6202
  %6204 = vadd.xlane.f32.xlu0 %v6173
  %v6205 = vpop.xlane.xlu0 %6204
  %6206 = vmatprep.subr.mxu0 0.0
  %6207 = vmatpush1.msra.mxu0 %v5691
  %6208 = vmatprep.subr.mxu0 0.0
  %6209 = vmatpush1.msra.mxu0 %v5696
  %6210 = vmatprep.subr.mxu0 0.0
  %6211 = vmatpush1.msra.mxu0 %v5701
  %6212 = vmatprep.subr.mxu0 0.0
  %6213 = vmatpush1.msra.mxu0 %v5706
  %6214 = vmatprep.subr.mxu0 0.0
  %6215 = vmatpush1.msra.mxu0 %v5711
  %6216 = vmatprep.subr.mxu0 0.0
  %6217 = vmatpush1.msra.mxu0 %v5716
  %6218 = vmatprep.subr.mxu0 0.0
  %6219 = vmatpush1.msra.mxu0 %v5721
  %6220 = vmatprep.subr.mxu0 0.0
  %6221 = vmatpush1.msra.mxu0 %v5726
  %6222 = vmatprep.subr.mxu0 0.0
  %6223 = vmatpush1.msra.mxu0 %v5731
  %6224 = vmatprep.subr.mxu0 0.0
  %6225 = vmatpush1.msra.mxu0 %v5736
  %6226 = vmatprep.subr.mxu0 0.0
  %6227 = vmatpush1.msra.mxu0 %v5741
  %6228 = vmatprep.subr.mxu0 0.0
  %6229 = vmatpush1.msra.mxu0 %v5746
  %6230 = vmatprep.subr.mxu0 0.0
  %6231 = vmatpush1.msra.mxu0 %v5751
  %6232 = vmatprep.subr.mxu0 0.0
  %6233 = vmatpush1.msra.mxu0 %v5756
  %6234 = vmatprep.subr.mxu0 0.0
  %6235 = vmatpush1.msra.mxu0 %v5761
  %6236 = vmatprep.subr.mxu0 0.0
  %6237 = vmatpush1.msra.mxu0 %v5766
  %6238 = vmatprep.subr.mxu0 0.0
  %6239 = vmatpush1.msra.mxu0 0.0
  %6240 = vmatprep.subr.mxu0 0.0
  %6241 = vmatpush1.msra.mxu0 0.0
  %6242 = vmatprep.subr.mxu0 0.0
  %6243 = vmatpush1.msra.mxu0 0.0
  %6244 = vmatprep.subr.mxu0 0.0
  %6245 = vmatpush1.msra.mxu0 0.0
  %6246 = vmatprep.subr.mxu0 0.0
  %6247 = vmatpush1.msra.mxu0 0.0
  %6248 = vmatprep.subr.mxu0 0.0
  %6249 = vmatpush1.msra.mxu0 0.0
  %6250 = vmatprep.subr.mxu0 0.0
  %6251 = vmatpush1.msra.mxu0 0.0
  %6252 = vmatprep.subr.mxu0 0.0
  %6253 = vmatpush1.msra.mxu0 0.0
  %6254 = vmatprep.subr.mxu0 0.0
  %6255 = vmatpush1.msra.mxu0 0.0
  %6256 = vmatprep.subr.mxu0 0.0
  %6257 = vmatpush1.msra.mxu0 0.0
  %6258 = vmatprep.subr.mxu0 0.0
  %6259 = vmatpush1.msra.mxu0 0.0
  %6260 = vmatprep.subr.mxu0 0.0
  %6261 = vmatpush1.msra.mxu0 0.0
  %6262 = vmatprep.subr.mxu0 0.0
  %6263 = vmatpush1.msra.mxu0 0.0
  %6264 = vmatprep.subr.mxu0 0.0
  %6265 = vmatpush1.msra.mxu0 0.0
  %6266 = vmatprep.subr.mxu0 0.0
  %6267 = vmatpush1.msra.mxu0 0.0
  %6268 = vmatprep.subr.mxu0 0.0
  %6269 = vmatpush1.msra.mxu0 0.0
  %6270 = vmatprep.mubr.f32.mxu0 0.0
  %6271 = vmatmul.mubr.f32.gmra.mrb[0].mxu0 %v6143
  %v6272 = vpop.f32.mrb[0].mxu0
  %v6273 = vadd.f32 0.0, %v6272
  %v6274 = vpop.f32.mrb[0].mxu0
  %6275 = vmatprep.mubr.f32.mxu0 0.0
  %6276 = vmatmul.mubr.f32.gmra.mrb[0].mxu0 %v6145
  %v6277 = vpop.f32.mrb[0].mxu0
  %v6278 = vadd.f32 0.0, %v6277
  %v6279 = vpop.f32.mrb[0].mxu0
  %6280 = vmatprep.mubr.f32.mxu0 0.0
  %6281 = vmatmul.mubr.f32.gmra.mrb[0].mxu0 %v6147
  %v6282 = vpop.f32.mrb[0].mxu0
  %v6283 = vadd.f32 0.0, %v6282
  %v6284 = vpop.f32.mrb[0].mxu0
  %6285 = vmatprep.mubr.f32.mxu0 0.0
  %6286 = vmatmul.mubr.f32.gmra.mrb[0].mxu0 %v6149
  %v6287 = vpop.f32.mrb[0].mxu0
  %v6288 = vadd.f32 0.0, %v6287
  %v6289 = vpop.f32.mrb[0].mxu0
  %6290 = vmatprep.mubr.f32.mxu0 0.0
  %6291 = vmatmul.mubr.f32.gmra.mrb[0].mxu0 %v6151
  %v6292 = vpop.f32.mrb[0].mxu0
  %v6293 = vadd.f32 0.0, %v6292
  %v6294 = vpop.f32.mrb[0].mxu0
  %6295 = vmatprep.mubr.f32.mxu0 0.0
  %6296 = vmatmul.mubr.f32.gmra.mrb[0].mxu0 %v6153
  %v6297 = vpop.f32.mrb[0].mxu0
  %v6298 = vadd.f32 0.0, %v6297
  %v6299 = vpop.f32.mrb[0].mxu0
  %6300 = vmatprep.mubr.f32.mxu0 0.0
  %6301 = vmatmul.mubr.f32.gmra.mrb[0].mxu0 %v6155
  %v6302 = vpop.f32.mrb[0].mxu0
  %v6303 = vadd.f32 0.0, %v6302
  %v6304 = vpop.f32.mrb[0].mxu0
  %6305 = vmatprep.mubr.f32.mxu0 0.0
  %6306 = vmatmul.mubr.f32.gmra.mrb[0].mxu0 %v6157
  %v6307 = vpop.f32.mrb[0].mxu0
  %v6308 = vadd.f32 0.0, %v6307
  %v6309 = vpop.f32.mrb[0].mxu0
  %6310 = vmatprep.mubr.f32.mxu0 0.0
  %6311 = vmatmul.mubr.f32.gmra.mrb[0].mxu0 %v6159
  %v6312 = vpop.f32.mrb[0].mxu0
  %v6313 = vadd.f32 0.0, %v6312
  %v6314 = vpop.f32.mrb[0].mxu0
  %6315 = vmatprep.mubr.f32.mxu0 0.0
  %6316 = vmatmul.mubr.f32.gmra.mrb[0].mxu0 %v6161
  %v6317 = vpop.f32.mrb[0].mxu0
  %v6318 = vadd.f32 0.0, %v6317
  %v6319 = vpop.f32.mrb[0].mxu0
  %6320 = vmatprep.mubr.f32.mxu0 0.0
  %6321 = vmatmul.mubr.f32.gmra.mrb[0].mxu0 %v6163
  %v6322 = vpop.f32.mrb[0].mxu0
  %v6323 = vadd.f32 0.0, %v6322
  %v6324 = vpop.f32.mrb[0].mxu0
  %6325 = vmatprep.mubr.f32.mxu0 0.0
  %6326 = vmatmul.mubr.f32.gmra.mrb[0].mxu0 %v6165
  %v6327 = vpop.f32.mrb[0].mxu0
  %v6328 = vadd.f32 0.0, %v6327
  %v6329 = vpop.f32.mrb[0].mxu0
  %6330 = vmatprep.mubr.f32.mxu0 0.0
  %6331 = vmatmul.mubr.f32.gmra.mrb[0].mxu0 %v6167
  %v6332 = vpop.f32.mrb[0].mxu0
  %v6333 = vadd.f32 0.0, %v6332
  %v6334 = vpop.f32.mrb[0].mxu0
  %6335 = vmatprep.mubr.f32.mxu0 0.0
  %6336 = vmatmul.mubr.f32.gmra.mrb[0].mxu0 %v6169
  %v6337 = vpop.f32.mrb[0].mxu0
  %v6338 = vadd.f32 0.0, %v6337
  %v6339 = vpop.f32.mrb[0].mxu0
  %6340 = vmatprep.mubr.f32.mxu0 0.0
  %6341 = vmatmul.mubr.f32.gmra.mrb[0].mxu0 %v6171
  %v6342 = vpop.f32.mrb[0].mxu0
  %v6343 = vadd.f32 0.0, %v6342
  %v6344 = vpop.f32.mrb[0].mxu0
  %6345 = vmatprep.mubr.f32.mxu0 0.0
  %6346 = vmatmul.mubr.f32.gmra.mrb[0].mxu0 %v6173
  %v6347 = vpop.f32.mrb[0].mxu0
  %v6348 = vadd.f32 0.0, %v6347
  %v6349 = vpop.f32.mrb[0].mxu0
  %6350 = vdwg.mxu0
  %v6351 = vrcp.pop %v6175
  %v6352 = vrcp.pop %v6177
  %v6353 = vrcp.pop %v6179
  %v6354 = vrcp.pop %v6181
  %v6355 = vrcp.pop %v6183
  %v6356 = vrcp.pop %v6185
  %v6357 = vrcp.pop %v6187
  %v6358 = vrcp.pop %v6189
  %v6359 = vrcp.pop %v6191
  %v6360 = vrcp.pop %v6193
  %v6361 = vrcp.pop %v6195
  %v6362 = vrcp.pop %v6197
  %v6363 = vrcp.pop %v6199
  %v6364 = vrcp.pop %v6201
  %v6365 = vrcp.pop %v6203
  %v6366 = vrcp.pop %v6205
  %v6367 = vmul.f32 %v6273, %v6351
  %v6368 = vmul.f32 %v6278, %v6352
  %v6369 = vmul.f32 %v6283, %v6353
  %v6370 = vmul.f32 %v6288, %v6354
  %v6371 = vmul.f32 %v6293, %v6355
  %v6372 = vmul.f32 %v6298, %v6356
  %v6373 = vmul.f32 %v6303, %v6357
  %v6374 = vmul.f32 %v6308, %v6358
  %v6375 = vmul.f32 %v6313, %v6359
  %v6376 = vmul.f32 %v6318, %v6360
  %v6377 = vmul.f32 %v6323, %v6361
  %v6378 = vmul.f32 %v6328, %v6362
  %v6379 = vmul.f32 %v6333, %v6363
  %v6380 = vmul.f32 %v6338, %v6364
  %v6381 = vmul.f32 %v6343, %v6365
  %v6382 = vmul.f32 %v6348, %v6366
  %6383 = vset.pattern.permute.xlu0 1
  %6384 = vperm.xlu0 %6383, %v5836
  %v6385 = vpop.permute.xlu0 %6384
  %6387 = vset.pattern.permute.xlu0 1
  %6388 = vperm.xlu0 %6387, %v5841
  %v6389 = vpop.permute.xlu0 %6388
  %6391 = vset.pattern.permute.xlu0 1
  %6392 = vperm.xlu0 %6391, %v5846
  %v6393 = vpop.permute.xlu0 %6392
  %6395 = vset.pattern.permute.xlu0 1
  %6396 = vperm.xlu0 %6395, %v5851
  %v6397 = vpop.permute.xlu0 %6396
  %6399 = vset.pattern.permute.xlu0 1
  %6400 = vperm.xlu0 %6399, %v5856
  %v6401 = vpop.permute.xlu0 %6400
  %6403 = vset.pattern.permute.xlu0 1
  %6404 = vperm.xlu0 %6403, %v5861
  %v6405 = vpop.permute.xlu0 %6404
  %6407 = vset.pattern.permute.xlu0 1
  %6408 = vperm.xlu0 %6407, %v5866
  %v6409 = vpop.permute.xlu0 %6408
  %6411 = vset.pattern.permute.xlu0 1
  %6412 = vperm.xlu0 %6411, %v5871
  %v6413 = vpop.permute.xlu0 %6412
  %6415 = vset.pattern.permute.xlu0 1
  %6416 = vperm.xlu0 %6415, %v5876
  %v6417 = vpop.permute.xlu0 %6416
  %6419 = vset.pattern.permute.xlu0 1
  %6420 = vperm.xlu0 %6419, %v5881
  %v6421 = vpop.permute.xlu0 %6420
  %6423 = vset.pattern.permute.xlu0 1
  %6424 = vperm.xlu0 %6423, %v5886
  %v6425 = vpop.permute.xlu0 %6424
  %6427 = vset.pattern.permute.xlu0 1
  %6428 = vperm.xlu0 %6427, %v5891
  %v6429 = vpop.permute.xlu0 %6428
  %6431 = vset.pattern.permute.xlu0 1
  %6432 = vperm.xlu0 %6431, %v5896
  %v6433 = vpop.permute.xlu0 %6432
  %6435 = vset.pattern.permute.xlu0 1
  %6436 = vperm.xlu0 %6435, %v5901
  %v6437 = vpop.permute.xlu0 %6436
  %6439 = vset.pattern.permute.xlu0 1
  %6440 = vperm.xlu0 %6439, %v5906
  %v6441 = vpop.permute.xlu0 %6440
  %6443 = vset.pattern.permute.xlu0 1
  %6444 = vperm.xlu0 %6443, %v5911
  %v6445 = vpop.permute.xlu0 %6444
  %v6447 = vlaneseq
  %v6448 = vshrl.u32 %v6447, 7
  %v6449 = vsub.s32 5, %v6448
  %v6450 = vrot.slane %v5930, %v6449
  %v6451 = vadd.f32 %v6385, %v6450
  %v6452 = vadd.f32 %v6389, %v6450
  %v6453 = vadd.f32 %v6393, %v6450
  %v6454 = vadd.f32 %v6397, %v6450
  %v6455 = vadd.f32 %v6401, %v6450
  %v6456 = vadd.f32 %v6405, %v6450
  %v6457 = vadd.f32 %v6409, %v6450
  %v6458 = vadd.f32 %v6413, %v6450
  %v6459 = vadd.f32 %v6417, %v6450
  %v6460 = vadd.f32 %v6421, %v6450
  %v6461 = vadd.f32 %v6425, %v6450
  %v6462 = vadd.f32 %v6429, %v6450
  %v6463 = vadd.f32 %v6433, %v6450
  %v6464 = vadd.f32 %v6437, %v6450
  %v6465 = vadd.f32 %v6441, %v6450
  %v6466 = vadd.f32 %v6445, %v6450
  %v6467 = vmul.f32 %v6451, 0.2
  %v6468 = vmul.f32 %v6452, 0.2
  %v6469 = vmul.f32 %v6453, 0.2
  %v6470 = vmul.f32 %v6454, 0.2
  %v6471 = vmul.f32 %v6455, 0.2
  %v6472 = vmul.f32 %v6456, 0.2
  %v6473 = vmul.f32 %v6457, 0.2
  %v6474 = vmul.f32 %v6458, 0.2
  %v6475 = vmul.f32 %v6459, 0.2
  %v6476 = vmul.f32 %v6460, 0.2
  %v6477 = vmul.f32 %v6461, 0.2
  %v6478 = vmul.f32 %v6462, 0.2
  %v6479 = vmul.f32 %v6463, 0.2
  %v6480 = vmul.f32 %v6464, 0.2
  %v6481 = vmul.f32 %v6465, 0.2
  %v6482 = vmul.f32 %v6466, 0.2
  %v6483 = vmax.f32 %v6451, %v6467
  %v6484 = vmax.f32 %v6452, %v6468
  %v6485 = vmax.f32 %v6453, %v6469
  %v6486 = vmax.f32 %v6454, %v6470
  %v6487 = vmax.f32 %v6455, %v6471
  %v6488 = vmax.f32 %v6456, %v6472
  %v6489 = vmax.f32 %v6457, %v6473
  %v6490 = vmax.f32 %v6458, %v6474
  %v6491 = vmax.f32 %v6459, %v6475
  %v6492 = vmax.f32 %v6460, %v6476
  %v6493 = vmax.f32 %v6461, %v6477
  %v6494 = vmax.f32 %v6462, %v6478
  %v6495 = vmax.f32 %v6463, %v6479
  %v6496 = vmax.f32 %v6464, %v6480
  %v6497 = vmax.f32 %v6465, %v6481
  %v6498 = vmax.f32 %v6466, %v6482
  %v6499 = vadd.f32 %v6483, %v74
  %v6500 = vadd.f32 %v6484, %v75
  %v6501 = vadd.f32 %v6485, %v76
  %v6502 = vadd.f32 %v6486, %v77
  %v6503 = vadd.f32 %v6487, %v78
  %v6504 = vadd.f32 %v6488, %v79
  %v6505 = vadd.f32 %v6489, %v80
  %v6506 = vadd.f32 %v6490, %v81
  %v6507 = vadd.f32 %v6491, %v82
  %v6508 = vadd.f32 %v6492, %v83
  %v6509 = vadd.f32 %v6493, %v84
  %v6510 = vadd.f32 %v6494, %v85
  %v6511 = vadd.f32 %v6495, %v86
  %v6512 = vadd.f32 %v6496, %v87
  %v6513 = vadd.f32 %v6497, %v88
  %v6514 = vadd.f32 %v6498, %v89
  %6515 = vmax.xlane.f32.xlu0 %v6499
  %v6516 = vpop.xlane.xlu0 %6515
  %6517 = vmax.xlane.f32.xlu0 %v6500
  %v6518 = vpop.xlane.xlu0 %6517
  %6519 = vmax.xlane.f32.xlu0 %v6501
  %v6520 = vpop.xlane.xlu0 %6519
  %6521 = vmax.xlane.f32.xlu0 %v6502
  %v6522 = vpop.xlane.xlu0 %6521
  %6523 = vmax.xlane.f32.xlu0 %v6503
  %v6524 = vpop.xlane.xlu0 %6523
  %6525 = vmax.xlane.f32.xlu0 %v6504
  %v6526 = vpop.xlane.xlu0 %6525
  %6527 = vmax.xlane.f32.xlu0 %v6505
  %v6528 = vpop.xlane.xlu0 %6527
  %6529 = vmax.xlane.f32.xlu0 %v6506
  %v6530 = vpop.xlane.xlu0 %6529
  %6531 = vmax.xlane.f32.xlu0 %v6507
  %v6532 = vpop.xlane.xlu0 %6531
  %6533 = vmax.xlane.f32.xlu0 %v6508
  %v6534 = vpop.xlane.xlu0 %6533
  %6535 = vmax.xlane.f32.xlu0 %v6509
  %v6536 = vpop.xlane.xlu0 %6535
  %6537 = vmax.xlane.f32.xlu0 %v6510
  %v6538 = vpop.xlane.xlu0 %6537
  %6539 = vmax.xlane.f32.xlu0 %v6511
  %v6540 = vpop.xlane.xlu0 %6539
  %6541 = vmax.xlane.f32.xlu0 %v6512
  %v6542 = vpop.xlane.xlu0 %6541
  %6543 = vmax.xlane.f32.xlu0 %v6513
  %v6544 = vpop.xlane.xlu0 %6543
  %6545 = vmax.xlane.f32.xlu0 %v6514
  %v6546 = vpop.xlane.xlu0 %6545
  %v6547 = vsub.f32 %v6499, %v6516
  %v6548 = vsub.f32 %v6500, %v6518
  %v6549 = vsub.f32 %v6501, %v6520
  %v6550 = vsub.f32 %v6502, %v6522
  %v6551 = vsub.f32 %v6503, %v6524
  %v6552 = vsub.f32 %v6504, %v6526
  %v6553 = vsub.f32 %v6505, %v6528
  %v6554 = vsub.f32 %v6506, %v6530
  %v6555 = vsub.f32 %v6507, %v6532
  %v6556 = vsub.f32 %v6508, %v6534
  %v6557 = vsub.f32 %v6509, %v6536
  %v6558 = vsub.f32 %v6510, %v6538
  %v6559 = vsub.f32 %v6511, %v6540
  %v6560 = vsub.f32 %v6512, %v6542
  %v6561 = vsub.f32 %v6513, %v6544
  %v6562 = vsub.f32 %v6514, %v6546
  %v6563 = vmul.f32 %v6547, 1.442695
  %v6564 = vpow.pop %v6563
  %v6565 = vmul.f32 %v6548, 1.442695
  %v6566 = vpow.pop %v6565
  %v6567 = vmul.f32 %v6549, 1.442695
  %v6568 = vpow.pop %v6567
  %v6569 = vmul.f32 %v6550, 1.442695
  %v6570 = vpow.pop %v6569
  %v6571 = vmul.f32 %v6551, 1.442695
  %v6572 = vpow.pop %v6571
  %v6573 = vmul.f32 %v6552, 1.442695
  %v6574 = vpow.pop %v6573
  %v6575 = vmul.f32 %v6553, 1.442695
  %v6576 = vpow.pop %v6575
  %v6577 = vmul.f32 %v6554, 1.442695
  %v6578 = vpow.pop %v6577
  %v6579 = vmul.f32 %v6555, 1.442695
  %v6580 = vpow.pop %v6579
  %v6581 = vmul.f32 %v6556, 1.442695
  %v6582 = vpow.pop %v6581
  %v6583 = vmul.f32 %v6557, 1.442695
  %v6584 = vpow.pop %v6583
  %v6585 = vmul.f32 %v6558, 1.442695
  %v6586 = vpow.pop %v6585
  %v6587 = vmul.f32 %v6559, 1.442695
  %v6588 = vpow.pop %v6587
  %v6589 = vmul.f32 %v6560, 1.442695
  %v6590 = vpow.pop %v6589
  %v6591 = vmul.f32 %v6561, 1.442695
  %v6592 = vpow.pop %v6591
  %v6593 = vmul.f32 %v6562, 1.442695
  %v6594 = vpow.pop %v6593
  %6595 = vadd.xlane.f32.xlu0 %v6564
  %v6596 = vpop.xlane.xlu0 %6595
  %6597 = vadd.xlane.f32.xlu0 %v6566
  %v6598 = vpop.xlane.xlu0 %6597
  %6599 = vadd.xlane.f32.xlu0 %v6568
  %v6600 = vpop.xlane.xlu0 %6599
  %6601 = vadd.xlane.f32.xlu0 %v6570
  %v6602 = vpop.xlane.xlu0 %6601
  %6603 = vadd.xlane.f32.xlu0 %v6572
  %v6604 = vpop.xlane.xlu0 %6603
  %6605 = vadd.xlane.f32.xlu0 %v6574
  %v6606 = vpop.xlane.xlu0 %6605
  %6607 = vadd.xlane.f32.xlu0 %v6576
  %v6608 = vpop.xlane.xlu0 %6607
  %6609 = vadd.xlane.f32.xlu0 %v6578
  %v6610 = vpop.xlane.xlu0 %6609
  %6611 = vadd.xlane.f32.xlu0 %v6580
  %v6612 = vpop.xlane.xlu0 %6611
  %6613 = vadd.xlane.f32.xlu0 %v6582
  %v6614 = vpop.xlane.xlu0 %6613
  %6615 = vadd.xlane.f32.xlu0 %v6584
  %v6616 = vpop.xlane.xlu0 %6615
  %6617 = vadd.xlane.f32.xlu0 %v6586
  %v6618 = vpop.xlane.xlu0 %6617
  %6619 = vadd.xlane.f32.xlu0 %v6588
  %v6620 = vpop.xlane.xlu0 %6619
  %6621 = vadd.xlane.f32.xlu0 %v6590
  %v6622 = vpop.xlane.xlu0 %6621
  %6623 = vadd.xlane.f32.xlu0 %v6592
  %v6624 = vpop.xlane.xlu0 %6623
  %6625 = vadd.xlane.f32.xlu0 %v6594
  %v6626 = vpop.xlane.xlu0 %6625
  %6643 = vrot.lane.b32.xlu0 %v5691, 96
  %v6644 = vpop.permute.xlu0 %6643
  %6645 = vrot.lane.b32.xlu0 %v5696, 96
  %v6646 = vpop.permute.xlu0 %6645
  %6647 = vrot.lane.b32.xlu0 %v5701, 96
  %v6648 = vpop.permute.xlu0 %6647
  %6649 = vrot.lane.b32.xlu0 %v5706, 96
  %v6650 = vpop.permute.xlu0 %6649
  %6651 = vrot.lane.b32.xlu0 %v5711, 96
  %v6652 = vpop.permute.xlu0 %6651
  %6653 = vrot.lane.b32.xlu0 %v5716, 96
  %v6654 = vpop.permute.xlu0 %6653
  %6655 = vrot.lane.b32.xlu0 %v5721, 96
  %v6656 = vpop.permute.xlu0 %6655
  %6657 = vrot.lane.b32.xlu0 %v5726, 96
  %v6658 = vpop.permute.xlu0 %6657
  %6659 = vrot.lane.b32.xlu0 %v5731, 96
  %v6660 = vpop.permute.xlu0 %6659
  %6661 = vrot.lane.b32.xlu0 %v5736, 96
  %v6662 = vpop.permute.xlu0 %6661
  %6663 = vrot.lane.b32.xlu0 %v5741, 96
  %v6664 = vpop.permute.xlu0 %6663
  %6665 = vrot.lane.b32.xlu0 %v5746, 96
  %v6666 = vpop.permute.xlu0 %6665
  %6667 = vrot.lane.b32.xlu0 %v5751, 96
  %v6668 = vpop.permute.xlu0 %6667
  %6669 = vrot.lane.b32.xlu0 %v5756, 96
  %v6670 = vpop.permute.xlu0 %6669
  %6671 = vrot.lane.b32.xlu0 %v5761, 96
  %v6672 = vpop.permute.xlu0 %6671
  %6673 = vrot.lane.b32.xlu0 %v5766, 96
  %v6674 = vpop.permute.xlu0 %6673
  %6691 = vmatprep.subr.mxu0 0.0
  %6692 = vmatpush1.msra.mxu0 %v6644
  %6693 = vmatprep.subr.mxu0 0.0
  %6694 = vmatpush1.msra.mxu0 %v6646
  %6695 = vmatprep.subr.mxu0 0.0
  %6696 = vmatpush1.msra.mxu0 %v6648
  %6697 = vmatprep.subr.mxu0 0.0
  %6698 = vmatpush1.msra.mxu0 %v6650
  %6699 = vmatprep.subr.mxu0 0.0
  %6700 = vmatpush1.msra.mxu0 %v6652
  %6701 = vmatprep.subr.mxu0 0.0
  %6702 = vmatpush1.msra.mxu0 %v6654
  %6703 = vmatprep.subr.mxu0 0.0
  %6704 = vmatpush1.msra.mxu0 %v6656
  %6705 = vmatprep.subr.mxu0 0.0
  %6706 = vmatpush1.msra.mxu0 %v6658
  %6707 = vmatprep.subr.mxu0 0.0
  %6708 = vmatpush1.msra.mxu0 %v6660
  %6709 = vmatprep.subr.mxu0 0.0
  %6710 = vmatpush1.msra.mxu0 %v6662
  %6711 = vmatprep.subr.mxu0 0.0
  %6712 = vmatpush1.msra.mxu0 %v6664
  %6713 = vmatprep.subr.mxu0 0.0
  %6714 = vmatpush1.msra.mxu0 %v6666
  %6715 = vmatprep.subr.mxu0 0.0
  %6716 = vmatpush1.msra.mxu0 %v6668
  %6717 = vmatprep.subr.mxu0 0.0
  %6718 = vmatpush1.msra.mxu0 %v6670
  %6719 = vmatprep.subr.mxu0 0.0
  %6720 = vmatpush1.msra.mxu0 %v6672
  %6721 = vmatprep.subr.mxu0 0.0
  %6722 = vmatpush1.msra.mxu0 %v6674
  %6723 = vmatprep.subr.mxu0 0.0
  %6724 = vmatpush1.msra.mxu0 0.0
  %6725 = vmatprep.subr.mxu0 0.0
  %6726 = vmatpush1.msra.mxu0 0.0
  %6727 = vmatprep.subr.mxu0 0.0
  %6728 = vmatpush1.msra.mxu0 0.0
  %6729 = vmatprep.subr.mxu0 0.0
  %6730 = vmatpush1.msra.mxu0 0.0
  %6731 = vmatprep.subr.mxu0 0.0
  %6732 = vmatpush1.msra.mxu0 0.0
  %6733 = vmatprep.subr.mxu0 0.0
  %6734 = vmatpush1.msra.mxu0 0.0
  %6735 = vmatprep.subr.mxu0 0.0
  %6736 = vmatpush1.msra.mxu0 0.0
  %6737 = vmatprep.subr.mxu0 0.0
  %6738 = vmatpush1.msra.mxu0 0.0
  %6739 = vmatprep.subr.mxu0 0.0
  %6740 = vmatpush1.msra.mxu0 0.0
  %6741 = vmatprep.subr.mxu0 0.0
  %6742 = vmatpush1.msra.mxu0 0.0
  %6743 = vmatprep.subr.mxu0 0.0
  %6744 = vmatpush1.msra.mxu0 0.0
  %6745 = vmatprep.subr.mxu0 0.0
  %6746 = vmatpush1.msra.mxu0 0.0
  %6747 = vmatprep.subr.mxu0 0.0
  %6748 = vmatpush1.msra.mxu0 0.0
  %6749 = vmatprep.subr.mxu0 0.0
  %6750 = vmatpush1.msra.mxu0 0.0
  %6751 = vmatprep.subr.mxu0 0.0
  %6752 = vmatpush1.msra.mxu0 0.0
  %6753 = vmatprep.subr.mxu0 0.0
  %6754 = vmatpush1.msra.mxu0 0.0
  %6755 = vmatprep.mubr.f32.mxu0 0.0
  %6756 = vmatmul.mubr.f32.gmra.mrb[0].mxu0 %v6564
  %v6757 = vpop.f32.mrb[0].mxu0
  %v6758 = vadd.f32 0.0, %v6757
  %v6759 = vpop.f32.mrb[0].mxu0
  %6760 = vmatprep.mubr.f32.mxu0 0.0
  %6761 = vmatmul.mubr.f32.gmra.mrb[0].mxu0 %v6566
  %v6762 = vpop.f32.mrb[0].mxu0
  %v6763 = vadd.f32 0.0, %v6762
  %v6764 = vpop.f32.mrb[0].mxu0
  %6765 = vmatprep.mubr.f32.mxu0 0.0
  %6766 = vmatmul.mubr.f32.gmra.mrb[0].mxu0 %v6568
  %v6767 = vpop.f32.mrb[0].mxu0
  %v6768 = vadd.f32 0.0, %v6767
  %v6769 = vpop.f32.mrb[0].mxu0
  %6770 = vmatprep.mubr.f32.mxu0 0.0
  %6771 = vmatmul.mubr.f32.gmra.mrb[0].mxu0 %v6570
  %v6772 = vpop.f32.mrb[0].mxu0
  %v6773 = vadd.f32 0.0, %v6772
  %v6774 = vpop.f32.mrb[0].mxu0
  %6775 = vmatprep.mubr.f32.mxu0 0.0
  %6776 = vmatmul.mubr.f32.gmra.mrb[0].mxu0 %v6572
  %v6777 = vpop.f32.mrb[0].mxu0
  %v6778 = vadd.f32 0.0, %v6777
  %v6779 = vpop.f32.mrb[0].mxu0
  %6780 = vmatprep.mubr.f32.mxu0 0.0
  %6781 = vmatmul.mubr.f32.gmra.mrb[0].mxu0 %v6574
  %v6782 = vpop.f32.mrb[0].mxu0
  %v6783 = vadd.f32 0.0, %v6782
  %v6784 = vpop.f32.mrb[0].mxu0
  %6785 = vmatprep.mubr.f32.mxu0 0.0
  %6786 = vmatmul.mubr.f32.gmra.mrb[0].mxu0 %v6576
  %v6787 = vpop.f32.mrb[0].mxu0
  %v6788 = vadd.f32 0.0, %v6787
  %v6789 = vpop.f32.mrb[0].mxu0
  %6790 = vmatprep.mubr.f32.mxu0 0.0
  %6791 = vmatmul.mubr.f32.gmra.mrb[0].mxu0 %v6578
  %v6792 = vpop.f32.mrb[0].mxu0
  %v6793 = vadd.f32 0.0, %v6792
  %v6794 = vpop.f32.mrb[0].mxu0
  %6795 = vmatprep.mubr.f32.mxu0 0.0
  %6796 = vmatmul.mubr.f32.gmra.mrb[0].mxu0 %v6580
  %v6797 = vpop.f32.mrb[0].mxu0
  %v6798 = vadd.f32 0.0, %v6797
  %v6799 = vpop.f32.mrb[0].mxu0
  %6800 = vmatprep.mubr.f32.mxu0 0.0
  %6801 = vmatmul.mubr.f32.gmra.mrb[0].mxu0 %v6582
  %v6802 = vpop.f32.mrb[0].mxu0
  %v6803 = vadd.f32 0.0, %v6802
  %v6804 = vpop.f32.mrb[0].mxu0
  %6805 = vmatprep.mubr.f32.mxu0 0.0
  %6806 = vmatmul.mubr.f32.gmra.mrb[0].mxu0 %v6584
  %v6807 = vpop.f32.mrb[0].mxu0
  %v6808 = vadd.f32 0.0, %v6807
  %v6809 = vpop.f32.mrb[0].mxu0
  %6810 = vmatprep.mubr.f32.mxu0 0.0
  %6811 = vmatmul.mubr.f32.gmra.mrb[0].mxu0 %v6586
  %v6812 = vpop.f32.mrb[0].mxu0
  %v6813 = vadd.f32 0.0, %v6812
  %v6814 = vpop.f32.mrb[0].mxu0
  %6815 = vmatprep.mubr.f32.mxu0 0.0
  %6816 = vmatmul.mubr.f32.gmra.mrb[0].mxu0 %v6588
  %v6817 = vpop.f32.mrb[0].mxu0
  %v6818 = vadd.f32 0.0, %v6817
  %v6819 = vpop.f32.mrb[0].mxu0
  %6820 = vmatprep.mubr.f32.mxu0 0.0
  %6821 = vmatmul.mubr.f32.gmra.mrb[0].mxu0 %v6590
  %v6822 = vpop.f32.mrb[0].mxu0
  %v6823 = vadd.f32 0.0, %v6822
  %v6824 = vpop.f32.mrb[0].mxu0
  %6825 = vmatprep.mubr.f32.mxu0 0.0
  %6826 = vmatmul.mubr.f32.gmra.mrb[0].mxu0 %v6592
  %v6827 = vpop.f32.mrb[0].mxu0
  %v6828 = vadd.f32 0.0, %v6827
  %v6829 = vpop.f32.mrb[0].mxu0
  %6830 = vmatprep.mubr.f32.mxu0 0.0
  %6831 = vmatmul.mubr.f32.gmra.mrb[0].mxu0 %v6594
  %v6832 = vpop.f32.mrb[0].mxu0
  %v6833 = vadd.f32 0.0, %v6832
  %v6834 = vpop.f32.mrb[0].mxu0
  %6835 = vdwg.mxu0
  %v6836 = vrcp.pop %v6596
  %v6837 = vrcp.pop %v6598
  %v6838 = vrcp.pop %v6600
  %v6839 = vrcp.pop %v6602
  %v6840 = vrcp.pop %v6604
  %v6841 = vrcp.pop %v6606
  %v6842 = vrcp.pop %v6608
  %v6843 = vrcp.pop %v6610
  %v6844 = vrcp.pop %v6612
  %v6845 = vrcp.pop %v6614
  %v6846 = vrcp.pop %v6616
  %v6847 = vrcp.pop %v6618
  %v6848 = vrcp.pop %v6620
  %v6849 = vrcp.pop %v6622
  %v6850 = vrcp.pop %v6624
  %v6851 = vrcp.pop %v6626
  %v6852 = vmul.f32 %v6758, %v6836
  %v6853 = vmul.f32 %v6763, %v6837
  %v6854 = vmul.f32 %v6768, %v6838
  %v6855 = vmul.f32 %v6773, %v6839
  %v6856 = vmul.f32 %v6778, %v6840
  %v6857 = vmul.f32 %v6783, %v6841
  %v6858 = vmul.f32 %v6788, %v6842
  %v6859 = vmul.f32 %v6793, %v6843
  %v6860 = vmul.f32 %v6798, %v6844
  %v6861 = vmul.f32 %v6803, %v6845
  %v6862 = vmul.f32 %v6808, %v6846
  %v6863 = vmul.f32 %v6813, %v6847
  %v6864 = vmul.f32 %v6818, %v6848
  %v6865 = vmul.f32 %v6823, %v6849
  %v6866 = vmul.f32 %v6828, %v6850
  %v6867 = vmul.f32 %v6833, %v6851
  %6868 = vset.pattern.permute.xlu0 2
  %6869 = vperm.xlu0 %6868, %v5836
  %v6870 = vpop.permute.xlu0 %6869
  %6872 = vset.pattern.permute.xlu0 2
  %6873 = vperm.xlu0 %6872, %v5841
  %v6874 = vpop.permute.xlu0 %6873
  %6876 = vset.pattern.permute.xlu0 2
  %6877 = vperm.xlu0 %6876, %v5846
  %v6878 = vpop.permute.xlu0 %6877
  %6880 = vset.pattern.permute.xlu0 2
  %6881 = vperm.xlu0 %6880, %v5851
  %v6882 = vpop.permute.xlu0 %6881
  %6884 = vset.pattern.permute.xlu0 2
  %6885 = vperm.xlu0 %6884, %v5856
  %v6886 = vpop.permute.xlu0 %6885
  %6888 = vset.pattern.permute.xlu0 2
  %6889 = vperm.xlu0 %6888, %v5861
  %v6890 = vpop.permute.xlu0 %6889
  %6892 = vset.pattern.permute.xlu0 2
  %6893 = vperm.xlu0 %6892, %v5866
  %v6894 = vpop.permute.xlu0 %6893
  %6896 = vset.pattern.permute.xlu0 2
  %6897 = vperm.xlu0 %6896, %v5871
  %v6898 = vpop.permute.xlu0 %6897
  %6900 = vset.pattern.permute.xlu0 2
  %6901 = vperm.xlu0 %6900, %v5876
  %v6902 = vpop.permute.xlu0 %6901
  %6904 = vset.pattern.permute.xlu0 2
  %6905 = vperm.xlu0 %6904, %v5881
  %v6906 = vpop.permute.xlu0 %6905
  %6908 = vset.pattern.permute.xlu0 2
  %6909 = vperm.xlu0 %6908, %v5886
  %v6910 = vpop.permute.xlu0 %6909
  %6912 = vset.pattern.permute.xlu0 2
  %6913 = vperm.xlu0 %6912, %v5891
  %v6914 = vpop.permute.xlu0 %6913
  %6916 = vset.pattern.permute.xlu0 2
  %6917 = vperm.xlu0 %6916, %v5896
  %v6918 = vpop.permute.xlu0 %6917
  %6920 = vset.pattern.permute.xlu0 2
  %6921 = vperm.xlu0 %6920, %v5901
  %v6922 = vpop.permute.xlu0 %6921
  %6924 = vset.pattern.permute.xlu0 2
  %6925 = vperm.xlu0 %6924, %v5906
  %v6926 = vpop.permute.xlu0 %6925
  %6928 = vset.pattern.permute.xlu0 2
  %6929 = vperm.xlu0 %6928, %v5911
  %v6930 = vpop.permute.xlu0 %6929
  %v6932 = vlaneseq
  %v6933 = vshrl.u32 %v6932, 7
  %v6934 = vsub.s32 6, %v6933
  %v6935 = vrot.slane %v5930, %v6934
  %v6936 = vadd.f32 %v6870, %v6935
  %v6937 = vadd.f32 %v6874, %v6935
  %v6938 = vadd.f32 %v6878, %v6935
  %v6939 = vadd.f32 %v6882, %v6935
  %v6940 = vadd.f32 %v6886, %v6935
  %v6941 = vadd.f32 %v6890, %v6935
  %v6942 = vadd.f32 %v6894, %v6935
  %v6943 = vadd.f32 %v6898, %v6935
  %v6944 = vadd.f32 %v6902, %v6935
  %v6945 = vadd.f32 %v6906, %v6935
  %v6946 = vadd.f32 %v6910, %v6935
  %v6947 = vadd.f32 %v6914, %v6935
  %v6948 = vadd.f32 %v6918, %v6935
  %v6949 = vadd.f32 %v6922, %v6935
  %v6950 = vadd.f32 %v6926, %v6935
  %v6951 = vadd.f32 %v6930, %v6935
  %v6952 = vmul.f32 %v6936, 0.2
  %v6953 = vmul.f32 %v6937, 0.2
  %v6954 = vmul.f32 %v6938, 0.2
  %v6955 = vmul.f32 %v6939, 0.2
  %v6956 = vmul.f32 %v6940, 0.2
  %v6957 = vmul.f32 %v6941, 0.2
  %v6958 = vmul.f32 %v6942, 0.2
  %v6959 = vmul.f32 %v6943, 0.2
  %v6960 = vmul.f32 %v6944, 0.2
  %v6961 = vmul.f32 %v6945, 0.2
  %v6962 = vmul.f32 %v6946, 0.2
  %v6963 = vmul.f32 %v6947, 0.2
  %v6964 = vmul.f32 %v6948, 0.2
  %v6965 = vmul.f32 %v6949, 0.2
  %v6966 = vmul.f32 %v6950, 0.2
  %v6967 = vmul.f32 %v6951, 0.2
  %v6968 = vmax.f32 %v6936, %v6952
  %v6969 = vmax.f32 %v6937, %v6953
  %v6970 = vmax.f32 %v6938, %v6954
  %v6971 = vmax.f32 %v6939, %v6955
  %v6972 = vmax.f32 %v6940, %v6956
  %v6973 = vmax.f32 %v6941, %v6957
  %v6974 = vmax.f32 %v6942, %v6958
  %v6975 = vmax.f32 %v6943, %v6959
  %v6976 = vmax.f32 %v6944, %v6960
  %v6977 = vmax.f32 %v6945, %v6961
  %v6978 = vmax.f32 %v6946, %v6962
  %v6979 = vmax.f32 %v6947, %v6963
  %v6980 = vmax.f32 %v6948, %v6964
  %v6981 = vmax.f32 %v6949, %v6965
  %v6982 = vmax.f32 %v6950, %v6966
  %v6983 = vmax.f32 %v6951, %v6967
  %v6984 = vadd.f32 %v6968, %v74
  %v6985 = vadd.f32 %v6969, %v75
  %v6986 = vadd.f32 %v6970, %v76
  %v6987 = vadd.f32 %v6971, %v77
  %v6988 = vadd.f32 %v6972, %v78
  %v6989 = vadd.f32 %v6973, %v79
  %v6990 = vadd.f32 %v6974, %v80
  %v6991 = vadd.f32 %v6975, %v81
  %v6992 = vadd.f32 %v6976, %v82
  %v6993 = vadd.f32 %v6977, %v83
  %v6994 = vadd.f32 %v6978, %v84
  %v6995 = vadd.f32 %v6979, %v85
  %v6996 = vadd.f32 %v6980, %v86
  %v6997 = vadd.f32 %v6981, %v87
  %v6998 = vadd.f32 %v6982, %v88
  %v6999 = vadd.f32 %v6983, %v89
  %7000 = vmax.xlane.f32.xlu0 %v6984
  %v7001 = vpop.xlane.xlu0 %7000
  %7002 = vmax.xlane.f32.xlu0 %v6985
  %v7003 = vpop.xlane.xlu0 %7002
  %7004 = vmax.xlane.f32.xlu0 %v6986
  %v7005 = vpop.xlane.xlu0 %7004
  %7006 = vmax.xlane.f32.xlu0 %v6987
  %v7007 = vpop.xlane.xlu0 %7006
  %7008 = vmax.xlane.f32.xlu0 %v6988
  %v7009 = vpop.xlane.xlu0 %7008
  %7010 = vmax.xlane.f32.xlu0 %v6989
  %v7011 = vpop.xlane.xlu0 %7010
  %7012 = vmax.xlane.f32.xlu0 %v6990
  %v7013 = vpop.xlane.xlu0 %7012
  %7014 = vmax.xlane.f32.xlu0 %v6991
  %v7015 = vpop.xlane.xlu0 %7014
  %7016 = vmax.xlane.f32.xlu0 %v6992
  %v7017 = vpop.xlane.xlu0 %7016
  %7018 = vmax.xlane.f32.xlu0 %v6993
  %v7019 = vpop.xlane.xlu0 %7018
  %7020 = vmax.xlane.f32.xlu0 %v6994
  %v7021 = vpop.xlane.xlu0 %7020
  %7022 = vmax.xlane.f32.xlu0 %v6995
  %v7023 = vpop.xlane.xlu0 %7022
  %7024 = vmax.xlane.f32.xlu0 %v6996
  %v7025 = vpop.xlane.xlu0 %7024
  %7026 = vmax.xlane.f32.xlu0 %v6997
  %v7027 = vpop.xlane.xlu0 %7026
  %7028 = vmax.xlane.f32.xlu0 %v6998
  %v7029 = vpop.xlane.xlu0 %7028
  %7030 = vmax.xlane.f32.xlu0 %v6999
  %v7031 = vpop.xlane.xlu0 %7030
  %v7032 = vsub.f32 %v6984, %v7001
  %v7033 = vsub.f32 %v6985, %v7003
  %v7034 = vsub.f32 %v6986, %v7005
  %v7035 = vsub.f32 %v6987, %v7007
  %v7036 = vsub.f32 %v6988, %v7009
  %v7037 = vsub.f32 %v6989, %v7011
  %v7038 = vsub.f32 %v6990, %v7013
  %v7039 = vsub.f32 %v6991, %v7015
  %v7040 = vsub.f32 %v6992, %v7017
  %v7041 = vsub.f32 %v6993, %v7019
  %v7042 = vsub.f32 %v6994, %v7021
  %v7043 = vsub.f32 %v6995, %v7023
  %v7044 = vsub.f32 %v6996, %v7025
  %v7045 = vsub.f32 %v6997, %v7027
  %v7046 = vsub.f32 %v6998, %v7029
  %v7047 = vsub.f32 %v6999, %v7031
  %v7048 = vmul.f32 %v7032, 1.442695
  %v7049 = vpow.pop %v7048
  %v7050 = vmul.f32 %v7033, 1.442695
  %v7051 = vpow.pop %v7050
  %v7052 = vmul.f32 %v7034, 1.442695
  %v7053 = vpow.pop %v7052
  %v7054 = vmul.f32 %v7035, 1.442695
  %v7055 = vpow.pop %v7054
  %v7056 = vmul.f32 %v7036, 1.442695
  %v7057 = vpow.pop %v7056
  %v7058 = vmul.f32 %v7037, 1.442695
  %v7059 = vpow.pop %v7058
  %v7060 = vmul.f32 %v7038, 1.442695
  %v7061 = vpow.pop %v7060
  %v7062 = vmul.f32 %v7039, 1.442695
  %v7063 = vpow.pop %v7062
  %v7064 = vmul.f32 %v7040, 1.442695
  %v7065 = vpow.pop %v7064
  %v7066 = vmul.f32 %v7041, 1.442695
  %v7067 = vpow.pop %v7066
  %v7068 = vmul.f32 %v7042, 1.442695
  %v7069 = vpow.pop %v7068
  %v7070 = vmul.f32 %v7043, 1.442695
  %v7071 = vpow.pop %v7070
  %v7072 = vmul.f32 %v7044, 1.442695
  %v7073 = vpow.pop %v7072
  %v7074 = vmul.f32 %v7045, 1.442695
  %v7075 = vpow.pop %v7074
  %v7076 = vmul.f32 %v7046, 1.442695
  %v7077 = vpow.pop %v7076
  %v7078 = vmul.f32 %v7047, 1.442695
  %v7079 = vpow.pop %v7078
  %7080 = vadd.xlane.f32.xlu0 %v7049
  %v7081 = vpop.xlane.xlu0 %7080
  %7082 = vadd.xlane.f32.xlu0 %v7051
  %v7083 = vpop.xlane.xlu0 %7082
  %7084 = vadd.xlane.f32.xlu0 %v7053
  %v7085 = vpop.xlane.xlu0 %7084
  %7086 = vadd.xlane.f32.xlu0 %v7055
  %v7087 = vpop.xlane.xlu0 %7086
  %7088 = vadd.xlane.f32.xlu0 %v7057
  %v7089 = vpop.xlane.xlu0 %7088
  %7090 = vadd.xlane.f32.xlu0 %v7059
  %v7091 = vpop.xlane.xlu0 %7090
  %7092 = vadd.xlane.f32.xlu0 %v7061
  %v7093 = vpop.xlane.xlu0 %7092
  %7094 = vadd.xlane.f32.xlu0 %v7063
  %v7095 = vpop.xlane.xlu0 %7094
  %7096 = vadd.xlane.f32.xlu0 %v7065
  %v7097 = vpop.xlane.xlu0 %7096
  %7098 = vadd.xlane.f32.xlu0 %v7067
  %v7099 = vpop.xlane.xlu0 %7098
  %7100 = vadd.xlane.f32.xlu0 %v7069
  %v7101 = vpop.xlane.xlu0 %7100
  %7102 = vadd.xlane.f32.xlu0 %v7071
  %v7103 = vpop.xlane.xlu0 %7102
  %7104 = vadd.xlane.f32.xlu0 %v7073
  %v7105 = vpop.xlane.xlu0 %7104
  %7106 = vadd.xlane.f32.xlu0 %v7075
  %v7107 = vpop.xlane.xlu0 %7106
  %7108 = vadd.xlane.f32.xlu0 %v7077
  %v7109 = vpop.xlane.xlu0 %7108
  %7110 = vadd.xlane.f32.xlu0 %v7079
  %v7111 = vpop.xlane.xlu0 %7110
  %7112 = vrot.lane.b32.xlu0 %v5691, 64
  %v7113 = vpop.permute.xlu0 %7112
  %7114 = vrot.lane.b32.xlu0 %v5696, 64
  %v7115 = vpop.permute.xlu0 %7114
  %7116 = vrot.lane.b32.xlu0 %v5701, 64
  %v7117 = vpop.permute.xlu0 %7116
  %7118 = vrot.lane.b32.xlu0 %v5706, 64
  %v7119 = vpop.permute.xlu0 %7118
  %7120 = vrot.lane.b32.xlu0 %v5711, 64
  %v7121 = vpop.permute.xlu0 %7120
  %7122 = vrot.lane.b32.xlu0 %v5716, 64
  %v7123 = vpop.permute.xlu0 %7122
  %7124 = vrot.lane.b32.xlu0 %v5721, 64
  %v7125 = vpop.permute.xlu0 %7124
  %7126 = vrot.lane.b32.xlu0 %v5726, 64
  %v7127 = vpop.permute.xlu0 %7126
  %7128 = vrot.lane.b32.xlu0 %v5731, 64
  %v7129 = vpop.permute.xlu0 %7128
  %7130 = vrot.lane.b32.xlu0 %v5736, 64
  %v7131 = vpop.permute.xlu0 %7130
  %7132 = vrot.lane.b32.xlu0 %v5741, 64
  %v7133 = vpop.permute.xlu0 %7132
  %7134 = vrot.lane.b32.xlu0 %v5746, 64
  %v7135 = vpop.permute.xlu0 %7134
  %7136 = vrot.lane.b32.xlu0 %v5751, 64
  %v7137 = vpop.permute.xlu0 %7136
  %7138 = vrot.lane.b32.xlu0 %v5756, 64
  %v7139 = vpop.permute.xlu0 %7138
  %7140 = vrot.lane.b32.xlu0 %v5761, 64
  %v7141 = vpop.permute.xlu0 %7140
  %7142 = vrot.lane.b32.xlu0 %v5766, 64
  %v7143 = vpop.permute.xlu0 %7142
  %7160 = vmatprep.subr.mxu0 0.0
  %7161 = vmatpush1.msra.mxu0 %v7113
  %7162 = vmatprep.subr.mxu0 0.0
  %7163 = vmatpush1.msra.mxu0 %v7115
  %7164 = vmatprep.subr.mxu0 0.0
  %7165 = vmatpush1.msra.mxu0 %v7117
  %7166 = vmatprep.subr.mxu0 0.0
  %7167 = vmatpush1.msra.mxu0 %v7119
  %7168 = vmatprep.subr.mxu0 0.0
  %7169 = vmatpush1.msra.mxu0 %v7121
  %7170 = vmatprep.subr.mxu0 0.0
  %7171 = vmatpush1.msra.mxu0 %v7123
  %7172 = vmatprep.subr.mxu0 0.0
  %7173 = vmatpush1.msra.mxu0 %v7125
  %7174 = vmatprep.subr.mxu0 0.0
  %7175 = vmatpush1.msra.mxu0 %v7127
  %7176 = vmatprep.subr.mxu0 0.0
  %7177 = vmatpush1.msra.mxu0 %v7129
  %7178 = vmatprep.subr.mxu0 0.0
  %7179 = vmatpush1.msra.mxu0 %v7131
  %7180 = vmatprep.subr.mxu0 0.0
  %7181 = vmatpush1.msra.mxu0 %v7133
  %7182 = vmatprep.subr.mxu0 0.0
  %7183 = vmatpush1.msra.mxu0 %v7135
  %7184 = vmatprep.subr.mxu0 0.0
  %7185 = vmatpush1.msra.mxu0 %v7137
  %7186 = vmatprep.subr.mxu0 0.0
  %7187 = vmatpush1.msra.mxu0 %v7139
  %7188 = vmatprep.subr.mxu0 0.0
  %7189 = vmatpush1.msra.mxu0 %v7141
  %7190 = vmatprep.subr.mxu0 0.0
  %7191 = vmatpush1.msra.mxu0 %v7143
  %7192 = vmatprep.subr.mxu0 0.0
  %7193 = vmatpush1.msra.mxu0 0.0
  %7194 = vmatprep.subr.mxu0 0.0
  %7195 = vmatpush1.msra.mxu0 0.0
  %7196 = vmatprep.subr.mxu0 0.0
  %7197 = vmatpush1.msra.mxu0 0.0
  %7198 = vmatprep.subr.mxu0 0.0
  %7199 = vmatpush1.msra.mxu0 0.0
  %7200 = vmatprep.subr.mxu0 0.0
  %7201 = vmatpush1.msra.mxu0 0.0
  %7202 = vmatprep.subr.mxu0 0.0
  %7203 = vmatpush1.msra.mxu0 0.0
  %7204 = vmatprep.subr.mxu0 0.0
  %7205 = vmatpush1.msra.mxu0 0.0
  %7206 = vmatprep.subr.mxu0 0.0
  %7207 = vmatpush1.msra.mxu0 0.0
  %7208 = vmatprep.subr.mxu0 0.0
  %7209 = vmatpush1.msra.mxu0 0.0
  %7210 = vmatprep.subr.mxu0 0.0
  %7211 = vmatpush1.msra.mxu0 0.0
  %7212 = vmatprep.subr.mxu0 0.0
  %7213 = vmatpush1.msra.mxu0 0.0
  %7214 = vmatprep.subr.mxu0 0.0
  %7215 = vmatpush1.msra.mxu0 0.0
  %7216 = vmatprep.subr.mxu0 0.0
  %7217 = vmatpush1.msra.mxu0 0.0
  %7218 = vmatprep.subr.mxu0 0.0
  %7219 = vmatpush1.msra.mxu0 0.0
  %7220 = vmatprep.subr.mxu0 0.0
  %7221 = vmatpush1.msra.mxu0 0.0
  %7222 = vmatprep.subr.mxu0 0.0
  %7223 = vmatpush1.msra.mxu0 0.0
  %7224 = vmatprep.mubr.f32.mxu0 0.0
  %7225 = vmatmul.mubr.f32.gmra.mrb[0].mxu0 %v7049
  %v7226 = vpop.f32.mrb[0].mxu0
  %v7227 = vadd.f32 0.0, %v7226
  %v7228 = vpop.f32.mrb[0].mxu0
  %7229 = vmatprep.mubr.f32.mxu0 0.0
  %7230 = vmatmul.mubr.f32.gmra.mrb[0].mxu0 %v7051
  %v7231 = vpop.f32.mrb[0].mxu0
  %v7232 = vadd.f32 0.0, %v7231
  %v7233 = vpop.f32.mrb[0].mxu0
  %7234 = vmatprep.mubr.f32.mxu0 0.0
  %7235 = vmatmul.mubr.f32.gmra.mrb[0].mxu0 %v7053
  %v7236 = vpop.f32.mrb[0].mxu0
  %v7237 = vadd.f32 0.0, %v7236
  %v7238 = vpop.f32.mrb[0].mxu0
  %7239 = vmatprep.mubr.f32.mxu0 0.0
  %7240 = vmatmul.mubr.f32.gmra.mrb[0].mxu0 %v7055
  %v7241 = vpop.f32.mrb[0].mxu0
  %v7242 = vadd.f32 0.0, %v7241
  %v7243 = vpop.f32.mrb[0].mxu0
  %7244 = vmatprep.mubr.f32.mxu0 0.0
  %7245 = vmatmul.mubr.f32.gmra.mrb[0].mxu0 %v7057
  %v7246 = vpop.f32.mrb[0].mxu0
  %v7247 = vadd.f32 0.0, %v7246
  %v7248 = vpop.f32.mrb[0].mxu0
  %7249 = vmatprep.mubr.f32.mxu0 0.0
  %7250 = vmatmul.mubr.f32.gmra.mrb[0].mxu0 %v7059
  %v7251 = vpop.f32.mrb[0].mxu0
  %v7252 = vadd.f32 0.0, %v7251
  %v7253 = vpop.f32.mrb[0].mxu0
  %7254 = vmatprep.mubr.f32.mxu0 0.0
  %7255 = vmatmul.mubr.f32.gmra.mrb[0].mxu0 %v7061
  %v7256 = vpop.f32.mrb[0].mxu0
  %v7257 = vadd.f32 0.0, %v7256
  %v7258 = vpop.f32.mrb[0].mxu0
  %7259 = vmatprep.mubr.f32.mxu0 0.0
  %7260 = vmatmul.mubr.f32.gmra.mrb[0].mxu0 %v7063
  %v7261 = vpop.f32.mrb[0].mxu0
  %v7262 = vadd.f32 0.0, %v7261
  %v7263 = vpop.f32.mrb[0].mxu0
  %7264 = vmatprep.mubr.f32.mxu0 0.0
  %7265 = vmatmul.mubr.f32.gmra.mrb[0].mxu0 %v7065
  %v7266 = vpop.f32.mrb[0].mxu0
  %v7267 = vadd.f32 0.0, %v7266
  %v7268 = vpop.f32.mrb[0].mxu0
  %7269 = vmatprep.mubr.f32.mxu0 0.0
  %7270 = vmatmul.mubr.f32.gmra.mrb[0].mxu0 %v7067
  %v7271 = vpop.f32.mrb[0].mxu0
  %v7272 = vadd.f32 0.0, %v7271
  %v7273 = vpop.f32.mrb[0].mxu0
  %7274 = vmatprep.mubr.f32.mxu0 0.0
  %7275 = vmatmul.mubr.f32.gmra.mrb[0].mxu0 %v7069
  %v7276 = vpop.f32.mrb[0].mxu0
  %v7277 = vadd.f32 0.0, %v7276
  %v7278 = vpop.f32.mrb[0].mxu0
  %7279 = vmatprep.mubr.f32.mxu0 0.0
  %7280 = vmatmul.mubr.f32.gmra.mrb[0].mxu0 %v7071
  %v7281 = vpop.f32.mrb[0].mxu0
  %v7282 = vadd.f32 0.0, %v7281
  %v7283 = vpop.f32.mrb[0].mxu0
  %7284 = vmatprep.mubr.f32.mxu0 0.0
  %7285 = vmatmul.mubr.f32.gmra.mrb[0].mxu0 %v7073
  %v7286 = vpop.f32.mrb[0].mxu0
  %v7287 = vadd.f32 0.0, %v7286
  %v7288 = vpop.f32.mrb[0].mxu0
  %7289 = vmatprep.mubr.f32.mxu0 0.0
  %7290 = vmatmul.mubr.f32.gmra.mrb[0].mxu0 %v7075
  %v7291 = vpop.f32.mrb[0].mxu0
  %v7292 = vadd.f32 0.0, %v7291
  %v7293 = vpop.f32.mrb[0].mxu0
  %7294 = vmatprep.mubr.f32.mxu0 0.0
  %7295 = vmatmul.mubr.f32.gmra.mrb[0].mxu0 %v7077
  %v7296 = vpop.f32.mrb[0].mxu0
  %v7297 = vadd.f32 0.0, %v7296
  %v7298 = vpop.f32.mrb[0].mxu0
  %7299 = vmatprep.mubr.f32.mxu0 0.0
  %7300 = vmatmul.mubr.f32.gmra.mrb[0].mxu0 %v7079
  %v7301 = vpop.f32.mrb[0].mxu0
  %v7302 = vadd.f32 0.0, %v7301
  %v7303 = vpop.f32.mrb[0].mxu0
  %7304 = vdwg.mxu0
  %v7305 = vrcp.pop %v7081
  %v7306 = vrcp.pop %v7083
  %v7307 = vrcp.pop %v7085
  %v7308 = vrcp.pop %v7087
  %v7309 = vrcp.pop %v7089
  %v7310 = vrcp.pop %v7091
  %v7311 = vrcp.pop %v7093
  %v7312 = vrcp.pop %v7095
  %v7313 = vrcp.pop %v7097
  %v7314 = vrcp.pop %v7099
  %v7315 = vrcp.pop %v7101
  %v7316 = vrcp.pop %v7103
  %v7317 = vrcp.pop %v7105
  %v7318 = vrcp.pop %v7107
  %v7319 = vrcp.pop %v7109
  %v7320 = vrcp.pop %v7111
  %v7321 = vmul.f32 %v7227, %v7305
  %v7322 = vmul.f32 %v7232, %v7306
  %v7323 = vmul.f32 %v7237, %v7307
  %v7324 = vmul.f32 %v7242, %v7308
  %v7325 = vmul.f32 %v7247, %v7309
  %v7326 = vmul.f32 %v7252, %v7310
  %v7327 = vmul.f32 %v7257, %v7311
  %v7328 = vmul.f32 %v7262, %v7312
  %v7329 = vmul.f32 %v7267, %v7313
  %v7330 = vmul.f32 %v7272, %v7314
  %v7331 = vmul.f32 %v7277, %v7315
  %v7332 = vmul.f32 %v7282, %v7316
  %v7333 = vmul.f32 %v7287, %v7317
  %v7334 = vmul.f32 %v7292, %v7318
  %v7335 = vmul.f32 %v7297, %v7319
  %v7336 = vmul.f32 %v7302, %v7320
  %7337 = vset.pattern.permute.xlu0 3
  %7338 = vperm.xlu0 %7337, %v5836
  %v7339 = vpop.permute.xlu0 %7338
  %7341 = vset.pattern.permute.xlu0 3
  %7342 = vperm.xlu0 %7341, %v5841
  %v7343 = vpop.permute.xlu0 %7342
  %7345 = vset.pattern.permute.xlu0 3
  %7346 = vperm.xlu0 %7345, %v5846
  %v7347 = vpop.permute.xlu0 %7346
  %7349 = vset.pattern.permute.xlu0 3
  %7350 = vperm.xlu0 %7349, %v5851
  %v7351 = vpop.permute.xlu0 %7350
  %7353 = vset.pattern.permute.xlu0 3
  %7354 = vperm.xlu0 %7353, %v5856
  %v7355 = vpop.permute.xlu0 %7354
  %7357 = vset.pattern.permute.xlu0 3
  %7358 = vperm.xlu0 %7357, %v5861
  %v7359 = vpop.permute.xlu0 %7358
  %7361 = vset.pattern.permute.xlu0 3
  %7362 = vperm.xlu0 %7361, %v5866
  %v7363 = vpop.permute.xlu0 %7362
  %7365 = vset.pattern.permute.xlu0 3
  %7366 = vperm.xlu0 %7365, %v5871
  %v7367 = vpop.permute.xlu0 %7366
  %7369 = vset.pattern.permute.xlu0 3
  %7370 = vperm.xlu0 %7369, %v5876
  %v7371 = vpop.permute.xlu0 %7370
  %7373 = vset.pattern.permute.xlu0 3
  %7374 = vperm.xlu0 %7373, %v5881
  %v7375 = vpop.permute.xlu0 %7374
  %7377 = vset.pattern.permute.xlu0 3
  %7378 = vperm.xlu0 %7377, %v5886
  %v7379 = vpop.permute.xlu0 %7378
  %7381 = vset.pattern.permute.xlu0 3
  %7382 = vperm.xlu0 %7381, %v5891
  %v7383 = vpop.permute.xlu0 %7382
  %7385 = vset.pattern.permute.xlu0 3
  %7386 = vperm.xlu0 %7385, %v5896
  %v7387 = vpop.permute.xlu0 %7386
  %7389 = vset.pattern.permute.xlu0 3
  %7390 = vperm.xlu0 %7389, %v5901
  %v7391 = vpop.permute.xlu0 %7390
  %7393 = vset.pattern.permute.xlu0 3
  %7394 = vperm.xlu0 %7393, %v5906
  %v7395 = vpop.permute.xlu0 %7394
  %7397 = vset.pattern.permute.xlu0 3
  %7398 = vperm.xlu0 %7397, %v5911
  %v7399 = vpop.permute.xlu0 %7398
  %v7401 = vlaneseq
  %v7402 = vshrl.u32 %v7401, 7
  %v7403 = vsub.s32 7, %v7402
  %v7404 = vrot.slane %v5930, %v7403
  %v7405 = vadd.f32 %v7339, %v7404
  %v7406 = vadd.f32 %v7343, %v7404
  %v7407 = vadd.f32 %v7347, %v7404
  %v7408 = vadd.f32 %v7351, %v7404
  %v7409 = vadd.f32 %v7355, %v7404
  %v7410 = vadd.f32 %v7359, %v7404
  %v7411 = vadd.f32 %v7363, %v7404
  %v7412 = vadd.f32 %v7367, %v7404
  %v7413 = vadd.f32 %v7371, %v7404
  %v7414 = vadd.f32 %v7375, %v7404
  %v7415 = vadd.f32 %v7379, %v7404
  %v7416 = vadd.f32 %v7383, %v7404
  %v7417 = vadd.f32 %v7387, %v7404
  %v7418 = vadd.f32 %v7391, %v7404
  %v7419 = vadd.f32 %v7395, %v7404
  %v7420 = vadd.f32 %v7399, %v7404
  %v7421 = vmul.f32 %v7405, 0.2
  %v7422 = vmul.f32 %v7406, 0.2
  %v7423 = vmul.f32 %v7407, 0.2
  %v7424 = vmul.f32 %v7408, 0.2
  %v7425 = vmul.f32 %v7409, 0.2
  %v7426 = vmul.f32 %v7410, 0.2
  %v7427 = vmul.f32 %v7411, 0.2
  %v7428 = vmul.f32 %v7412, 0.2
  %v7429 = vmul.f32 %v7413, 0.2
  %v7430 = vmul.f32 %v7414, 0.2
  %v7431 = vmul.f32 %v7415, 0.2
  %v7432 = vmul.f32 %v7416, 0.2
  %v7433 = vmul.f32 %v7417, 0.2
  %v7434 = vmul.f32 %v7418, 0.2
  %v7435 = vmul.f32 %v7419, 0.2
  %v7436 = vmul.f32 %v7420, 0.2
  %v7437 = vmax.f32 %v7405, %v7421
  %v7438 = vmax.f32 %v7406, %v7422
  %v7439 = vmax.f32 %v7407, %v7423
  %v7440 = vmax.f32 %v7408, %v7424
  %v7441 = vmax.f32 %v7409, %v7425
  %v7442 = vmax.f32 %v7410, %v7426
  %v7443 = vmax.f32 %v7411, %v7427
  %v7444 = vmax.f32 %v7412, %v7428
  %v7445 = vmax.f32 %v7413, %v7429
  %v7446 = vmax.f32 %v7414, %v7430
  %v7447 = vmax.f32 %v7415, %v7431
  %v7448 = vmax.f32 %v7416, %v7432
  %v7449 = vmax.f32 %v7417, %v7433
  %v7450 = vmax.f32 %v7418, %v7434
  %v7451 = vmax.f32 %v7419, %v7435
  %v7452 = vmax.f32 %v7420, %v7436
  %v7453 = vadd.f32 %v7437, %v74
  %v7454 = vadd.f32 %v7438, %v75
  %v7455 = vadd.f32 %v7439, %v76
  %v7456 = vadd.f32 %v7440, %v77
  %v7457 = vadd.f32 %v7441, %v78
  %v7458 = vadd.f32 %v7442, %v79
  %v7459 = vadd.f32 %v7443, %v80
  %v7460 = vadd.f32 %v7444, %v81
  %v7461 = vadd.f32 %v7445, %v82
  %v7462 = vadd.f32 %v7446, %v83
  %v7463 = vadd.f32 %v7447, %v84
  %v7464 = vadd.f32 %v7448, %v85
  %v7465 = vadd.f32 %v7449, %v86
  %v7466 = vadd.f32 %v7450, %v87
  %v7467 = vadd.f32 %v7451, %v88
  %v7468 = vadd.f32 %v7452, %v89
  %7469 = vmax.xlane.f32.xlu0 %v7453
  %v7470 = vpop.xlane.xlu0 %7469
  %7471 = vmax.xlane.f32.xlu0 %v7454
  %v7472 = vpop.xlane.xlu0 %7471
  %7473 = vmax.xlane.f32.xlu0 %v7455
  %v7474 = vpop.xlane.xlu0 %7473
  %7475 = vmax.xlane.f32.xlu0 %v7456
  %v7476 = vpop.xlane.xlu0 %7475
  %7477 = vmax.xlane.f32.xlu0 %v7457
  %v7478 = vpop.xlane.xlu0 %7477
  %7479 = vmax.xlane.f32.xlu0 %v7458
  %v7480 = vpop.xlane.xlu0 %7479
  %7481 = vmax.xlane.f32.xlu0 %v7459
  %v7482 = vpop.xlane.xlu0 %7481
  %7483 = vmax.xlane.f32.xlu0 %v7460
  %v7484 = vpop.xlane.xlu0 %7483
  %7485 = vmax.xlane.f32.xlu0 %v7461
  %v7486 = vpop.xlane.xlu0 %7485
  %7487 = vmax.xlane.f32.xlu0 %v7462
  %v7488 = vpop.xlane.xlu0 %7487
  %7489 = vmax.xlane.f32.xlu0 %v7463
  %v7490 = vpop.xlane.xlu0 %7489
  %7491 = vmax.xlane.f32.xlu0 %v7464
  %v7492 = vpop.xlane.xlu0 %7491
  %7493 = vmax.xlane.f32.xlu0 %v7465
  %v7494 = vpop.xlane.xlu0 %7493
  %7495 = vmax.xlane.f32.xlu0 %v7466
  %v7496 = vpop.xlane.xlu0 %7495
  %7497 = vmax.xlane.f32.xlu0 %v7467
  %v7498 = vpop.xlane.xlu0 %7497
  %7499 = vmax.xlane.f32.xlu0 %v7468
  %v7500 = vpop.xlane.xlu0 %7499
  %v7501 = vsub.f32 %v7453, %v7470
  %v7502 = vsub.f32 %v7454, %v7472
  %v7503 = vsub.f32 %v7455, %v7474
  %v7504 = vsub.f32 %v7456, %v7476
  %v7505 = vsub.f32 %v7457, %v7478
  %v7506 = vsub.f32 %v7458, %v7480
  %v7507 = vsub.f32 %v7459, %v7482
  %v7508 = vsub.f32 %v7460, %v7484
  %v7509 = vsub.f32 %v7461, %v7486
  %v7510 = vsub.f32 %v7462, %v7488
  %v7511 = vsub.f32 %v7463, %v7490
  %v7512 = vsub.f32 %v7464, %v7492
  %v7513 = vsub.f32 %v7465, %v7494
  %v7514 = vsub.f32 %v7466, %v7496
  %v7515 = vsub.f32 %v7467, %v7498
  %v7516 = vsub.f32 %v7468, %v7500
  %v7517 = vmul.f32 %v7501, 1.442695
  %v7518 = vpow.pop %v7517
  %v7519 = vmul.f32 %v7502, 1.442695
  %v7520 = vpow.pop %v7519
  %v7521 = vmul.f32 %v7503, 1.442695
  %v7522 = vpow.pop %v7521
  %v7523 = vmul.f32 %v7504, 1.442695
  %v7524 = vpow.pop %v7523
  %v7525 = vmul.f32 %v7505, 1.442695
  %v7526 = vpow.pop %v7525
  %v7527 = vmul.f32 %v7506, 1.442695
  %v7528 = vpow.pop %v7527
  %v7529 = vmul.f32 %v7507, 1.442695
  %v7530 = vpow.pop %v7529
  %v7531 = vmul.f32 %v7508, 1.442695
  %v7532 = vpow.pop %v7531
  %v7533 = vmul.f32 %v7509, 1.442695
  %v7534 = vpow.pop %v7533
  %v7535 = vmul.f32 %v7510, 1.442695
  %v7536 = vpow.pop %v7535
  %v7537 = vmul.f32 %v7511, 1.442695
  %v7538 = vpow.pop %v7537
  %v7539 = vmul.f32 %v7512, 1.442695
  %v7540 = vpow.pop %v7539
  %v7541 = vmul.f32 %v7513, 1.442695
  %v7542 = vpow.pop %v7541
  %v7543 = vmul.f32 %v7514, 1.442695
  %v7544 = vpow.pop %v7543
  %v7545 = vmul.f32 %v7515, 1.442695
  %v7546 = vpow.pop %v7545
  %v7547 = vmul.f32 %v7516, 1.442695
  %v7548 = vpow.pop %v7547
  %7549 = vadd.xlane.f32.xlu0 %v7518
  %v7550 = vpop.xlane.xlu0 %7549
  %7551 = vadd.xlane.f32.xlu0 %v7520
  %v7552 = vpop.xlane.xlu0 %7551
  %7553 = vadd.xlane.f32.xlu0 %v7522
  %v7554 = vpop.xlane.xlu0 %7553
  %7555 = vadd.xlane.f32.xlu0 %v7524
  %v7556 = vpop.xlane.xlu0 %7555
  %7557 = vadd.xlane.f32.xlu0 %v7526
  %v7558 = vpop.xlane.xlu0 %7557
  %7559 = vadd.xlane.f32.xlu0 %v7528
  %v7560 = vpop.xlane.xlu0 %7559
  %7561 = vadd.xlane.f32.xlu0 %v7530
  %v7562 = vpop.xlane.xlu0 %7561
  %7563 = vadd.xlane.f32.xlu0 %v7532
  %v7564 = vpop.xlane.xlu0 %7563
  %7565 = vadd.xlane.f32.xlu0 %v7534
  %v7566 = vpop.xlane.xlu0 %7565
  %7567 = vadd.xlane.f32.xlu0 %v7536
  %v7568 = vpop.xlane.xlu0 %7567
  %7569 = vadd.xlane.f32.xlu0 %v7538
  %v7570 = vpop.xlane.xlu0 %7569
  %7571 = vadd.xlane.f32.xlu0 %v7540
  %v7572 = vpop.xlane.xlu0 %7571
  %7573 = vadd.xlane.f32.xlu0 %v7542
  %v7574 = vpop.xlane.xlu0 %7573
  %7575 = vadd.xlane.f32.xlu0 %v7544
  %v7576 = vpop.xlane.xlu0 %7575
  %7577 = vadd.xlane.f32.xlu0 %v7546
  %v7578 = vpop.xlane.xlu0 %7577
  %7579 = vadd.xlane.f32.xlu0 %v7548
  %v7580 = vpop.xlane.xlu0 %7579
  %7581 = vrot.lane.b32.xlu0 %v5691, 32
  %v7582 = vpop.permute.xlu0 %7581
  %7583 = vrot.lane.b32.xlu0 %v5696, 32
  %v7584 = vpop.permute.xlu0 %7583
  %7585 = vrot.lane.b32.xlu0 %v5701, 32
  %v7586 = vpop.permute.xlu0 %7585
  %7587 = vrot.lane.b32.xlu0 %v5706, 32
  %v7588 = vpop.permute.xlu0 %7587
  %7589 = vrot.lane.b32.xlu0 %v5711, 32
  %v7590 = vpop.permute.xlu0 %7589
  %7591 = vrot.lane.b32.xlu0 %v5716, 32
  %v7592 = vpop.permute.xlu0 %7591
  %7593 = vrot.lane.b32.xlu0 %v5721, 32
  %v7594 = vpop.permute.xlu0 %7593
  %7595 = vrot.lane.b32.xlu0 %v5726, 32
  %v7596 = vpop.permute.xlu0 %7595
  %7597 = vrot.lane.b32.xlu0 %v5731, 32
  %v7598 = vpop.permute.xlu0 %7597
  %7599 = vrot.lane.b32.xlu0 %v5736, 32
  %v7600 = vpop.permute.xlu0 %7599
  %7601 = vrot.lane.b32.xlu0 %v5741, 32
  %v7602 = vpop.permute.xlu0 %7601
  %7603 = vrot.lane.b32.xlu0 %v5746, 32
  %v7604 = vpop.permute.xlu0 %7603
  %7605 = vrot.lane.b32.xlu0 %v5751, 32
  %v7606 = vpop.permute.xlu0 %7605
  %7607 = vrot.lane.b32.xlu0 %v5756, 32
  %v7608 = vpop.permute.xlu0 %7607
  %7609 = vrot.lane.b32.xlu0 %v5761, 32
  %v7610 = vpop.permute.xlu0 %7609
  %7611 = vrot.lane.b32.xlu0 %v5766, 32
  %v7612 = vpop.permute.xlu0 %7611
  %7629 = vmatprep.subr.mxu0 0.0
  %7630 = vmatpush1.msra.mxu0 %v7582
  %7631 = vmatprep.subr.mxu0 0.0
  %7632 = vmatpush1.msra.mxu0 %v7584
  %7633 = vmatprep.subr.mxu0 0.0
  %7634 = vmatpush1.msra.mxu0 %v7586
  %7635 = vmatprep.subr.mxu0 0.0
  %7636 = vmatpush1.msra.mxu0 %v7588
  %7637 = vmatprep.subr.mxu0 0.0
  %7638 = vmatpush1.msra.mxu0 %v7590
  %7639 = vmatprep.subr.mxu0 0.0
  %7640 = vmatpush1.msra.mxu0 %v7592
  %7641 = vmatprep.subr.mxu0 0.0
  %7642 = vmatpush1.msra.mxu0 %v7594
  %7643 = vmatprep.subr.mxu0 0.0
  %7644 = vmatpush1.msra.mxu0 %v7596
  %7645 = vmatprep.subr.mxu0 0.0
  %7646 = vmatpush1.msra.mxu0 %v7598
  %7647 = vmatprep.subr.mxu0 0.0
  %7648 = vmatpush1.msra.mxu0 %v7600
  %7649 = vmatprep.subr.mxu0 0.0
  %7650 = vmatpush1.msra.mxu0 %v7602
  %7651 = vmatprep.subr.mxu0 0.0
  %7652 = vmatpush1.msra.mxu0 %v7604
  %7653 = vmatprep.subr.mxu0 0.0
  %7654 = vmatpush1.msra.mxu0 %v7606
  %7655 = vmatprep.subr.mxu0 0.0
  %7656 = vmatpush1.msra.mxu0 %v7608
  %7657 = vmatprep.subr.mxu0 0.0
  %7658 = vmatpush1.msra.mxu0 %v7610
  %7659 = vmatprep.subr.mxu0 0.0
  %7660 = vmatpush1.msra.mxu0 %v7612
  %7661 = vmatprep.subr.mxu0 0.0
  %7662 = vmatpush1.msra.mxu0 0.0
  %7663 = vmatprep.subr.mxu0 0.0
  %7664 = vmatpush1.msra.mxu0 0.0
  %7665 = vmatprep.subr.mxu0 0.0
  %7666 = vmatpush1.msra.mxu0 0.0
  %7667 = vmatprep.subr.mxu0 0.0
  %7668 = vmatpush1.msra.mxu0 0.0
  %7669 = vmatprep.subr.mxu0 0.0
  %7670 = vmatpush1.msra.mxu0 0.0
  %7671 = vmatprep.subr.mxu0 0.0
  %7672 = vmatpush1.msra.mxu0 0.0
  %7673 = vmatprep.subr.mxu0 0.0
  %7674 = vmatpush1.msra.mxu0 0.0
  %7675 = vmatprep.subr.mxu0 0.0
  %7676 = vmatpush1.msra.mxu0 0.0
  %7677 = vmatprep.subr.mxu0 0.0
  %7678 = vmatpush1.msra.mxu0 0.0
  %7679 = vmatprep.subr.mxu0 0.0
  %7680 = vmatpush1.msra.mxu0 0.0
  %7681 = vmatprep.subr.mxu0 0.0
  %7682 = vmatpush1.msra.mxu0 0.0
  %7683 = vmatprep.subr.mxu0 0.0
  %7684 = vmatpush1.msra.mxu0 0.0
  %7685 = vmatprep.subr.mxu0 0.0
  %7686 = vmatpush1.msra.mxu0 0.0
  %7687 = vmatprep.subr.mxu0 0.0
  %7688 = vmatpush1.msra.mxu0 0.0
  %7689 = vmatprep.subr.mxu0 0.0
  %7690 = vmatpush1.msra.mxu0 0.0
  %7691 = vmatprep.subr.mxu0 0.0
  %7692 = vmatpush1.msra.mxu0 0.0
  %7693 = vmatprep.mubr.f32.mxu0 0.0
  %7694 = vmatmul.mubr.f32.gmra.mrb[0].mxu0 %v7518
  %v7695 = vpop.f32.mrb[0].mxu0
  %v7696 = vadd.f32 0.0, %v7695
  %v7697 = vpop.f32.mrb[0].mxu0
  %7698 = vmatprep.mubr.f32.mxu0 0.0
  %7699 = vmatmul.mubr.f32.gmra.mrb[0].mxu0 %v7520
  %v7700 = vpop.f32.mrb[0].mxu0
  %v7701 = vadd.f32 0.0, %v7700
  %v7702 = vpop.f32.mrb[0].mxu0
  %7703 = vmatprep.mubr.f32.mxu0 0.0
  %7704 = vmatmul.mubr.f32.gmra.mrb[0].mxu0 %v7522
  %v7705 = vpop.f32.mrb[0].mxu0
  %v7706 = vadd.f32 0.0, %v7705
  %v7707 = vpop.f32.mrb[0].mxu0
  %7708 = vmatprep.mubr.f32.mxu0 0.0
  %7709 = vmatmul.mubr.f32.gmra.mrb[0].mxu0 %v7524
  %v7710 = vpop.f32.mrb[0].mxu0
  %v7711 = vadd.f32 0.0, %v7710
  %v7712 = vpop.f32.mrb[0].mxu0
  %7713 = vmatprep.mubr.f32.mxu0 0.0
  %7714 = vmatmul.mubr.f32.gmra.mrb[0].mxu0 %v7526
  %v7715 = vpop.f32.mrb[0].mxu0
  %v7716 = vadd.f32 0.0, %v7715
  %v7717 = vpop.f32.mrb[0].mxu0
  %7718 = vmatprep.mubr.f32.mxu0 0.0
  %7719 = vmatmul.mubr.f32.gmra.mrb[0].mxu0 %v7528
  %v7720 = vpop.f32.mrb[0].mxu0
  %v7721 = vadd.f32 0.0, %v7720
  %v7722 = vpop.f32.mrb[0].mxu0
  %7723 = vmatprep.mubr.f32.mxu0 0.0
  %7724 = vmatmul.mubr.f32.gmra.mrb[0].mxu0 %v7530
  %v7725 = vpop.f32.mrb[0].mxu0
  %v7726 = vadd.f32 0.0, %v7725
  %v7727 = vpop.f32.mrb[0].mxu0
  %7728 = vmatprep.mubr.f32.mxu0 0.0
  %7729 = vmatmul.mubr.f32.gmra.mrb[0].mxu0 %v7532
  %v7730 = vpop.f32.mrb[0].mxu0
  %v7731 = vadd.f32 0.0, %v7730
  %v7732 = vpop.f32.mrb[0].mxu0
  %7733 = vmatprep.mubr.f32.mxu0 0.0
  %7734 = vmatmul.mubr.f32.gmra.mrb[0].mxu0 %v7534
  %v7735 = vpop.f32.mrb[0].mxu0
  %v7736 = vadd.f32 0.0, %v7735
  %v7737 = vpop.f32.mrb[0].mxu0
  %7738 = vmatprep.mubr.f32.mxu0 0.0
  %7739 = vmatmul.mubr.f32.gmra.mrb[0].mxu0 %v7536
  %v7740 = vpop.f32.mrb[0].mxu0
  %v7741 = vadd.f32 0.0, %v7740
  %v7742 = vpop.f32.mrb[0].mxu0
  %7743 = vmatprep.mubr.f32.mxu0 0.0
  %7744 = vmatmul.mubr.f32.gmra.mrb[0].mxu0 %v7538
  %v7745 = vpop.f32.mrb[0].mxu0
  %v7746 = vadd.f32 0.0, %v7745
  %v7747 = vpop.f32.mrb[0].mxu0
  %7748 = vmatprep.mubr.f32.mxu0 0.0
  %7749 = vmatmul.mubr.f32.gmra.mrb[0].mxu0 %v7540
  %v7750 = vpop.f32.mrb[0].mxu0
  %v7751 = vadd.f32 0.0, %v7750
  %v7752 = vpop.f32.mrb[0].mxu0
  %7753 = vmatprep.mubr.f32.mxu0 0.0
  %7754 = vmatmul.mubr.f32.gmra.mrb[0].mxu0 %v7542
  %v7755 = vpop.f32.mrb[0].mxu0
  %v7756 = vadd.f32 0.0, %v7755
  %v7757 = vpop.f32.mrb[0].mxu0
  %7758 = vmatprep.mubr.f32.mxu0 0.0
  %7759 = vmatmul.mubr.f32.gmra.mrb[0].mxu0 %v7544
  %v7760 = vpop.f32.mrb[0].mxu0
  %v7761 = vadd.f32 0.0, %v7760
  %v7762 = vpop.f32.mrb[0].mxu0
  %7763 = vmatprep.mubr.f32.mxu0 0.0
  %7764 = vmatmul.mubr.f32.gmra.mrb[0].mxu0 %v7546
  %v7765 = vpop.f32.mrb[0].mxu0
  %v7766 = vadd.f32 0.0, %v7765
  %v7767 = vpop.f32.mrb[0].mxu0
  %7768 = vmatprep.mubr.f32.mxu0 0.0
  %7769 = vmatmul.mubr.f32.gmra.mrb[0].mxu0 %v7548
  %v7770 = vpop.f32.mrb[0].mxu0
  %v7771 = vadd.f32 0.0, %v7770
  %v7772 = vpop.f32.mrb[0].mxu0
  %7773 = vdwg.mxu0
  %v7774 = vrcp.pop %v7550
  %v7775 = vrcp.pop %v7552
  %v7776 = vrcp.pop %v7554
  %v7777 = vrcp.pop %v7556
  %v7778 = vrcp.pop %v7558
  %v7779 = vrcp.pop %v7560
  %v7780 = vrcp.pop %v7562
  %v7781 = vrcp.pop %v7564
  %v7782 = vrcp.pop %v7566
  %v7783 = vrcp.pop %v7568
  %v7784 = vrcp.pop %v7570
  %v7785 = vrcp.pop %v7572
  %v7786 = vrcp.pop %v7574
  %v7787 = vrcp.pop %v7576
  %v7788 = vrcp.pop %v7578
  %v7789 = vrcp.pop %v7580
  %v7790 = vmul.f32 %v7696, %v7774
  %v7791 = vmul.f32 %v7701, %v7775
  %v7792 = vmul.f32 %v7706, %v7776
  %v7793 = vmul.f32 %v7711, %v7777
  %v7794 = vmul.f32 %v7716, %v7778
  %v7795 = vmul.f32 %v7721, %v7779
  %v7796 = vmul.f32 %v7726, %v7780
  %v7797 = vmul.f32 %v7731, %v7781
  %v7798 = vmul.f32 %v7736, %v7782
  %v7799 = vmul.f32 %v7741, %v7783
  %v7800 = vmul.f32 %v7746, %v7784
  %v7801 = vmul.f32 %v7751, %v7785
  %v7802 = vmul.f32 %v7756, %v7786
  %v7803 = vmul.f32 %v7761, %v7787
  %v7804 = vmul.f32 %v7766, %v7788
  %v7805 = vmul.f32 %v7771, %v7789
  %7822 = vrot.lane.b32.xlu0 %v6852, 32
  %v7823 = vpop.permute.xlu0 %7822
  %7824 = vrot.lane.b32.xlu0 %v6853, 32
  %v7825 = vpop.permute.xlu0 %7824
  %7826 = vrot.lane.b32.xlu0 %v6854, 32
  %v7827 = vpop.permute.xlu0 %7826
  %7828 = vrot.lane.b32.xlu0 %v6855, 32
  %v7829 = vpop.permute.xlu0 %7828
  %7830 = vrot.lane.b32.xlu0 %v6856, 32
  %v7831 = vpop.permute.xlu0 %7830
  %7832 = vrot.lane.b32.xlu0 %v6857, 32
  %v7833 = vpop.permute.xlu0 %7832
  %7834 = vrot.lane.b32.xlu0 %v6858, 32
  %v7835 = vpop.permute.xlu0 %7834
  %7836 = vrot.lane.b32.xlu0 %v6859, 32
  %v7837 = vpop.permute.xlu0 %7836
  %7838 = vrot.lane.b32.xlu0 %v6860, 32
  %v7839 = vpop.permute.xlu0 %7838
  %7840 = vrot.lane.b32.xlu0 %v6861, 32
  %v7841 = vpop.permute.xlu0 %7840
  %7842 = vrot.lane.b32.xlu0 %v6862, 32
  %v7843 = vpop.permute.xlu0 %7842
  %7844 = vrot.lane.b32.xlu0 %v6863, 32
  %v7845 = vpop.permute.xlu0 %7844
  %7846 = vrot.lane.b32.xlu0 %v6864, 32
  %v7847 = vpop.permute.xlu0 %7846
  %7848 = vrot.lane.b32.xlu0 %v6865, 32
  %v7849 = vpop.permute.xlu0 %7848
  %7850 = vrot.lane.b32.xlu0 %v6866, 32
  %v7851 = vpop.permute.xlu0 %7850
  %7852 = vrot.lane.b32.xlu0 %v6867, 32
  %v7853 = vpop.permute.xlu0 %7852
  %7886 = vrot.lane.b32.xlu0 %v7321, 64
  %v7887 = vpop.permute.xlu0 %7886
  %7888 = vrot.lane.b32.xlu0 %v7322, 64
  %v7889 = vpop.permute.xlu0 %7888
  %7890 = vrot.lane.b32.xlu0 %v7323, 64
  %v7891 = vpop.permute.xlu0 %7890
  %7892 = vrot.lane.b32.xlu0 %v7324, 64
  %v7893 = vpop.permute.xlu0 %7892
  %7894 = vrot.lane.b32.xlu0 %v7325, 64
  %v7895 = vpop.permute.xlu0 %7894
  %7896 = vrot.lane.b32.xlu0 %v7326, 64
  %v7897 = vpop.permute.xlu0 %7896
  %7898 = vrot.lane.b32.xlu0 %v7327, 64
  %v7899 = vpop.permute.xlu0 %7898
  %7900 = vrot.lane.b32.xlu0 %v7328, 64
  %v7901 = vpop.permute.xlu0 %7900
  %7902 = vrot.lane.b32.xlu0 %v7329, 64
  %v7903 = vpop.permute.xlu0 %7902
  %7904 = vrot.lane.b32.xlu0 %v7330, 64
  %v7905 = vpop.permute.xlu0 %7904
  %7906 = vrot.lane.b32.xlu0 %v7331, 64
  %v7907 = vpop.permute.xlu0 %7906
  %7908 = vrot.lane.b32.xlu0 %v7332, 64
  %v7909 = vpop.permute.xlu0 %7908
  %7910 = vrot.lane.b32.xlu0 %v7333, 64
  %v7911 = vpop.permute.xlu0 %7910
  %7912 = vrot.lane.b32.xlu0 %v7334, 64
  %v7913 = vpop.permute.xlu0 %7912
  %7914 = vrot.lane.b32.xlu0 %v7335, 64
  %v7915 = vpop.permute.xlu0 %7914
  %7916 = vrot.lane.b32.xlu0 %v7336, 64
  %v7917 = vpop.permute.xlu0 %7916
  %7950 = vrot.lane.b32.xlu0 %v7790, 96
  %v7951 = vpop.permute.xlu0 %7950
  %7952 = vrot.lane.b32.xlu0 %v7791, 96
  %v7953 = vpop.permute.xlu0 %7952
  %7954 = vrot.lane.b32.xlu0 %v7792, 96
  %v7955 = vpop.permute.xlu0 %7954
  %7956 = vrot.lane.b32.xlu0 %v7793, 96
  %v7957 = vpop.permute.xlu0 %7956
  %7958 = vrot.lane.b32.xlu0 %v7794, 96
  %v7959 = vpop.permute.xlu0 %7958
  %7960 = vrot.lane.b32.xlu0 %v7795, 96
  %v7961 = vpop.permute.xlu0 %7960
  %7962 = vrot.lane.b32.xlu0 %v7796, 96
  %v7963 = vpop.permute.xlu0 %7962
  %7964 = vrot.lane.b32.xlu0 %v7797, 96
  %v7965 = vpop.permute.xlu0 %7964
  %7966 = vrot.lane.b32.xlu0 %v7798, 96
  %v7967 = vpop.permute.xlu0 %7966
  %7968 = vrot.lane.b32.xlu0 %v7799, 96
  %v7969 = vpop.permute.xlu0 %7968
  %7970 = vrot.lane.b32.xlu0 %v7800, 96
  %v7971 = vpop.permute.xlu0 %7970
  %7972 = vrot.lane.b32.xlu0 %v7801, 96
  %v7973 = vpop.permute.xlu0 %7972
  %7974 = vrot.lane.b32.xlu0 %v7802, 96
  %v7975 = vpop.permute.xlu0 %7974
  %7976 = vrot.lane.b32.xlu0 %v7803, 96
  %v7977 = vpop.permute.xlu0 %7976
  %7978 = vrot.lane.b32.xlu0 %v7804, 96
  %v7979 = vpop.permute.xlu0 %7978
  %7980 = vrot.lane.b32.xlu0 %v7805, 96
  %v7981 = vpop.permute.xlu0 %7980
  %v7998 = vsel %vm2554, %v6367, %v7823
  %v7999 = vsel %vm2554, %v6368, %v7825
  %v8000 = vsel %vm2554, %v6369, %v7827
  %v8001 = vsel %vm2554, %v6370, %v7829
  %v8002 = vsel %vm2554, %v6371, %v7831
  %v8003 = vsel %vm2554, %v6372, %v7833
  %v8004 = vsel %vm2554, %v6373, %v7835
  %v8005 = vsel %vm2554, %v6374, %v7837
  %v8006 = vsel %vm2554, %v6375, %v7839
  %v8007 = vsel %vm2554, %v6376, %v7841
  %v8008 = vsel %vm2554, %v6377, %v7843
  %v8009 = vsel %vm2554, %v6378, %v7845
  %v8010 = vsel %vm2554, %v6379, %v7847
  %v8011 = vsel %vm2554, %v6380, %v7849
  %v8012 = vsel %vm2554, %v6381, %v7851
  %v8013 = vsel %vm2554, %v6382, %v7853
  %v8014 = vsel %vm131, %v7998, %v7887
  %v8015 = vsel %vm131, %v7999, %v7889
  %v8016 = vsel %vm131, %v8000, %v7891
  %v8017 = vsel %vm131, %v8001, %v7893
  %v8018 = vsel %vm131, %v8002, %v7895
  %v8019 = vsel %vm131, %v8003, %v7897
  %v8020 = vsel %vm131, %v8004, %v7899
  %v8021 = vsel %vm131, %v8005, %v7901
  %v8022 = vsel %vm131, %v8006, %v7903
  %v8023 = vsel %vm131, %v8007, %v7905
  %v8024 = vsel %vm131, %v8008, %v7907
  %v8025 = vsel %vm131, %v8009, %v7909
  %v8026 = vsel %vm131, %v8010, %v7911
  %v8027 = vsel %vm131, %v8011, %v7913
  %v8028 = vsel %vm131, %v8012, %v7915
  %v8029 = vsel %vm131, %v8013, %v7917
  %v8030 = vsel %vm2587, %v8014, %v7951
  %v8031 = vsel %vm2587, %v8015, %v7953
  %v8032 = vsel %vm2587, %v8016, %v7955
  %v8033 = vsel %vm2587, %v8017, %v7957
  %v8034 = vsel %vm2587, %v8018, %v7959
  %v8035 = vsel %vm2587, %v8019, %v7961
  %v8036 = vsel %vm2587, %v8020, %v7963
  %v8037 = vsel %vm2587, %v8021, %v7965
  %v8038 = vsel %vm2587, %v8022, %v7967
  %v8039 = vsel %vm2587, %v8023, %v7969
  %v8040 = vsel %vm2587, %v8024, %v7971
  %v8041 = vsel %vm2587, %v8025, %v7973
  %v8042 = vsel %vm2587, %v8026, %v7975
  %v8043 = vsel %vm2587, %v8027, %v7977
  %v8044 = vsel %vm2587, %v8028, %v7979
  %v8045 = vsel %vm2587, %v8029, %v7981
  %v8047 = vlaneseq
  %v8048 = vshrl.u32 %v8047, 7
  %v8049 = vsub.s32 0, %v8048
  %v8050 = vrot.slane %v5623, %v8049
  %v8052 = vadd.f32 %v8030, %v8050
  %v8053 = vadd.f32 %v8031, %v8050
  %v8054 = vadd.f32 %v8032, %v8050
  %v8055 = vadd.f32 %v8033, %v8050
  %v8056 = vadd.f32 %v8034, %v8050
  %v8057 = vadd.f32 %v8035, %v8050
  %v8058 = vadd.f32 %v8036, %v8050
  %v8059 = vadd.f32 %v8037, %v8050
  %v8060 = vadd.f32 %v8038, %v8050
  %v8061 = vadd.f32 %v8039, %v8050
  %v8062 = vadd.f32 %v8040, %v8050
  %v8063 = vadd.f32 %v8041, %v8050
  %v8064 = vadd.f32 %v8042, %v8050
  %v8065 = vadd.f32 %v8043, %v8050
  %v8066 = vadd.f32 %v8044, %v8050
  %v8067 = vadd.f32 %v8045, %v8050
  %v8068 = vld [vmem:[%s17] sm:$0x1]
  %v8069 = vld [vmem:[%s18] sm:$0x1]
  %v8070 = vld [vmem:[%s19] sm:$0x1]
  %v8071 = vadd.f32 %v8052, %v8053
  %v8072 = vadd.f32 %v8071, %v8054
  %v8073 = vadd.f32 %v8072, %v8055
  %v8074 = vadd.f32 %v8073, %v8056
  %v8075 = vadd.f32 %v8074, %v8057
  %v8076 = vadd.f32 %v8075, %v8058
  %v8077 = vadd.f32 %v8076, %v8059
  %v8078 = vadd.f32 %v8077, %v8060
  %v8079 = vadd.f32 %v8078, %v8061
  %v8080 = vadd.f32 %v8079, %v8062
  %v8081 = vadd.f32 %v8080, %v8063
  %v8082 = vadd.f32 %v8081, %v8064
  %v8083 = vadd.f32 %v8082, %v8065
  %v8084 = vadd.f32 %v8083, %v8066
  %v8085 = vadd.f32 %v8084, %v8067
  %v8086 = vrot.slane %v8085, 4
  %v8087 = vadd.f32 %v8085, %v8086
  %v8088 = vrot.slane %v8087, 2
  %v8089 = vadd.f32 %v8087, %v8088
  %v8090 = vrot.slane %v8089, 1
  %v8091 = vadd.f32 %v8089, %v8090
  %v8092 = vmul.f32 %v8091, 0.0078125
  %v8093 = vmul.f32 %v8070, %v8092
  %v8095 = vlaneseq
  %v8096 = vshrl.u32 %v8095, 7
  %v8097 = vsub.s32 0, %v8096
  %v8098 = vrot.slane %v8093, %v8097
  %v8100 = vsub.f32 %v8052, %v8098
  %v8101 = vsub.f32 %v8053, %v8098
  %v8102 = vsub.f32 %v8054, %v8098
  %v8103 = vsub.f32 %v8055, %v8098
  %v8104 = vsub.f32 %v8056, %v8098
  %v8105 = vsub.f32 %v8057, %v8098
  %v8106 = vsub.f32 %v8058, %v8098
  %v8107 = vsub.f32 %v8059, %v8098
  %v8108 = vsub.f32 %v8060, %v8098
  %v8109 = vsub.f32 %v8061, %v8098
  %v8110 = vsub.f32 %v8062, %v8098
  %v8111 = vsub.f32 %v8063, %v8098
  %v8112 = vsub.f32 %v8064, %v8098
  %v8113 = vsub.f32 %v8065, %v8098
  %v8114 = vsub.f32 %v8066, %v8098
  %v8115 = vsub.f32 %v8067, %v8098
  %v8116 = vmul.f32 %v8100, %v8100
  %v8117 = vmul.f32 %v8101, %v8101
  %v8118 = vmul.f32 %v8102, %v8102
  %v8119 = vmul.f32 %v8103, %v8103
  %v8120 = vmul.f32 %v8104, %v8104
  %v8121 = vmul.f32 %v8105, %v8105
  %v8122 = vmul.f32 %v8106, %v8106
  %v8123 = vmul.f32 %v8107, %v8107
  %v8124 = vmul.f32 %v8108, %v8108
  %v8125 = vmul.f32 %v8109, %v8109
  %v8126 = vmul.f32 %v8110, %v8110
  %v8127 = vmul.f32 %v8111, %v8111
  %v8128 = vmul.f32 %v8112, %v8112
  %v8129 = vmul.f32 %v8113, %v8113
  %v8130 = vmul.f32 %v8114, %v8114
  %v8131 = vmul.f32 %v8115, %v8115
  %v8132 = vadd.f32 %v8116, %v8117
  %v8133 = vadd.f32 %v8132, %v8118
  %v8134 = vadd.f32 %v8133, %v8119
  %v8135 = vadd.f32 %v8134, %v8120
  %v8136 = vadd.f32 %v8135, %v8121
  %v8137 = vadd.f32 %v8136, %v8122
  %v8138 = vadd.f32 %v8137, %v8123
  %v8139 = vadd.f32 %v8138, %v8124
  %v8140 = vadd.f32 %v8139, %v8125
  %v8141 = vadd.f32 %v8140, %v8126
  %v8142 = vadd.f32 %v8141, %v8127
  %v8143 = vadd.f32 %v8142, %v8128
  %v8144 = vadd.f32 %v8143, %v8129
  %v8145 = vadd.f32 %v8144, %v8130
  %v8146 = vadd.f32 %v8145, %v8131
  %v8147 = vrot.slane %v8146, 4
  %v8148 = vadd.f32 %v8146, %v8147
  %v8149 = vrot.slane %v8148, 2
  %v8150 = vadd.f32 %v8148, %v8149
  %v8151 = vrot.slane %v8150, 1
  %v8152 = vadd.f32 %v8150, %v8151
  %v8153 = vmul.f32 %v8152, 0.0078125
  %v8155 = vlaneseq
  %v8156 = vshrl.u32 %v8155, 7
  %v8157 = vsub.s32 0, %v8156
  %v8158 = vrot.slane %v8068, %v8157
  %v8160 = vmul.f32 %v8158, %v8100
  %v8161 = vmul.f32 %v8158, %v8101
  %v8162 = vmul.f32 %v8158, %v8102
  %v8163 = vmul.f32 %v8158, %v8103
  %v8164 = vmul.f32 %v8158, %v8104
  %v8165 = vmul.f32 %v8158, %v8105
  %v8166 = vmul.f32 %v8158, %v8106
  %v8167 = vmul.f32 %v8158, %v8107
  %v8168 = vmul.f32 %v8158, %v8108
  %v8169 = vmul.f32 %v8158, %v8109
  %v8170 = vmul.f32 %v8158, %v8110
  %v8171 = vmul.f32 %v8158, %v8111
  %v8172 = vmul.f32 %v8158, %v8112
  %v8173 = vmul.f32 %v8158, %v8113
  %v8174 = vmul.f32 %v8158, %v8114
  %v8175 = vmul.f32 %v8158, %v8115
  %v8176 = vadd.f32 %v8153, 1e-05
  %v8177 = vrsqrt.pop %v8176
  %v8178 = vmul.f32 %v8160, %v8177
  %v8179 = vmul.f32 %v8161, %v8177
  %v8180 = vmul.f32 %v8162, %v8177
  %v8181 = vmul.f32 %v8163, %v8177
  %v8182 = vmul.f32 %v8164, %v8177
  %v8183 = vmul.f32 %v8165, %v8177
  %v8184 = vmul.f32 %v8166, %v8177
  %v8185 = vmul.f32 %v8167, %v8177
  %v8186 = vmul.f32 %v8168, %v8177
  %v8187 = vmul.f32 %v8169, %v8177
  %v8188 = vmul.f32 %v8170, %v8177
  %v8189 = vmul.f32 %v8171, %v8177
  %v8190 = vmul.f32 %v8172, %v8177
  %v8191 = vmul.f32 %v8173, %v8177
  %v8192 = vmul.f32 %v8174, %v8177
  %v8193 = vmul.f32 %v8175, %v8177
  %v8195 = vlaneseq
  %v8196 = vshrl.u32 %v8195, 7
  %v8197 = vsub.s32 0, %v8196
  %v8198 = vrot.slane %v8069, %v8197
  %v8200 = vadd.f32 %v8178, %v8198
  %v8201 = vadd.f32 %v8179, %v8198
  %v8202 = vadd.f32 %v8180, %v8198
  %v8203 = vadd.f32 %v8181, %v8198
  %v8204 = vadd.f32 %v8182, %v8198
  %v8205 = vadd.f32 %v8183, %v8198
  %v8206 = vadd.f32 %v8184, %v8198
  %v8207 = vadd.f32 %v8185, %v8198
  %v8208 = vadd.f32 %v8186, %v8198
  %v8209 = vadd.f32 %v8187, %v8198
  %v8210 = vadd.f32 %v8188, %v8198
  %v8211 = vadd.f32 %v8189, %v8198
  %v8212 = vadd.f32 %v8190, %v8198
  %v8213 = vadd.f32 %v8191, %v8198
  %v8214 = vadd.f32 %v8192, %v8198
  %v8215 = vadd.f32 %v8193, %v8198
  %v8216 = vmin.f32 %v8200, 0.0
  %v8217 = vmin.f32 %v8201, 0.0
  %v8218 = vmin.f32 %v8202, 0.0
  %v8219 = vmin.f32 %v8203, 0.0
  %v8220 = vmin.f32 %v8204, 0.0
  %v8221 = vmin.f32 %v8205, 0.0
  %v8222 = vmin.f32 %v8206, 0.0
  %v8223 = vmin.f32 %v8207, 0.0
  %v8224 = vmin.f32 %v8208, 0.0
  %v8225 = vmin.f32 %v8209, 0.0
  %v8226 = vmin.f32 %v8210, 0.0
  %v8227 = vmin.f32 %v8211, 0.0
  %v8228 = vmin.f32 %v8212, 0.0
  %v8229 = vmin.f32 %v8213, 0.0
  %v8230 = vmin.f32 %v8214, 0.0
  %v8231 = vmin.f32 %v8215, 0.0
  %v8232 = vmul.f32 %v8216, 1.442695
  %v8233 = vpow.pop %v8232
  %v8234 = vmul.f32 %v8217, 1.442695
  %v8235 = vpow.pop %v8234
  %v8236 = vmul.f32 %v8218, 1.442695
  %v8237 = vpow.pop %v8236
  %v8238 = vmul.f32 %v8219, 1.442695
  %v8239 = vpow.pop %v8238
  %v8240 = vmul.f32 %v8220, 1.442695
  %v8241 = vpow.pop %v8240
  %v8242 = vmul.f32 %v8221, 1.442695
  %v8243 = vpow.pop %v8242
  %v8244 = vmul.f32 %v8222, 1.442695
  %v8245 = vpow.pop %v8244
  %v8246 = vmul.f32 %v8223, 1.442695
  %v8247 = vpow.pop %v8246
  %v8248 = vmul.f32 %v8224, 1.442695
  %v8249 = vpow.pop %v8248
  %v8250 = vmul.f32 %v8225, 1.442695
  %v8251 = vpow.pop %v8250
  %v8252 = vmul.f32 %v8226, 1.442695
  %v8253 = vpow.pop %v8252
  %v8254 = vmul.f32 %v8227, 1.442695
  %v8255 = vpow.pop %v8254
  %v8256 = vmul.f32 %v8228, 1.442695
  %v8257 = vpow.pop %v8256
  %v8258 = vmul.f32 %v8229, 1.442695
  %v8259 = vpow.pop %v8258
  %v8260 = vmul.f32 %v8230, 1.442695
  %v8261 = vpow.pop %v8260
  %v8262 = vmul.f32 %v8231, 1.442695
  %v8263 = vpow.pop %v8262
  %v8264 = vsub.f32 %v8233, 1.0
  %v8265 = vsub.f32 %v8235, 1.0
  %v8266 = vsub.f32 %v8237, 1.0
  %v8267 = vsub.f32 %v8239, 1.0
  %v8268 = vsub.f32 %v8241, 1.0
  %v8269 = vsub.f32 %v8243, 1.0
  %v8270 = vsub.f32 %v8245, 1.0
  %v8271 = vsub.f32 %v8247, 1.0
  %v8272 = vsub.f32 %v8249, 1.0
  %v8273 = vsub.f32 %v8251, 1.0
  %v8274 = vsub.f32 %v8253, 1.0
  %v8275 = vsub.f32 %v8255, 1.0
  %v8276 = vsub.f32 %v8257, 1.0
  %v8277 = vsub.f32 %v8259, 1.0
  %v8278 = vsub.f32 %v8261, 1.0
  %v8279 = vsub.f32 %v8263, 1.0
  %vm8280 = vcmp.gt.f32.partialorder %v8200, 0.0
  %vm8281 = vcmp.gt.f32.partialorder %v8201, 0.0
  %vm8282 = vcmp.gt.f32.partialorder %v8202, 0.0
  %vm8283 = vcmp.gt.f32.partialorder %v8203, 0.0
  %vm8284 = vcmp.gt.f32.partialorder %v8204, 0.0
  %vm8285 = vcmp.gt.f32.partialorder %v8205, 0.0
  %vm8286 = vcmp.gt.f32.partialorder %v8206, 0.0
  %vm8287 = vcmp.gt.f32.partialorder %v8207, 0.0
  %vm8288 = vcmp.gt.f32.partialorder %v8208, 0.0
  %vm8289 = vcmp.gt.f32.partialorder %v8209, 0.0
  %vm8290 = vcmp.gt.f32.partialorder %v8210, 0.0
  %vm8291 = vcmp.gt.f32.partialorder %v8211, 0.0
  %vm8292 = vcmp.gt.f32.partialorder %v8212, 0.0
  %vm8293 = vcmp.gt.f32.partialorder %v8213, 0.0
  %vm8294 = vcmp.gt.f32.partialorder %v8214, 0.0
  %vm8295 = vcmp.gt.f32.partialorder %v8215, 0.0
  %v8296 = vsel %vm8280, %v8200, %v8264
  %v8297 = vsel %vm8281, %v8201, %v8265
  %v8298 = vsel %vm8282, %v8202, %v8266
  %v8299 = vsel %vm8283, %v8203, %v8267
  %v8300 = vsel %vm8284, %v8204, %v8268
  %v8301 = vsel %vm8285, %v8205, %v8269
  %v8302 = vsel %vm8286, %v8206, %v8270
  %v8303 = vsel %vm8287, %v8207, %v8271
  %v8304 = vsel %vm8288, %v8208, %v8272
  %v8305 = vsel %vm8289, %v8209, %v8273
  %v8306 = vsel %vm8290, %v8210, %v8274
  %v8307 = vsel %vm8291, %v8211, %v8275
  %v8308 = vsel %vm8292, %v8212, %v8276
  %v8309 = vsel %vm8293, %v8213, %v8277
  %v8310 = vsel %vm8294, %v8214, %v8278
  %v8311 = vsel %vm8295, %v8215, %v8279
  %v8312 = vld [vmem:[%s20] sm:$0xff]
  %v8313 = vld [vmem:[%s20 + $0x8] sm:$0xff]
  %v8314 = vld [vmem:[%s20 + $0x10] sm:$0xff]
  %v8315 = vld [vmem:[%s20 + $0x18] sm:$0xff]
  %v8316 = vld [vmem:[%s20 + $0x20] sm:$0xff]
  %v8317 = vld [vmem:[%s20 + $0x28] sm:$0xff]
  %v8318 = vld [vmem:[%s20 + $0x30] sm:$0xff]
  %v8319 = vld [vmem:[%s20 + $0x38] sm:$0xff]
  %v8320 = vld [vmem:[%s20 + $0x40] sm:$0xff]
  %v8321 = vld [vmem:[%s20 + $0x48] sm:$0xff]
  %v8322 = vld [vmem:[%s20 + $0x50] sm:$0xff]
  %v8323 = vld [vmem:[%s20 + $0x58] sm:$0xff]
  %v8324 = vld [vmem:[%s20 + $0x60] sm:$0xff]
  %v8325 = vld [vmem:[%s20 + $0x68] sm:$0xff]
  %v8326 = vld [vmem:[%s20 + $0x70] sm:$0xff]
  %v8327 = vld [vmem:[%s20 + $0x78] sm:$0xff]
  %v8328 = vld [vmem:[%s21] sm:$0xff]
  %v8329 = vld [vmem:[%s21 + $0x8] sm:$0xff]
  %v8330 = vld [vmem:[%s22] sm:$0x1]
  %8331 = vmatprep.subr.mxu0 0.0
  %8332 = vmatpush1.msra.mxu0 %v8312
  %8333 = vmatprep.subr.mxu0 0.0
  %8334 = vmatpush1.msra.mxu0 %v8313
  %8335 = vmatprep.subr.mxu0 0.0
  %8336 = vmatpush1.msra.mxu0 %v8314
  %8337 = vmatprep.subr.mxu0 0.0
  %8338 = vmatpush1.msra.mxu0 %v8315
  %8339 = vmatprep.subr.mxu0 0.0
  %8340 = vmatpush1.msra.mxu0 %v8316
  %8341 = vmatprep.subr.mxu0 0.0
  %8342 = vmatpush1.msra.mxu0 %v8317
  %8343 = vmatprep.subr.mxu0 0.0
  %8344 = vmatpush1.msra.mxu0 %v8318
  %8345 = vmatprep.subr.mxu0 0.0
  %8346 = vmatpush1.msra.mxu0 %v8319
  %8347 = vmatprep.subr.mxu0 0.0
  %8348 = vmatpush1.msra.mxu0 %v8320
  %8349 = vmatprep.subr.mxu0 0.0
  %8350 = vmatpush1.msra.mxu0 %v8321
  %8351 = vmatprep.subr.mxu0 0.0
  %8352 = vmatpush1.msra.mxu0 %v8322
  %8353 = vmatprep.subr.mxu0 0.0
  %8354 = vmatpush1.msra.mxu0 %v8323
  %8355 = vmatprep.subr.mxu0 0.0
  %8356 = vmatpush1.msra.mxu0 %v8324
  %8357 = vmatprep.subr.mxu0 0.0
  %8358 = vmatpush1.msra.mxu0 %v8325
  %8359 = vmatprep.subr.mxu0 0.0
  %8360 = vmatpush1.msra.mxu0 %v8326
  %8361 = vmatprep.subr.mxu0 0.0
  %8362 = vmatpush1.msra.mxu0 %v8327
  %8363 = vmatprep.subr.mxu0 0.0
  %8364 = vmatpush1.msra.mxu0 0.0
  %8365 = vmatprep.subr.mxu0 0.0
  %8366 = vmatpush1.msra.mxu0 0.0
  %8367 = vmatprep.subr.mxu0 0.0
  %8368 = vmatpush1.msra.mxu0 0.0
  %8369 = vmatprep.subr.mxu0 0.0
  %8370 = vmatpush1.msra.mxu0 0.0
  %8371 = vmatprep.subr.mxu0 0.0
  %8372 = vmatpush1.msra.mxu0 0.0
  %8373 = vmatprep.subr.mxu0 0.0
  %8374 = vmatpush1.msra.mxu0 0.0
  %8375 = vmatprep.subr.mxu0 0.0
  %8376 = vmatpush1.msra.mxu0 0.0
  %8377 = vmatprep.subr.mxu0 0.0
  %8378 = vmatpush1.msra.mxu0 0.0
  %8379 = vmatprep.subr.mxu0 0.0
  %8380 = vmatpush1.msra.mxu0 0.0
  %8381 = vmatprep.subr.mxu0 0.0
  %8382 = vmatpush1.msra.mxu0 0.0
  %8383 = vmatprep.subr.mxu0 0.0
  %8384 = vmatpush1.msra.mxu0 0.0
  %8385 = vmatprep.subr.mxu0 0.0
  %8386 = vmatpush1.msra.mxu0 0.0
  %8387 = vmatprep.subr.mxu0 0.0
  %8388 = vmatpush1.msra.mxu0 0.0
  %8389 = vmatprep.subr.mxu0 0.0
  %8390 = vmatpush1.msra.mxu0 0.0
  %8391 = vmatprep.subr.mxu0 0.0
  %8392 = vmatpush1.msra.mxu0 0.0
  %8393 = vmatprep.subr.mxu0 0.0
  %8394 = vmatpush1.msra.mxu0 0.0
  %8395 = vmatprep.mubr.f32.mxu0 0.0
  %8396 = vmatmul.mubr.f32.gmra.mrb[0].mxu0 %v8296
  %v8397 = vpop.f32.mrb[0].mxu0
  %v8398 = vadd.f32 0.0, %v8397
  %v8399 = vpop.f32.mrb[0].mxu0
  %8400 = vmatprep.mubr.f32.mxu0 0.0
  %8401 = vmatmul.mubr.f32.gmra.mrb[0].mxu0 %v8297
  %v8402 = vpop.f32.mrb[0].mxu0
  %v8403 = vadd.f32 0.0, %v8402
  %v8404 = vpop.f32.mrb[0].mxu0
  %8405 = vmatprep.mubr.f32.mxu0 0.0
  %8406 = vmatmul.mubr.f32.gmra.mrb[0].mxu0 %v8298
  %v8407 = vpop.f32.mrb[0].mxu0
  %v8408 = vadd.f32 0.0, %v8407
  %v8409 = vpop.f32.mrb[0].mxu0
  %8410 = vmatprep.mubr.f32.mxu0 0.0
  %8411 = vmatmul.mubr.f32.gmra.mrb[0].mxu0 %v8299
  %v8412 = vpop.f32.mrb[0].mxu0
  %v8413 = vadd.f32 0.0, %v8412
  %v8414 = vpop.f32.mrb[0].mxu0
  %8415 = vmatprep.mubr.f32.mxu0 0.0
  %8416 = vmatmul.mubr.f32.gmra.mrb[0].mxu0 %v8300
  %v8417 = vpop.f32.mrb[0].mxu0
  %v8418 = vadd.f32 0.0, %v8417
  %v8419 = vpop.f32.mrb[0].mxu0
  %8420 = vmatprep.mubr.f32.mxu0 0.0
  %8421 = vmatmul.mubr.f32.gmra.mrb[0].mxu0 %v8301
  %v8422 = vpop.f32.mrb[0].mxu0
  %v8423 = vadd.f32 0.0, %v8422
  %v8424 = vpop.f32.mrb[0].mxu0
  %8425 = vmatprep.mubr.f32.mxu0 0.0
  %8426 = vmatmul.mubr.f32.gmra.mrb[0].mxu0 %v8302
  %v8427 = vpop.f32.mrb[0].mxu0
  %v8428 = vadd.f32 0.0, %v8427
  %v8429 = vpop.f32.mrb[0].mxu0
  %8430 = vmatprep.mubr.f32.mxu0 0.0
  %8431 = vmatmul.mubr.f32.gmra.mrb[0].mxu0 %v8303
  %v8432 = vpop.f32.mrb[0].mxu0
  %v8433 = vadd.f32 0.0, %v8432
  %v8434 = vpop.f32.mrb[0].mxu0
  %8435 = vmatprep.mubr.f32.mxu0 0.0
  %8436 = vmatmul.mubr.f32.gmra.mrb[0].mxu0 %v8304
  %v8437 = vpop.f32.mrb[0].mxu0
  %v8438 = vadd.f32 0.0, %v8437
  %v8439 = vpop.f32.mrb[0].mxu0
  %8440 = vmatprep.mubr.f32.mxu0 0.0
  %8441 = vmatmul.mubr.f32.gmra.mrb[0].mxu0 %v8305
  %v8442 = vpop.f32.mrb[0].mxu0
  %v8443 = vadd.f32 0.0, %v8442
  %v8444 = vpop.f32.mrb[0].mxu0
  %8445 = vmatprep.mubr.f32.mxu0 0.0
  %8446 = vmatmul.mubr.f32.gmra.mrb[0].mxu0 %v8306
  %v8447 = vpop.f32.mrb[0].mxu0
  %v8448 = vadd.f32 0.0, %v8447
  %v8449 = vpop.f32.mrb[0].mxu0
  %8450 = vmatprep.mubr.f32.mxu0 0.0
  %8451 = vmatmul.mubr.f32.gmra.mrb[0].mxu0 %v8307
  %v8452 = vpop.f32.mrb[0].mxu0
  %v8453 = vadd.f32 0.0, %v8452
  %v8454 = vpop.f32.mrb[0].mxu0
  %8455 = vmatprep.mubr.f32.mxu0 0.0
  %8456 = vmatmul.mubr.f32.gmra.mrb[0].mxu0 %v8308
  %v8457 = vpop.f32.mrb[0].mxu0
  %v8458 = vadd.f32 0.0, %v8457
  %v8459 = vpop.f32.mrb[0].mxu0
  %8460 = vmatprep.mubr.f32.mxu0 0.0
  %8461 = vmatmul.mubr.f32.gmra.mrb[0].mxu0 %v8309
  %v8462 = vpop.f32.mrb[0].mxu0
  %v8463 = vadd.f32 0.0, %v8462
  %v8464 = vpop.f32.mrb[0].mxu0
  %8465 = vmatprep.mubr.f32.mxu0 0.0
  %8466 = vmatmul.mubr.f32.gmra.mrb[0].mxu0 %v8310
  %v8467 = vpop.f32.mrb[0].mxu0
  %v8468 = vadd.f32 0.0, %v8467
  %v8469 = vpop.f32.mrb[0].mxu0
  %8470 = vmatprep.mubr.f32.mxu0 0.0
  %8471 = vmatmul.mubr.f32.gmra.mrb[0].mxu0 %v8311
  %v8472 = vpop.f32.mrb[0].mxu0
  %v8473 = vadd.f32 0.0, %v8472
  %v8474 = vpop.f32.mrb[0].mxu0
  %8475 = vdwg.mxu0
  %vm8476 = vcmask 130048
  %v8478 = vsel %vm8476, %v8398, 0
  %v8481 = vsel %vm8476, %v8403, 0
  %v8484 = vsel %vm8476, %v8408, 0
  %v8487 = vsel %vm8476, %v8413, 0
  %v8490 = vsel %vm8476, %v8418, 0
  %v8493 = vsel %vm8476, %v8423, 0
  %v8496 = vsel %vm8476, %v8428, 0
  %v8499 = vsel %vm8476, %v8433, 0
  %v8502 = vsel %vm8476, %v8438, 0
  %v8505 = vsel %vm8476, %v8443, 0
  %v8508 = vsel %vm8476, %v8448, 0
  %v8511 = vsel %vm8476, %v8453, 0
  %v8514 = vsel %vm8476, %v8458, 0
  %v8517 = vsel %vm8476, %v8463, 0
  %v8520 = vsel %vm8476, %v8468, 0
  %v8523 = vsel %vm8476, %v8473, 0
  %8525 = vmatprep.subr.mxu0 0.0
  %8526 = vmatpush1.msra.mxu0 %v8328
  %8527 = vmatprep.subr.mxu0 0.0
  %8528 = vmatpush1.msra.mxu0 %v8329
  %8529 = vmatprep.subr.mxu0 0.0
  %8530 = vmatpush1.msra.mxu0 0.0
  %8531 = vmatprep.subr.mxu0 0.0
  %8532 = vmatpush1.msra.mxu0 0.0
  %8533 = vmatprep.subr.mxu0 0.0
  %8534 = vmatpush1.msra.mxu0 0.0
  %8535 = vmatprep.subr.mxu0 0.0
  %8536 = vmatpush1.msra.mxu0 0.0
  %8537 = vmatprep.subr.mxu0 0.0
  %8538 = vmatpush1.msra.mxu0 0.0
  %8539 = vmatprep.subr.mxu0 0.0
  %8540 = vmatpush1.msra.mxu0 0.0
  %8541 = vmatprep.subr.mxu0 0.0
  %8542 = vmatpush1.msra.mxu0 0.0
  %8543 = vmatprep.subr.mxu0 0.0
  %8544 = vmatpush1.msra.mxu0 0.0
  %8545 = vmatprep.subr.mxu0 0.0
  %8546 = vmatpush1.msra.mxu0 0.0
  %8547 = vmatprep.subr.mxu0 0.0
  %8548 = vmatpush1.msra.mxu0 0.0
  %8549 = vmatprep.subr.mxu0 0.0
  %8550 = vmatpush1.msra.mxu0 0.0
  %8551 = vmatprep.subr.mxu0 0.0
  %8552 = vmatpush1.msra.mxu0 0.0
  %8553 = vmatprep.subr.mxu0 0.0
  %8554 = vmatpush1.msra.mxu0 0.0
  %8555 = vmatprep.subr.mxu0 0.0
  %8556 = vmatpush1.msra.mxu0 0.0
  %8557 = vmatprep.subr.mxu0 0.0
  %8558 = vmatpush1.msra.mxu0 0.0
  %8559 = vmatprep.subr.mxu0 0.0
  %8560 = vmatpush1.msra.mxu0 0.0
  %8561 = vmatprep.subr.mxu0 0.0
  %8562 = vmatpush1.msra.mxu0 0.0
  %8563 = vmatprep.subr.mxu0 0.0
  %8564 = vmatpush1.msra.mxu0 0.0
  %8565 = vmatprep.subr.mxu0 0.0
  %8566 = vmatpush1.msra.mxu0 0.0
  %8567 = vmatprep.subr.mxu0 0.0
  %8568 = vmatpush1.msra.mxu0 0.0
  %8569 = vmatprep.subr.mxu0 0.0
  %8570 = vmatpush1.msra.mxu0 0.0
  %8571 = vmatprep.subr.mxu0 0.0
  %8572 = vmatpush1.msra.mxu0 0.0
  %8573 = vmatprep.subr.mxu0 0.0
  %8574 = vmatpush1.msra.mxu0 0.0
  %8575 = vmatprep.subr.mxu0 0.0
  %8576 = vmatpush1.msra.mxu0 0.0
  %8577 = vmatprep.subr.mxu0 0.0
  %8578 = vmatpush1.msra.mxu0 0.0
  %8579 = vmatprep.subr.mxu0 0.0
  %8580 = vmatpush1.msra.mxu0 0.0
  %8581 = vmatprep.subr.mxu0 0.0
  %8582 = vmatpush1.msra.mxu0 0.0
  %8583 = vmatprep.subr.mxu0 0.0
  %8584 = vmatpush1.msra.mxu0 0.0
  %8585 = vmatprep.subr.mxu0 0.0
  %8586 = vmatpush1.msra.mxu0 0.0
  %8587 = vmatprep.subr.mxu0 0.0
  %8588 = vmatpush1.msra.mxu0 0.0
  %8589 = vmatprep.mubr.f32.mxu0 0.0
  %8590 = vmatmul.mubr.f32.gmra.mrb[0].mxu0 %v8478
  %v8591 = vpop.f32.mrb[0].mxu0
  %v8592 = vadd.f32 0.0, %v8591
  %v8593 = vpop.f32.mrb[0].mxu0
  %8594 = vmatprep.mubr.f32.mxu0 0.0
  %8595 = vmatmul.mubr.f32.gmra.mrb[0].mxu0 %v8481
  %v8596 = vpop.f32.mrb[0].mxu0
  %v8597 = vadd.f32 0.0, %v8596
  %v8598 = vpop.f32.mrb[0].mxu0
  %8599 = vmatprep.mubr.f32.mxu0 0.0
  %8600 = vmatmul.mubr.f32.gmra.mrb[0].mxu0 %v8484
  %v8601 = vpop.f32.mrb[0].mxu0
  %v8602 = vadd.f32 0.0, %v8601
  %v8603 = vpop.f32.mrb[0].mxu0
  %8604 = vmatprep.mubr.f32.mxu0 0.0
  %8605 = vmatmul.mubr.f32.gmra.mrb[0].mxu0 %v8487
  %v8606 = vpop.f32.mrb[0].mxu0
  %v8607 = vadd.f32 0.0, %v8606
  %v8608 = vpop.f32.mrb[0].mxu0
  %8609 = vmatprep.mubr.f32.mxu0 0.0
  %8610 = vmatmul.mubr.f32.gmra.mrb[0].mxu0 %v8490
  %v8611 = vpop.f32.mrb[0].mxu0
  %v8612 = vadd.f32 0.0, %v8611
  %v8613 = vpop.f32.mrb[0].mxu0
  %8614 = vmatprep.mubr.f32.mxu0 0.0
  %8615 = vmatmul.mubr.f32.gmra.mrb[0].mxu0 %v8493
  %v8616 = vpop.f32.mrb[0].mxu0
  %v8617 = vadd.f32 0.0, %v8616
  %v8618 = vpop.f32.mrb[0].mxu0
  %8619 = vmatprep.mubr.f32.mxu0 0.0
  %8620 = vmatmul.mubr.f32.gmra.mrb[0].mxu0 %v8496
  %v8621 = vpop.f32.mrb[0].mxu0
  %v8622 = vadd.f32 0.0, %v8621
  %v8623 = vpop.f32.mrb[0].mxu0
  %8624 = vmatprep.mubr.f32.mxu0 0.0
  %8625 = vmatmul.mubr.f32.gmra.mrb[0].mxu0 %v8499
  %v8626 = vpop.f32.mrb[0].mxu0
  %v8627 = vadd.f32 0.0, %v8626
  %v8628 = vpop.f32.mrb[0].mxu0
  %8629 = vmatprep.mubr.f32.mxu0 0.0
  %8630 = vmatmul.mubr.f32.gmra.mrb[0].mxu0 %v8502
  %v8631 = vpop.f32.mrb[0].mxu0
  %v8632 = vadd.f32 0.0, %v8631
  %v8633 = vpop.f32.mrb[0].mxu0
  %8634 = vmatprep.mubr.f32.mxu0 0.0
  %8635 = vmatmul.mubr.f32.gmra.mrb[0].mxu0 %v8505
  %v8636 = vpop.f32.mrb[0].mxu0
  %v8637 = vadd.f32 0.0, %v8636
  %v8638 = vpop.f32.mrb[0].mxu0
  %8639 = vmatprep.mubr.f32.mxu0 0.0
  %8640 = vmatmul.mubr.f32.gmra.mrb[0].mxu0 %v8508
  %v8641 = vpop.f32.mrb[0].mxu0
  %v8642 = vadd.f32 0.0, %v8641
  %v8643 = vpop.f32.mrb[0].mxu0
  %8644 = vmatprep.mubr.f32.mxu0 0.0
  %8645 = vmatmul.mubr.f32.gmra.mrb[0].mxu0 %v8511
  %v8646 = vpop.f32.mrb[0].mxu0
  %v8647 = vadd.f32 0.0, %v8646
  %v8648 = vpop.f32.mrb[0].mxu0
  %8649 = vmatprep.mubr.f32.mxu0 0.0
  %8650 = vmatmul.mubr.f32.gmra.mrb[0].mxu0 %v8514
  %v8651 = vpop.f32.mrb[0].mxu0
  %v8652 = vadd.f32 0.0, %v8651
  %v8653 = vpop.f32.mrb[0].mxu0
  %8654 = vmatprep.mubr.f32.mxu0 0.0
  %8655 = vmatmul.mubr.f32.gmra.mrb[0].mxu0 %v8517
  %v8656 = vpop.f32.mrb[0].mxu0
  %v8657 = vadd.f32 0.0, %v8656
  %v8658 = vpop.f32.mrb[0].mxu0
  %8659 = vmatprep.mubr.f32.mxu0 0.0
  %8660 = vmatmul.mubr.f32.gmra.mrb[0].mxu0 %v8520
  %v8661 = vpop.f32.mrb[0].mxu0
  %v8662 = vadd.f32 0.0, %v8661
  %v8663 = vpop.f32.mrb[0].mxu0
  %8664 = vmatprep.mubr.f32.mxu0 0.0
  %8665 = vmatmul.mubr.f32.gmra.mrb[0].mxu0 %v8523
  %v8666 = vpop.f32.mrb[0].mxu0
  %v8667 = vadd.f32 0.0, %v8666
  %v8668 = vpop.f32.mrb[0].mxu0
  %8669 = vdwg.mxu0
  %8670 = vxpose.xlu0.b32.start [1/16] %v8592, 128
  %8671 = vxpose.xlu0.b32.cont [2/16] %v8597, 128
  %8672 = vxpose.xlu0.b32.cont [3/16] %v8602, 128
  %8673 = vxpose.xlu0.b32.cont [4/16] %v8607, 128
  %8674 = vxpose.xlu0.b32.cont [5/16] %v8612, 128
  %8675 = vxpose.xlu0.b32.cont [6/16] %v8617, 128
  %8676 = vxpose.xlu0.b32.cont [7/16] %v8622, 128
  %8677 = vxpose.xlu0.b32.cont [8/16] %v8627, 128
  %8678 = vxpose.xlu0.b32.cont [9/16] %v8632, 128
  %8679 = vxpose.xlu0.b32.cont [10/16] %v8637, 128
  %8680 = vxpose.xlu0.b32.cont [11/16] %v8642, 128
  %8681 = vxpose.xlu0.b32.cont [12/16] %v8647, 128
  %8682 = vxpose.xlu0.b32.cont [13/16] %v8652, 128
  %8683 = vxpose.xlu0.b32.cont [14/16] %v8657, 128
  %8684 = vxpose.xlu0.b32.cont [15/16] %v8662, 128
  %8685 = vxpose.xlu0.b32.end [16/16] %v8667, 128
  %v8686 = vpop.trf.xlu0
  %v8687 = vpop.trf.xlu0
  %v8688 = vpop.trf.xlu0
  %v8689 = vpop.trf.xlu0
  %v8690 = vpop.trf.xlu0
  %v8691 = vpop.trf.xlu0
  %v8692 = vpop.trf.xlu0
  %v8693 = vpop.trf.xlu0
  %v8694 = vpop.trf.xlu0
  %v8695 = vpop.trf.xlu0
  %v8696 = vpop.trf.xlu0
  %v8697 = vpop.trf.xlu0
  %v8698 = vpop.trf.xlu0
  %v8699 = vpop.trf.xlu0
  %v8700 = vpop.trf.xlu0
  %v8701 = vpop.trf.xlu0
  %8703 = vset.pattern.permute.xlu0 0
  %8704 = vperm.xlu0 %8703, %v8592
  %v8705 = vpop.permute.xlu0 %8704
  %8708 = vset.pattern.permute.xlu0 0
  %8709 = vperm.xlu0 %8708, %v8597
  %v8710 = vpop.permute.xlu0 %8709
  %8713 = vset.pattern.permute.xlu0 0
  %8714 = vperm.xlu0 %8713, %v8602
  %v8715 = vpop.permute.xlu0 %8714
  %8718 = vset.pattern.permute.xlu0 0
  %8719 = vperm.xlu0 %8718, %v8607
  %v8720 = vpop.permute.xlu0 %8719
  %8723 = vset.pattern.permute.xlu0 0
  %8724 = vperm.xlu0 %8723, %v8612
  %v8725 = vpop.permute.xlu0 %8724
  %8728 = vset.pattern.permute.xlu0 0
  %8729 = vperm.xlu0 %8728, %v8617
  %v8730 = vpop.permute.xlu0 %8729
  %8733 = vset.pattern.permute.xlu0 0
  %8734 = vperm.xlu0 %8733, %v8622
  %v8735 = vpop.permute.xlu0 %8734
  %8738 = vset.pattern.permute.xlu0 0
  %8739 = vperm.xlu0 %8738, %v8627
  %v8740 = vpop.permute.xlu0 %8739
  %8743 = vset.pattern.permute.xlu0 0
  %8744 = vperm.xlu0 %8743, %v8632
  %v8745 = vpop.permute.xlu0 %8744
  %8748 = vset.pattern.permute.xlu0 0
  %8749 = vperm.xlu0 %8748, %v8637
  %v8750 = vpop.permute.xlu0 %8749
  %8753 = vset.pattern.permute.xlu0 0
  %8754 = vperm.xlu0 %8753, %v8642
  %v8755 = vpop.permute.xlu0 %8754
  %8758 = vset.pattern.permute.xlu0 0
  %8759 = vperm.xlu0 %8758, %v8647
  %v8760 = vpop.permute.xlu0 %8759
  %8763 = vset.pattern.permute.xlu0 0
  %8764 = vperm.xlu0 %8763, %v8652
  %v8765 = vpop.permute.xlu0 %8764
  %8768 = vset.pattern.permute.xlu0 0
  %8769 = vperm.xlu0 %8768, %v8657
  %v8770 = vpop.permute.xlu0 %8769
  %8773 = vset.pattern.permute.xlu0 0
  %8774 = vperm.xlu0 %8773, %v8662
  %v8775 = vpop.permute.xlu0 %8774
  %8778 = vset.pattern.permute.xlu0 0
  %8779 = vperm.xlu0 %8778, %v8667
  %v8780 = vpop.permute.xlu0 %8779
  %v8782 = vlaneseq
  %v8783 = vshrl.u32 %v8782, 7
  %v8784 = vsub.s32 1, %v8783
  %v8785 = vrot.slane %v8686, %v8784
  %v8786 = vadd.f32 %v8705, %v8785
  %v8787 = vadd.f32 %v8710, %v8785
  %v8788 = vadd.f32 %v8715, %v8785
  %v8789 = vadd.f32 %v8720, %v8785
  %v8790 = vadd.f32 %v8725, %v8785
  %v8791 = vadd.f32 %v8730, %v8785
  %v8792 = vadd.f32 %v8735, %v8785
  %v8793 = vadd.f32 %v8740, %v8785
  %v8794 = vadd.f32 %v8745, %v8785
  %v8795 = vadd.f32 %v8750, %v8785
  %v8796 = vadd.f32 %v8755, %v8785
  %v8797 = vadd.f32 %v8760, %v8785
  %v8798 = vadd.f32 %v8765, %v8785
  %v8799 = vadd.f32 %v8770, %v8785
  %v8800 = vadd.f32 %v8775, %v8785
  %v8801 = vadd.f32 %v8780, %v8785
  %v8802 = vmul.f32 %v8786, 0.2
  %v8803 = vmul.f32 %v8787, 0.2
  %v8804 = vmul.f32 %v8788, 0.2
  %v8805 = vmul.f32 %v8789, 0.2
  %v8806 = vmul.f32 %v8790, 0.2
  %v8807 = vmul.f32 %v8791, 0.2
  %v8808 = vmul.f32 %v8792, 0.2
  %v8809 = vmul.f32 %v8793, 0.2
  %v8810 = vmul.f32 %v8794, 0.2
  %v8811 = vmul.f32 %v8795, 0.2
  %v8812 = vmul.f32 %v8796, 0.2
  %v8813 = vmul.f32 %v8797, 0.2
  %v8814 = vmul.f32 %v8798, 0.2
  %v8815 = vmul.f32 %v8799, 0.2
  %v8816 = vmul.f32 %v8800, 0.2
  %v8817 = vmul.f32 %v8801, 0.2
  %v8818 = vmax.f32 %v8786, %v8802
  %v8819 = vmax.f32 %v8787, %v8803
  %v8820 = vmax.f32 %v8788, %v8804
  %v8821 = vmax.f32 %v8789, %v8805
  %v8822 = vmax.f32 %v8790, %v8806
  %v8823 = vmax.f32 %v8791, %v8807
  %v8824 = vmax.f32 %v8792, %v8808
  %v8825 = vmax.f32 %v8793, %v8809
  %v8826 = vmax.f32 %v8794, %v8810
  %v8827 = vmax.f32 %v8795, %v8811
  %v8828 = vmax.f32 %v8796, %v8812
  %v8829 = vmax.f32 %v8797, %v8813
  %v8830 = vmax.f32 %v8798, %v8814
  %v8831 = vmax.f32 %v8799, %v8815
  %v8832 = vmax.f32 %v8800, %v8816
  %v8833 = vmax.f32 %v8801, %v8817
  %v8834 = vadd.f32 %v8818, %v74
  %v8835 = vadd.f32 %v8819, %v75
  %v8836 = vadd.f32 %v8820, %v76
  %v8837 = vadd.f32 %v8821, %v77
  %v8838 = vadd.f32 %v8822, %v78
  %v8839 = vadd.f32 %v8823, %v79
  %v8840 = vadd.f32 %v8824, %v80
  %v8841 = vadd.f32 %v8825, %v81
  %v8842 = vadd.f32 %v8826, %v82
  %v8843 = vadd.f32 %v8827, %v83
  %v8844 = vadd.f32 %v8828, %v84
  %v8845 = vadd.f32 %v8829, %v85
  %v8846 = vadd.f32 %v8830, %v86
  %v8847 = vadd.f32 %v8831, %v87
  %v8848 = vadd.f32 %v8832, %v88
  %v8849 = vadd.f32 %v8833, %v89
  %8850 = vmax.xlane.f32.xlu0 %v8834
  %v8851 = vpop.xlane.xlu0 %8850
  %8852 = vmax.xlane.f32.xlu0 %v8835
  %v8853 = vpop.xlane.xlu0 %8852
  %8854 = vmax.xlane.f32.xlu0 %v8836
  %v8855 = vpop.xlane.xlu0 %8854
  %8856 = vmax.xlane.f32.xlu0 %v8837
  %v8857 = vpop.xlane.xlu0 %8856
  %8858 = vmax.xlane.f32.xlu0 %v8838
  %v8859 = vpop.xlane.xlu0 %8858
  %8860 = vmax.xlane.f32.xlu0 %v8839
  %v8861 = vpop.xlane.xlu0 %8860
  %8862 = vmax.xlane.f32.xlu0 %v8840
  %v8863 = vpop.xlane.xlu0 %8862
  %8864 = vmax.xlane.f32.xlu0 %v8841
  %v8865 = vpop.xlane.xlu0 %8864
  %8866 = vmax.xlane.f32.xlu0 %v8842
  %v8867 = vpop.xlane.xlu0 %8866
  %8868 = vmax.xlane.f32.xlu0 %v8843
  %v8869 = vpop.xlane.xlu0 %8868
  %8870 = vmax.xlane.f32.xlu0 %v8844
  %v8871 = vpop.xlane.xlu0 %8870
  %8872 = vmax.xlane.f32.xlu0 %v8845
  %v8873 = vpop.xlane.xlu0 %8872
  %8874 = vmax.xlane.f32.xlu0 %v8846
  %v8875 = vpop.xlane.xlu0 %8874
  %8876 = vmax.xlane.f32.xlu0 %v8847
  %v8877 = vpop.xlane.xlu0 %8876
  %8878 = vmax.xlane.f32.xlu0 %v8848
  %v8879 = vpop.xlane.xlu0 %8878
  %8880 = vmax.xlane.f32.xlu0 %v8849
  %v8881 = vpop.xlane.xlu0 %8880
  %v8882 = vsub.f32 %v8834, %v8851
  %v8883 = vsub.f32 %v8835, %v8853
  %v8884 = vsub.f32 %v8836, %v8855
  %v8885 = vsub.f32 %v8837, %v8857
  %v8886 = vsub.f32 %v8838, %v8859
  %v8887 = vsub.f32 %v8839, %v8861
  %v8888 = vsub.f32 %v8840, %v8863
  %v8889 = vsub.f32 %v8841, %v8865
  %v8890 = vsub.f32 %v8842, %v8867
  %v8891 = vsub.f32 %v8843, %v8869
  %v8892 = vsub.f32 %v8844, %v8871
  %v8893 = vsub.f32 %v8845, %v8873
  %v8894 = vsub.f32 %v8846, %v8875
  %v8895 = vsub.f32 %v8847, %v8877
  %v8896 = vsub.f32 %v8848, %v8879
  %v8897 = vsub.f32 %v8849, %v8881
  %v8898 = vmul.f32 %v8882, 1.442695
  %v8899 = vpow.pop %v8898
  %v8900 = vmul.f32 %v8883, 1.442695
  %v8901 = vpow.pop %v8900
  %v8902 = vmul.f32 %v8884, 1.442695
  %v8903 = vpow.pop %v8902
  %v8904 = vmul.f32 %v8885, 1.442695
  %v8905 = vpow.pop %v8904
  %v8906 = vmul.f32 %v8886, 1.442695
  %v8907 = vpow.pop %v8906
  %v8908 = vmul.f32 %v8887, 1.442695
  %v8909 = vpow.pop %v8908
  %v8910 = vmul.f32 %v8888, 1.442695
  %v8911 = vpow.pop %v8910
  %v8912 = vmul.f32 %v8889, 1.442695
  %v8913 = vpow.pop %v8912
  %v8914 = vmul.f32 %v8890, 1.442695
  %v8915 = vpow.pop %v8914
  %v8916 = vmul.f32 %v8891, 1.442695
  %v8917 = vpow.pop %v8916
  %v8918 = vmul.f32 %v8892, 1.442695
  %v8919 = vpow.pop %v8918
  %v8920 = vmul.f32 %v8893, 1.442695
  %v8921 = vpow.pop %v8920
  %v8922 = vmul.f32 %v8894, 1.442695
  %v8923 = vpow.pop %v8922
  %v8924 = vmul.f32 %v8895, 1.442695
  %v8925 = vpow.pop %v8924
  %v8926 = vmul.f32 %v8896, 1.442695
  %v8927 = vpow.pop %v8926
  %v8928 = vmul.f32 %v8897, 1.442695
  %v8929 = vpow.pop %v8928
  %8930 = vadd.xlane.f32.xlu0 %v8899
  %v8931 = vpop.xlane.xlu0 %8930
  %8932 = vadd.xlane.f32.xlu0 %v8901
  %v8933 = vpop.xlane.xlu0 %8932
  %8934 = vadd.xlane.f32.xlu0 %v8903
  %v8935 = vpop.xlane.xlu0 %8934
  %8936 = vadd.xlane.f32.xlu0 %v8905
  %v8937 = vpop.xlane.xlu0 %8936
  %8938 = vadd.xlane.f32.xlu0 %v8907
  %v8939 = vpop.xlane.xlu0 %8938
  %8940 = vadd.xlane.f32.xlu0 %v8909
  %v8941 = vpop.xlane.xlu0 %8940
  %8942 = vadd.xlane.f32.xlu0 %v8911
  %v8943 = vpop.xlane.xlu0 %8942
  %8944 = vadd.xlane.f32.xlu0 %v8913
  %v8945 = vpop.xlane.xlu0 %8944
  %8946 = vadd.xlane.f32.xlu0 %v8915
  %v8947 = vpop.xlane.xlu0 %8946
  %8948 = vadd.xlane.f32.xlu0 %v8917
  %v8949 = vpop.xlane.xlu0 %8948
  %8950 = vadd.xlane.f32.xlu0 %v8919
  %v8951 = vpop.xlane.xlu0 %8950
  %8952 = vadd.xlane.f32.xlu0 %v8921
  %v8953 = vpop.xlane.xlu0 %8952
  %8954 = vadd.xlane.f32.xlu0 %v8923
  %v8955 = vpop.xlane.xlu0 %8954
  %8956 = vadd.xlane.f32.xlu0 %v8925
  %v8957 = vpop.xlane.xlu0 %8956
  %8958 = vadd.xlane.f32.xlu0 %v8927
  %v8959 = vpop.xlane.xlu0 %8958
  %8960 = vadd.xlane.f32.xlu0 %v8929
  %v8961 = vpop.xlane.xlu0 %8960
  %8962 = vmatprep.subr.mxu0 0.0
  %8963 = vmatpush1.msra.mxu0 %v8398
  %8964 = vmatprep.subr.mxu0 0.0
  %8965 = vmatpush1.msra.mxu0 %v8403
  %8966 = vmatprep.subr.mxu0 0.0
  %8967 = vmatpush1.msra.mxu0 %v8408
  %8968 = vmatprep.subr.mxu0 0.0
  %8969 = vmatpush1.msra.mxu0 %v8413
  %8970 = vmatprep.subr.mxu0 0.0
  %8971 = vmatpush1.msra.mxu0 %v8418
  %8972 = vmatprep.subr.mxu0 0.0
  %8973 = vmatpush1.msra.mxu0 %v8423
  %8974 = vmatprep.subr.mxu0 0.0
  %8975 = vmatpush1.msra.mxu0 %v8428
  %8976 = vmatprep.subr.mxu0 0.0
  %8977 = vmatpush1.msra.mxu0 %v8433
  %8978 = vmatprep.subr.mxu0 0.0
  %8979 = vmatpush1.msra.mxu0 %v8438
  %8980 = vmatprep.subr.mxu0 0.0
  %8981 = vmatpush1.msra.mxu0 %v8443
  %8982 = vmatprep.subr.mxu0 0.0
  %8983 = vmatpush1.msra.mxu0 %v8448
  %8984 = vmatprep.subr.mxu0 0.0
  %8985 = vmatpush1.msra.mxu0 %v8453
  %8986 = vmatprep.subr.mxu0 0.0
  %8987 = vmatpush1.msra.mxu0 %v8458
  %8988 = vmatprep.subr.mxu0 0.0
  %8989 = vmatpush1.msra.mxu0 %v8463
  %8990 = vmatprep.subr.mxu0 0.0
  %8991 = vmatpush1.msra.mxu0 %v8468
  %8992 = vmatprep.subr.mxu0 0.0
  %8993 = vmatpush1.msra.mxu0 %v8473
  %8994 = vmatprep.subr.mxu0 0.0
  %8995 = vmatpush1.msra.mxu0 0.0
  %8996 = vmatprep.subr.mxu0 0.0
  %8997 = vmatpush1.msra.mxu0 0.0
  %8998 = vmatprep.subr.mxu0 0.0
  %8999 = vmatpush1.msra.mxu0 0.0
  %9000 = vmatprep.subr.mxu0 0.0
  %9001 = vmatpush1.msra.mxu0 0.0
  %9002 = vmatprep.subr.mxu0 0.0
  %9003 = vmatpush1.msra.mxu0 0.0
  %9004 = vmatprep.subr.mxu0 0.0
  %9005 = vmatpush1.msra.mxu0 0.0
  %9006 = vmatprep.subr.mxu0 0.0
  %9007 = vmatpush1.msra.mxu0 0.0
  %9008 = vmatprep.subr.mxu0 0.0
  %9009 = vmatpush1.msra.mxu0 0.0
  %9010 = vmatprep.subr.mxu0 0.0
  %9011 = vmatpush1.msra.mxu0 0.0
  %9012 = vmatprep.subr.mxu0 0.0
  %9013 = vmatpush1.msra.mxu0 0.0
  %9014 = vmatprep.subr.mxu0 0.0
  %9015 = vmatpush1.msra.mxu0 0.0
  %9016 = vmatprep.subr.mxu0 0.0
  %9017 = vmatpush1.msra.mxu0 0.0
  %9018 = vmatprep.subr.mxu0 0.0
  %9019 = vmatpush1.msra.mxu0 0.0
  %9020 = vmatprep.subr.mxu0 0.0
  %9021 = vmatpush1.msra.mxu0 0.0
  %9022 = vmatprep.subr.mxu0 0.0
  %9023 = vmatpush1.msra.mxu0 0.0
  %9024 = vmatprep.subr.mxu0 0.0
  %9025 = vmatpush1.msra.mxu0 0.0
  %9026 = vmatprep.mubr.f32.mxu0 0.0
  %9027 = vmatmul.mubr.f32.gmra.mrb[0].mxu0 %v8899
  %v9028 = vpop.f32.mrb[0].mxu0
  %v9029 = vadd.f32 0.0, %v9028
  %v9030 = vpop.f32.mrb[0].mxu0
  %9031 = vmatprep.mubr.f32.mxu0 0.0
  %9032 = vmatmul.mubr.f32.gmra.mrb[0].mxu0 %v8901
  %v9033 = vpop.f32.mrb[0].mxu0
  %v9034 = vadd.f32 0.0, %v9033
  %v9035 = vpop.f32.mrb[0].mxu0
  %9036 = vmatprep.mubr.f32.mxu0 0.0
  %9037 = vmatmul.mubr.f32.gmra.mrb[0].mxu0 %v8903
  %v9038 = vpop.f32.mrb[0].mxu0
  %v9039 = vadd.f32 0.0, %v9038
  %v9040 = vpop.f32.mrb[0].mxu0
  %9041 = vmatprep.mubr.f32.mxu0 0.0
  %9042 = vmatmul.mubr.f32.gmra.mrb[0].mxu0 %v8905
  %v9043 = vpop.f32.mrb[0].mxu0
  %v9044 = vadd.f32 0.0, %v9043
  %v9045 = vpop.f32.mrb[0].mxu0
  %9046 = vmatprep.mubr.f32.mxu0 0.0
  %9047 = vmatmul.mubr.f32.gmra.mrb[0].mxu0 %v8907
  %v9048 = vpop.f32.mrb[0].mxu0
  %v9049 = vadd.f32 0.0, %v9048
  %v9050 = vpop.f32.mrb[0].mxu0
  %9051 = vmatprep.mubr.f32.mxu0 0.0
  %9052 = vmatmul.mubr.f32.gmra.mrb[0].mxu0 %v8909
  %v9053 = vpop.f32.mrb[0].mxu0
  %v9054 = vadd.f32 0.0, %v9053
  %v9055 = vpop.f32.mrb[0].mxu0
  %9056 = vmatprep.mubr.f32.mxu0 0.0
  %9057 = vmatmul.mubr.f32.gmra.mrb[0].mxu0 %v8911
  %v9058 = vpop.f32.mrb[0].mxu0
  %v9059 = vadd.f32 0.0, %v9058
  %v9060 = vpop.f32.mrb[0].mxu0
  %9061 = vmatprep.mubr.f32.mxu0 0.0
  %9062 = vmatmul.mubr.f32.gmra.mrb[0].mxu0 %v8913
  %v9063 = vpop.f32.mrb[0].mxu0
  %v9064 = vadd.f32 0.0, %v9063
  %v9065 = vpop.f32.mrb[0].mxu0
  %9066 = vmatprep.mubr.f32.mxu0 0.0
  %9067 = vmatmul.mubr.f32.gmra.mrb[0].mxu0 %v8915
  %v9068 = vpop.f32.mrb[0].mxu0
  %v9069 = vadd.f32 0.0, %v9068
  %v9070 = vpop.f32.mrb[0].mxu0
  %9071 = vmatprep.mubr.f32.mxu0 0.0
  %9072 = vmatmul.mubr.f32.gmra.mrb[0].mxu0 %v8917
  %v9073 = vpop.f32.mrb[0].mxu0
  %v9074 = vadd.f32 0.0, %v9073
  %v9075 = vpop.f32.mrb[0].mxu0
  %9076 = vmatprep.mubr.f32.mxu0 0.0
  %9077 = vmatmul.mubr.f32.gmra.mrb[0].mxu0 %v8919
  %v9078 = vpop.f32.mrb[0].mxu0
  %v9079 = vadd.f32 0.0, %v9078
  %v9080 = vpop.f32.mrb[0].mxu0
  %9081 = vmatprep.mubr.f32.mxu0 0.0
  %9082 = vmatmul.mubr.f32.gmra.mrb[0].mxu0 %v8921
  %v9083 = vpop.f32.mrb[0].mxu0
  %v9084 = vadd.f32 0.0, %v9083
  %v9085 = vpop.f32.mrb[0].mxu0
  %9086 = vmatprep.mubr.f32.mxu0 0.0
  %9087 = vmatmul.mubr.f32.gmra.mrb[0].mxu0 %v8923
  %v9088 = vpop.f32.mrb[0].mxu0
  %v9089 = vadd.f32 0.0, %v9088
  %v9090 = vpop.f32.mrb[0].mxu0
  %9091 = vmatprep.mubr.f32.mxu0 0.0
  %9092 = vmatmul.mubr.f32.gmra.mrb[0].mxu0 %v8925
  %v9093 = vpop.f32.mrb[0].mxu0
  %v9094 = vadd.f32 0.0, %v9093
  %v9095 = vpop.f32.mrb[0].mxu0
  %9096 = vmatprep.mubr.f32.mxu0 0.0
  %9097 = vmatmul.mubr.f32.gmra.mrb[0].mxu0 %v8927
  %v9098 = vpop.f32.mrb[0].mxu0
  %v9099 = vadd.f32 0.0, %v9098
  %v9100 = vpop.f32.mrb[0].mxu0
  %9101 = vmatprep.mubr.f32.mxu0 0.0
  %9102 = vmatmul.mubr.f32.gmra.mrb[0].mxu0 %v8929
  %v9103 = vpop.f32.mrb[0].mxu0
  %v9104 = vadd.f32 0.0, %v9103
  %v9105 = vpop.f32.mrb[0].mxu0
  %9106 = vdwg.mxu0
  %v9107 = vrcp.pop %v8931
  %v9108 = vrcp.pop %v8933
  %v9109 = vrcp.pop %v8935
  %v9110 = vrcp.pop %v8937
  %v9111 = vrcp.pop %v8939
  %v9112 = vrcp.pop %v8941
  %v9113 = vrcp.pop %v8943
  %v9114 = vrcp.pop %v8945
  %v9115 = vrcp.pop %v8947
  %v9116 = vrcp.pop %v8949
  %v9117 = vrcp.pop %v8951
  %v9118 = vrcp.pop %v8953
  %v9119 = vrcp.pop %v8955
  %v9120 = vrcp.pop %v8957
  %v9121 = vrcp.pop %v8959
  %v9122 = vrcp.pop %v8961
  %v9123 = vmul.f32 %v9029, %v9107
  %v9124 = vmul.f32 %v9034, %v9108
  %v9125 = vmul.f32 %v9039, %v9109
  %v9126 = vmul.f32 %v9044, %v9110
  %v9127 = vmul.f32 %v9049, %v9111
  %v9128 = vmul.f32 %v9054, %v9112
  %v9129 = vmul.f32 %v9059, %v9113
  %v9130 = vmul.f32 %v9064, %v9114
  %v9131 = vmul.f32 %v9069, %v9115
  %v9132 = vmul.f32 %v9074, %v9116
  %v9133 = vmul.f32 %v9079, %v9117
  %v9134 = vmul.f32 %v9084, %v9118
  %v9135 = vmul.f32 %v9089, %v9119
  %v9136 = vmul.f32 %v9094, %v9120
  %v9137 = vmul.f32 %v9099, %v9121
  %v9138 = vmul.f32 %v9104, %v9122
  %v9140 = vlaneseq
  %v9141 = vshrl.u32 %v9140, 7
  %v9142 = vsub.s32 0, %v9141
  %v9143 = vrot.slane %v8330, %v9142
  %v9145 = vadd.f32 %v9123, %v9143
  %v9146 = vadd.f32 %v9124, %v9143
  %v9147 = vadd.f32 %v9125, %v9143
  %v9148 = vadd.f32 %v9126, %v9143
  %v9149 = vadd.f32 %v9127, %v9143
  %v9150 = vadd.f32 %v9128, %v9143
  %v9151 = vadd.f32 %v9129, %v9143
  %v9152 = vadd.f32 %v9130, %v9143
  %v9153 = vadd.f32 %v9131, %v9143
  %v9154 = vadd.f32 %v9132, %v9143
  %v9155 = vadd.f32 %v9133, %v9143
  %v9156 = vadd.f32 %v9134, %v9143
  %v9157 = vadd.f32 %v9135, %v9143
  %v9158 = vadd.f32 %v9136, %v9143
  %v9159 = vadd.f32 %v9137, %v9143
  %v9160 = vadd.f32 %v9138, %v9143
  %9161 = vst.msk [vmem:[%s23] sm:$0xff] %vm8476, %v9145
  %9162 = vst.msk [vmem:[%s23 + $0x8] sm:$0xff] %vm8476, %v9146
  %9163 = vst.msk [vmem:[%s23 + $0x10] sm:$0xff] %vm8476, %v9147
  %9164 = vst.msk [vmem:[%s23 + $0x18] sm:$0xff] %vm8476, %v9148
  %9165 = vst.msk [vmem:[%s23 + $0x20] sm:$0xff] %vm8476, %v9149
  %9166 = vst.msk [vmem:[%s23 + $0x28] sm:$0xff] %vm8476, %v9150
  %9167 = vst.msk [vmem:[%s23 + $0x30] sm:$0xff] %vm8476, %v9151
  %9168 = vst.msk [vmem:[%s23 + $0x38] sm:$0xff] %vm8476, %v9152
  %9169 = vst.msk [vmem:[%s23 + $0x40] sm:$0xff] %vm8476, %v9153
  %9170 = vst.msk [vmem:[%s23 + $0x48] sm:$0xff] %vm8476, %v9154
  %9171 = vst.msk [vmem:[%s23 + $0x50] sm:$0xff] %vm8476, %v9155
  %9172 = vst.msk [vmem:[%s23 + $0x58] sm:$0xff] %vm8476, %v9156
  %9173 = vst.msk [vmem:[%s23 + $0x60] sm:$0xff] %vm8476, %v9157
  %9174 = vst.msk [vmem:[%s23 + $0x68] sm:$0xff] %vm8476, %v9158
  %9175 = vst.msk [vmem:[%s23 + $0x70] sm:$0xff] %vm8476, %v9159
  %9176 = vst.msk [vmem:[%s23 + $0x78] sm:$0xff] %vm8476, %v9160
  // Predicated region
  $region94: #{gat_forward.1} parent=0 // pred_check
    _
  $region95: #{gat_forward.1} parent=0 // pred_check_branch
    %9178 = sbr.rel (0) target = $region97
  $region96: #{gat_forward.1} parent=0 // pred_region
    _
  $region97: #{gat_forward.1} parent=0 // pred_fallthru
    _
  // Predicated region
  $region98: #{gat_forward.1} parent=0 // pred_check
    _
  $region99: #{gat_forward.1} parent=0 // pred_check_branch
    %9180 = sbr.rel (0) target = $region101
  $region100: #{gat_forward.1} parent=0 // pred_region
    _
  $region101: #{gat_forward.1} parent=0 // pred_fallthru
    _

</llo_original>
